<compile_context>
chip_gen: v7x
topology: tpu7x:2x2x1
jax: 0.10.0
libtpu: 0.0.40
codegen_flags: <defaults>
</compile_context>

<pallas_src>
import functools

import jax
import jax.numpy as jnp
from jax.experimental import pallas as pl
from jax.experimental.pallas import tpu as pltpu

BN_EPS = 1e-5


# ----------------------------------------------------------------------------
# Single fused kernel: cv1 (1x1+BN+SiLU) -> multi-scale depthwise (+BN+SiLU)
#                      -> conv1x1 on cat([x1,x2]) (+BN+SiLU) -> + shortcut
# ----------------------------------------------------------------------------
def _msga_kernel(*refs, H, W, pad, kshort, add):
    if add:
        (xp_ref, w_cv1_ref, b_cv1_ref, w_dw1_ref, b_dw1_ref,
         w_ct_ref, w_cb_ref, b_c_ref,
         w_dws_ref, b_dws_ref, w_sc_ref, b_sc_ref, o_ref) = refs
    else:
        (xp_ref, w_cv1_ref, b_cv1_ref, w_dw1_ref, b_dw1_ref,
         w_ct_ref, w_cb_ref, b_c_ref, o_ref) = refs

    xp = xp_ref[0]                                   # (Hp, Wp, C1) f32 (zero padded)
    Hp, Wp, C1 = xp.shape
    K = 2 * pad + 1                                  # unified depthwise kernel size
    min_ch = w_cv1_ref.shape[1]

    # ---- cv1: 1x1 conv + folded BN + SiLU (MXU, bf16 operands, f32 accumulate) ----
    z1 = jnp.dot(xp.reshape(Hp * Wp, C1).astype(jnp.bfloat16), w_cv1_ref[...],
                 preferred_element_type=jnp.float32) + b_cv1_ref[...]
    x1f = (z1 * jax.nn.sigmoid(z1)).reshape(Hp, Wp, min_ch)

    # Zero the halo ring so the depthwise stage sees a properly zero-padded x1
    # (conv-of-zero-input + BN bias + SiLU is not zero).
    r = jax.lax.broadcasted_iota(jnp.int32, (Hp, Wp, min_ch), 0)
    c = jax.lax.broadcasted_iota(jnp.int32, (Hp, Wp, min_ch), 1)
    inside = (r >= pad) & (r < pad + H) & (c >= pad) & (c < pad + W)
    x1p = jnp.where(inside, x1f, 0.0)

    # ---- multi-scale depthwise (k=3 / k=5 halves unified as one KxK) + BN + SiLU ----
    w_dw1 = w_dw1_ref[...]                           # (K*K, min_ch), BN scale folded
    acc = jnp.zeros((H, W, min_ch), jnp.float32)
    for kh in range(K):
        for kw in range(K):
            t = kh * K + kw
            acc = acc + x1p[kh:kh + H, kw:kw + W, :] * w_dw1[t:t + 1, :]
    acc = acc + b_dw1_ref[...]
    x2 = acc * jax.nn.sigmoid(acc)                   # SiLU

    # ---- conv1x1 on cat([x1, x2]) via split-weight matmul + BN + SiLU ----
    x1_in = x1p[pad:pad + H, pad:pad + W, :].reshape(H * W, min_ch)
    z = (jnp.dot(x1_in.astype(jnp.bfloat16), w_ct_ref[...],
                 preferred_element_type=jnp.float32)
         + jnp.dot(x2.reshape(H * W, min_ch).astype(jnp.bfloat16), w_cb_ref[...],
                   preferred_element_type=jnp.float32)
         + b_c_ref[...])
    out = z * jax.nn.sigmoid(z)                      # SiLU

    # ---- shortcut branch ----
    if add:
        # DWConv(c1, c1, kshort) + BN (no act) -> Conv(c1, c2, 1) + BN (no act)
        off = pad - kshort // 2
        w_dws = w_dws_ref[...]                       # (kshort*kshort, C1)
        sacc = jnp.zeros((H, W, C1), jnp.float32)
        for kh in range(kshort):
            for kw in range(kshort):
                t = kh * kshort + kw
                sacc = sacc + (xp[off + kh:off + kh + H, off + kw:off + kw + W, :]
                               * w_dws[t:t + 1, :])
        sacc = sacc + b_dws_ref[...]
        short = jnp.dot(sacc.reshape(H * W, C1).astype(jnp.bfloat16), w_sc_ref[...],
                        preferred_element_type=jnp.float32) + b_sc_ref[...]
        out = out + short
    else:
        # Identity shortcut (c1 == c2)
        out = out + xp[pad:pad + H, pad:pad + W, :].reshape(H * W, C1)

    o_ref[0] = out.reshape(H, W, out.shape[-1])


# ----------------------------------------------------------------------------
# Forward wrapper (NCHW in / NCHW out)
# ----------------------------------------------------------------------------
def msga_conv_forward(x_nchw, p, add, *, kernels=(3, 5), k=3, s=1):
    # TODO(synk): stride-2 variant (cv1 = 3x3/s2 conv, strided shortcut) not implemented.
    assert s == 1
    N, C1, H, W = x_nchw.shape
    c2 = p["b_c"].shape[1]
    pad = max(kernels) // 2
    assert k // 2 <= pad
    assert W % 8 == 0, "W must be a multiple of 8 for layout-trivial reshapes"

    x = jnp.transpose(x_nchw, (0, 2, 3, 1)).astype(jnp.float32)   # NHWC
    Hp = H + 2 * pad
    Wp = ((W + 2 * pad + 7) // 8) * 8          # round sublane dim up to a multiple of 8
    xp = jnp.pad(x, ((0, 0), (pad, Hp - H - pad), (pad, Wp - W - pad), (0, 0)))

    in_arrays = [xp, p["w_cv1"], p["b_cv1"], p["w_dw1"], p["b_dw1"],
                 p["w_ct"], p["w_cb"], p["b_c"]]
    in_specs = [
        pl.BlockSpec((1, Hp, Wp, C1), lambda n: (n, 0, 0, 0)),
        pl.BlockSpec(p["w_cv1"].shape, lambda n: (0, 0)),
        pl.BlockSpec(p["b_cv1"].shape, lambda n: (0, 0)),
        pl.BlockSpec(p["w_dw1"].shape, lambda n: (0, 0)),
        pl.BlockSpec(p["b_dw1"].shape, lambda n: (0, 0)),
        pl.BlockSpec(p["w_ct"].shape, lambda n: (0, 0)),
        pl.BlockSpec(p["w_cb"].shape, lambda n: (0, 0)),
        pl.BlockSpec(p["b_c"].shape, lambda n: (0, 0)),
    ]
    if add:
        in_arrays += [p["w_dws"], p["b_dws"], p["w_sc"], p["b_sc"]]
        in_specs += [pl.BlockSpec(p["w_dws"].shape, lambda n: (0, 0)),
                     pl.BlockSpec(p["b_dws"].shape, lambda n: (0, 0)),
                     pl.BlockSpec(p["w_sc"].shape, lambda n: (0, 0)),
                     pl.BlockSpec(p["b_sc"].shape, lambda n: (0, 0))]

    kernel = functools.partial(_msga_kernel, H=H, W=W, pad=pad, kshort=k, add=add)
    out = pl.pallas_call(
        kernel,
        out_shape=jax.ShapeDtypeStruct((N, H, W, c2), jnp.float32),
        grid=(N,),
        in_specs=in_specs,
        out_specs=pl.BlockSpec((1, H, W, c2), lambda n: (n, 0, 0, 0)),
        compiler_params=pltpu.CompilerParams(
            dimension_semantics=("parallel",),
            vmem_limit_bytes=32 * 1024 * 1024),
    )(*in_arrays)
    return jnp.transpose(out, (0, 3, 1, 2))          # back to NCHW


# ----------------------------------------------------------------------------
# Deterministic synthetic parameters (eval-mode BatchNorm folded into weights)
# ----------------------------------------------------------------------------
def make_params(c1, c2, kernels, key, k=3):
    min_ch = c2 // 2
    g = len(kernels)
    assert min_ch % g == 0
    ch = min_ch // g
    kmax = max(kernels)
    K2 = kmax * kmax
    keys = iter(jax.random.split(key, 64))

    def randn(shape, scale=0.2):
        return scale * jax.random.normal(next(keys), shape, jnp.float32)

    def bn(n):
        gamma = 1.0 + randn((n,), 0.1)
        beta = randn((n,), 0.1)
        mean = randn((n,), 0.1)
        var = 1.0 + 0.1 * jnp.abs(jax.random.normal(next(keys), (n,), jnp.float32))
        scale = gamma / jnp.sqrt(var + BN_EPS)
        return scale, beta - mean * scale

    p = {}

    # cv1: 1x1 conv (c1 -> min_ch) + BN + SiLU
    w = randn((min_ch, c1), 0.2)
    sc, bi = bn(min_ch)
    p["w_cv1"] = (w.T * sc[None, :]).astype(jnp.bfloat16)        # (c1, min_ch)
    p["b_cv1"] = bi.reshape(1, min_ch)

    # multi-scale depthwise convs (one per group), unified into a kmax x kmax kernel
    w_dw = jnp.zeros((K2, min_ch), jnp.float32)
    b_dw = jnp.zeros((min_ch,), jnp.float32)
    for i, ks in enumerate(kernels):
        wdi = randn((ch, ks, ks), 0.3)                           # depthwise (ch,1,ks,ks)
        sc, bi = bn(ch)
        wdi = wdi * sc[:, None, None]
        off = (kmax - ks) // 2
        full = jnp.zeros((ch, kmax, kmax), jnp.float32)
        full = full.at[:, off:off + ks, off:off + ks].set(wdi)
        w_dw = w_dw.at[:, i * ch:(i + 1) * ch].set(
            full.transpose(1, 2, 0).reshape(K2, ch))
        b_dw = b_dw.at[i * ch:(i + 1) * ch].set(bi)
    p["w_dw1"] = w_dw                                            # (kmax*kmax, min_ch)
    p["b_dw1"] = b_dw.reshape(1, min_ch)

    # conv1x1: c2 -> c2 + BN + SiLU, split into rows for the x1 / x2 halves of the cat
    w = randn((c2, c2), 0.2)
    sc, bi = bn(c2)
    w_eff = w.T * sc[None, :]
    p["w_ct"] = w_eff[:min_ch].astype(jnp.bfloat16)              # (min_ch, c2)
    p["w_cb"] = w_eff[min_ch:].astype(jnp.bfloat16)              # (min_ch, c2)
    p["b_c"] = bi.reshape(1, c2)

    add = (c1 != c2)
    if add:
        # shortcut = DWConv(c1, c1, k, act=False) -> Conv(c1, c2, 1, act=False)
        wd = randn((c1, k, k), 0.3)
        sc, bi = bn(c1)
        wd = wd * sc[:, None, None]
        p["w_dws"] = wd.transpose(1, 2, 0).reshape(k * k, c1)    # (k*k, c1)
        p["b_dws"] = bi.reshape(1, c1)
        w = randn((c2, c1), 0.2)
        sc, bi = bn(c2)
        p["w_sc"] = (w.T * sc[None, :]).astype(jnp.bfloat16)     # (c1, c2)
        p["b_sc"] = bi.reshape(1, c2)
    return p, add


if __name__ == "__main__":
    key = jax.random.PRNGKey(0)
    kx, kp = jax.random.split(key)

    N, C1, C2, H, W = 2, 64, 128, 16, 16
    KERNELS = (3, 5)
    K_SHORT = 3

    x = jax.random.normal(kx, (N, C1, H, W), jnp.float32)
    params, add = make_params(C1, C2, KERNELS, kp, k=K_SHORT)

    fwd = jax.jit(lambda a: msga_conv_forward(a, params, add,
                                              kernels=KERNELS, k=K_SHORT, s=1))
    out = jax.block_until_ready(fwd(x))
    assert out.shape == (N, C2, H, W)
    assert bool(jnp.all(jnp.isfinite(out)))
    print("KERNEL_OK")
</pallas_src>

<mosaic_0001>
module attributes {stable_mosaic.version = 11 : i64} {
  func.func @_msga_kernel(%arg0: i32, %arg1: memref<1x20x24x64xf32, #tpu.memory_space<vmem>>, %arg2: memref<64x64xbf16, #tpu.memory_space<vmem>>, %arg3: memref<1x64xf32, #tpu.memory_space<vmem>>, %arg4: memref<25x64xf32, #tpu.memory_space<vmem>>, %arg5: memref<1x64xf32, #tpu.memory_space<vmem>>, %arg6: memref<64x128xbf16, #tpu.memory_space<vmem>>, %arg7: memref<64x128xbf16, #tpu.memory_space<vmem>>, %arg8: memref<1x128xf32, #tpu.memory_space<vmem>>, %arg9: memref<9x64xf32, #tpu.memory_space<vmem>>, %arg10: memref<1x64xf32, #tpu.memory_space<vmem>>, %arg11: memref<64x128xbf16, #tpu.memory_space<vmem>>, %arg12: memref<1x128xf32, #tpu.memory_space<vmem>>, %arg13: memref<1x16x16x128xf32, #tpu.memory_space<vmem>>) attributes {dimension_semantics = [#tpu.dimension_semantics<parallel>], iteration_bounds = array<i64: 2>, scalar_prefetch = 0 : i64, scratch_operands = 0 : i64, tpu.core_type = #tpu.core_type<tc>, window_params = [{transform_indices = @transform_0, window_bounds = array<i64: 1, 20, 24, 64>}, {pipeline_mode = #tpu.pipeline_mode<synchronous>, transform_indices = @transform_1, window_bounds = array<i64: 64, 64>}, {pipeline_mode = #tpu.pipeline_mode<synchronous>, transform_indices = @transform_2, window_bounds = array<i64: 1, 64>}, {pipeline_mode = #tpu.pipeline_mode<synchronous>, transform_indices = @transform_3, window_bounds = array<i64: 25, 64>}, {pipeline_mode = #tpu.pipeline_mode<synchronous>, transform_indices = @transform_4, window_bounds = array<i64: 1, 64>}, {pipeline_mode = #tpu.pipeline_mode<synchronous>, transform_indices = @transform_5, window_bounds = array<i64: 64, 128>}, {pipeline_mode = #tpu.pipeline_mode<synchronous>, transform_indices = @transform_6, window_bounds = array<i64: 64, 128>}, {pipeline_mode = #tpu.pipeline_mode<synchronous>, transform_indices = @transform_7, window_bounds = array<i64: 1, 128>}, {pipeline_mode = #tpu.pipeline_mode<synchronous>, transform_indices = @transform_8, window_bounds = array<i64: 9, 64>}, {pipeline_mode = #tpu.pipeline_mode<synchronous>, transform_indices = @transform_9, window_bounds = array<i64: 1, 64>}, {pipeline_mode = #tpu.pipeline_mode<synchronous>, transform_indices = @transform_10, window_bounds = array<i64: 64, 128>}, {pipeline_mode = #tpu.pipeline_mode<synchronous>, transform_indices = @transform_11, window_bounds = array<i64: 1, 128>}, {transform_indices = @transform_12, window_bounds = array<i64: 1, 16, 16, 128>}]} {
    %c0 = arith.constant 0 : index
    %c0_0 = arith.constant 0 : index
    %c0_1 = arith.constant 0 : index
    %c0_2 = arith.constant 0 : index
    %0 = vector.load %arg1[%c0, %c0_0, %c0_1, %c0_2] : memref<1x20x24x64xf32, #tpu.memory_space<vmem>>, vector<1x20x24x64xf32>
    %1 = vector.shape_cast %0 : vector<1x20x24x64xf32> to vector<20x24x64xf32>
    %2 = vector.shape_cast %1 : vector<20x24x64xf32> to vector<480x64xf32>
    %3 = arith.truncf %2 : vector<480x64xf32> to vector<480x64xbf16>
    %c0_3 = arith.constant 0 : index
    %c0_4 = arith.constant 0 : index
    %4 = vector.load %arg2[%c0_3, %c0_4] : memref<64x64xbf16, #tpu.memory_space<vmem>>, vector<64x64xbf16>
    %cst = arith.constant dense<0.000000e+00> : vector<480x64xf32>
    %5 = tpu.matmul %3, %4, %cst {dimension_numbers = #tpu.dot_dimension_numbers<[1], [0], [0], [1], [0, 0, 1, 1], [], []>} : vector<480x64xbf16>, vector<64x64xbf16>, vector<480x64xf32> -> vector<480x64xf32>
    %c0_5 = arith.constant 0 : index
    %c0_6 = arith.constant 0 : index
    %6 = vector.load %arg3[%c0_5, %c0_6] : memref<1x64xf32, #tpu.memory_space<vmem>>, vector<1x64xf32>
    %7 = vector.broadcast %6 : vector<1x64xf32> to vector<480x64xf32>
    %8 = arith.addf %5, %7 : vector<480x64xf32>
    %9 = arith.negf %8 : vector<480x64xf32>
    %10 = math.exp %9 : vector<480x64xf32>
    %cst_7 = arith.constant 1.000000e+00 : f32
    %11 = vector.broadcast %cst_7 : f32 to vector<480x64xf32>
    %12 = arith.addf %11, %10 : vector<480x64xf32>
    %13 = arith.divf %11, %12 : vector<480x64xf32>
    %14 = arith.mulf %8, %13 : vector<480x64xf32>
    %15 = vector.shape_cast %14 : vector<480x64xf32> to vector<20x24x64xf32>
    %16 = tpu.iota {dimensions = array<i32: 0>} : vector<20x24x64xi32>
    %17 = tpu.iota {dimensions = array<i32: 1>} : vector<20x24x64xi32>
    %c2_i32 = arith.constant 2 : i32
    %18 = vector.broadcast %c2_i32 : i32 to vector<20x24x64xi32>
    %19 = arith.cmpi sge, %16, %18 : vector<20x24x64xi32>
    %c18_i32 = arith.constant 18 : i32
    %20 = vector.broadcast %c18_i32 : i32 to vector<20x24x64xi32>
    %21 = arith.cmpi slt, %16, %20 : vector<20x24x64xi32>
    %22 = arith.andi %19, %21 : vector<20x24x64xi1>
    %c2_i32_8 = arith.constant 2 : i32
    %23 = vector.broadcast %c2_i32_8 : i32 to vector<20x24x64xi32>
    %24 = arith.cmpi sge, %17, %23 : vector<20x24x64xi32>
    %25 = arith.andi %22, %24 : vector<20x24x64xi1>
    %c18_i32_9 = arith.constant 18 : i32
    %26 = vector.broadcast %c18_i32_9 : i32 to vector<20x24x64xi32>
    %27 = arith.cmpi slt, %17, %26 : vector<20x24x64xi32>
    %28 = arith.andi %25, %27 : vector<20x24x64xi1>
    %cst_10 = arith.constant 0.000000e+00 : f32
    %29 = vector.broadcast %cst_10 : f32 to vector<20x24x64xf32>
    %30 = arith.select %28, %15, %29 : vector<20x24x64xi1>, vector<20x24x64xf32>
    %c0_11 = arith.constant 0 : index
    %c0_12 = arith.constant 0 : index
    %31 = vector.load %arg4[%c0_11, %c0_12] : memref<25x64xf32, #tpu.memory_space<vmem>>, vector<25x64xf32>
    %cst_13 = arith.constant 0.000000e+00 : f32
    %32 = vector.broadcast %cst_13 : f32 to vector<16x16x64xf32>
    %33 = vector.extract_strided_slice %30 {offsets = [0, 0, 0], sizes = [16, 16, 64], strides = [1, 1, 1]} : vector<20x24x64xf32> to vector<16x16x64xf32>
    %34 = vector.extract_strided_slice %31 {offsets = [0, 0], sizes = [1, 64], strides = [1, 1]} : vector<25x64xf32> to vector<1x64xf32>
    %35 = vector.shape_cast %34 : vector<1x64xf32> to vector<1x1x64xf32>
    %36 = vector.broadcast %35 : vector<1x1x64xf32> to vector<16x16x64xf32>
    %37 = arith.mulf %33, %36 : vector<16x16x64xf32>
    %38 = arith.addf %32, %37 : vector<16x16x64xf32>
    %39 = vector.extract_strided_slice %30 {offsets = [0, 1, 0], sizes = [16, 16, 64], strides = [1, 1, 1]} : vector<20x24x64xf32> to vector<16x16x64xf32>
    %40 = vector.extract_strided_slice %31 {offsets = [1, 0], sizes = [1, 64], strides = [1, 1]} : vector<25x64xf32> to vector<1x64xf32>
    %41 = vector.shape_cast %40 : vector<1x64xf32> to vector<1x1x64xf32>
    %42 = vector.broadcast %41 : vector<1x1x64xf32> to vector<16x16x64xf32>
    %43 = arith.mulf %39, %42 : vector<16x16x64xf32>
    %44 = arith.addf %38, %43 : vector<16x16x64xf32>
    %45 = vector.extract_strided_slice %30 {offsets = [0, 2, 0], sizes = [16, 16, 64], strides = [1, 1, 1]} : vector<20x24x64xf32> to vector<16x16x64xf32>
    %46 = vector.extract_strided_slice %31 {offsets = [2, 0], sizes = [1, 64], strides = [1, 1]} : vector<25x64xf32> to vector<1x64xf32>
    %47 = vector.shape_cast %46 : vector<1x64xf32> to vector<1x1x64xf32>
    %48 = vector.broadcast %47 : vector<1x1x64xf32> to vector<16x16x64xf32>
    %49 = arith.mulf %45, %48 : vector<16x16x64xf32>
    %50 = arith.addf %44, %49 : vector<16x16x64xf32>
    %51 = vector.extract_strided_slice %30 {offsets = [0, 3, 0], sizes = [16, 16, 64], strides = [1, 1, 1]} : vector<20x24x64xf32> to vector<16x16x64xf32>
    %52 = vector.extract_strided_slice %31 {offsets = [3, 0], sizes = [1, 64], strides = [1, 1]} : vector<25x64xf32> to vector<1x64xf32>
    %53 = vector.shape_cast %52 : vector<1x64xf32> to vector<1x1x64xf32>
    %54 = vector.broadcast %53 : vector<1x1x64xf32> to vector<16x16x64xf32>
    %55 = arith.mulf %51, %54 : vector<16x16x64xf32>
    %56 = arith.addf %50, %55 : vector<16x16x64xf32>
    %57 = vector.extract_strided_slice %30 {offsets = [0, 4, 0], sizes = [16, 16, 64], strides = [1, 1, 1]} : vector<20x24x64xf32> to vector<16x16x64xf32>
    %58 = vector.extract_strided_slice %31 {offsets = [4, 0], sizes = [1, 64], strides = [1, 1]} : vector<25x64xf32> to vector<1x64xf32>
    %59 = vector.shape_cast %58 : vector<1x64xf32> to vector<1x1x64xf32>
    %60 = vector.broadcast %59 : vector<1x1x64xf32> to vector<16x16x64xf32>
    %61 = arith.mulf %57, %60 : vector<16x16x64xf32>
    %62 = arith.addf %56, %61 : vector<16x16x64xf32>
    %63 = vector.extract_strided_slice %30 {offsets = [1, 0, 0], sizes = [16, 16, 64], strides = [1, 1, 1]} : vector<20x24x64xf32> to vector<16x16x64xf32>
    %64 = vector.extract_strided_slice %31 {offsets = [5, 0], sizes = [1, 64], strides = [1, 1]} : vector<25x64xf32> to vector<1x64xf32>
    %65 = vector.shape_cast %64 : vector<1x64xf32> to vector<1x1x64xf32>
    %66 = vector.broadcast %65 : vector<1x1x64xf32> to vector<16x16x64xf32>
    %67 = arith.mulf %63, %66 : vector<16x16x64xf32>
    %68 = arith.addf %62, %67 : vector<16x16x64xf32>
    %69 = vector.extract_strided_slice %30 {offsets = [1, 1, 0], sizes = [16, 16, 64], strides = [1, 1, 1]} : vector<20x24x64xf32> to vector<16x16x64xf32>
    %70 = vector.extract_strided_slice %31 {offsets = [6, 0], sizes = [1, 64], strides = [1, 1]} : vector<25x64xf32> to vector<1x64xf32>
    %71 = vector.shape_cast %70 : vector<1x64xf32> to vector<1x1x64xf32>
    %72 = vector.broadcast %71 : vector<1x1x64xf32> to vector<16x16x64xf32>
    %73 = arith.mulf %69, %72 : vector<16x16x64xf32>
    %74 = arith.addf %68, %73 : vector<16x16x64xf32>
    %75 = vector.extract_strided_slice %30 {offsets = [1, 2, 0], sizes = [16, 16, 64], strides = [1, 1, 1]} : vector<20x24x64xf32> to vector<16x16x64xf32>
    %76 = vector.extract_strided_slice %31 {offsets = [7, 0], sizes = [1, 64], strides = [1, 1]} : vector<25x64xf32> to vector<1x64xf32>
    %77 = vector.shape_cast %76 : vector<1x64xf32> to vector<1x1x64xf32>
    %78 = vector.broadcast %77 : vector<1x1x64xf32> to vector<16x16x64xf32>
    %79 = arith.mulf %75, %78 : vector<16x16x64xf32>
    %80 = arith.addf %74, %79 : vector<16x16x64xf32>
    %81 = vector.extract_strided_slice %30 {offsets = [1, 3, 0], sizes = [16, 16, 64], strides = [1, 1, 1]} : vector<20x24x64xf32> to vector<16x16x64xf32>
    %82 = vector.extract_strided_slice %31 {offsets = [8, 0], sizes = [1, 64], strides = [1, 1]} : vector<25x64xf32> to vector<1x64xf32>
    %83 = vector.shape_cast %82 : vector<1x64xf32> to vector<1x1x64xf32>
    %84 = vector.broadcast %83 : vector<1x1x64xf32> to vector<16x16x64xf32>
    %85 = arith.mulf %81, %84 : vector<16x16x64xf32>
    %86 = arith.addf %80, %85 : vector<16x16x64xf32>
    %87 = vector.extract_strided_slice %30 {offsets = [1, 4, 0], sizes = [16, 16, 64], strides = [1, 1, 1]} : vector<20x24x64xf32> to vector<16x16x64xf32>
    %88 = vector.extract_strided_slice %31 {offsets = [9, 0], sizes = [1, 64], strides = [1, 1]} : vector<25x64xf32> to vector<1x64xf32>
    %89 = vector.shape_cast %88 : vector<1x64xf32> to vector<1x1x64xf32>
    %90 = vector.broadcast %89 : vector<1x1x64xf32> to vector<16x16x64xf32>
    %91 = arith.mulf %87, %90 : vector<16x16x64xf32>
    %92 = arith.addf %86, %91 : vector<16x16x64xf32>
    %93 = vector.extract_strided_slice %30 {offsets = [2, 0, 0], sizes = [16, 16, 64], strides = [1, 1, 1]} : vector<20x24x64xf32> to vector<16x16x64xf32>
    %94 = vector.extract_strided_slice %31 {offsets = [10, 0], sizes = [1, 64], strides = [1, 1]} : vector<25x64xf32> to vector<1x64xf32>
    %95 = vector.shape_cast %94 : vector<1x64xf32> to vector<1x1x64xf32>
    %96 = vector.broadcast %95 : vector<1x1x64xf32> to vector<16x16x64xf32>
    %97 = arith.mulf %93, %96 : vector<16x16x64xf32>
    %98 = arith.addf %92, %97 : vector<16x16x64xf32>
    %99 = vector.extract_strided_slice %30 {offsets = [2, 1, 0], sizes = [16, 16, 64], strides = [1, 1, 1]} : vector<20x24x64xf32> to vector<16x16x64xf32>
    %100 = vector.extract_strided_slice %31 {offsets = [11, 0], sizes = [1, 64], strides = [1, 1]} : vector<25x64xf32> to vector<1x64xf32>
    %101 = vector.shape_cast %100 : vector<1x64xf32> to vector<1x1x64xf32>
    %102 = vector.broadcast %101 : vector<1x1x64xf32> to vector<16x16x64xf32>
    %103 = arith.mulf %99, %102 : vector<16x16x64xf32>
    %104 = arith.addf %98, %103 : vector<16x16x64xf32>
    %105 = vector.extract_strided_slice %30 {offsets = [2, 2, 0], sizes = [16, 16, 64], strides = [1, 1, 1]} : vector<20x24x64xf32> to vector<16x16x64xf32>
    %106 = vector.extract_strided_slice %31 {offsets = [12, 0], sizes = [1, 64], strides = [1, 1]} : vector<25x64xf32> to vector<1x64xf32>
    %107 = vector.shape_cast %106 : vector<1x64xf32> to vector<1x1x64xf32>
    %108 = vector.broadcast %107 : vector<1x1x64xf32> to vector<16x16x64xf32>
    %109 = arith.mulf %105, %108 : vector<16x16x64xf32>
    %110 = arith.addf %104, %109 : vector<16x16x64xf32>
    %111 = vector.extract_strided_slice %30 {offsets = [2, 3, 0], sizes = [16, 16, 64], strides = [1, 1, 1]} : vector<20x24x64xf32> to vector<16x16x64xf32>
    %112 = vector.extract_strided_slice %31 {offsets = [13, 0], sizes = [1, 64], strides = [1, 1]} : vector<25x64xf32> to vector<1x64xf32>
    %113 = vector.shape_cast %112 : vector<1x64xf32> to vector<1x1x64xf32>
    %114 = vector.broadcast %113 : vector<1x1x64xf32> to vector<16x16x64xf32>
    %115 = arith.mulf %111, %114 : vector<16x16x64xf32>
    %116 = arith.addf %110, %115 : vector<16x16x64xf32>
    %117 = vector.extract_strided_slice %30 {offsets = [2, 4, 0], sizes = [16, 16, 64], strides = [1, 1, 1]} : vector<20x24x64xf32> to vector<16x16x64xf32>
    %118 = vector.extract_strided_slice %31 {offsets = [14, 0], sizes = [1, 64], strides = [1, 1]} : vector<25x64xf32> to vector<1x64xf32>
    %119 = vector.shape_cast %118 : vector<1x64xf32> to vector<1x1x64xf32>
    %120 = vector.broadcast %119 : vector<1x1x64xf32> to vector<16x16x64xf32>
    %121 = arith.mulf %117, %120 : vector<16x16x64xf32>
    %122 = arith.addf %116, %121 : vector<16x16x64xf32>
    %123 = vector.extract_strided_slice %30 {offsets = [3, 0, 0], sizes = [16, 16, 64], strides = [1, 1, 1]} : vector<20x24x64xf32> to vector<16x16x64xf32>
    %124 = vector.extract_strided_slice %31 {offsets = [15, 0], sizes = [1, 64], strides = [1, 1]} : vector<25x64xf32> to vector<1x64xf32>
    %125 = vector.shape_cast %124 : vector<1x64xf32> to vector<1x1x64xf32>
    %126 = vector.broadcast %125 : vector<1x1x64xf32> to vector<16x16x64xf32>
    %127 = arith.mulf %123, %126 : vector<16x16x64xf32>
    %128 = arith.addf %122, %127 : vector<16x16x64xf32>
    %129 = vector.extract_strided_slice %30 {offsets = [3, 1, 0], sizes = [16, 16, 64], strides = [1, 1, 1]} : vector<20x24x64xf32> to vector<16x16x64xf32>
    %130 = vector.extract_strided_slice %31 {offsets = [16, 0], sizes = [1, 64], strides = [1, 1]} : vector<25x64xf32> to vector<1x64xf32>
    %131 = vector.shape_cast %130 : vector<1x64xf32> to vector<1x1x64xf32>
    %132 = vector.broadcast %131 : vector<1x1x64xf32> to vector<16x16x64xf32>
    %133 = arith.mulf %129, %132 : vector<16x16x64xf32>
    %134 = arith.addf %128, %133 : vector<16x16x64xf32>
    %135 = vector.extract_strided_slice %30 {offsets = [3, 2, 0], sizes = [16, 16, 64], strides = [1, 1, 1]} : vector<20x24x64xf32> to vector<16x16x64xf32>
    %136 = vector.extract_strided_slice %31 {offsets = [17, 0], sizes = [1, 64], strides = [1, 1]} : vector<25x64xf32> to vector<1x64xf32>
    %137 = vector.shape_cast %136 : vector<1x64xf32> to vector<1x1x64xf32>
    %138 = vector.broadcast %137 : vector<1x1x64xf32> to vector<16x16x64xf32>
    %139 = arith.mulf %135, %138 : vector<16x16x64xf32>
    %140 = arith.addf %134, %139 : vector<16x16x64xf32>
    %141 = vector.extract_strided_slice %30 {offsets = [3, 3, 0], sizes = [16, 16, 64], strides = [1, 1, 1]} : vector<20x24x64xf32> to vector<16x16x64xf32>
    %142 = vector.extract_strided_slice %31 {offsets = [18, 0], sizes = [1, 64], strides = [1, 1]} : vector<25x64xf32> to vector<1x64xf32>
    %143 = vector.shape_cast %142 : vector<1x64xf32> to vector<1x1x64xf32>
    %144 = vector.broadcast %143 : vector<1x1x64xf32> to vector<16x16x64xf32>
    %145 = arith.mulf %141, %144 : vector<16x16x64xf32>
    %146 = arith.addf %140, %145 : vector<16x16x64xf32>
    %147 = vector.extract_strided_slice %30 {offsets = [3, 4, 0], sizes = [16, 16, 64], strides = [1, 1, 1]} : vector<20x24x64xf32> to vector<16x16x64xf32>
    %148 = vector.extract_strided_slice %31 {offsets = [19, 0], sizes = [1, 64], strides = [1, 1]} : vector<25x64xf32> to vector<1x64xf32>
    %149 = vector.shape_cast %148 : vector<1x64xf32> to vector<1x1x64xf32>
    %150 = vector.broadcast %149 : vector<1x1x64xf32> to vector<16x16x64xf32>
    %151 = arith.mulf %147, %150 : vector<16x16x64xf32>
    %152 = arith.addf %146, %151 : vector<16x16x64xf32>
    %153 = vector.extract_strided_slice %30 {offsets = [4, 0, 0], sizes = [16, 16, 64], strides = [1, 1, 1]} : vector<20x24x64xf32> to vector<16x16x64xf32>
    %154 = vector.extract_strided_slice %31 {offsets = [20, 0], sizes = [1, 64], strides = [1, 1]} : vector<25x64xf32> to vector<1x64xf32>
    %155 = vector.shape_cast %154 : vector<1x64xf32> to vector<1x1x64xf32>
    %156 = vector.broadcast %155 : vector<1x1x64xf32> to vector<16x16x64xf32>
    %157 = arith.mulf %153, %156 : vector<16x16x64xf32>
    %158 = arith.addf %152, %157 : vector<16x16x64xf32>
    %159 = vector.extract_strided_slice %30 {offsets = [4, 1, 0], sizes = [16, 16, 64], strides = [1, 1, 1]} : vector<20x24x64xf32> to vector<16x16x64xf32>
    %160 = vector.extract_strided_slice %31 {offsets = [21, 0], sizes = [1, 64], strides = [1, 1]} : vector<25x64xf32> to vector<1x64xf32>
    %161 = vector.shape_cast %160 : vector<1x64xf32> to vector<1x1x64xf32>
    %162 = vector.broadcast %161 : vector<1x1x64xf32> to vector<16x16x64xf32>
    %163 = arith.mulf %159, %162 : vector<16x16x64xf32>
    %164 = arith.addf %158, %163 : vector<16x16x64xf32>
    %165 = vector.extract_strided_slice %30 {offsets = [4, 2, 0], sizes = [16, 16, 64], strides = [1, 1, 1]} : vector<20x24x64xf32> to vector<16x16x64xf32>
    %166 = vector.extract_strided_slice %31 {offsets = [22, 0], sizes = [1, 64], strides = [1, 1]} : vector<25x64xf32> to vector<1x64xf32>
    %167 = vector.shape_cast %166 : vector<1x64xf32> to vector<1x1x64xf32>
    %168 = vector.broadcast %167 : vector<1x1x64xf32> to vector<16x16x64xf32>
    %169 = arith.mulf %165, %168 : vector<16x16x64xf32>
    %170 = arith.addf %164, %169 : vector<16x16x64xf32>
    %171 = vector.extract_strided_slice %30 {offsets = [4, 3, 0], sizes = [16, 16, 64], strides = [1, 1, 1]} : vector<20x24x64xf32> to vector<16x16x64xf32>
    %172 = vector.extract_strided_slice %31 {offsets = [23, 0], sizes = [1, 64], strides = [1, 1]} : vector<25x64xf32> to vector<1x64xf32>
    %173 = vector.shape_cast %172 : vector<1x64xf32> to vector<1x1x64xf32>
    %174 = vector.broadcast %173 : vector<1x1x64xf32> to vector<16x16x64xf32>
    %175 = arith.mulf %171, %174 : vector<16x16x64xf32>
    %176 = arith.addf %170, %175 : vector<16x16x64xf32>
    %177 = vector.extract_strided_slice %30 {offsets = [4, 4, 0], sizes = [16, 16, 64], strides = [1, 1, 1]} : vector<20x24x64xf32> to vector<16x16x64xf32>
    %178 = vector.extract_strided_slice %31 {offsets = [24, 0], sizes = [1, 64], strides = [1, 1]} : vector<25x64xf32> to vector<1x64xf32>
    %179 = vector.shape_cast %178 : vector<1x64xf32> to vector<1x1x64xf32>
    %180 = vector.broadcast %179 : vector<1x1x64xf32> to vector<16x16x64xf32>
    %181 = arith.mulf %177, %180 : vector<16x16x64xf32>
    %182 = arith.addf %176, %181 : vector<16x16x64xf32>
    %c0_14 = arith.constant 0 : index
    %c0_15 = arith.constant 0 : index
    %183 = vector.load %arg5[%c0_14, %c0_15] : memref<1x64xf32, #tpu.memory_space<vmem>>, vector<1x64xf32>
    %184 = vector.shape_cast %183 : vector<1x64xf32> to vector<1x1x64xf32>
    %185 = vector.broadcast %184 : vector<1x1x64xf32> to vector<16x16x64xf32>
    %186 = arith.addf %182, %185 : vector<16x16x64xf32>
    %187 = arith.negf %186 : vector<16x16x64xf32>
    %188 = math.exp %187 : vector<16x16x64xf32>
    %cst_16 = arith.constant 1.000000e+00 : f32
    %189 = vector.broadcast %cst_16 : f32 to vector<16x16x64xf32>
    %190 = arith.addf %189, %188 : vector<16x16x64xf32>
    %191 = arith.divf %189, %190 : vector<16x16x64xf32>
    %192 = arith.mulf %186, %191 : vector<16x16x64xf32>
    %193 = vector.extract_strided_slice %30 {offsets = [2, 2, 0], sizes = [16, 16, 64], strides = [1, 1, 1]} : vector<20x24x64xf32> to vector<16x16x64xf32>
    %194 = vector.shape_cast %193 : vector<16x16x64xf32> to vector<256x64xf32>
    %195 = arith.truncf %194 : vector<256x64xf32> to vector<256x64xbf16>
    %c0_17 = arith.constant 0 : index
    %c0_18 = arith.constant 0 : index
    %196 = vector.load %arg6[%c0_17, %c0_18] : memref<64x128xbf16, #tpu.memory_space<vmem>>, vector<64x128xbf16>
    %cst_19 = arith.constant dense<0.000000e+00> : vector<256x128xf32>
    %197 = tpu.matmul %195, %196, %cst_19 {dimension_numbers = #tpu.dot_dimension_numbers<[1], [0], [0], [1], [0, 0, 1, 1], [], []>} : vector<256x64xbf16>, vector<64x128xbf16>, vector<256x128xf32> -> vector<256x128xf32>
    %198 = vector.shape_cast %192 : vector<16x16x64xf32> to vector<256x64xf32>
    %199 = arith.truncf %198 : vector<256x64xf32> to vector<256x64xbf16>
    %c0_20 = arith.constant 0 : index
    %c0_21 = arith.constant 0 : index
    %200 = vector.load %arg7[%c0_20, %c0_21] : memref<64x128xbf16, #tpu.memory_space<vmem>>, vector<64x128xbf16>
    %cst_22 = arith.constant dense<0.000000e+00> : vector<256x128xf32>
    %201 = tpu.matmul %199, %200, %cst_22 {dimension_numbers = #tpu.dot_dimension_numbers<[1], [0], [0], [1], [0, 0, 1, 1], [], []>} : vector<256x64xbf16>, vector<64x128xbf16>, vector<256x128xf32> -> vector<256x128xf32>
    %202 = arith.addf %197, %201 : vector<256x128xf32>
    %c0_23 = arith.constant 0 : index
    %c0_24 = arith.constant 0 : index
    %203 = vector.load %arg8[%c0_23, %c0_24] : memref<1x128xf32, #tpu.memory_space<vmem>>, vector<1x128xf32>
    %204 = vector.broadcast %203 : vector<1x128xf32> to vector<256x128xf32>
    %205 = arith.addf %202, %204 : vector<256x128xf32>
    %206 = arith.negf %205 : vector<256x128xf32>
    %207 = math.exp %206 : vector<256x128xf32>
    %cst_25 = arith.constant 1.000000e+00 : f32
    %208 = vector.broadcast %cst_25 : f32 to vector<256x128xf32>
    %209 = arith.addf %208, %207 : vector<256x128xf32>
    %210 = arith.divf %208, %209 : vector<256x128xf32>
    %211 = arith.mulf %205, %210 : vector<256x128xf32>
    %c0_26 = arith.constant 0 : index
    %c0_27 = arith.constant 0 : index
    %212 = vector.load %arg9[%c0_26, %c0_27] : memref<9x64xf32, #tpu.memory_space<vmem>>, vector<9x64xf32>
    %cst_28 = arith.constant 0.000000e+00 : f32
    %213 = vector.broadcast %cst_28 : f32 to vector<16x16x64xf32>
    %214 = vector.extract_strided_slice %1 {offsets = [1, 1, 0], sizes = [16, 16, 64], strides = [1, 1, 1]} : vector<20x24x64xf32> to vector<16x16x64xf32>
    %215 = vector.extract_strided_slice %212 {offsets = [0, 0], sizes = [1, 64], strides = [1, 1]} : vector<9x64xf32> to vector<1x64xf32>
    %216 = vector.shape_cast %215 : vector<1x64xf32> to vector<1x1x64xf32>
    %217 = vector.broadcast %216 : vector<1x1x64xf32> to vector<16x16x64xf32>
    %218 = arith.mulf %214, %217 : vector<16x16x64xf32>
    %219 = arith.addf %213, %218 : vector<16x16x64xf32>
    %220 = vector.extract_strided_slice %1 {offsets = [1, 2, 0], sizes = [16, 16, 64], strides = [1, 1, 1]} : vector<20x24x64xf32> to vector<16x16x64xf32>
    %221 = vector.extract_strided_slice %212 {offsets = [1, 0], sizes = [1, 64], strides = [1, 1]} : vector<9x64xf32> to vector<1x64xf32>
    %222 = vector.shape_cast %221 : vector<1x64xf32> to vector<1x1x64xf32>
    %223 = vector.broadcast %222 : vector<1x1x64xf32> to vector<16x16x64xf32>
    %224 = arith.mulf %220, %223 : vector<16x16x64xf32>
    %225 = arith.addf %219, %224 : vector<16x16x64xf32>
    %226 = vector.extract_strided_slice %1 {offsets = [1, 3, 0], sizes = [16, 16, 64], strides = [1, 1, 1]} : vector<20x24x64xf32> to vector<16x16x64xf32>
    %227 = vector.extract_strided_slice %212 {offsets = [2, 0], sizes = [1, 64], strides = [1, 1]} : vector<9x64xf32> to vector<1x64xf32>
    %228 = vector.shape_cast %227 : vector<1x64xf32> to vector<1x1x64xf32>
    %229 = vector.broadcast %228 : vector<1x1x64xf32> to vector<16x16x64xf32>
    %230 = arith.mulf %226, %229 : vector<16x16x64xf32>
    %231 = arith.addf %225, %230 : vector<16x16x64xf32>
    %232 = vector.extract_strided_slice %1 {offsets = [2, 1, 0], sizes = [16, 16, 64], strides = [1, 1, 1]} : vector<20x24x64xf32> to vector<16x16x64xf32>
    %233 = vector.extract_strided_slice %212 {offsets = [3, 0], sizes = [1, 64], strides = [1, 1]} : vector<9x64xf32> to vector<1x64xf32>
    %234 = vector.shape_cast %233 : vector<1x64xf32> to vector<1x1x64xf32>
    %235 = vector.broadcast %234 : vector<1x1x64xf32> to vector<16x16x64xf32>
    %236 = arith.mulf %232, %235 : vector<16x16x64xf32>
    %237 = arith.addf %231, %236 : vector<16x16x64xf32>
    %238 = vector.extract_strided_slice %1 {offsets = [2, 2, 0], sizes = [16, 16, 64], strides = [1, 1, 1]} : vector<20x24x64xf32> to vector<16x16x64xf32>
    %239 = vector.extract_strided_slice %212 {offsets = [4, 0], sizes = [1, 64], strides = [1, 1]} : vector<9x64xf32> to vector<1x64xf32>
    %240 = vector.shape_cast %239 : vector<1x64xf32> to vector<1x1x64xf32>
    %241 = vector.broadcast %240 : vector<1x1x64xf32> to vector<16x16x64xf32>
    %242 = arith.mulf %238, %241 : vector<16x16x64xf32>
    %243 = arith.addf %237, %242 : vector<16x16x64xf32>
    %244 = vector.extract_strided_slice %1 {offsets = [2, 3, 0], sizes = [16, 16, 64], strides = [1, 1, 1]} : vector<20x24x64xf32> to vector<16x16x64xf32>
    %245 = vector.extract_strided_slice %212 {offsets = [5, 0], sizes = [1, 64], strides = [1, 1]} : vector<9x64xf32> to vector<1x64xf32>
    %246 = vector.shape_cast %245 : vector<1x64xf32> to vector<1x1x64xf32>
    %247 = vector.broadcast %246 : vector<1x1x64xf32> to vector<16x16x64xf32>
    %248 = arith.mulf %244, %247 : vector<16x16x64xf32>
    %249 = arith.addf %243, %248 : vector<16x16x64xf32>
    %250 = vector.extract_strided_slice %1 {offsets = [3, 1, 0], sizes = [16, 16, 64], strides = [1, 1, 1]} : vector<20x24x64xf32> to vector<16x16x64xf32>
    %251 = vector.extract_strided_slice %212 {offsets = [6, 0], sizes = [1, 64], strides = [1, 1]} : vector<9x64xf32> to vector<1x64xf32>
    %252 = vector.shape_cast %251 : vector<1x64xf32> to vector<1x1x64xf32>
    %253 = vector.broadcast %252 : vector<1x1x64xf32> to vector<16x16x64xf32>
    %254 = arith.mulf %250, %253 : vector<16x16x64xf32>
    %255 = arith.addf %249, %254 : vector<16x16x64xf32>
    %256 = vector.extract_strided_slice %1 {offsets = [3, 2, 0], sizes = [16, 16, 64], strides = [1, 1, 1]} : vector<20x24x64xf32> to vector<16x16x64xf32>
    %257 = vector.extract_strided_slice %212 {offsets = [7, 0], sizes = [1, 64], strides = [1, 1]} : vector<9x64xf32> to vector<1x64xf32>
    %258 = vector.shape_cast %257 : vector<1x64xf32> to vector<1x1x64xf32>
    %259 = vector.broadcast %258 : vector<1x1x64xf32> to vector<16x16x64xf32>
    %260 = arith.mulf %256, %259 : vector<16x16x64xf32>
    %261 = arith.addf %255, %260 : vector<16x16x64xf32>
    %262 = vector.extract_strided_slice %1 {offsets = [3, 3, 0], sizes = [16, 16, 64], strides = [1, 1, 1]} : vector<20x24x64xf32> to vector<16x16x64xf32>
    %263 = vector.extract_strided_slice %212 {offsets = [8, 0], sizes = [1, 64], strides = [1, 1]} : vector<9x64xf32> to vector<1x64xf32>
    %264 = vector.shape_cast %263 : vector<1x64xf32> to vector<1x1x64xf32>
    %265 = vector.broadcast %264 : vector<1x1x64xf32> to vector<16x16x64xf32>
    %266 = arith.mulf %262, %265 : vector<16x16x64xf32>
    %267 = arith.addf %261, %266 : vector<16x16x64xf32>
    %c0_29 = arith.constant 0 : index
    %c0_30 = arith.constant 0 : index
    %268 = vector.load %arg10[%c0_29, %c0_30] : memref<1x64xf32, #tpu.memory_space<vmem>>, vector<1x64xf32>
    %269 = vector.shape_cast %268 : vector<1x64xf32> to vector<1x1x64xf32>
    %270 = vector.broadcast %269 : vector<1x1x64xf32> to vector<16x16x64xf32>
    %271 = arith.addf %267, %270 : vector<16x16x64xf32>
    %272 = vector.shape_cast %271 : vector<16x16x64xf32> to vector<256x64xf32>
    %273 = arith.truncf %272 : vector<256x64xf32> to vector<256x64xbf16>
    %c0_31 = arith.constant 0 : index
    %c0_32 = arith.constant 0 : index
    %274 = vector.load %arg11[%c0_31, %c0_32] : memref<64x128xbf16, #tpu.memory_space<vmem>>, vector<64x128xbf16>
    %cst_33 = arith.constant dense<0.000000e+00> : vector<256x128xf32>
    %275 = tpu.matmul %273, %274, %cst_33 {dimension_numbers = #tpu.dot_dimension_numbers<[1], [0], [0], [1], [0, 0, 1, 1], [], []>} : vector<256x64xbf16>, vector<64x128xbf16>, vector<256x128xf32> -> vector<256x128xf32>
    %c0_34 = arith.constant 0 : index
    %c0_35 = arith.constant 0 : index
    %276 = vector.load %arg12[%c0_34, %c0_35] : memref<1x128xf32, #tpu.memory_space<vmem>>, vector<1x128xf32>
    %277 = vector.broadcast %276 : vector<1x128xf32> to vector<256x128xf32>
    %278 = arith.addf %275, %277 : vector<256x128xf32>
    %279 = arith.addf %211, %278 : vector<256x128xf32>
    %280 = vector.shape_cast %279 : vector<256x128xf32> to vector<16x16x128xf32>
    %c0_36 = arith.constant 0 : index
    %c0_37 = arith.constant 0 : index
    %c0_38 = arith.constant 0 : index
    %c0_39 = arith.constant 0 : index
    %281 = vector.load %arg13[%c0_36, %c0_37, %c0_38, %c0_39] : memref<1x16x16x128xf32, #tpu.memory_space<vmem>>, vector<1x16x16x128xf32>
    %282 = vector.shape_cast %281 : vector<1x16x16x128xf32> to vector<16x16x128xf32>
    %283 = vector.shape_cast %280 : vector<16x16x128xf32> to vector<1x16x16x128xf32>
    tpu.vector_store %arg13[%c0_36, %c0_37, %c0_38, %c0_39], %283 {strides = array<i32>} : memref<1x16x16x128xf32, #tpu.memory_space<vmem>>, vector<1x16x16x128xf32>,
    return
  }
  func.func @transform_0(%arg0: i32) -> (i32, i32, i32, i32) {
    %c0_i32 = arith.constant 0 : i32
    %c0_i32_0 = arith.constant 0 : i32
    %c0_i32_1 = arith.constant 0 : i32
    %c0_i32_2 = arith.constant 0 : i32
    return %arg0, %c0_i32, %c0_i32_0, %c0_i32_1 : i32, i32, i32, i32
  }
  func.func @transform_1(%arg0: i32) -> (i32, i32) {
    %c0_i32 = arith.constant 0 : i32
    %c0_i32_0 = arith.constant 0 : i32
    %c0_i32_1 = arith.constant 0 : i32
    return %c0_i32, %c0_i32_0 : i32, i32
  }
  func.func @transform_2(%arg0: i32) -> (i32, i32) {
    %c0_i32 = arith.constant 0 : i32
    %c0_i32_0 = arith.constant 0 : i32
    %c0_i32_1 = arith.constant 0 : i32
    return %c0_i32, %c0_i32_0 : i32, i32
  }
  func.func @transform_3(%arg0: i32) -> (i32, i32) {
    %c0_i32 = arith.constant 0 : i32
    %c0_i32_0 = arith.constant 0 : i32
    %c0_i32_1 = arith.constant 0 : i32
    return %c0_i32, %c0_i32_0 : i32, i32
  }
  func.func @transform_4(%arg0: i32) -> (i32, i32) {
    %c0_i32 = arith.constant 0 : i32
    %c0_i32_0 = arith.constant 0 : i32
    %c0_i32_1 = arith.constant 0 : i32
    return %c0_i32, %c0_i32_0 : i32, i32
  }
  func.func @transform_5(%arg0: i32) -> (i32, i32) {
    %c0_i32 = arith.constant 0 : i32
    %c0_i32_0 = arith.constant 0 : i32
    %c0_i32_1 = arith.constant 0 : i32
    return %c0_i32, %c0_i32_0 : i32, i32
  }
  func.func @transform_6(%arg0: i32) -> (i32, i32) {
    %c0_i32 = arith.constant 0 : i32
    %c0_i32_0 = arith.constant 0 : i32
    %c0_i32_1 = arith.constant 0 : i32
    return %c0_i32, %c0_i32_0 : i32, i32
  }
  func.func @transform_7(%arg0: i32) -> (i32, i32) {
    %c0_i32 = arith.constant 0 : i32
    %c0_i32_0 = arith.constant 0 : i32
    %c0_i32_1 = arith.constant 0 : i32
    return %c0_i32, %c0_i32_0 : i32, i32
  }
  func.func @transform_8(%arg0: i32) -> (i32, i32) {
    %c0_i32 = arith.constant 0 : i32
    %c0_i32_0 = arith.constant 0 : i32
    %c0_i32_1 = arith.constant 0 : i32
    return %c0_i32, %c0_i32_0 : i32, i32
  }
  func.func @transform_9(%arg0: i32) -> (i32, i32) {
    %c0_i32 = arith.constant 0 : i32
    %c0_i32_0 = arith.constant 0 : i32
    %c0_i32_1 = arith.constant 0 : i32
    return %c0_i32, %c0_i32_0 : i32, i32
  }
  func.func @transform_10(%arg0: i32) -> (i32, i32) {
    %c0_i32 = arith.constant 0 : i32
    %c0_i32_0 = arith.constant 0 : i32
    %c0_i32_1 = arith.constant 0 : i32
    return %c0_i32, %c0_i32_0 : i32, i32
  }
  func.func @transform_11(%arg0: i32) -> (i32, i32) {
    %c0_i32 = arith.constant 0 : i32
    %c0_i32_0 = arith.constant 0 : i32
    %c0_i32_1 = arith.constant 0 : i32
    return %c0_i32, %c0_i32_0 : i32, i32
  }
  func.func @transform_12(%arg0: i32) -> (i32, i32, i32, i32) {
    %c0_i32 = arith.constant 0 : i32
    %c0_i32_0 = arith.constant 0 : i32
    %c0_i32_1 = arith.constant 0 : i32
    %c0_i32_2 = arith.constant 0 : i32
    return %arg0, %c0_i32, %c0_i32_0, %c0_i32_1 : i32, i32, i32, i32
  }
}

</mosaic_0001>

<llo_original>
// kernel: _lambda_.1
$region0: #{_lambda_.1}
  #allocation0 [shape = 'u32[]', space=smem, size = 0x4, offset = 0x4, fixed_abs, tag = 'smem constant byte address 0x4 - core index']
  #allocation1 [shape = 'u32[144,128]{1,0:T(1,128)}', space=vmem, size = 0x12000, scoped, tag = 'internal scratch']
  %s0 = inlined_call_operand.vmem [shape: f32[2,20,24,64], index: 0, kind: input, shape index: {}]
  %s1 = inlined_call_operand.vmem [shape: bf16[64,64], index: 1, kind: input, shape index: {}]
  %s2 = inlined_call_operand.vmem [shape: f32[1,64], index: 2, kind: input, shape index: {}]
  %s3 = inlined_call_operand.vmem [shape: f32[25,64], index: 3, kind: input, shape index: {}]
  %s4 = inlined_call_operand.vmem [shape: f32[1,64], index: 4, kind: input, shape index: {}]
  %s5 = inlined_call_operand.vmem [shape: bf16[64,128], index: 5, kind: input, shape index: {}]
  %s6 = inlined_call_operand.vmem [shape: bf16[64,128], index: 6, kind: input, shape index: {}]
  %s7 = inlined_call_operand.vmem [shape: f32[1,128], index: 7, kind: input, shape index: {}]
  %s8 = inlined_call_operand.vmem [shape: f32[9,64], index: 8, kind: input, shape index: {}]
  %s9 = inlined_call_operand.vmem [shape: f32[1,64], index: 9, kind: input, shape index: {}]
  %s10 = inlined_call_operand.vmem [shape: bf16[64,128], index: 10, kind: input, shape index: {}]
  %s11 = inlined_call_operand.vmem [shape: f32[1,128], index: 11, kind: input, shape index: {}]
  %s12 = inlined_call_operand.hbm [shape: f32[2,16,16,128], index: 12, kind: output, shape index: {}]
  %s13 = sld [smem:[#allocation0]]
  $region81: #{_lambda_.1} parent=0
    _
  %s15 = ssub.s32 1, %s13
  %s16 = scalar_select 0, %s15, %s13
  $region1: #{_lambda_.1} parent=0
    #allocation2 [shape = 'u8[262144]{0}', space=vmem, size = 0x40000, scoped, tag = 'output window, operand 0']
    #allocation3 [shape = 's32[2]{0}', space=sflag, size = 0x8, scoped, tag = 'scoped memory for _lambda_.1']
    %17 = vsyncpa [#allocation3], 0
    %s18 = scalar_lea.sflag [#allocation3], 1
    %19 = vsyncpa %s18, 0
    loop: start=0, step=1, limit=4
    $region2: #{_lambda_.1} parent=1 // loop_pre_header
      _
    $region3: #{_lambda_.1} parent=1 // loop_header
      %s21 = sphi 0, %s25
      %p22 = scmp.ge.s32.totalorder %s21, 4
      %s31 = sphi 0, %s33
      %s34 = sphi 0, %s31
      %s35 = sphi 0, %s34
      %s51 = sphi 0, %s35
      %s55 = sphi 0, %s55
      %s57 = sphi 0, %s55
      %s58 = sphi 0, %s57
      %s72 = sphi 0, %s58
      %s76 = sphi 0, %s76
      %s78 = sphi 0, %s76
      %s79 = sphi 0, %s78
      %s93 = sphi 0, %s79
      %s97 = sphi 0, %s97
      %s99 = sphi 0, %s97
      %s100 = sphi 0, %s99
      %s114 = sphi 0, %s100
      %s118 = sphi 0, %s118
      %s120 = sphi 0, %s118
      %s121 = sphi 0, %s120
      %s135 = sphi 0, %s121
      %s139 = sphi 0, %s139
      %s141 = sphi 0, %s139
      %s142 = sphi 0, %s141
      %s156 = sphi 0, %s142
      %s160 = sphi 0, %s160
      %s162 = sphi 0, %s160
      %s163 = sphi 0, %s162
      %s177 = sphi 0, %s163
      %s181 = sphi 0, %s181
      %s183 = sphi 0, %s181
      %s184 = sphi 0, %s183
      %s198 = sphi 0, %s184
      %s202 = sphi 0, %s202
      %s204 = sphi 0, %s202
      %s205 = sphi 0, %s204
      %s219 = sphi 0, %s205
      %s223 = sphi 0, %s223
      %s225 = sphi 0, %s223
      %s226 = sphi 0, %s225
      %s240 = sphi 0, %s226
      %s244 = sphi 0, %s244
      %s246 = sphi 0, %s244
      %s247 = sphi 0, %s246
      %s261 = sphi 0, %s247
      %s265 = sphi 0, %s265
      %s267 = sphi 0, %s265
      %s268 = sphi 0, %s267
      %s282 = sphi 0, %s268
      %s288 = sphi 0, %s290
      %s291 = sphi 0, %s288
      %s292 = sphi 0, %s291
      %s308 = sphi 0, %s292
    $region4: #{_lambda_.1} parent=1 // loop_header_branch
      %24 = sbr.rel (%p22) target = $region8
    $region5: #{_lambda_.1} parent=1 // loop_body
      %s26 = ssub.s32 %s21, 1
      %s27 = ssub.s32 %s21, 2
      %s28 = sadd.s32 %s21, 1
      %s29 = ssub.s32 %s21, %s28
      %p30 = scmp.eq.s32.totalorder %s29, 0
      %s32 = sadd.s32 %s31, 1
      %s33 = scalar_select %p30, %s31, %s32
      %p36 = pneg %p30
      %p37 = scmp.eq.s32.totalorder %s21, 1
      %p38 = por %p36, %p37
      %p39 = scmp.ne.s32.totalorder %s31, %s34
      %p40 = scmp.eq.s32.totalorder %s21, 0
      %p41 = por %p39, %p40
      %p42 = scmp.ne.s32.totalorder %s31, %s34
      %p43 = scmp.eq.s32.totalorder %s26, 1
      %p44 = por %p42, %p43
      %p45 = scmp.ne.s32.totalorder %s34, %s35
      %p46 = scmp.eq.s32.totalorder %s26, 0
      %p47 = por %p45, %p46
      %p48 = scmp.ne.s32.totalorder %s34, %s35
      %p49 = scmp.eq.s32.totalorder %s27, 1
      %p50 = por %p48, %p49
      %p52 = scmp.ne.s32.totalorder %s35, %s51
      %p53 = scmp.eq.s32.totalorder %s27, 0
      %p54 = por %p52, %p53
      %s56 = sadd.s32 %s55, 1
      %p59 = scmp.eq.s32.totalorder %s21, 1
      %p60 = scmp.ne.s32.totalorder %s55, %s57
      %p61 = scmp.eq.s32.totalorder %s21, 0
      %p62 = por %p60, %p61
      %p63 = scmp.ne.s32.totalorder %s55, %s57
      %p64 = scmp.eq.s32.totalorder %s26, 1
      %p65 = por %p63, %p64
      %p66 = scmp.ne.s32.totalorder %s57, %s58
      %p67 = scmp.eq.s32.totalorder %s26, 0
      %p68 = por %p66, %p67
      %p69 = scmp.ne.s32.totalorder %s57, %s58
      %p70 = scmp.eq.s32.totalorder %s27, 1
      %p71 = por %p69, %p70
      %p73 = scmp.ne.s32.totalorder %s58, %s72
      %p74 = scmp.eq.s32.totalorder %s27, 0
      %p75 = por %p73, %p74
      %s77 = sadd.s32 %s76, 1
      %p80 = scmp.eq.s32.totalorder %s21, 1
      %p81 = scmp.ne.s32.totalorder %s76, %s78
      %p82 = scmp.eq.s32.totalorder %s21, 0
      %p83 = por %p81, %p82
      %p84 = scmp.ne.s32.totalorder %s76, %s78
      %p85 = scmp.eq.s32.totalorder %s26, 1
      %p86 = por %p84, %p85
      %p87 = scmp.ne.s32.totalorder %s78, %s79
      %p88 = scmp.eq.s32.totalorder %s26, 0
      %p89 = por %p87, %p88
      %p90 = scmp.ne.s32.totalorder %s78, %s79
      %p91 = scmp.eq.s32.totalorder %s27, 1
      %p92 = por %p90, %p91
      %p94 = scmp.ne.s32.totalorder %s79, %s93
      %p95 = scmp.eq.s32.totalorder %s27, 0
      %p96 = por %p94, %p95
      %s98 = sadd.s32 %s97, 1
      %p101 = scmp.eq.s32.totalorder %s21, 1
      %p102 = scmp.ne.s32.totalorder %s97, %s99
      %p103 = scmp.eq.s32.totalorder %s21, 0
      %p104 = por %p102, %p103
      %p105 = scmp.ne.s32.totalorder %s97, %s99
      %p106 = scmp.eq.s32.totalorder %s26, 1
      %p107 = por %p105, %p106
      %p108 = scmp.ne.s32.totalorder %s99, %s100
      %p109 = scmp.eq.s32.totalorder %s26, 0
      %p110 = por %p108, %p109
      %p111 = scmp.ne.s32.totalorder %s99, %s100
      %p112 = scmp.eq.s32.totalorder %s27, 1
      %p113 = por %p111, %p112
      %p115 = scmp.ne.s32.totalorder %s100, %s114
      %p116 = scmp.eq.s32.totalorder %s27, 0
      %p117 = por %p115, %p116
      %s119 = sadd.s32 %s118, 1
      %p122 = scmp.eq.s32.totalorder %s21, 1
      %p123 = scmp.ne.s32.totalorder %s118, %s120
      %p124 = scmp.eq.s32.totalorder %s21, 0
      %p125 = por %p123, %p124
      %p126 = scmp.ne.s32.totalorder %s118, %s120
      %p127 = scmp.eq.s32.totalorder %s26, 1
      %p128 = por %p126, %p127
      %p129 = scmp.ne.s32.totalorder %s120, %s121
      %p130 = scmp.eq.s32.totalorder %s26, 0
      %p131 = por %p129, %p130
      %p132 = scmp.ne.s32.totalorder %s120, %s121
      %p133 = scmp.eq.s32.totalorder %s27, 1
      %p134 = por %p132, %p133
      %p136 = scmp.ne.s32.totalorder %s121, %s135
      %p137 = scmp.eq.s32.totalorder %s27, 0
      %p138 = por %p136, %p137
      %s140 = sadd.s32 %s139, 1
      %p143 = scmp.eq.s32.totalorder %s21, 1
      %p144 = scmp.ne.s32.totalorder %s139, %s141
      %p145 = scmp.eq.s32.totalorder %s21, 0
      %p146 = por %p144, %p145
      %p147 = scmp.ne.s32.totalorder %s139, %s141
      %p148 = scmp.eq.s32.totalorder %s26, 1
      %p149 = por %p147, %p148
      %p150 = scmp.ne.s32.totalorder %s141, %s142
      %p151 = scmp.eq.s32.totalorder %s26, 0
      %p152 = por %p150, %p151
      %p153 = scmp.ne.s32.totalorder %s141, %s142
      %p154 = scmp.eq.s32.totalorder %s27, 1
      %p155 = por %p153, %p154
      %p157 = scmp.ne.s32.totalorder %s142, %s156
      %p158 = scmp.eq.s32.totalorder %s27, 0
      %p159 = por %p157, %p158
      %s161 = sadd.s32 %s160, 1
      %p164 = scmp.eq.s32.totalorder %s21, 1
      %p165 = scmp.ne.s32.totalorder %s160, %s162
      %p166 = scmp.eq.s32.totalorder %s21, 0
      %p167 = por %p165, %p166
      %p168 = scmp.ne.s32.totalorder %s160, %s162
      %p169 = scmp.eq.s32.totalorder %s26, 1
      %p170 = por %p168, %p169
      %p171 = scmp.ne.s32.totalorder %s162, %s163
      %p172 = scmp.eq.s32.totalorder %s26, 0
      %p173 = por %p171, %p172
      %p174 = scmp.ne.s32.totalorder %s162, %s163
      %p175 = scmp.eq.s32.totalorder %s27, 1
      %p176 = por %p174, %p175
      %p178 = scmp.ne.s32.totalorder %s163, %s177
      %p179 = scmp.eq.s32.totalorder %s27, 0
      %p180 = por %p178, %p179
      %s182 = sadd.s32 %s181, 1
      %p185 = scmp.eq.s32.totalorder %s21, 1
      %p186 = scmp.ne.s32.totalorder %s181, %s183
      %p187 = scmp.eq.s32.totalorder %s21, 0
      %p188 = por %p186, %p187
      %p189 = scmp.ne.s32.totalorder %s181, %s183
      %p190 = scmp.eq.s32.totalorder %s26, 1
      %p191 = por %p189, %p190
      %p192 = scmp.ne.s32.totalorder %s183, %s184
      %p193 = scmp.eq.s32.totalorder %s26, 0
      %p194 = por %p192, %p193
      %p195 = scmp.ne.s32.totalorder %s183, %s184
      %p196 = scmp.eq.s32.totalorder %s27, 1
      %p197 = por %p195, %p196
      %p199 = scmp.ne.s32.totalorder %s184, %s198
      %p200 = scmp.eq.s32.totalorder %s27, 0
      %p201 = por %p199, %p200
      %s203 = sadd.s32 %s202, 1
      %p206 = scmp.eq.s32.totalorder %s21, 1
      %p207 = scmp.ne.s32.totalorder %s202, %s204
      %p208 = scmp.eq.s32.totalorder %s21, 0
      %p209 = por %p207, %p208
      %p210 = scmp.ne.s32.totalorder %s202, %s204
      %p211 = scmp.eq.s32.totalorder %s26, 1
      %p212 = por %p210, %p211
      %p213 = scmp.ne.s32.totalorder %s204, %s205
      %p214 = scmp.eq.s32.totalorder %s26, 0
      %p215 = por %p213, %p214
      %p216 = scmp.ne.s32.totalorder %s204, %s205
      %p217 = scmp.eq.s32.totalorder %s27, 1
      %p218 = por %p216, %p217
      %p220 = scmp.ne.s32.totalorder %s205, %s219
      %p221 = scmp.eq.s32.totalorder %s27, 0
      %p222 = por %p220, %p221
      %s224 = sadd.s32 %s223, 1
      %p227 = scmp.eq.s32.totalorder %s21, 1
      %p228 = scmp.ne.s32.totalorder %s223, %s225
      %p229 = scmp.eq.s32.totalorder %s21, 0
      %p230 = por %p228, %p229
      %p231 = scmp.ne.s32.totalorder %s223, %s225
      %p232 = scmp.eq.s32.totalorder %s26, 1
      %p233 = por %p231, %p232
      %p234 = scmp.ne.s32.totalorder %s225, %s226
      %p235 = scmp.eq.s32.totalorder %s26, 0
      %p236 = por %p234, %p235
      %p237 = scmp.ne.s32.totalorder %s225, %s226
      %p238 = scmp.eq.s32.totalorder %s27, 1
      %p239 = por %p237, %p238
      %p241 = scmp.ne.s32.totalorder %s226, %s240
      %p242 = scmp.eq.s32.totalorder %s27, 0
      %p243 = por %p241, %p242
      %s245 = sadd.s32 %s244, 1
      %p248 = scmp.eq.s32.totalorder %s21, 1
      %p249 = scmp.ne.s32.totalorder %s244, %s246
      %p250 = scmp.eq.s32.totalorder %s21, 0
      %p251 = por %p249, %p250
      %p252 = scmp.ne.s32.totalorder %s244, %s246
      %p253 = scmp.eq.s32.totalorder %s26, 1
      %p254 = por %p252, %p253
      %p255 = scmp.ne.s32.totalorder %s246, %s247
      %p256 = scmp.eq.s32.totalorder %s26, 0
      %p257 = por %p255, %p256
      %p258 = scmp.ne.s32.totalorder %s246, %s247
      %p259 = scmp.eq.s32.totalorder %s27, 1
      %p260 = por %p258, %p259
      %p262 = scmp.ne.s32.totalorder %s247, %s261
      %p263 = scmp.eq.s32.totalorder %s27, 0
      %p264 = por %p262, %p263
      %s266 = sadd.s32 %s265, 1
      %p269 = scmp.eq.s32.totalorder %s21, 1
      %p270 = scmp.ne.s32.totalorder %s265, %s267
      %p271 = scmp.eq.s32.totalorder %s21, 0
      %p272 = por %p270, %p271
      %p273 = scmp.ne.s32.totalorder %s265, %s267
      %p274 = scmp.eq.s32.totalorder %s26, 1
      %p275 = por %p273, %p274
      %p276 = scmp.ne.s32.totalorder %s267, %s268
      %p277 = scmp.eq.s32.totalorder %s26, 0
      %p278 = por %p276, %p277
      %p279 = scmp.ne.s32.totalorder %s267, %s268
      %p280 = scmp.eq.s32.totalorder %s27, 1
      %p281 = por %p279, %p280
      %p283 = scmp.ne.s32.totalorder %s268, %s282
      %p284 = scmp.eq.s32.totalorder %s27, 0
      %p285 = por %p283, %p284
      %s286 = ssub.s32 %s21, %s28
      %p287 = scmp.eq.s32.totalorder %s286, 0
      %s289 = sadd.s32 %s288, 1
      %s290 = scalar_select %p287, %s288, %s289
      %p293 = pneg %p287
      %p294 = scmp.eq.s32.totalorder %s21, 1
      %p295 = por %p293, %p294
      %p296 = scmp.ne.s32.totalorder %s288, %s291
      %p297 = scmp.eq.s32.totalorder %s21, 0
      %p298 = por %p296, %p297
      %p299 = scmp.ne.s32.totalorder %s288, %s291
      %p300 = scmp.eq.s32.totalorder %s26, 1
      %p301 = por %p299, %p300
      %p302 = scmp.ne.s32.totalorder %s291, %s292
      %p303 = scmp.eq.s32.totalorder %s26, 0
      %p304 = por %p302, %p303
      %p305 = scmp.ne.s32.totalorder %s291, %s292
      %p306 = scmp.eq.s32.totalorder %s27, 1
      %p307 = por %p305, %p306
      %p309 = scmp.ne.s32.totalorder %s292, %s308
      %p310 = scmp.eq.s32.totalorder %s27, 0
      %p311 = por %p309, %p310
      %p312 = scmp.le.s32.totalorder 1, %s21
      %p313 = scmp.lt.s32.totalorder %s21, 3
      %p314 = pnand %p312, %p313
      %p315 = pneg %p314
      // Predicated region
      $region9: #{_lambda_.1} parent=5 // pred_check
        _
      $region10: #{_lambda_.1} parent=5 // pred_check_branch
        %317 = sbr.rel (%p314) target = $region12
      $region11: #{_lambda_.1} parent=5 // pred_region
        %s318 = ssub.s32 %s21, 1
        // Predicated region
        $region13: #{_lambda_.1} parent=11 // pred_check
          %p319 = pneg %p68
        $region14: #{_lambda_.1} parent=11 // pred_check_branch
          %321 = sbr.rel (%p319) target = $region16
        $region15: #{_lambda_.1} parent=11 // pred_region
          _
        $region16: #{_lambda_.1} parent=11 // pred_fallthru
          _
        // Predicated region
        $region17: #{_lambda_.1} parent=11 // pred_check
          %p322 = pneg %p89
        $region18: #{_lambda_.1} parent=11 // pred_check_branch
          %324 = sbr.rel (%p322) target = $region20
        $region19: #{_lambda_.1} parent=11 // pred_region
          _
        $region20: #{_lambda_.1} parent=11 // pred_fallthru
          _
        // Predicated region
        $region21: #{_lambda_.1} parent=11 // pred_check
          %p325 = pneg %p110
        $region22: #{_lambda_.1} parent=11 // pred_check_branch
          %327 = sbr.rel (%p325) target = $region24
        $region23: #{_lambda_.1} parent=11 // pred_region
          _
        $region24: #{_lambda_.1} parent=11 // pred_fallthru
          _
        // Predicated region
        $region25: #{_lambda_.1} parent=11 // pred_check
          %p328 = pneg %p131
        $region26: #{_lambda_.1} parent=11 // pred_check_branch
          %330 = sbr.rel (%p328) target = $region28
        $region27: #{_lambda_.1} parent=11 // pred_region
          _
        $region28: #{_lambda_.1} parent=11 // pred_fallthru
          _
        // Predicated region
        $region29: #{_lambda_.1} parent=11 // pred_check
          %p331 = pneg %p152
        $region30: #{_lambda_.1} parent=11 // pred_check_branch
          %333 = sbr.rel (%p331) target = $region32
        $region31: #{_lambda_.1} parent=11 // pred_region
          _
        $region32: #{_lambda_.1} parent=11 // pred_fallthru
          _
        // Predicated region
        $region33: #{_lambda_.1} parent=11 // pred_check
          %p334 = pneg %p173
        $region34: #{_lambda_.1} parent=11 // pred_check_branch
          %336 = sbr.rel (%p334) target = $region36
        $region35: #{_lambda_.1} parent=11 // pred_region
          _
        $region36: #{_lambda_.1} parent=11 // pred_fallthru
          _
        // Predicated region
        $region37: #{_lambda_.1} parent=11 // pred_check
          %p337 = pneg %p194
        $region38: #{_lambda_.1} parent=11 // pred_check_branch
          %339 = sbr.rel (%p337) target = $region40
        $region39: #{_lambda_.1} parent=11 // pred_region
          _
        $region40: #{_lambda_.1} parent=11 // pred_fallthru
          _
        // Predicated region
        $region41: #{_lambda_.1} parent=11 // pred_check
          %p340 = pneg %p215
        $region42: #{_lambda_.1} parent=11 // pred_check_branch
          %342 = sbr.rel (%p340) target = $region44
        $region43: #{_lambda_.1} parent=11 // pred_region
          _
        $region44: #{_lambda_.1} parent=11 // pred_fallthru
          _
        // Predicated region
        $region45: #{_lambda_.1} parent=11 // pred_check
          %p343 = pneg %p236
        $region46: #{_lambda_.1} parent=11 // pred_check_branch
          %345 = sbr.rel (%p343) target = $region48
        $region47: #{_lambda_.1} parent=11 // pred_region
          _
        $region48: #{_lambda_.1} parent=11 // pred_fallthru
          _
        // Predicated region
        $region49: #{_lambda_.1} parent=11 // pred_check
          %p346 = pneg %p257
        $region50: #{_lambda_.1} parent=11 // pred_check_branch
          %348 = sbr.rel (%p346) target = $region52
        $region51: #{_lambda_.1} parent=11 // pred_region
          _
        $region52: #{_lambda_.1} parent=11 // pred_fallthru
          _
        // Predicated region
        $region53: #{_lambda_.1} parent=11 // pred_check
          %p349 = pneg %p278
        $region54: #{_lambda_.1} parent=11 // pred_check_branch
          %351 = sbr.rel (%p349) target = $region56
        $region55: #{_lambda_.1} parent=11 // pred_region
          _
        $region56: #{_lambda_.1} parent=11 // pred_fallthru
          _
      $region12: #{_lambda_.1} parent=5 // pred_fallthru
        _
      %p352 = scmp.lt.s32.totalorder %s21, 2
      // Predicated region
      $region57: #{_lambda_.1} parent=5 // pred_check
        %p353 = pneg %p352
      $region58: #{_lambda_.1} parent=5 // pred_check_branch
        %355 = sbr.rel (%p353) target = $region60
      $region59: #{_lambda_.1} parent=5 // pred_region
        // Predicated region
        $region61: #{_lambda_.1} parent=59 // pred_check
          %p356 = pneg %p41
        $region62: #{_lambda_.1} parent=59 // pred_check_branch
          %358 = sbr.rel (%p356) target = $region64
        $region63: #{_lambda_.1} parent=59 // pred_region
          %p359 = scmp.lt.s32.totalorder %s21, 1
          %s360 = scalar_select %p359, %s21, 1
          %s361 = smul.addr %s360, 60
          %s362 = smul.addr %s361, 8
          %s363 = scalar_lea.vmem %s0, %s362
        $region64: #{_lambda_.1} parent=59 // pred_fallthru
          _
      $region60: #{_lambda_.1} parent=5 // pred_fallthru
        _
      %p364 = scmp.le.s32.totalorder 1, %s21
      %p365 = scmp.lt.s32.totalorder %s21, 3
      %p366 = pnand %p364, %p365
      %p367 = pneg %p366
      // Predicated region
      $region65: #{_lambda_.1} parent=5 // pred_check
        _
      $region66: #{_lambda_.1} parent=5 // pred_check_branch
        %369 = sbr.rel (%p366) target = $region68
      $region67: #{_lambda_.1} parent=5 // pred_region
        %s370 = ssub.s32 %s21, 1
        %p371 = scmp.lt.s32.totalorder %s26, 1
        %s372 = scalar_select %p371, %s26, 1
        %s373 = smul.addr %s372, 60
        %s374 = smul.addr %s373, 8
        %s375 = scalar_lea.vmem %s0, %s374
        %p376 = pneg %p47
        %p377 = pneg %p44
        %p378 = pneg %p68
        %p379 = pneg %p65
        %p380 = pneg %p89
        %p381 = pneg %p86
        %p382 = pneg %p110
        %p383 = pneg %p107
        %p384 = pneg %p131
        %p385 = pneg %p128
        %p386 = pneg %p152
        %p387 = pneg %p149
        %p388 = pneg %p173
        %p389 = pneg %p170
        %p390 = pneg %p194
        %p391 = pneg %p191
        %p392 = pneg %p215
        %p393 = pneg %p212
        %p394 = pneg %p236
        %p395 = pneg %p233
        %p396 = pneg %p257
        %p397 = pneg %p254
        %p398 = pneg %p278
        %p399 = pneg %p275
        %p400 = pneg %p304
        %p401 = pneg %p301
        %s402 = sand.u32 %s291, 1
        %s403 = scalar_lea.sflag [#allocation3], %s402
        %s404 = sand.u32 %s291, 1
        %s405 = smul.addr %s404, 256
        %s406 = scalar_lea.vmem [#allocation2], %s405
        %p407 = scmp.lt.s32.totalorder %s26, 1
        %s408 = scalar_select %p407, %s26, 1
        %s409 = smul.addr %s408, 60
        %s410 = smul.addr %s409, 8
        %s411 = scalar_lea.vmem %s0, %s410
        %v413 = vld [vmem:[%s411] sm:$0xff]
        %v414 = vld [vmem:[%s411 + $0x8] sm:$0xff]
        %v415 = vld [vmem:[%s411 + $0x10] sm:$0xff]
        %v416 = vld [vmem:[%s411 + $0x18] sm:$0xff]
        %v417 = vld [vmem:[%s411 + $0x20] sm:$0xff]
        %v418 = vld [vmem:[%s411 + $0x28] sm:$0xff]
        %v419 = vld [vmem:[%s411 + $0x30] sm:$0xff]
        %v420 = vld [vmem:[%s411 + $0x38] sm:$0xff]
        %v421 = vld [vmem:[%s411 + $0x40] sm:$0xff]
        %v422 = vld [vmem:[%s411 + $0x48] sm:$0xff]
        %v423 = vld [vmem:[%s411 + $0x50] sm:$0xff]
        %v424 = vld [vmem:[%s411 + $0x58] sm:$0xff]
        %v425 = vld [vmem:[%s411 + $0x60] sm:$0xff]
        %v426 = vld [vmem:[%s411 + $0x68] sm:$0xff]
        %v427 = vld [vmem:[%s411 + $0x70] sm:$0xff]
        %v428 = vld [vmem:[%s411 + $0x78] sm:$0xff]
        %v429 = vld [vmem:[%s411 + $0x80] sm:$0xff]
        %v430 = vld [vmem:[%s411 + $0x88] sm:$0xff]
        %v431 = vld [vmem:[%s411 + $0x90] sm:$0xff]
        %v432 = vld [vmem:[%s411 + $0x98] sm:$0xff]
        %v433 = vld [vmem:[%s411 + $0xa0] sm:$0xff]
        %v434 = vld [vmem:[%s411 + $0xa8] sm:$0xff]
        %v435 = vld [vmem:[%s411 + $0xb0] sm:$0xff]
        %v436 = vld [vmem:[%s411 + $0xb8] sm:$0xff]
        %v437 = vld [vmem:[%s411 + $0xc0] sm:$0xff]
        %v438 = vld [vmem:[%s411 + $0xc8] sm:$0xff]
        %v439 = vld [vmem:[%s411 + $0xd0] sm:$0xff]
        %v440 = vld [vmem:[%s411 + $0xd8] sm:$0xff]
        %v441 = vld [vmem:[%s411 + $0xe0] sm:$0xff]
        %v442 = vld [vmem:[%s411 + $0xe8] sm:$0xff]
        %v443 = vld [vmem:[%s411 + $0xf0] sm:$0xff]
        %v444 = vld [vmem:[%s411 + $0xf8] sm:$0xff]
        %v445 = vld [vmem:[%s411 + $0x100] sm:$0xff]
        %v446 = vld [vmem:[%s411 + $0x108] sm:$0xff]
        %v447 = vld [vmem:[%s411 + $0x110] sm:$0xff]
        %v448 = vld [vmem:[%s411 + $0x118] sm:$0xff]
        %v449 = vld [vmem:[%s411 + $0x120] sm:$0xff]
        %v450 = vld [vmem:[%s411 + $0x128] sm:$0xff]
        %v451 = vld [vmem:[%s411 + $0x130] sm:$0xff]
        %v452 = vld [vmem:[%s411 + $0x138] sm:$0xff]
        %v453 = vld [vmem:[%s411 + $0x140] sm:$0xff]
        %v454 = vld [vmem:[%s411 + $0x148] sm:$0xff]
        %v455 = vld [vmem:[%s411 + $0x150] sm:$0xff]
        %v456 = vld [vmem:[%s411 + $0x158] sm:$0xff]
        %v457 = vld [vmem:[%s411 + $0x160] sm:$0xff]
        %v458 = vld [vmem:[%s411 + $0x168] sm:$0xff]
        %v459 = vld [vmem:[%s411 + $0x170] sm:$0xff]
        %v460 = vld [vmem:[%s411 + $0x178] sm:$0xff]
        %v461 = vld [vmem:[%s411 + $0x180] sm:$0xff]
        %v462 = vld [vmem:[%s411 + $0x188] sm:$0xff]
        %v463 = vld [vmem:[%s411 + $0x190] sm:$0xff]
        %v464 = vld [vmem:[%s411 + $0x198] sm:$0xff]
        %v465 = vld [vmem:[%s411 + $0x1a0] sm:$0xff]
        %v466 = vld [vmem:[%s411 + $0x1a8] sm:$0xff]
        %v467 = vld [vmem:[%s411 + $0x1b0] sm:$0xff]
        %v468 = vld [vmem:[%s411 + $0x1b8] sm:$0xff]
        %v469 = vld [vmem:[%s411 + $0x1c0] sm:$0xff]
        %v470 = vld [vmem:[%s411 + $0x1c8] sm:$0xff]
        %v471 = vld [vmem:[%s411 + $0x1d0] sm:$0xff]
        %v472 = vld [vmem:[%s411 + $0x1d8] sm:$0xff]
        %v473 = vpack.c.bf16 %v414, %v413
        %v474 = vpack.c.bf16 %v416, %v415
        %v475 = vpack.c.bf16 %v418, %v417
        %v476 = vpack.c.bf16 %v420, %v419
        %v477 = vpack.c.bf16 %v422, %v421
        %v478 = vpack.c.bf16 %v424, %v423
        %v479 = vpack.c.bf16 %v426, %v425
        %v480 = vpack.c.bf16 %v428, %v427
        %v481 = vpack.c.bf16 %v430, %v429
        %v482 = vpack.c.bf16 %v432, %v431
        %v483 = vpack.c.bf16 %v434, %v433
        %v484 = vpack.c.bf16 %v436, %v435
        %v485 = vpack.c.bf16 %v438, %v437
        %v486 = vpack.c.bf16 %v440, %v439
        %v487 = vpack.c.bf16 %v442, %v441
        %v488 = vpack.c.bf16 %v444, %v443
        %v489 = vpack.c.bf16 %v446, %v445
        %v490 = vpack.c.bf16 %v448, %v447
        %v491 = vpack.c.bf16 %v450, %v449
        %v492 = vpack.c.bf16 %v452, %v451
        %v493 = vpack.c.bf16 %v454, %v453
        %v494 = vpack.c.bf16 %v456, %v455
        %v495 = vpack.c.bf16 %v458, %v457
        %v496 = vpack.c.bf16 %v460, %v459
        %v497 = vpack.c.bf16 %v462, %v461
        %v498 = vpack.c.bf16 %v464, %v463
        %v499 = vpack.c.bf16 %v466, %v465
        %v500 = vpack.c.bf16 %v468, %v467
        %v501 = vpack.c.bf16 %v470, %v469
        %v502 = vpack.c.bf16 %v472, %v471
        %v503 = vld [vmem:[%s1] sm:$0xf]
        %v504 = vld [vmem:[%s1 + $0x4] sm:$0xf]
        %v505 = vld [vmem:[%s1 + $0x8] sm:$0xf]
        %v506 = vld [vmem:[%s1 + $0xc] sm:$0xf]
        %v507 = vld [vmem:[%s1 + $0x10] sm:$0xf]
        %v508 = vld [vmem:[%s1 + $0x14] sm:$0xf]
        %v509 = vld [vmem:[%s1 + $0x18] sm:$0xf]
        %v510 = vld [vmem:[%s1 + $0x1c] sm:$0xf]
        %v511 = vld [vmem:[%s2] sm:$0x1]
        %v513 = vlaneseq
        %v514 = vshrl.u32 %v513, 7
        %v515 = vsub.s32 0, %v514
        %v516 = vrot.slane %v511, %v515
        %v526 = vunpack.c.l.b16 %v503
        %v527 = vunpack.c.l.b16 %v504
        %v528 = vunpack.c.l.b16 %v505
        %v529 = vunpack.c.l.b16 %v506
        %v530 = vunpack.c.l.b16 %v507
        %v531 = vunpack.c.l.b16 %v508
        %v532 = vunpack.c.l.b16 %v509
        %v533 = vunpack.c.l.b16 %v510
        %v534 = vpack.c.b16 %v527, %v526
        %v535 = vpack.c.b16 %v529, %v528
        %v536 = vpack.c.b16 %v531, %v530
        %v537 = vpack.c.b16 %v533, %v532
        %vm542 = vcmask 523264
        %v544 = vsel %vm542, %v473, 0
        %v547 = vsel %vm542, %v474, 0
        %v550 = vsel %vm542, %v475, 0
        %v553 = vsel %vm542, %v476, 0
        %v556 = vsel %vm542, %v477, 0
        %v559 = vsel %vm542, %v478, 0
        %v562 = vsel %vm542, %v479, 0
        %v565 = vsel %vm542, %v480, 0
        %v568 = vsel %vm542, %v481, 0
        %v571 = vsel %vm542, %v482, 0
        %v574 = vsel %vm542, %v483, 0
        %v577 = vsel %vm542, %v484, 0
        %v580 = vsel %vm542, %v485, 0
        %v583 = vsel %vm542, %v486, 0
        %v586 = vsel %vm542, %v487, 0
        %v589 = vsel %vm542, %v488, 0
        %v592 = vsel %vm542, %v489, 0
        %v595 = vsel %vm542, %v490, 0
        %v598 = vsel %vm542, %v491, 0
        %v601 = vsel %vm542, %v492, 0
        %v604 = vsel %vm542, %v493, 0
        %v607 = vsel %vm542, %v494, 0
        %v610 = vsel %vm542, %v495, 0
        %v613 = vsel %vm542, %v496, 0
        %v616 = vsel %vm542, %v497, 0
        %v619 = vsel %vm542, %v498, 0
        %v622 = vsel %vm542, %v499, 0
        %v625 = vsel %vm542, %v500, 0
        %v628 = vsel %vm542, %v501, 0
        %v631 = vsel %vm542, %v502, 0
        %633 = vmatprep.subr.bf16.mxu0 0
        %634 = vmatpush1.bf16.msra.mxu0 %v534
        %635 = vmatprep.subr.bf16.mxu0 0
        %636 = vmatpush1.bf16.msra.mxu0 %v535
        %637 = vmatprep.subr.bf16.mxu0 0
        %638 = vmatpush1.bf16.msra.mxu0 %v536
        %639 = vmatprep.subr.bf16.mxu0 0
        %640 = vmatpush1.bf16.msra.mxu0 %v537
        %641 = vmatprep.subr.bf16.mxu0 0
        %642 = vmatpush1.bf16.msra.mxu0 0
        %643 = vmatprep.subr.bf16.mxu0 0
        %644 = vmatpush1.bf16.msra.mxu0 0
        %645 = vmatprep.subr.bf16.mxu0 0
        %646 = vmatpush1.bf16.msra.mxu0 0
        %647 = vmatprep.subr.bf16.mxu0 0
        %648 = vmatpush1.bf16.msra.mxu0 0
        %649 = vmatprep.subr.bf16.mxu0 0
        %650 = vmatpush1.bf16.msra.mxu0 0
        %651 = vmatprep.subr.bf16.mxu0 0
        %652 = vmatpush1.bf16.msra.mxu0 0
        %653 = vmatprep.subr.bf16.mxu0 0
        %654 = vmatpush1.bf16.msra.mxu0 0
        %655 = vmatprep.subr.bf16.mxu0 0
        %656 = vmatpush1.bf16.msra.mxu0 0
        %657 = vmatprep.subr.bf16.mxu0 0
        %658 = vmatpush1.bf16.msra.mxu0 0
        %659 = vmatprep.subr.bf16.mxu0 0
        %660 = vmatpush1.bf16.msra.mxu0 0
        %661 = vmatprep.subr.bf16.mxu0 0
        %662 = vmatpush1.bf16.msra.mxu0 0
        %663 = vmatprep.subr.bf16.mxu0 0
        %664 = vmatpush1.bf16.msra.mxu0 0
        %665 = vmatprep.mubr.bf16.mxu0 0
        %666 = vmatmul.mubr.bf16.gmra.mrb[0].mxu0 %v544
        %v667 = vpop.f32.mrb[0].mxu0
        %v668 = vadd.f32 %v516, %v667
        %v669 = vpop.f32.mrb[0].mxu0
        %v670 = vpop.f32.mrb[0].mxu0
        %v671 = vadd.f32 %v516, %v670
        %v672 = vpop.f32.mrb[0].mxu0
        %673 = vmatprep.mubr.bf16.mxu0 0
        %674 = vmatmul.mubr.bf16.gmra.mrb[0].mxu0 %v547
        %v675 = vpop.f32.mrb[0].mxu0
        %v676 = vadd.f32 %v516, %v675
        %v677 = vpop.f32.mrb[0].mxu0
        %v678 = vpop.f32.mrb[0].mxu0
        %v679 = vadd.f32 %v516, %v678
        %v680 = vpop.f32.mrb[0].mxu0
        %681 = vmatprep.mubr.bf16.mxu0 0
        %682 = vmatmul.mubr.bf16.gmra.mrb[0].mxu0 %v550
        %v683 = vpop.f32.mrb[0].mxu0
        %v684 = vadd.f32 %v516, %v683
        %v685 = vpop.f32.mrb[0].mxu0
        %v686 = vpop.f32.mrb[0].mxu0
        %v687 = vadd.f32 %v516, %v686
        %v688 = vpop.f32.mrb[0].mxu0
        %689 = vmatprep.mubr.bf16.mxu0 0
        %690 = vmatmul.mubr.bf16.gmra.mrb[0].mxu0 %v553
        %v691 = vpop.f32.mrb[0].mxu0
        %v692 = vadd.f32 %v516, %v691
        %v693 = vpop.f32.mrb[0].mxu0
        %v694 = vpop.f32.mrb[0].mxu0
        %v695 = vadd.f32 %v516, %v694
        %v696 = vpop.f32.mrb[0].mxu0
        %697 = vmatprep.mubr.bf16.mxu0 0
        %698 = vmatmul.mubr.bf16.gmra.mrb[0].mxu0 %v556
        %v699 = vpop.f32.mrb[0].mxu0
        %v700 = vadd.f32 %v516, %v699
        %v701 = vpop.f32.mrb[0].mxu0
        %v702 = vpop.f32.mrb[0].mxu0
        %v703 = vadd.f32 %v516, %v702
        %v704 = vpop.f32.mrb[0].mxu0
        %705 = vmatprep.mubr.bf16.mxu0 0
        %706 = vmatmul.mubr.bf16.gmra.mrb[0].mxu0 %v559
        %v707 = vpop.f32.mrb[0].mxu0
        %v708 = vadd.f32 %v516, %v707
        %v709 = vpop.f32.mrb[0].mxu0
        %v710 = vpop.f32.mrb[0].mxu0
        %v711 = vadd.f32 %v516, %v710
        %v712 = vpop.f32.mrb[0].mxu0
        %713 = vmatprep.mubr.bf16.mxu0 0
        %714 = vmatmul.mubr.bf16.gmra.mrb[0].mxu0 %v562
        %v715 = vpop.f32.mrb[0].mxu0
        %v716 = vadd.f32 %v516, %v715
        %v717 = vpop.f32.mrb[0].mxu0
        %v718 = vpop.f32.mrb[0].mxu0
        %v719 = vadd.f32 %v516, %v718
        %v720 = vpop.f32.mrb[0].mxu0
        %721 = vmatprep.mubr.bf16.mxu0 0
        %722 = vmatmul.mubr.bf16.gmra.mrb[0].mxu0 %v565
        %v723 = vpop.f32.mrb[0].mxu0
        %v724 = vadd.f32 %v516, %v723
        %v725 = vpop.f32.mrb[0].mxu0
        %v726 = vpop.f32.mrb[0].mxu0
        %v727 = vadd.f32 %v516, %v726
        %v728 = vpop.f32.mrb[0].mxu0
        %729 = vmatprep.mubr.bf16.mxu0 0
        %730 = vmatmul.mubr.bf16.gmra.mrb[0].mxu0 %v568
        %v731 = vpop.f32.mrb[0].mxu0
        %v732 = vadd.f32 %v516, %v731
        %v733 = vpop.f32.mrb[0].mxu0
        %v734 = vpop.f32.mrb[0].mxu0
        %v735 = vadd.f32 %v516, %v734
        %v736 = vpop.f32.mrb[0].mxu0
        %737 = vmatprep.mubr.bf16.mxu0 0
        %738 = vmatmul.mubr.bf16.gmra.mrb[0].mxu0 %v571
        %v739 = vpop.f32.mrb[0].mxu0
        %v740 = vadd.f32 %v516, %v739
        %v741 = vpop.f32.mrb[0].mxu0
        %v742 = vpop.f32.mrb[0].mxu0
        %v743 = vadd.f32 %v516, %v742
        %v744 = vpop.f32.mrb[0].mxu0
        %745 = vmatprep.mubr.bf16.mxu0 0
        %746 = vmatmul.mubr.bf16.gmra.mrb[0].mxu0 %v574
        %v747 = vpop.f32.mrb[0].mxu0
        %v748 = vadd.f32 %v516, %v747
        %v749 = vpop.f32.mrb[0].mxu0
        %v750 = vpop.f32.mrb[0].mxu0
        %v751 = vadd.f32 %v516, %v750
        %v752 = vpop.f32.mrb[0].mxu0
        %753 = vmatprep.mubr.bf16.mxu0 0
        %754 = vmatmul.mubr.bf16.gmra.mrb[0].mxu0 %v577
        %v755 = vpop.f32.mrb[0].mxu0
        %v756 = vadd.f32 %v516, %v755
        %v757 = vpop.f32.mrb[0].mxu0
        %v758 = vpop.f32.mrb[0].mxu0
        %v759 = vadd.f32 %v516, %v758
        %v760 = vpop.f32.mrb[0].mxu0
        %761 = vmatprep.mubr.bf16.mxu0 0
        %762 = vmatmul.mubr.bf16.gmra.mrb[0].mxu0 %v580
        %v763 = vpop.f32.mrb[0].mxu0
        %v764 = vadd.f32 %v516, %v763
        %v765 = vpop.f32.mrb[0].mxu0
        %v766 = vpop.f32.mrb[0].mxu0
        %v767 = vadd.f32 %v516, %v766
        %v768 = vpop.f32.mrb[0].mxu0
        %769 = vmatprep.mubr.bf16.mxu0 0
        %770 = vmatmul.mubr.bf16.gmra.mrb[0].mxu0 %v583
        %v771 = vpop.f32.mrb[0].mxu0
        %v772 = vadd.f32 %v516, %v771
        %v773 = vpop.f32.mrb[0].mxu0
        %v774 = vpop.f32.mrb[0].mxu0
        %v775 = vadd.f32 %v516, %v774
        %v776 = vpop.f32.mrb[0].mxu0
        %777 = vmatprep.mubr.bf16.mxu0 0
        %778 = vmatmul.mubr.bf16.gmra.mrb[0].mxu0 %v586
        %v779 = vpop.f32.mrb[0].mxu0
        %v780 = vadd.f32 %v516, %v779
        %v781 = vpop.f32.mrb[0].mxu0
        %v782 = vpop.f32.mrb[0].mxu0
        %v783 = vadd.f32 %v516, %v782
        %v784 = vpop.f32.mrb[0].mxu0
        %785 = vmatprep.mubr.bf16.mxu0 0
        %786 = vmatmul.mubr.bf16.gmra.mrb[0].mxu0 %v589
        %v787 = vpop.f32.mrb[0].mxu0
        %v788 = vadd.f32 %v516, %v787
        %v789 = vpop.f32.mrb[0].mxu0
        %v790 = vpop.f32.mrb[0].mxu0
        %v791 = vadd.f32 %v516, %v790
        %v792 = vpop.f32.mrb[0].mxu0
        %793 = vmatprep.mubr.bf16.mxu0 0
        %794 = vmatmul.mubr.bf16.gmra.mrb[0].mxu0 %v592
        %v795 = vpop.f32.mrb[0].mxu0
        %v796 = vadd.f32 %v516, %v795
        %v797 = vpop.f32.mrb[0].mxu0
        %v798 = vpop.f32.mrb[0].mxu0
        %v799 = vadd.f32 %v516, %v798
        %v800 = vpop.f32.mrb[0].mxu0
        %801 = vmatprep.mubr.bf16.mxu0 0
        %802 = vmatmul.mubr.bf16.gmra.mrb[0].mxu0 %v595
        %v803 = vpop.f32.mrb[0].mxu0
        %v804 = vadd.f32 %v516, %v803
        %v805 = vpop.f32.mrb[0].mxu0
        %v806 = vpop.f32.mrb[0].mxu0
        %v807 = vadd.f32 %v516, %v806
        %v808 = vpop.f32.mrb[0].mxu0
        %809 = vmatprep.mubr.bf16.mxu0 0
        %810 = vmatmul.mubr.bf16.gmra.mrb[0].mxu0 %v598
        %v811 = vpop.f32.mrb[0].mxu0
        %v812 = vadd.f32 %v516, %v811
        %v813 = vpop.f32.mrb[0].mxu0
        %v814 = vpop.f32.mrb[0].mxu0
        %v815 = vadd.f32 %v516, %v814
        %v816 = vpop.f32.mrb[0].mxu0
        %817 = vmatprep.mubr.bf16.mxu0 0
        %818 = vmatmul.mubr.bf16.gmra.mrb[0].mxu0 %v601
        %v819 = vpop.f32.mrb[0].mxu0
        %v820 = vadd.f32 %v516, %v819
        %v821 = vpop.f32.mrb[0].mxu0
        %v822 = vpop.f32.mrb[0].mxu0
        %v823 = vadd.f32 %v516, %v822
        %v824 = vpop.f32.mrb[0].mxu0
        %825 = vmatprep.mubr.bf16.mxu0 0
        %826 = vmatmul.mubr.bf16.gmra.mrb[0].mxu0 %v604
        %v827 = vpop.f32.mrb[0].mxu0
        %v828 = vadd.f32 %v516, %v827
        %v829 = vpop.f32.mrb[0].mxu0
        %v830 = vpop.f32.mrb[0].mxu0
        %v831 = vadd.f32 %v516, %v830
        %v832 = vpop.f32.mrb[0].mxu0
        %833 = vmatprep.mubr.bf16.mxu0 0
        %834 = vmatmul.mubr.bf16.gmra.mrb[0].mxu0 %v607
        %v835 = vpop.f32.mrb[0].mxu0
        %v836 = vadd.f32 %v516, %v835
        %v837 = vpop.f32.mrb[0].mxu0
        %v838 = vpop.f32.mrb[0].mxu0
        %v839 = vadd.f32 %v516, %v838
        %v840 = vpop.f32.mrb[0].mxu0
        %841 = vmatprep.mubr.bf16.mxu0 0
        %842 = vmatmul.mubr.bf16.gmra.mrb[0].mxu0 %v610
        %v843 = vpop.f32.mrb[0].mxu0
        %v844 = vadd.f32 %v516, %v843
        %v845 = vpop.f32.mrb[0].mxu0
        %v846 = vpop.f32.mrb[0].mxu0
        %v847 = vadd.f32 %v516, %v846
        %v848 = vpop.f32.mrb[0].mxu0
        %849 = vmatprep.mubr.bf16.mxu0 0
        %850 = vmatmul.mubr.bf16.gmra.mrb[0].mxu0 %v613
        %v851 = vpop.f32.mrb[0].mxu0
        %v852 = vadd.f32 %v516, %v851
        %v853 = vpop.f32.mrb[0].mxu0
        %v854 = vpop.f32.mrb[0].mxu0
        %v855 = vadd.f32 %v516, %v854
        %v856 = vpop.f32.mrb[0].mxu0
        %857 = vmatprep.mubr.bf16.mxu0 0
        %858 = vmatmul.mubr.bf16.gmra.mrb[0].mxu0 %v616
        %v859 = vpop.f32.mrb[0].mxu0
        %v860 = vadd.f32 %v516, %v859
        %v861 = vpop.f32.mrb[0].mxu0
        %v862 = vpop.f32.mrb[0].mxu0
        %v863 = vadd.f32 %v516, %v862
        %v864 = vpop.f32.mrb[0].mxu0
        %865 = vmatprep.mubr.bf16.mxu0 0
        %866 = vmatmul.mubr.bf16.gmra.mrb[0].mxu0 %v619
        %v867 = vpop.f32.mrb[0].mxu0
        %v868 = vadd.f32 %v516, %v867
        %v869 = vpop.f32.mrb[0].mxu0
        %v870 = vpop.f32.mrb[0].mxu0
        %v871 = vadd.f32 %v516, %v870
        %v872 = vpop.f32.mrb[0].mxu0
        %873 = vmatprep.mubr.bf16.mxu0 0
        %874 = vmatmul.mubr.bf16.gmra.mrb[0].mxu0 %v622
        %v875 = vpop.f32.mrb[0].mxu0
        %v876 = vadd.f32 %v516, %v875
        %v877 = vpop.f32.mrb[0].mxu0
        %v878 = vpop.f32.mrb[0].mxu0
        %v879 = vadd.f32 %v516, %v878
        %v880 = vpop.f32.mrb[0].mxu0
        %881 = vmatprep.mubr.bf16.mxu0 0
        %882 = vmatmul.mubr.bf16.gmra.mrb[0].mxu0 %v625
        %v883 = vpop.f32.mrb[0].mxu0
        %v884 = vadd.f32 %v516, %v883
        %v885 = vpop.f32.mrb[0].mxu0
        %v886 = vpop.f32.mrb[0].mxu0
        %v887 = vadd.f32 %v516, %v886
        %v888 = vpop.f32.mrb[0].mxu0
        %889 = vmatprep.mubr.bf16.mxu0 0
        %890 = vmatmul.mubr.bf16.gmra.mrb[0].mxu0 %v628
        %v891 = vpop.f32.mrb[0].mxu0
        %v892 = vadd.f32 %v516, %v891
        %v893 = vpop.f32.mrb[0].mxu0
        %v894 = vpop.f32.mrb[0].mxu0
        %v895 = vadd.f32 %v516, %v894
        %v896 = vpop.f32.mrb[0].mxu0
        %897 = vmatprep.mubr.bf16.mxu0 0
        %898 = vmatmul.mubr.bf16.gmra.mrb[0].mxu0 %v631
        %v899 = vpop.f32.mrb[0].mxu0
        %v900 = vadd.f32 %v516, %v899
        %v901 = vpop.f32.mrb[0].mxu0
        %v902 = vpop.f32.mrb[0].mxu0
        %v903 = vadd.f32 %v516, %v902
        %v904 = vpop.f32.mrb[0].mxu0
        %905 = vdwg.mxu0
        %v906 = vxor.u32 %v668, 2147483648
        %v907 = vxor.u32 %v671, 2147483648
        %v908 = vxor.u32 %v676, 2147483648
        %v909 = vxor.u32 %v679, 2147483648
        %v910 = vxor.u32 %v684, 2147483648
        %v911 = vxor.u32 %v687, 2147483648
        %v912 = vxor.u32 %v692, 2147483648
        %v913 = vxor.u32 %v695, 2147483648
        %v914 = vxor.u32 %v700, 2147483648
        %v915 = vxor.u32 %v703, 2147483648
        %v916 = vxor.u32 %v708, 2147483648
        %v917 = vxor.u32 %v711, 2147483648
        %v918 = vxor.u32 %v716, 2147483648
        %v919 = vxor.u32 %v719, 2147483648
        %v920 = vxor.u32 %v724, 2147483648
        %v921 = vxor.u32 %v727, 2147483648
        %v922 = vxor.u32 %v732, 2147483648
        %v923 = vxor.u32 %v735, 2147483648
        %v924 = vxor.u32 %v740, 2147483648
        %v925 = vxor.u32 %v743, 2147483648
        %v926 = vxor.u32 %v748, 2147483648
        %v927 = vxor.u32 %v751, 2147483648
        %v928 = vxor.u32 %v756, 2147483648
        %v929 = vxor.u32 %v759, 2147483648
        %v930 = vxor.u32 %v764, 2147483648
        %v931 = vxor.u32 %v767, 2147483648
        %v932 = vxor.u32 %v772, 2147483648
        %v933 = vxor.u32 %v775, 2147483648
        %v934 = vxor.u32 %v780, 2147483648
        %v935 = vxor.u32 %v783, 2147483648
        %v936 = vxor.u32 %v788, 2147483648
        %v937 = vxor.u32 %v791, 2147483648
        %v938 = vxor.u32 %v796, 2147483648
        %v939 = vxor.u32 %v799, 2147483648
        %v940 = vxor.u32 %v804, 2147483648
        %v941 = vxor.u32 %v807, 2147483648
        %v942 = vxor.u32 %v812, 2147483648
        %v943 = vxor.u32 %v815, 2147483648
        %v944 = vxor.u32 %v820, 2147483648
        %v945 = vxor.u32 %v823, 2147483648
        %v946 = vxor.u32 %v828, 2147483648
        %v947 = vxor.u32 %v831, 2147483648
        %v948 = vxor.u32 %v836, 2147483648
        %v949 = vxor.u32 %v839, 2147483648
        %v950 = vxor.u32 %v844, 2147483648
        %v951 = vxor.u32 %v847, 2147483648
        %v952 = vxor.u32 %v852, 2147483648
        %v953 = vxor.u32 %v855, 2147483648
        %v954 = vxor.u32 %v860, 2147483648
        %v955 = vxor.u32 %v863, 2147483648
        %v956 = vxor.u32 %v868, 2147483648
        %v957 = vxor.u32 %v871, 2147483648
        %v958 = vxor.u32 %v876, 2147483648
        %v959 = vxor.u32 %v879, 2147483648
        %v960 = vxor.u32 %v884, 2147483648
        %v961 = vxor.u32 %v887, 2147483648
        %v962 = vxor.u32 %v892, 2147483648
        %v963 = vxor.u32 %v895, 2147483648
        %v964 = vxor.u32 %v900, 2147483648
        %v965 = vxor.u32 %v903, 2147483648
        %v966 = vmul.f32 %v906, 1.442695
        %v967 = vpow.pop %v966
        %v968 = vmul.f32 %v907, 1.442695
        %v969 = vpow.pop %v968
        %v970 = vmul.f32 %v908, 1.442695
        %v971 = vpow.pop %v970
        %v972 = vmul.f32 %v909, 1.442695
        %v973 = vpow.pop %v972
        %v974 = vmul.f32 %v910, 1.442695
        %v975 = vpow.pop %v974
        %v976 = vmul.f32 %v911, 1.442695
        %v977 = vpow.pop %v976
        %v978 = vmul.f32 %v912, 1.442695
        %v979 = vpow.pop %v978
        %v980 = vmul.f32 %v913, 1.442695
        %v981 = vpow.pop %v980
        %v982 = vmul.f32 %v914, 1.442695
        %v983 = vpow.pop %v982
        %v984 = vmul.f32 %v915, 1.442695
        %v985 = vpow.pop %v984
        %v986 = vmul.f32 %v916, 1.442695
        %v987 = vpow.pop %v986
        %v988 = vmul.f32 %v917, 1.442695
        %v989 = vpow.pop %v988
        %v990 = vmul.f32 %v918, 1.442695
        %v991 = vpow.pop %v990
        %v992 = vmul.f32 %v919, 1.442695
        %v993 = vpow.pop %v992
        %v994 = vmul.f32 %v920, 1.442695
        %v995 = vpow.pop %v994
        %v996 = vmul.f32 %v921, 1.442695
        %v997 = vpow.pop %v996
        %v998 = vmul.f32 %v922, 1.442695
        %v999 = vpow.pop %v998
        %v1000 = vmul.f32 %v923, 1.442695
        %v1001 = vpow.pop %v1000
        %v1002 = vmul.f32 %v924, 1.442695
        %v1003 = vpow.pop %v1002
        %v1004 = vmul.f32 %v925, 1.442695
        %v1005 = vpow.pop %v1004
        %v1006 = vmul.f32 %v926, 1.442695
        %v1007 = vpow.pop %v1006
        %v1008 = vmul.f32 %v927, 1.442695
        %v1009 = vpow.pop %v1008
        %v1010 = vmul.f32 %v928, 1.442695
        %v1011 = vpow.pop %v1010
        %v1012 = vmul.f32 %v929, 1.442695
        %v1013 = vpow.pop %v1012
        %v1014 = vmul.f32 %v930, 1.442695
        %v1015 = vpow.pop %v1014
        %v1016 = vmul.f32 %v931, 1.442695
        %v1017 = vpow.pop %v1016
        %v1018 = vmul.f32 %v932, 1.442695
        %v1019 = vpow.pop %v1018
        %v1020 = vmul.f32 %v933, 1.442695
        %v1021 = vpow.pop %v1020
        %v1022 = vmul.f32 %v934, 1.442695
        %v1023 = vpow.pop %v1022
        %v1024 = vmul.f32 %v935, 1.442695
        %v1025 = vpow.pop %v1024
        %v1026 = vmul.f32 %v936, 1.442695
        %v1027 = vpow.pop %v1026
        %v1028 = vmul.f32 %v937, 1.442695
        %v1029 = vpow.pop %v1028
        %v1030 = vmul.f32 %v938, 1.442695
        %v1031 = vpow.pop %v1030
        %v1032 = vmul.f32 %v939, 1.442695
        %v1033 = vpow.pop %v1032
        %v1034 = vmul.f32 %v940, 1.442695
        %v1035 = vpow.pop %v1034
        %v1036 = vmul.f32 %v941, 1.442695
        %v1037 = vpow.pop %v1036
        %v1038 = vmul.f32 %v942, 1.442695
        %v1039 = vpow.pop %v1038
        %v1040 = vmul.f32 %v943, 1.442695
        %v1041 = vpow.pop %v1040
        %v1042 = vmul.f32 %v944, 1.442695
        %v1043 = vpow.pop %v1042
        %v1044 = vmul.f32 %v945, 1.442695
        %v1045 = vpow.pop %v1044
        %v1046 = vmul.f32 %v946, 1.442695
        %v1047 = vpow.pop %v1046
        %v1048 = vmul.f32 %v947, 1.442695
        %v1049 = vpow.pop %v1048
        %v1050 = vmul.f32 %v948, 1.442695
        %v1051 = vpow.pop %v1050
        %v1052 = vmul.f32 %v949, 1.442695
        %v1053 = vpow.pop %v1052
        %v1054 = vmul.f32 %v950, 1.442695
        %v1055 = vpow.pop %v1054
        %v1056 = vmul.f32 %v951, 1.442695
        %v1057 = vpow.pop %v1056
        %v1058 = vmul.f32 %v952, 1.442695
        %v1059 = vpow.pop %v1058
        %v1060 = vmul.f32 %v953, 1.442695
        %v1061 = vpow.pop %v1060
        %v1062 = vmul.f32 %v954, 1.442695
        %v1063 = vpow.pop %v1062
        %v1064 = vmul.f32 %v955, 1.442695
        %v1065 = vpow.pop %v1064
        %v1066 = vmul.f32 %v956, 1.442695
        %v1067 = vpow.pop %v1066
        %v1068 = vmul.f32 %v957, 1.442695
        %v1069 = vpow.pop %v1068
        %v1070 = vmul.f32 %v958, 1.442695
        %v1071 = vpow.pop %v1070
        %v1072 = vmul.f32 %v959, 1.442695
        %v1073 = vpow.pop %v1072
        %v1074 = vmul.f32 %v960, 1.442695
        %v1075 = vpow.pop %v1074
        %v1076 = vmul.f32 %v961, 1.442695
        %v1077 = vpow.pop %v1076
        %v1078 = vmul.f32 %v962, 1.442695
        %v1079 = vpow.pop %v1078
        %v1080 = vmul.f32 %v963, 1.442695
        %v1081 = vpow.pop %v1080
        %v1082 = vmul.f32 %v964, 1.442695
        %v1083 = vpow.pop %v1082
        %v1084 = vmul.f32 %v965, 1.442695
        %v1085 = vpow.pop %v1084
        %v1086 = vadd.f32 %v967, 1.0
        %v1087 = vadd.f32 %v969, 1.0
        %v1088 = vadd.f32 %v971, 1.0
        %v1089 = vadd.f32 %v973, 1.0
        %v1090 = vadd.f32 %v975, 1.0
        %v1091 = vadd.f32 %v977, 1.0
        %v1092 = vadd.f32 %v979, 1.0
        %v1093 = vadd.f32 %v981, 1.0
        %v1094 = vadd.f32 %v983, 1.0
        %v1095 = vadd.f32 %v985, 1.0
        %v1096 = vadd.f32 %v987, 1.0
        %v1097 = vadd.f32 %v989, 1.0
        %v1098 = vadd.f32 %v991, 1.0
        %v1099 = vadd.f32 %v993, 1.0
        %v1100 = vadd.f32 %v995, 1.0
        %v1101 = vadd.f32 %v997, 1.0
        %v1102 = vadd.f32 %v999, 1.0
        %v1103 = vadd.f32 %v1001, 1.0
        %v1104 = vadd.f32 %v1003, 1.0
        %v1105 = vadd.f32 %v1005, 1.0
        %v1106 = vadd.f32 %v1007, 1.0
        %v1107 = vadd.f32 %v1009, 1.0
        %v1108 = vadd.f32 %v1011, 1.0
        %v1109 = vadd.f32 %v1013, 1.0
        %v1110 = vadd.f32 %v1015, 1.0
        %v1111 = vadd.f32 %v1017, 1.0
        %v1112 = vadd.f32 %v1019, 1.0
        %v1113 = vadd.f32 %v1021, 1.0
        %v1114 = vadd.f32 %v1023, 1.0
        %v1115 = vadd.f32 %v1025, 1.0
        %v1116 = vadd.f32 %v1027, 1.0
        %v1117 = vadd.f32 %v1029, 1.0
        %v1118 = vadd.f32 %v1031, 1.0
        %v1119 = vadd.f32 %v1033, 1.0
        %v1120 = vadd.f32 %v1035, 1.0
        %v1121 = vadd.f32 %v1037, 1.0
        %v1122 = vadd.f32 %v1039, 1.0
        %v1123 = vadd.f32 %v1041, 1.0
        %v1124 = vadd.f32 %v1043, 1.0
        %v1125 = vadd.f32 %v1045, 1.0
        %v1126 = vadd.f32 %v1047, 1.0
        %v1127 = vadd.f32 %v1049, 1.0
        %v1128 = vadd.f32 %v1051, 1.0
        %v1129 = vadd.f32 %v1053, 1.0
        %v1130 = vadd.f32 %v1055, 1.0
        %v1131 = vadd.f32 %v1057, 1.0
        %v1132 = vadd.f32 %v1059, 1.0
        %v1133 = vadd.f32 %v1061, 1.0
        %v1134 = vadd.f32 %v1063, 1.0
        %v1135 = vadd.f32 %v1065, 1.0
        %v1136 = vadd.f32 %v1067, 1.0
        %v1137 = vadd.f32 %v1069, 1.0
        %v1138 = vadd.f32 %v1071, 1.0
        %v1139 = vadd.f32 %v1073, 1.0
        %v1140 = vadd.f32 %v1075, 1.0
        %v1141 = vadd.f32 %v1077, 1.0
        %v1142 = vadd.f32 %v1079, 1.0
        %v1143 = vadd.f32 %v1081, 1.0
        %v1144 = vadd.f32 %v1083, 1.0
        %v1145 = vadd.f32 %v1085, 1.0
        %v1146 = vrcp.pop %v1086
        %v1147 = vmul.f32 1.0, %v1146
        %v1148 = vrcp.pop %v1087
        %v1149 = vmul.f32 1.0, %v1148
        %v1150 = vrcp.pop %v1088
        %v1151 = vmul.f32 1.0, %v1150
        %v1152 = vrcp.pop %v1089
        %v1153 = vmul.f32 1.0, %v1152
        %v1154 = vrcp.pop %v1090
        %v1155 = vmul.f32 1.0, %v1154
        %v1156 = vrcp.pop %v1091
        %v1157 = vmul.f32 1.0, %v1156
        %v1158 = vrcp.pop %v1092
        %v1159 = vmul.f32 1.0, %v1158
        %v1160 = vrcp.pop %v1093
        %v1161 = vmul.f32 1.0, %v1160
        %v1162 = vrcp.pop %v1094
        %v1163 = vmul.f32 1.0, %v1162
        %v1164 = vrcp.pop %v1095
        %v1165 = vmul.f32 1.0, %v1164
        %v1166 = vrcp.pop %v1096
        %v1167 = vmul.f32 1.0, %v1166
        %v1168 = vrcp.pop %v1097
        %v1169 = vmul.f32 1.0, %v1168
        %v1170 = vrcp.pop %v1098
        %v1171 = vmul.f32 1.0, %v1170
        %v1172 = vrcp.pop %v1099
        %v1173 = vmul.f32 1.0, %v1172
        %v1174 = vrcp.pop %v1100
        %v1175 = vmul.f32 1.0, %v1174
        %v1176 = vrcp.pop %v1101
        %v1177 = vmul.f32 1.0, %v1176
        %v1178 = vrcp.pop %v1102
        %v1179 = vmul.f32 1.0, %v1178
        %v1180 = vrcp.pop %v1103
        %v1181 = vmul.f32 1.0, %v1180
        %v1182 = vrcp.pop %v1104
        %v1183 = vmul.f32 1.0, %v1182
        %v1184 = vrcp.pop %v1105
        %v1185 = vmul.f32 1.0, %v1184
        %v1186 = vrcp.pop %v1106
        %v1187 = vmul.f32 1.0, %v1186
        %v1188 = vrcp.pop %v1107
        %v1189 = vmul.f32 1.0, %v1188
        %v1190 = vrcp.pop %v1108
        %v1191 = vmul.f32 1.0, %v1190
        %v1192 = vrcp.pop %v1109
        %v1193 = vmul.f32 1.0, %v1192
        %v1194 = vrcp.pop %v1110
        %v1195 = vmul.f32 1.0, %v1194
        %v1196 = vrcp.pop %v1111
        %v1197 = vmul.f32 1.0, %v1196
        %v1198 = vrcp.pop %v1112
        %v1199 = vmul.f32 1.0, %v1198
        %v1200 = vrcp.pop %v1113
        %v1201 = vmul.f32 1.0, %v1200
        %v1202 = vrcp.pop %v1114
        %v1203 = vmul.f32 1.0, %v1202
        %v1204 = vrcp.pop %v1115
        %v1205 = vmul.f32 1.0, %v1204
        %v1206 = vrcp.pop %v1116
        %v1207 = vmul.f32 1.0, %v1206
        %v1208 = vrcp.pop %v1117
        %v1209 = vmul.f32 1.0, %v1208
        %v1210 = vrcp.pop %v1118
        %v1211 = vmul.f32 1.0, %v1210
        %v1212 = vrcp.pop %v1119
        %v1213 = vmul.f32 1.0, %v1212
        %v1214 = vrcp.pop %v1120
        %v1215 = vmul.f32 1.0, %v1214
        %v1216 = vrcp.pop %v1121
        %v1217 = vmul.f32 1.0, %v1216
        %v1218 = vrcp.pop %v1122
        %v1219 = vmul.f32 1.0, %v1218
        %v1220 = vrcp.pop %v1123
        %v1221 = vmul.f32 1.0, %v1220
        %v1222 = vrcp.pop %v1124
        %v1223 = vmul.f32 1.0, %v1222
        %v1224 = vrcp.pop %v1125
        %v1225 = vmul.f32 1.0, %v1224
        %v1226 = vrcp.pop %v1126
        %v1227 = vmul.f32 1.0, %v1226
        %v1228 = vrcp.pop %v1127
        %v1229 = vmul.f32 1.0, %v1228
        %v1230 = vrcp.pop %v1128
        %v1231 = vmul.f32 1.0, %v1230
        %v1232 = vrcp.pop %v1129
        %v1233 = vmul.f32 1.0, %v1232
        %v1234 = vrcp.pop %v1130
        %v1235 = vmul.f32 1.0, %v1234
        %v1236 = vrcp.pop %v1131
        %v1237 = vmul.f32 1.0, %v1236
        %v1238 = vrcp.pop %v1132
        %v1239 = vmul.f32 1.0, %v1238
        %v1240 = vrcp.pop %v1133
        %v1241 = vmul.f32 1.0, %v1240
        %v1242 = vrcp.pop %v1134
        %v1243 = vmul.f32 1.0, %v1242
        %v1244 = vrcp.pop %v1135
        %v1245 = vmul.f32 1.0, %v1244
        %v1246 = vrcp.pop %v1136
        %v1247 = vmul.f32 1.0, %v1246
        %v1248 = vrcp.pop %v1137
        %v1249 = vmul.f32 1.0, %v1248
        %v1250 = vrcp.pop %v1138
        %v1251 = vmul.f32 1.0, %v1250
        %v1252 = vrcp.pop %v1139
        %v1253 = vmul.f32 1.0, %v1252
        %v1254 = vrcp.pop %v1140
        %v1255 = vmul.f32 1.0, %v1254
        %v1256 = vrcp.pop %v1141
        %v1257 = vmul.f32 1.0, %v1256
        %v1258 = vrcp.pop %v1142
        %v1259 = vmul.f32 1.0, %v1258
        %v1260 = vrcp.pop %v1143
        %v1261 = vmul.f32 1.0, %v1260
        %v1262 = vrcp.pop %v1144
        %v1263 = vmul.f32 1.0, %v1262
        %v1264 = vrcp.pop %v1145
        %v1265 = vmul.f32 1.0, %v1264
        %v1266 = vmul.f32 %v668, %v1147
        %v1267 = vmul.f32 %v671, %v1149
        %v1268 = vmul.f32 %v676, %v1151
        %v1269 = vmul.f32 %v679, %v1153
        %v1270 = vmul.f32 %v684, %v1155
        %v1271 = vmul.f32 %v687, %v1157
        %v1272 = vmul.f32 %v692, %v1159
        %v1273 = vmul.f32 %v695, %v1161
        %v1274 = vmul.f32 %v700, %v1163
        %v1275 = vmul.f32 %v703, %v1165
        %v1276 = vmul.f32 %v708, %v1167
        %v1277 = vmul.f32 %v711, %v1169
        %v1278 = vmul.f32 %v716, %v1171
        %v1279 = vmul.f32 %v719, %v1173
        %v1280 = vmul.f32 %v724, %v1175
        %v1281 = vmul.f32 %v727, %v1177
        %v1282 = vmul.f32 %v732, %v1179
        %v1283 = vmul.f32 %v735, %v1181
        %v1284 = vmul.f32 %v740, %v1183
        %v1285 = vmul.f32 %v743, %v1185
        %v1286 = vmul.f32 %v748, %v1187
        %v1287 = vmul.f32 %v751, %v1189
        %v1288 = vmul.f32 %v756, %v1191
        %v1289 = vmul.f32 %v759, %v1193
        %v1290 = vmul.f32 %v764, %v1195
        %v1291 = vmul.f32 %v767, %v1197
        %v1292 = vmul.f32 %v772, %v1199
        %v1293 = vmul.f32 %v775, %v1201
        %v1294 = vmul.f32 %v780, %v1203
        %v1295 = vmul.f32 %v783, %v1205
        %v1296 = vmul.f32 %v788, %v1207
        %v1297 = vmul.f32 %v791, %v1209
        %v1298 = vmul.f32 %v796, %v1211
        %v1299 = vmul.f32 %v799, %v1213
        %v1300 = vmul.f32 %v804, %v1215
        %v1301 = vmul.f32 %v807, %v1217
        %v1302 = vmul.f32 %v812, %v1219
        %v1303 = vmul.f32 %v815, %v1221
        %v1304 = vmul.f32 %v820, %v1223
        %v1305 = vmul.f32 %v823, %v1225
        %v1306 = vmul.f32 %v828, %v1227
        %v1307 = vmul.f32 %v831, %v1229
        %v1308 = vmul.f32 %v836, %v1231
        %v1309 = vmul.f32 %v839, %v1233
        %v1310 = vmul.f32 %v844, %v1235
        %v1311 = vmul.f32 %v847, %v1237
        %v1312 = vmul.f32 %v852, %v1239
        %v1313 = vmul.f32 %v855, %v1241
        %v1314 = vmul.f32 %v860, %v1243
        %v1315 = vmul.f32 %v863, %v1245
        %v1316 = vmul.f32 %v868, %v1247
        %v1317 = vmul.f32 %v871, %v1249
        %v1318 = vmul.f32 %v876, %v1251
        %v1319 = vmul.f32 %v879, %v1253
        %v1320 = vmul.f32 %v884, %v1255
        %v1321 = vmul.f32 %v887, %v1257
        %v1322 = vmul.f32 %v892, %v1259
        %v1323 = vmul.f32 %v895, %v1261
        %v1324 = vmul.f32 %v900, %v1263
        %v1325 = vmul.f32 %v903, %v1265
        %v1326 = vlaneseq
        %v1327 = vshrl.u32 %v1326, 7
        %v1328 = vadd.s32 %v1327, 8
        %v1329 = vadd.s32 %v1327, 16
        %vm1330 = vcmp.ge.s32.totalorder %v1327, 2
        %vm1331 = vcmp.ge.s32.totalorder %v1328, 2
        %vm1332 = vcmp.ge.s32.totalorder %v1329, 2
        %vm1333 = vmand 0, %vm1330
        %vm1334 = vmand 0, %vm1331
        %vm1335 = vmand 0, %vm1332
        %vm1336 = vmand 1, %vm1330
        %vm1337 = vmand 1, %vm1331
        %vm1338 = vmand 1, %vm1332
        %vm1339 = vcmp.lt.s32.totalorder %v1327, 18
        %vm1340 = vcmp.lt.s32.totalorder %v1328, 18
        %vm1341 = vcmp.lt.s32.totalorder %v1329, 18
        %vm1342 = vmand %vm1333, %vm1339
        %vm1343 = vmand %vm1334, %vm1340
        %vm1344 = vmand %vm1335, %vm1341
        %vm1345 = vmand %vm1336, %vm1339
        %vm1346 = vmand %vm1337, %vm1340
        %vm1347 = vmand %vm1338, %vm1341
        %v1348 = vsel %vm1342, %v1266, 0.0
        %v1349 = vsel %vm1343, %v1267, 0.0
        %v1350 = vsel %vm1344, %v1268, 0.0
        %v1351 = vsel %vm1342, %v1269, 0.0
        %v1352 = vsel %vm1343, %v1270, 0.0
        %v1353 = vsel %vm1344, %v1271, 0.0
        %v1354 = vsel %vm1345, %v1272, 0.0
        %v1355 = vsel %vm1346, %v1273, 0.0
        %v1356 = vsel %vm1347, %v1274, 0.0
        %v1357 = vsel %vm1345, %v1275, 0.0
        %v1358 = vsel %vm1346, %v1276, 0.0
        %v1359 = vsel %vm1347, %v1277, 0.0
        %v1360 = vsel %vm1345, %v1278, 0.0
        %v1361 = vsel %vm1346, %v1279, 0.0
        %v1362 = vsel %vm1347, %v1280, 0.0
        %v1363 = vsel %vm1345, %v1281, 0.0
        %v1364 = vsel %vm1346, %v1282, 0.0
        %v1365 = vsel %vm1347, %v1283, 0.0
        %v1366 = vsel %vm1345, %v1284, 0.0
        %v1367 = vsel %vm1346, %v1285, 0.0
        %v1368 = vsel %vm1347, %v1286, 0.0
        %v1369 = vsel %vm1345, %v1287, 0.0
        %v1370 = vsel %vm1346, %v1288, 0.0
        %v1371 = vsel %vm1347, %v1289, 0.0
        %v1372 = vsel %vm1345, %v1290, 0.0
        %v1373 = vsel %vm1346, %v1291, 0.0
        %v1374 = vsel %vm1347, %v1292, 0.0
        %v1375 = vsel %vm1345, %v1293, 0.0
        %v1376 = vsel %vm1346, %v1294, 0.0
        %v1377 = vsel %vm1347, %v1295, 0.0
        %v1378 = vsel %vm1345, %v1296, 0.0
        %v1379 = vsel %vm1346, %v1297, 0.0
        %v1380 = vsel %vm1347, %v1298, 0.0
        %v1381 = vsel %vm1345, %v1299, 0.0
        %v1382 = vsel %vm1346, %v1300, 0.0
        %v1383 = vsel %vm1347, %v1301, 0.0
        %v1384 = vsel %vm1345, %v1302, 0.0
        %v1385 = vsel %vm1346, %v1303, 0.0
        %v1386 = vsel %vm1347, %v1304, 0.0
        %v1387 = vsel %vm1345, %v1305, 0.0
        %v1388 = vsel %vm1346, %v1306, 0.0
        %v1389 = vsel %vm1347, %v1307, 0.0
        %v1390 = vsel %vm1345, %v1308, 0.0
        %v1391 = vsel %vm1346, %v1309, 0.0
        %v1392 = vsel %vm1347, %v1310, 0.0
        %v1393 = vsel %vm1345, %v1311, 0.0
        %v1394 = vsel %vm1346, %v1312, 0.0
        %v1395 = vsel %vm1347, %v1313, 0.0
        %v1396 = vsel %vm1345, %v1314, 0.0
        %v1397 = vsel %vm1346, %v1315, 0.0
        %v1398 = vsel %vm1347, %v1316, 0.0
        %v1399 = vsel %vm1345, %v1317, 0.0
        %v1400 = vsel %vm1346, %v1318, 0.0
        %v1401 = vsel %vm1347, %v1319, 0.0
        %v1402 = vsel %vm1342, %v1320, 0.0
        %v1403 = vsel %vm1343, %v1321, 0.0
        %v1404 = vsel %vm1344, %v1322, 0.0
        %v1405 = vsel %vm1342, %v1323, 0.0
        %v1406 = vsel %vm1343, %v1324, 0.0
        %v1407 = vsel %vm1344, %v1325, 0.0
        %v1408 = vld [vmem:[%s3] sm:$0xff]
        %v1409 = vld [vmem:[%s3 + $0x8] sm:$0xff]
        %v1410 = vld [vmem:[%s3 + $0x10] sm:$0xff]
        %v1411 = vld [vmem:[%s3 + $0x18] sm:$0x1]
        %v1412 = vlaneseq
        %v1413 = vshrl.u32 %v1412, 7
        %v1414 = vsub.s32 0, %v1413
        %v1415 = vrot.slane %v1408, %v1414
        %v1416 = vmul.f32 %v1348, %v1415
        %v1417 = vmul.f32 %v1349, %v1415
        %v1418 = vmul.f32 %v1351, %v1415
        %v1419 = vmul.f32 %v1352, %v1415
        %v1420 = vmul.f32 %v1354, %v1415
        %v1421 = vmul.f32 %v1355, %v1415
        %v1422 = vmul.f32 %v1357, %v1415
        %v1423 = vmul.f32 %v1358, %v1415
        %v1424 = vmul.f32 %v1360, %v1415
        %v1425 = vmul.f32 %v1361, %v1415
        %v1426 = vmul.f32 %v1363, %v1415
        %v1427 = vmul.f32 %v1364, %v1415
        %v1428 = vmul.f32 %v1366, %v1415
        %v1429 = vmul.f32 %v1367, %v1415
        %v1430 = vmul.f32 %v1369, %v1415
        %v1431 = vmul.f32 %v1370, %v1415
        %v1432 = vmul.f32 %v1372, %v1415
        %v1433 = vmul.f32 %v1373, %v1415
        %v1434 = vmul.f32 %v1375, %v1415
        %v1435 = vmul.f32 %v1376, %v1415
        %v1436 = vmul.f32 %v1378, %v1415
        %v1437 = vmul.f32 %v1379, %v1415
        %v1438 = vmul.f32 %v1381, %v1415
        %v1439 = vmul.f32 %v1382, %v1415
        %v1440 = vmul.f32 %v1384, %v1415
        %v1441 = vmul.f32 %v1385, %v1415
        %v1442 = vmul.f32 %v1387, %v1415
        %v1443 = vmul.f32 %v1388, %v1415
        %v1444 = vmul.f32 %v1390, %v1415
        %v1445 = vmul.f32 %v1391, %v1415
        %v1446 = vmul.f32 %v1393, %v1415
        %v1447 = vmul.f32 %v1394, %v1415
        %v1448 = vadd.f32 %v1416, 0.0
        %v1449 = vadd.f32 %v1417, 0.0
        %v1450 = vadd.f32 %v1418, 0.0
        %v1451 = vadd.f32 %v1419, 0.0
        %v1452 = vadd.f32 %v1420, 0.0
        %v1453 = vadd.f32 %v1421, 0.0
        %v1454 = vadd.f32 %v1422, 0.0
        %v1455 = vadd.f32 %v1423, 0.0
        %v1456 = vadd.f32 %v1424, 0.0
        %v1457 = vadd.f32 %v1425, 0.0
        %v1458 = vadd.f32 %v1426, 0.0
        %v1459 = vadd.f32 %v1427, 0.0
        %v1460 = vadd.f32 %v1428, 0.0
        %v1461 = vadd.f32 %v1429, 0.0
        %v1462 = vadd.f32 %v1430, 0.0
        %v1463 = vadd.f32 %v1431, 0.0
        %v1464 = vadd.f32 %v1432, 0.0
        %v1465 = vadd.f32 %v1433, 0.0
        %v1466 = vadd.f32 %v1434, 0.0
        %v1467 = vadd.f32 %v1435, 0.0
        %v1468 = vadd.f32 %v1436, 0.0
        %v1469 = vadd.f32 %v1437, 0.0
        %v1470 = vadd.f32 %v1438, 0.0
        %v1471 = vadd.f32 %v1439, 0.0
        %v1472 = vadd.f32 %v1440, 0.0
        %v1473 = vadd.f32 %v1441, 0.0
        %v1474 = vadd.f32 %v1442, 0.0
        %v1475 = vadd.f32 %v1443, 0.0
        %v1476 = vadd.f32 %v1444, 0.0
        %v1477 = vadd.f32 %v1445, 0.0
        %v1478 = vadd.f32 %v1446, 0.0
        %v1479 = vadd.f32 %v1447, 0.0
        %v1480 = vlaneseq
        %v1481 = vshrl.u32 %v1480, 7
        %v1482 = vsub.s32 1, %v1481
        %v1483 = vrot.slane %v1408, %v1482
        %v1484 = vmul.f32 %v1348, %v1483
        %v1485 = vmul.f32 %v1349, %v1483
        %v1486 = vmul.f32 %v1350, %v1483
        %v1487 = vmul.f32 %v1351, %v1483
        %v1488 = vmul.f32 %v1352, %v1483
        %v1489 = vmul.f32 %v1353, %v1483
        %v1490 = vmul.f32 %v1354, %v1483
        %v1491 = vmul.f32 %v1355, %v1483
        %v1492 = vmul.f32 %v1356, %v1483
        %v1493 = vmul.f32 %v1357, %v1483
        %v1494 = vmul.f32 %v1358, %v1483
        %v1495 = vmul.f32 %v1359, %v1483
        %v1496 = vmul.f32 %v1360, %v1483
        %v1497 = vmul.f32 %v1361, %v1483
        %v1498 = vmul.f32 %v1362, %v1483
        %v1499 = vmul.f32 %v1363, %v1483
        %v1500 = vmul.f32 %v1364, %v1483
        %v1501 = vmul.f32 %v1365, %v1483
        %v1502 = vmul.f32 %v1366, %v1483
        %v1503 = vmul.f32 %v1367, %v1483
        %v1504 = vmul.f32 %v1368, %v1483
        %v1505 = vmul.f32 %v1369, %v1483
        %v1506 = vmul.f32 %v1370, %v1483
        %v1507 = vmul.f32 %v1371, %v1483
        %v1508 = vmul.f32 %v1372, %v1483
        %v1509 = vmul.f32 %v1373, %v1483
        %v1510 = vmul.f32 %v1374, %v1483
        %v1511 = vmul.f32 %v1375, %v1483
        %v1512 = vmul.f32 %v1376, %v1483
        %v1513 = vmul.f32 %v1377, %v1483
        %v1514 = vmul.f32 %v1378, %v1483
        %v1515 = vmul.f32 %v1379, %v1483
        %v1516 = vmul.f32 %v1380, %v1483
        %v1517 = vmul.f32 %v1381, %v1483
        %v1518 = vmul.f32 %v1382, %v1483
        %v1519 = vmul.f32 %v1383, %v1483
        %v1520 = vmul.f32 %v1384, %v1483
        %v1521 = vmul.f32 %v1385, %v1483
        %v1522 = vmul.f32 %v1386, %v1483
        %v1523 = vmul.f32 %v1387, %v1483
        %v1524 = vmul.f32 %v1388, %v1483
        %v1525 = vmul.f32 %v1389, %v1483
        %v1526 = vmul.f32 %v1390, %v1483
        %v1527 = vmul.f32 %v1391, %v1483
        %v1528 = vmul.f32 %v1392, %v1483
        %v1529 = vmul.f32 %v1393, %v1483
        %v1530 = vmul.f32 %v1394, %v1483
        %v1531 = vmul.f32 %v1395, %v1483
        %vm1580 = vcmask 1046528
        %v1581 = vrot.slane %v1484, 1
        %v1582 = vrot.slane %v1485, 1
        %v1583 = vsel %vm1580, %v1581, %v1582
        %v1584 = vrot.slane %v1486, 1
        %v1585 = vsel %vm1580, %v1582, %v1584
        %v1586 = vrot.slane %v1487, 1
        %v1587 = vrot.slane %v1488, 1
        %v1588 = vsel %vm1580, %v1586, %v1587
        %v1589 = vrot.slane %v1489, 1
        %v1590 = vsel %vm1580, %v1587, %v1589
        %v1591 = vrot.slane %v1490, 1
        %v1592 = vrot.slane %v1491, 1
        %v1593 = vsel %vm1580, %v1591, %v1592
        %v1594 = vrot.slane %v1492, 1
        %v1595 = vsel %vm1580, %v1592, %v1594
        %v1596 = vrot.slane %v1493, 1
        %v1597 = vrot.slane %v1494, 1
        %v1598 = vsel %vm1580, %v1596, %v1597
        %v1599 = vrot.slane %v1495, 1
        %v1600 = vsel %vm1580, %v1597, %v1599
        %v1601 = vrot.slane %v1496, 1
        %v1602 = vrot.slane %v1497, 1
        %v1603 = vsel %vm1580, %v1601, %v1602
        %v1604 = vrot.slane %v1498, 1
        %v1605 = vsel %vm1580, %v1602, %v1604
        %v1606 = vrot.slane %v1499, 1
        %v1607 = vrot.slane %v1500, 1
        %v1608 = vsel %vm1580, %v1606, %v1607
        %v1609 = vrot.slane %v1501, 1
        %v1610 = vsel %vm1580, %v1607, %v1609
        %v1611 = vrot.slane %v1502, 1
        %v1612 = vrot.slane %v1503, 1
        %v1613 = vsel %vm1580, %v1611, %v1612
        %v1614 = vrot.slane %v1504, 1
        %v1615 = vsel %vm1580, %v1612, %v1614
        %v1616 = vrot.slane %v1505, 1
        %v1617 = vrot.slane %v1506, 1
        %v1618 = vsel %vm1580, %v1616, %v1617
        %v1619 = vrot.slane %v1507, 1
        %v1620 = vsel %vm1580, %v1617, %v1619
        %v1621 = vrot.slane %v1508, 1
        %v1622 = vrot.slane %v1509, 1
        %v1623 = vsel %vm1580, %v1621, %v1622
        %v1624 = vrot.slane %v1510, 1
        %v1625 = vsel %vm1580, %v1622, %v1624
        %v1626 = vrot.slane %v1511, 1
        %v1627 = vrot.slane %v1512, 1
        %v1628 = vsel %vm1580, %v1626, %v1627
        %v1629 = vrot.slane %v1513, 1
        %v1630 = vsel %vm1580, %v1627, %v1629
        %v1631 = vrot.slane %v1514, 1
        %v1632 = vrot.slane %v1515, 1
        %v1633 = vsel %vm1580, %v1631, %v1632
        %v1634 = vrot.slane %v1516, 1
        %v1635 = vsel %vm1580, %v1632, %v1634
        %v1636 = vrot.slane %v1517, 1
        %v1637 = vrot.slane %v1518, 1
        %v1638 = vsel %vm1580, %v1636, %v1637
        %v1639 = vrot.slane %v1519, 1
        %v1640 = vsel %vm1580, %v1637, %v1639
        %v1641 = vrot.slane %v1520, 1
        %v1642 = vrot.slane %v1521, 1
        %v1643 = vsel %vm1580, %v1641, %v1642
        %v1644 = vrot.slane %v1522, 1
        %v1645 = vsel %vm1580, %v1642, %v1644
        %v1646 = vrot.slane %v1523, 1
        %v1647 = vrot.slane %v1524, 1
        %v1648 = vsel %vm1580, %v1646, %v1647
        %v1649 = vrot.slane %v1525, 1
        %v1650 = vsel %vm1580, %v1647, %v1649
        %v1651 = vrot.slane %v1526, 1
        %v1652 = vrot.slane %v1527, 1
        %v1653 = vsel %vm1580, %v1651, %v1652
        %v1654 = vrot.slane %v1528, 1
        %v1655 = vsel %vm1580, %v1652, %v1654
        %v1656 = vrot.slane %v1529, 1
        %v1657 = vrot.slane %v1530, 1
        %v1658 = vsel %vm1580, %v1656, %v1657
        %v1659 = vrot.slane %v1531, 1
        %v1660 = vsel %vm1580, %v1657, %v1659
        %v1693 = vadd.f32 %v1448, %v1583
        %v1694 = vadd.f32 %v1449, %v1585
        %v1695 = vadd.f32 %v1450, %v1588
        %v1696 = vadd.f32 %v1451, %v1590
        %v1697 = vadd.f32 %v1452, %v1593
        %v1698 = vadd.f32 %v1453, %v1595
        %v1699 = vadd.f32 %v1454, %v1598
        %v1700 = vadd.f32 %v1455, %v1600
        %v1701 = vadd.f32 %v1456, %v1603
        %v1702 = vadd.f32 %v1457, %v1605
        %v1703 = vadd.f32 %v1458, %v1608
        %v1704 = vadd.f32 %v1459, %v1610
        %v1705 = vadd.f32 %v1460, %v1613
        %v1706 = vadd.f32 %v1461, %v1615
        %v1707 = vadd.f32 %v1462, %v1618
        %v1708 = vadd.f32 %v1463, %v1620
        %v1709 = vadd.f32 %v1464, %v1623
        %v1710 = vadd.f32 %v1465, %v1625
        %v1711 = vadd.f32 %v1466, %v1628
        %v1712 = vadd.f32 %v1467, %v1630
        %v1713 = vadd.f32 %v1468, %v1633
        %v1714 = vadd.f32 %v1469, %v1635
        %v1715 = vadd.f32 %v1470, %v1638
        %v1716 = vadd.f32 %v1471, %v1640
        %v1717 = vadd.f32 %v1472, %v1643
        %v1718 = vadd.f32 %v1473, %v1645
        %v1719 = vadd.f32 %v1474, %v1648
        %v1720 = vadd.f32 %v1475, %v1650
        %v1721 = vadd.f32 %v1476, %v1653
        %v1722 = vadd.f32 %v1477, %v1655
        %v1723 = vadd.f32 %v1478, %v1658
        %v1724 = vadd.f32 %v1479, %v1660
        %v1725 = vlaneseq
        %v1726 = vshrl.u32 %v1725, 7
        %v1727 = vsub.s32 2, %v1726
        %v1728 = vrot.slane %v1408, %v1727
        %v1729 = vmul.f32 %v1348, %v1728
        %v1730 = vmul.f32 %v1349, %v1728
        %v1731 = vmul.f32 %v1350, %v1728
        %v1732 = vmul.f32 %v1351, %v1728
        %v1733 = vmul.f32 %v1352, %v1728
        %v1734 = vmul.f32 %v1353, %v1728
        %v1735 = vmul.f32 %v1354, %v1728
        %v1736 = vmul.f32 %v1355, %v1728
        %v1737 = vmul.f32 %v1356, %v1728
        %v1738 = vmul.f32 %v1357, %v1728
        %v1739 = vmul.f32 %v1358, %v1728
        %v1740 = vmul.f32 %v1359, %v1728
        %v1741 = vmul.f32 %v1360, %v1728
        %v1742 = vmul.f32 %v1361, %v1728
        %v1743 = vmul.f32 %v1362, %v1728
        %v1744 = vmul.f32 %v1363, %v1728
        %v1745 = vmul.f32 %v1364, %v1728
        %v1746 = vmul.f32 %v1365, %v1728
        %v1747 = vmul.f32 %v1366, %v1728
        %v1748 = vmul.f32 %v1367, %v1728
        %v1749 = vmul.f32 %v1368, %v1728
        %v1750 = vmul.f32 %v1369, %v1728
        %v1751 = vmul.f32 %v1370, %v1728
        %v1752 = vmul.f32 %v1371, %v1728
        %v1753 = vmul.f32 %v1372, %v1728
        %v1754 = vmul.f32 %v1373, %v1728
        %v1755 = vmul.f32 %v1374, %v1728
        %v1756 = vmul.f32 %v1375, %v1728
        %v1757 = vmul.f32 %v1376, %v1728
        %v1758 = vmul.f32 %v1377, %v1728
        %v1759 = vmul.f32 %v1378, %v1728
        %v1760 = vmul.f32 %v1379, %v1728
        %v1761 = vmul.f32 %v1380, %v1728
        %v1762 = vmul.f32 %v1381, %v1728
        %v1763 = vmul.f32 %v1382, %v1728
        %v1764 = vmul.f32 %v1383, %v1728
        %v1765 = vmul.f32 %v1384, %v1728
        %v1766 = vmul.f32 %v1385, %v1728
        %v1767 = vmul.f32 %v1386, %v1728
        %v1768 = vmul.f32 %v1387, %v1728
        %v1769 = vmul.f32 %v1388, %v1728
        %v1770 = vmul.f32 %v1389, %v1728
        %v1771 = vmul.f32 %v1390, %v1728
        %v1772 = vmul.f32 %v1391, %v1728
        %v1773 = vmul.f32 %v1392, %v1728
        %v1774 = vmul.f32 %v1393, %v1728
        %v1775 = vmul.f32 %v1394, %v1728
        %v1776 = vmul.f32 %v1395, %v1728
        %vm1825 = vcmask 1045504
        %v1826 = vrot.slane %v1729, 2
        %v1827 = vrot.slane %v1730, 2
        %v1828 = vsel %vm1825, %v1826, %v1827
        %v1829 = vrot.slane %v1731, 2
        %v1830 = vsel %vm1825, %v1827, %v1829
        %v1831 = vrot.slane %v1732, 2
        %v1832 = vrot.slane %v1733, 2
        %v1833 = vsel %vm1825, %v1831, %v1832
        %v1834 = vrot.slane %v1734, 2
        %v1835 = vsel %vm1825, %v1832, %v1834
        %v1836 = vrot.slane %v1735, 2
        %v1837 = vrot.slane %v1736, 2
        %v1838 = vsel %vm1825, %v1836, %v1837
        %v1839 = vrot.slane %v1737, 2
        %v1840 = vsel %vm1825, %v1837, %v1839
        %v1841 = vrot.slane %v1738, 2
        %v1842 = vrot.slane %v1739, 2
        %v1843 = vsel %vm1825, %v1841, %v1842
        %v1844 = vrot.slane %v1740, 2
        %v1845 = vsel %vm1825, %v1842, %v1844
        %v1846 = vrot.slane %v1741, 2
        %v1847 = vrot.slane %v1742, 2
        %v1848 = vsel %vm1825, %v1846, %v1847
        %v1849 = vrot.slane %v1743, 2
        %v1850 = vsel %vm1825, %v1847, %v1849
        %v1851 = vrot.slane %v1744, 2
        %v1852 = vrot.slane %v1745, 2
        %v1853 = vsel %vm1825, %v1851, %v1852
        %v1854 = vrot.slane %v1746, 2
        %v1855 = vsel %vm1825, %v1852, %v1854
        %v1856 = vrot.slane %v1747, 2
        %v1857 = vrot.slane %v1748, 2
        %v1858 = vsel %vm1825, %v1856, %v1857
        %v1859 = vrot.slane %v1749, 2
        %v1860 = vsel %vm1825, %v1857, %v1859
        %v1861 = vrot.slane %v1750, 2
        %v1862 = vrot.slane %v1751, 2
        %v1863 = vsel %vm1825, %v1861, %v1862
        %v1864 = vrot.slane %v1752, 2
        %v1865 = vsel %vm1825, %v1862, %v1864
        %v1866 = vrot.slane %v1753, 2
        %v1867 = vrot.slane %v1754, 2
        %v1868 = vsel %vm1825, %v1866, %v1867
        %v1869 = vrot.slane %v1755, 2
        %v1870 = vsel %vm1825, %v1867, %v1869
        %v1871 = vrot.slane %v1756, 2
        %v1872 = vrot.slane %v1757, 2
        %v1873 = vsel %vm1825, %v1871, %v1872
        %v1874 = vrot.slane %v1758, 2
        %v1875 = vsel %vm1825, %v1872, %v1874
        %v1876 = vrot.slane %v1759, 2
        %v1877 = vrot.slane %v1760, 2
        %v1878 = vsel %vm1825, %v1876, %v1877
        %v1879 = vrot.slane %v1761, 2
        %v1880 = vsel %vm1825, %v1877, %v1879
        %v1881 = vrot.slane %v1762, 2
        %v1882 = vrot.slane %v1763, 2
        %v1883 = vsel %vm1825, %v1881, %v1882
        %v1884 = vrot.slane %v1764, 2
        %v1885 = vsel %vm1825, %v1882, %v1884
        %v1886 = vrot.slane %v1765, 2
        %v1887 = vrot.slane %v1766, 2
        %v1888 = vsel %vm1825, %v1886, %v1887
        %v1889 = vrot.slane %v1767, 2
        %v1890 = vsel %vm1825, %v1887, %v1889
        %v1891 = vrot.slane %v1768, 2
        %v1892 = vrot.slane %v1769, 2
        %v1893 = vsel %vm1825, %v1891, %v1892
        %v1894 = vrot.slane %v1770, 2
        %v1895 = vsel %vm1825, %v1892, %v1894
        %v1896 = vrot.slane %v1771, 2
        %v1897 = vrot.slane %v1772, 2
        %v1898 = vsel %vm1825, %v1896, %v1897
        %v1899 = vrot.slane %v1773, 2
        %v1900 = vsel %vm1825, %v1897, %v1899
        %v1901 = vrot.slane %v1774, 2
        %v1902 = vrot.slane %v1775, 2
        %v1903 = vsel %vm1825, %v1901, %v1902
        %v1904 = vrot.slane %v1776, 2
        %v1905 = vsel %vm1825, %v1902, %v1904
        %v1938 = vadd.f32 %v1693, %v1828
        %v1939 = vadd.f32 %v1694, %v1830
        %v1940 = vadd.f32 %v1695, %v1833
        %v1941 = vadd.f32 %v1696, %v1835
        %v1942 = vadd.f32 %v1697, %v1838
        %v1943 = vadd.f32 %v1698, %v1840
        %v1944 = vadd.f32 %v1699, %v1843
        %v1945 = vadd.f32 %v1700, %v1845
        %v1946 = vadd.f32 %v1701, %v1848
        %v1947 = vadd.f32 %v1702, %v1850
        %v1948 = vadd.f32 %v1703, %v1853
        %v1949 = vadd.f32 %v1704, %v1855
        %v1950 = vadd.f32 %v1705, %v1858
        %v1951 = vadd.f32 %v1706, %v1860
        %v1952 = vadd.f32 %v1707, %v1863
        %v1953 = vadd.f32 %v1708, %v1865
        %v1954 = vadd.f32 %v1709, %v1868
        %v1955 = vadd.f32 %v1710, %v1870
        %v1956 = vadd.f32 %v1711, %v1873
        %v1957 = vadd.f32 %v1712, %v1875
        %v1958 = vadd.f32 %v1713, %v1878
        %v1959 = vadd.f32 %v1714, %v1880
        %v1960 = vadd.f32 %v1715, %v1883
        %v1961 = vadd.f32 %v1716, %v1885
        %v1962 = vadd.f32 %v1717, %v1888
        %v1963 = vadd.f32 %v1718, %v1890
        %v1964 = vadd.f32 %v1719, %v1893
        %v1965 = vadd.f32 %v1720, %v1895
        %v1966 = vadd.f32 %v1721, %v1898
        %v1967 = vadd.f32 %v1722, %v1900
        %v1968 = vadd.f32 %v1723, %v1903
        %v1969 = vadd.f32 %v1724, %v1905
        %v1970 = vlaneseq
        %v1971 = vshrl.u32 %v1970, 7
        %v1972 = vsub.s32 3, %v1971
        %v1973 = vrot.slane %v1408, %v1972
        %v1974 = vmul.f32 %v1348, %v1973
        %v1975 = vmul.f32 %v1349, %v1973
        %v1976 = vmul.f32 %v1350, %v1973
        %v1977 = vmul.f32 %v1351, %v1973
        %v1978 = vmul.f32 %v1352, %v1973
        %v1979 = vmul.f32 %v1353, %v1973
        %v1980 = vmul.f32 %v1354, %v1973
        %v1981 = vmul.f32 %v1355, %v1973
        %v1982 = vmul.f32 %v1356, %v1973
        %v1983 = vmul.f32 %v1357, %v1973
        %v1984 = vmul.f32 %v1358, %v1973
        %v1985 = vmul.f32 %v1359, %v1973
        %v1986 = vmul.f32 %v1360, %v1973
        %v1987 = vmul.f32 %v1361, %v1973
        %v1988 = vmul.f32 %v1362, %v1973
        %v1989 = vmul.f32 %v1363, %v1973
        %v1990 = vmul.f32 %v1364, %v1973
        %v1991 = vmul.f32 %v1365, %v1973
        %v1992 = vmul.f32 %v1366, %v1973
        %v1993 = vmul.f32 %v1367, %v1973
        %v1994 = vmul.f32 %v1368, %v1973
        %v1995 = vmul.f32 %v1369, %v1973
        %v1996 = vmul.f32 %v1370, %v1973
        %v1997 = vmul.f32 %v1371, %v1973
        %v1998 = vmul.f32 %v1372, %v1973
        %v1999 = vmul.f32 %v1373, %v1973
        %v2000 = vmul.f32 %v1374, %v1973
        %v2001 = vmul.f32 %v1375, %v1973
        %v2002 = vmul.f32 %v1376, %v1973
        %v2003 = vmul.f32 %v1377, %v1973
        %v2004 = vmul.f32 %v1378, %v1973
        %v2005 = vmul.f32 %v1379, %v1973
        %v2006 = vmul.f32 %v1380, %v1973
        %v2007 = vmul.f32 %v1381, %v1973
        %v2008 = vmul.f32 %v1382, %v1973
        %v2009 = vmul.f32 %v1383, %v1973
        %v2010 = vmul.f32 %v1384, %v1973
        %v2011 = vmul.f32 %v1385, %v1973
        %v2012 = vmul.f32 %v1386, %v1973
        %v2013 = vmul.f32 %v1387, %v1973
        %v2014 = vmul.f32 %v1388, %v1973
        %v2015 = vmul.f32 %v1389, %v1973
        %v2016 = vmul.f32 %v1390, %v1973
        %v2017 = vmul.f32 %v1391, %v1973
        %v2018 = vmul.f32 %v1392, %v1973
        %v2019 = vmul.f32 %v1393, %v1973
        %v2020 = vmul.f32 %v1394, %v1973
        %v2021 = vmul.f32 %v1395, %v1973
        %vm2070 = vcmask 1044480
        %v2071 = vrot.slane %v1974, 3
        %v2072 = vrot.slane %v1975, 3
        %v2073 = vsel %vm2070, %v2071, %v2072
        %v2074 = vrot.slane %v1976, 3
        %v2075 = vsel %vm2070, %v2072, %v2074
        %v2076 = vrot.slane %v1977, 3
        %v2077 = vrot.slane %v1978, 3
        %v2078 = vsel %vm2070, %v2076, %v2077
        %v2079 = vrot.slane %v1979, 3
        %v2080 = vsel %vm2070, %v2077, %v2079
        %v2081 = vrot.slane %v1980, 3
        %v2082 = vrot.slane %v1981, 3
        %v2083 = vsel %vm2070, %v2081, %v2082
        %v2084 = vrot.slane %v1982, 3
        %v2085 = vsel %vm2070, %v2082, %v2084
        %v2086 = vrot.slane %v1983, 3
        %v2087 = vrot.slane %v1984, 3
        %v2088 = vsel %vm2070, %v2086, %v2087
        %v2089 = vrot.slane %v1985, 3
        %v2090 = vsel %vm2070, %v2087, %v2089
        %v2091 = vrot.slane %v1986, 3
        %v2092 = vrot.slane %v1987, 3
        %v2093 = vsel %vm2070, %v2091, %v2092
        %v2094 = vrot.slane %v1988, 3
        %v2095 = vsel %vm2070, %v2092, %v2094
        %v2096 = vrot.slane %v1989, 3
        %v2097 = vrot.slane %v1990, 3
        %v2098 = vsel %vm2070, %v2096, %v2097
        %v2099 = vrot.slane %v1991, 3
        %v2100 = vsel %vm2070, %v2097, %v2099
        %v2101 = vrot.slane %v1992, 3
        %v2102 = vrot.slane %v1993, 3
        %v2103 = vsel %vm2070, %v2101, %v2102
        %v2104 = vrot.slane %v1994, 3
        %v2105 = vsel %vm2070, %v2102, %v2104
        %v2106 = vrot.slane %v1995, 3
        %v2107 = vrot.slane %v1996, 3
        %v2108 = vsel %vm2070, %v2106, %v2107
        %v2109 = vrot.slane %v1997, 3
        %v2110 = vsel %vm2070, %v2107, %v2109
        %v2111 = vrot.slane %v1998, 3
        %v2112 = vrot.slane %v1999, 3
        %v2113 = vsel %vm2070, %v2111, %v2112
        %v2114 = vrot.slane %v2000, 3
        %v2115 = vsel %vm2070, %v2112, %v2114
        %v2116 = vrot.slane %v2001, 3
        %v2117 = vrot.slane %v2002, 3
        %v2118 = vsel %vm2070, %v2116, %v2117
        %v2119 = vrot.slane %v2003, 3
        %v2120 = vsel %vm2070, %v2117, %v2119
        %v2121 = vrot.slane %v2004, 3
        %v2122 = vrot.slane %v2005, 3
        %v2123 = vsel %vm2070, %v2121, %v2122
        %v2124 = vrot.slane %v2006, 3
        %v2125 = vsel %vm2070, %v2122, %v2124
        %v2126 = vrot.slane %v2007, 3
        %v2127 = vrot.slane %v2008, 3
        %v2128 = vsel %vm2070, %v2126, %v2127
        %v2129 = vrot.slane %v2009, 3
        %v2130 = vsel %vm2070, %v2127, %v2129
        %v2131 = vrot.slane %v2010, 3
        %v2132 = vrot.slane %v2011, 3
        %v2133 = vsel %vm2070, %v2131, %v2132
        %v2134 = vrot.slane %v2012, 3
        %v2135 = vsel %vm2070, %v2132, %v2134
        %v2136 = vrot.slane %v2013, 3
        %v2137 = vrot.slane %v2014, 3
        %v2138 = vsel %vm2070, %v2136, %v2137
        %v2139 = vrot.slane %v2015, 3
        %v2140 = vsel %vm2070, %v2137, %v2139
        %v2141 = vrot.slane %v2016, 3
        %v2142 = vrot.slane %v2017, 3
        %v2143 = vsel %vm2070, %v2141, %v2142
        %v2144 = vrot.slane %v2018, 3
        %v2145 = vsel %vm2070, %v2142, %v2144
        %v2146 = vrot.slane %v2019, 3
        %v2147 = vrot.slane %v2020, 3
        %v2148 = vsel %vm2070, %v2146, %v2147
        %v2149 = vrot.slane %v2021, 3
        %v2150 = vsel %vm2070, %v2147, %v2149
        %v2183 = vadd.f32 %v1938, %v2073
        %v2184 = vadd.f32 %v1939, %v2075
        %v2185 = vadd.f32 %v1940, %v2078
        %v2186 = vadd.f32 %v1941, %v2080
        %v2187 = vadd.f32 %v1942, %v2083
        %v2188 = vadd.f32 %v1943, %v2085
        %v2189 = vadd.f32 %v1944, %v2088
        %v2190 = vadd.f32 %v1945, %v2090
        %v2191 = vadd.f32 %v1946, %v2093
        %v2192 = vadd.f32 %v1947, %v2095
        %v2193 = vadd.f32 %v1948, %v2098
        %v2194 = vadd.f32 %v1949, %v2100
        %v2195 = vadd.f32 %v1950, %v2103
        %v2196 = vadd.f32 %v1951, %v2105
        %v2197 = vadd.f32 %v1952, %v2108
        %v2198 = vadd.f32 %v1953, %v2110
        %v2199 = vadd.f32 %v1954, %v2113
        %v2200 = vadd.f32 %v1955, %v2115
        %v2201 = vadd.f32 %v1956, %v2118
        %v2202 = vadd.f32 %v1957, %v2120
        %v2203 = vadd.f32 %v1958, %v2123
        %v2204 = vadd.f32 %v1959, %v2125
        %v2205 = vadd.f32 %v1960, %v2128
        %v2206 = vadd.f32 %v1961, %v2130
        %v2207 = vadd.f32 %v1962, %v2133
        %v2208 = vadd.f32 %v1963, %v2135
        %v2209 = vadd.f32 %v1964, %v2138
        %v2210 = vadd.f32 %v1965, %v2140
        %v2211 = vadd.f32 %v1966, %v2143
        %v2212 = vadd.f32 %v1967, %v2145
        %v2213 = vadd.f32 %v1968, %v2148
        %v2214 = vadd.f32 %v1969, %v2150
        %v2215 = vlaneseq
        %v2216 = vshrl.u32 %v2215, 7
        %v2217 = vsub.s32 4, %v2216
        %v2218 = vrot.slane %v1408, %v2217
        %v2219 = vmul.f32 %v1348, %v2218
        %v2220 = vmul.f32 %v1349, %v2218
        %v2221 = vmul.f32 %v1350, %v2218
        %v2222 = vmul.f32 %v1351, %v2218
        %v2223 = vmul.f32 %v1352, %v2218
        %v2224 = vmul.f32 %v1353, %v2218
        %v2225 = vmul.f32 %v1354, %v2218
        %v2226 = vmul.f32 %v1355, %v2218
        %v2227 = vmul.f32 %v1356, %v2218
        %v2228 = vmul.f32 %v1357, %v2218
        %v2229 = vmul.f32 %v1358, %v2218
        %v2230 = vmul.f32 %v1359, %v2218
        %v2231 = vmul.f32 %v1360, %v2218
        %v2232 = vmul.f32 %v1361, %v2218
        %v2233 = vmul.f32 %v1362, %v2218
        %v2234 = vmul.f32 %v1363, %v2218
        %v2235 = vmul.f32 %v1364, %v2218
        %v2236 = vmul.f32 %v1365, %v2218
        %v2237 = vmul.f32 %v1366, %v2218
        %v2238 = vmul.f32 %v1367, %v2218
        %v2239 = vmul.f32 %v1368, %v2218
        %v2240 = vmul.f32 %v1369, %v2218
        %v2241 = vmul.f32 %v1370, %v2218
        %v2242 = vmul.f32 %v1371, %v2218
        %v2243 = vmul.f32 %v1372, %v2218
        %v2244 = vmul.f32 %v1373, %v2218
        %v2245 = vmul.f32 %v1374, %v2218
        %v2246 = vmul.f32 %v1375, %v2218
        %v2247 = vmul.f32 %v1376, %v2218
        %v2248 = vmul.f32 %v1377, %v2218
        %v2249 = vmul.f32 %v1378, %v2218
        %v2250 = vmul.f32 %v1379, %v2218
        %v2251 = vmul.f32 %v1380, %v2218
        %v2252 = vmul.f32 %v1381, %v2218
        %v2253 = vmul.f32 %v1382, %v2218
        %v2254 = vmul.f32 %v1383, %v2218
        %v2255 = vmul.f32 %v1384, %v2218
        %v2256 = vmul.f32 %v1385, %v2218
        %v2257 = vmul.f32 %v1386, %v2218
        %v2258 = vmul.f32 %v1387, %v2218
        %v2259 = vmul.f32 %v1388, %v2218
        %v2260 = vmul.f32 %v1389, %v2218
        %v2261 = vmul.f32 %v1390, %v2218
        %v2262 = vmul.f32 %v1391, %v2218
        %v2263 = vmul.f32 %v1392, %v2218
        %v2264 = vmul.f32 %v1393, %v2218
        %v2265 = vmul.f32 %v1394, %v2218
        %v2266 = vmul.f32 %v1395, %v2218
        %vm2315 = vcmask 1043456
        %v2316 = vrot.slane %v2219, 4
        %v2317 = vrot.slane %v2220, 4
        %v2318 = vsel %vm2315, %v2316, %v2317
        %v2319 = vrot.slane %v2221, 4
        %v2320 = vsel %vm2315, %v2317, %v2319
        %v2321 = vrot.slane %v2222, 4
        %v2322 = vrot.slane %v2223, 4
        %v2323 = vsel %vm2315, %v2321, %v2322
        %v2324 = vrot.slane %v2224, 4
        %v2325 = vsel %vm2315, %v2322, %v2324
        %v2326 = vrot.slane %v2225, 4
        %v2327 = vrot.slane %v2226, 4
        %v2328 = vsel %vm2315, %v2326, %v2327
        %v2329 = vrot.slane %v2227, 4
        %v2330 = vsel %vm2315, %v2327, %v2329
        %v2331 = vrot.slane %v2228, 4
        %v2332 = vrot.slane %v2229, 4
        %v2333 = vsel %vm2315, %v2331, %v2332
        %v2334 = vrot.slane %v2230, 4
        %v2335 = vsel %vm2315, %v2332, %v2334
        %v2336 = vrot.slane %v2231, 4
        %v2337 = vrot.slane %v2232, 4
        %v2338 = vsel %vm2315, %v2336, %v2337
        %v2339 = vrot.slane %v2233, 4
        %v2340 = vsel %vm2315, %v2337, %v2339
        %v2341 = vrot.slane %v2234, 4
        %v2342 = vrot.slane %v2235, 4
        %v2343 = vsel %vm2315, %v2341, %v2342
        %v2344 = vrot.slane %v2236, 4
        %v2345 = vsel %vm2315, %v2342, %v2344
        %v2346 = vrot.slane %v2237, 4
        %v2347 = vrot.slane %v2238, 4
        %v2348 = vsel %vm2315, %v2346, %v2347
        %v2349 = vrot.slane %v2239, 4
        %v2350 = vsel %vm2315, %v2347, %v2349
        %v2351 = vrot.slane %v2240, 4
        %v2352 = vrot.slane %v2241, 4
        %v2353 = vsel %vm2315, %v2351, %v2352
        %v2354 = vrot.slane %v2242, 4
        %v2355 = vsel %vm2315, %v2352, %v2354
        %v2356 = vrot.slane %v2243, 4
        %v2357 = vrot.slane %v2244, 4
        %v2358 = vsel %vm2315, %v2356, %v2357
        %v2359 = vrot.slane %v2245, 4
        %v2360 = vsel %vm2315, %v2357, %v2359
        %v2361 = vrot.slane %v2246, 4
        %v2362 = vrot.slane %v2247, 4
        %v2363 = vsel %vm2315, %v2361, %v2362
        %v2364 = vrot.slane %v2248, 4
        %v2365 = vsel %vm2315, %v2362, %v2364
        %v2366 = vrot.slane %v2249, 4
        %v2367 = vrot.slane %v2250, 4
        %v2368 = vsel %vm2315, %v2366, %v2367
        %v2369 = vrot.slane %v2251, 4
        %v2370 = vsel %vm2315, %v2367, %v2369
        %v2371 = vrot.slane %v2252, 4
        %v2372 = vrot.slane %v2253, 4
        %v2373 = vsel %vm2315, %v2371, %v2372
        %v2374 = vrot.slane %v2254, 4
        %v2375 = vsel %vm2315, %v2372, %v2374
        %v2376 = vrot.slane %v2255, 4
        %v2377 = vrot.slane %v2256, 4
        %v2378 = vsel %vm2315, %v2376, %v2377
        %v2379 = vrot.slane %v2257, 4
        %v2380 = vsel %vm2315, %v2377, %v2379
        %v2381 = vrot.slane %v2258, 4
        %v2382 = vrot.slane %v2259, 4
        %v2383 = vsel %vm2315, %v2381, %v2382
        %v2384 = vrot.slane %v2260, 4
        %v2385 = vsel %vm2315, %v2382, %v2384
        %v2386 = vrot.slane %v2261, 4
        %v2387 = vrot.slane %v2262, 4
        %v2388 = vsel %vm2315, %v2386, %v2387
        %v2389 = vrot.slane %v2263, 4
        %v2390 = vsel %vm2315, %v2387, %v2389
        %v2391 = vrot.slane %v2264, 4
        %v2392 = vrot.slane %v2265, 4
        %v2393 = vsel %vm2315, %v2391, %v2392
        %v2394 = vrot.slane %v2266, 4
        %v2395 = vsel %vm2315, %v2392, %v2394
        %v2428 = vadd.f32 %v2183, %v2318
        %v2429 = vadd.f32 %v2184, %v2320
        %v2430 = vadd.f32 %v2185, %v2323
        %v2431 = vadd.f32 %v2186, %v2325
        %v2432 = vadd.f32 %v2187, %v2328
        %v2433 = vadd.f32 %v2188, %v2330
        %v2434 = vadd.f32 %v2189, %v2333
        %v2435 = vadd.f32 %v2190, %v2335
        %v2436 = vadd.f32 %v2191, %v2338
        %v2437 = vadd.f32 %v2192, %v2340
        %v2438 = vadd.f32 %v2193, %v2343
        %v2439 = vadd.f32 %v2194, %v2345
        %v2440 = vadd.f32 %v2195, %v2348
        %v2441 = vadd.f32 %v2196, %v2350
        %v2442 = vadd.f32 %v2197, %v2353
        %v2443 = vadd.f32 %v2198, %v2355
        %v2444 = vadd.f32 %v2199, %v2358
        %v2445 = vadd.f32 %v2200, %v2360
        %v2446 = vadd.f32 %v2201, %v2363
        %v2447 = vadd.f32 %v2202, %v2365
        %v2448 = vadd.f32 %v2203, %v2368
        %v2449 = vadd.f32 %v2204, %v2370
        %v2450 = vadd.f32 %v2205, %v2373
        %v2451 = vadd.f32 %v2206, %v2375
        %v2452 = vadd.f32 %v2207, %v2378
        %v2453 = vadd.f32 %v2208, %v2380
        %v2454 = vadd.f32 %v2209, %v2383
        %v2455 = vadd.f32 %v2210, %v2385
        %v2456 = vadd.f32 %v2211, %v2388
        %v2457 = vadd.f32 %v2212, %v2390
        %v2458 = vadd.f32 %v2213, %v2393
        %v2459 = vadd.f32 %v2214, %v2395
        %v2460 = vlaneseq
        %v2461 = vshrl.u32 %v2460, 7
        %v2462 = vsub.s32 5, %v2461
        %v2463 = vrot.slane %v1408, %v2462
        %v2464 = vmul.f32 %v1351, %v2463
        %v2465 = vmul.f32 %v1352, %v2463
        %v2466 = vmul.f32 %v1354, %v2463
        %v2467 = vmul.f32 %v1355, %v2463
        %v2468 = vmul.f32 %v1357, %v2463
        %v2469 = vmul.f32 %v1358, %v2463
        %v2470 = vmul.f32 %v1360, %v2463
        %v2471 = vmul.f32 %v1361, %v2463
        %v2472 = vmul.f32 %v1363, %v2463
        %v2473 = vmul.f32 %v1364, %v2463
        %v2474 = vmul.f32 %v1366, %v2463
        %v2475 = vmul.f32 %v1367, %v2463
        %v2476 = vmul.f32 %v1369, %v2463
        %v2477 = vmul.f32 %v1370, %v2463
        %v2478 = vmul.f32 %v1372, %v2463
        %v2479 = vmul.f32 %v1373, %v2463
        %v2480 = vmul.f32 %v1375, %v2463
        %v2481 = vmul.f32 %v1376, %v2463
        %v2482 = vmul.f32 %v1378, %v2463
        %v2483 = vmul.f32 %v1379, %v2463
        %v2484 = vmul.f32 %v1381, %v2463
        %v2485 = vmul.f32 %v1382, %v2463
        %v2486 = vmul.f32 %v1384, %v2463
        %v2487 = vmul.f32 %v1385, %v2463
        %v2488 = vmul.f32 %v1387, %v2463
        %v2489 = vmul.f32 %v1388, %v2463
        %v2490 = vmul.f32 %v1390, %v2463
        %v2491 = vmul.f32 %v1391, %v2463
        %v2492 = vmul.f32 %v1393, %v2463
        %v2493 = vmul.f32 %v1394, %v2463
        %v2494 = vmul.f32 %v1396, %v2463
        %v2495 = vmul.f32 %v1397, %v2463
        %v2496 = vadd.f32 %v2428, %v2464
        %v2497 = vadd.f32 %v2429, %v2465
        %v2498 = vadd.f32 %v2430, %v2466
        %v2499 = vadd.f32 %v2431, %v2467
        %v2500 = vadd.f32 %v2432, %v2468
        %v2501 = vadd.f32 %v2433, %v2469
        %v2502 = vadd.f32 %v2434, %v2470
        %v2503 = vadd.f32 %v2435, %v2471
        %v2504 = vadd.f32 %v2436, %v2472
        %v2505 = vadd.f32 %v2437, %v2473
        %v2506 = vadd.f32 %v2438, %v2474
        %v2507 = vadd.f32 %v2439, %v2475
        %v2508 = vadd.f32 %v2440, %v2476
        %v2509 = vadd.f32 %v2441, %v2477
        %v2510 = vadd.f32 %v2442, %v2478
        %v2511 = vadd.f32 %v2443, %v2479
        %v2512 = vadd.f32 %v2444, %v2480
        %v2513 = vadd.f32 %v2445, %v2481
        %v2514 = vadd.f32 %v2446, %v2482
        %v2515 = vadd.f32 %v2447, %v2483
        %v2516 = vadd.f32 %v2448, %v2484
        %v2517 = vadd.f32 %v2449, %v2485
        %v2518 = vadd.f32 %v2450, %v2486
        %v2519 = vadd.f32 %v2451, %v2487
        %v2520 = vadd.f32 %v2452, %v2488
        %v2521 = vadd.f32 %v2453, %v2489
        %v2522 = vadd.f32 %v2454, %v2490
        %v2523 = vadd.f32 %v2455, %v2491
        %v2524 = vadd.f32 %v2456, %v2492
        %v2525 = vadd.f32 %v2457, %v2493
        %v2526 = vadd.f32 %v2458, %v2494
        %v2527 = vadd.f32 %v2459, %v2495
        %v2528 = vlaneseq
        %v2529 = vshrl.u32 %v2528, 7
        %v2530 = vsub.s32 6, %v2529
        %v2531 = vrot.slane %v1408, %v2530
        %v2532 = vmul.f32 %v1351, %v2531
        %v2533 = vmul.f32 %v1352, %v2531
        %v2534 = vmul.f32 %v1353, %v2531
        %v2535 = vmul.f32 %v1354, %v2531
        %v2536 = vmul.f32 %v1355, %v2531
        %v2537 = vmul.f32 %v1356, %v2531
        %v2538 = vmul.f32 %v1357, %v2531
        %v2539 = vmul.f32 %v1358, %v2531
        %v2540 = vmul.f32 %v1359, %v2531
        %v2541 = vmul.f32 %v1360, %v2531
        %v2542 = vmul.f32 %v1361, %v2531
        %v2543 = vmul.f32 %v1362, %v2531
        %v2544 = vmul.f32 %v1363, %v2531
        %v2545 = vmul.f32 %v1364, %v2531
        %v2546 = vmul.f32 %v1365, %v2531
        %v2547 = vmul.f32 %v1366, %v2531
        %v2548 = vmul.f32 %v1367, %v2531
        %v2549 = vmul.f32 %v1368, %v2531
        %v2550 = vmul.f32 %v1369, %v2531
        %v2551 = vmul.f32 %v1370, %v2531
        %v2552 = vmul.f32 %v1371, %v2531
        %v2553 = vmul.f32 %v1372, %v2531
        %v2554 = vmul.f32 %v1373, %v2531
        %v2555 = vmul.f32 %v1374, %v2531
        %v2556 = vmul.f32 %v1375, %v2531
        %v2557 = vmul.f32 %v1376, %v2531
        %v2558 = vmul.f32 %v1377, %v2531
        %v2559 = vmul.f32 %v1378, %v2531
        %v2560 = vmul.f32 %v1379, %v2531
        %v2561 = vmul.f32 %v1380, %v2531
        %v2562 = vmul.f32 %v1381, %v2531
        %v2563 = vmul.f32 %v1382, %v2531
        %v2564 = vmul.f32 %v1383, %v2531
        %v2565 = vmul.f32 %v1384, %v2531
        %v2566 = vmul.f32 %v1385, %v2531
        %v2567 = vmul.f32 %v1386, %v2531
        %v2568 = vmul.f32 %v1387, %v2531
        %v2569 = vmul.f32 %v1388, %v2531
        %v2570 = vmul.f32 %v1389, %v2531
        %v2571 = vmul.f32 %v1390, %v2531
        %v2572 = vmul.f32 %v1391, %v2531
        %v2573 = vmul.f32 %v1392, %v2531
        %v2574 = vmul.f32 %v1393, %v2531
        %v2575 = vmul.f32 %v1394, %v2531
        %v2576 = vmul.f32 %v1395, %v2531
        %v2577 = vmul.f32 %v1396, %v2531
        %v2578 = vmul.f32 %v1397, %v2531
        %v2579 = vmul.f32 %v1398, %v2531
        %v2628 = vrot.slane %v2532, 1
        %v2629 = vrot.slane %v2533, 1
        %v2630 = vsel %vm1580, %v2628, %v2629
        %v2631 = vrot.slane %v2534, 1
        %v2632 = vsel %vm1580, %v2629, %v2631
        %v2633 = vrot.slane %v2535, 1
        %v2634 = vrot.slane %v2536, 1
        %v2635 = vsel %vm1580, %v2633, %v2634
        %v2636 = vrot.slane %v2537, 1
        %v2637 = vsel %vm1580, %v2634, %v2636
        %v2638 = vrot.slane %v2538, 1
        %v2639 = vrot.slane %v2539, 1
        %v2640 = vsel %vm1580, %v2638, %v2639
        %v2641 = vrot.slane %v2540, 1
        %v2642 = vsel %vm1580, %v2639, %v2641
        %v2643 = vrot.slane %v2541, 1
        %v2644 = vrot.slane %v2542, 1
        %v2645 = vsel %vm1580, %v2643, %v2644
        %v2646 = vrot.slane %v2543, 1
        %v2647 = vsel %vm1580, %v2644, %v2646
        %v2648 = vrot.slane %v2544, 1
        %v2649 = vrot.slane %v2545, 1
        %v2650 = vsel %vm1580, %v2648, %v2649
        %v2651 = vrot.slane %v2546, 1
        %v2652 = vsel %vm1580, %v2649, %v2651
        %v2653 = vrot.slane %v2547, 1
        %v2654 = vrot.slane %v2548, 1
        %v2655 = vsel %vm1580, %v2653, %v2654
        %v2656 = vrot.slane %v2549, 1
        %v2657 = vsel %vm1580, %v2654, %v2656
        %v2658 = vrot.slane %v2550, 1
        %v2659 = vrot.slane %v2551, 1
        %v2660 = vsel %vm1580, %v2658, %v2659
        %v2661 = vrot.slane %v2552, 1
        %v2662 = vsel %vm1580, %v2659, %v2661
        %v2663 = vrot.slane %v2553, 1
        %v2664 = vrot.slane %v2554, 1
        %v2665 = vsel %vm1580, %v2663, %v2664
        %v2666 = vrot.slane %v2555, 1
        %v2667 = vsel %vm1580, %v2664, %v2666
        %v2668 = vrot.slane %v2556, 1
        %v2669 = vrot.slane %v2557, 1
        %v2670 = vsel %vm1580, %v2668, %v2669
        %v2671 = vrot.slane %v2558, 1
        %v2672 = vsel %vm1580, %v2669, %v2671
        %v2673 = vrot.slane %v2559, 1
        %v2674 = vrot.slane %v2560, 1
        %v2675 = vsel %vm1580, %v2673, %v2674
        %v2676 = vrot.slane %v2561, 1
        %v2677 = vsel %vm1580, %v2674, %v2676
        %v2678 = vrot.slane %v2562, 1
        %v2679 = vrot.slane %v2563, 1
        %v2680 = vsel %vm1580, %v2678, %v2679
        %v2681 = vrot.slane %v2564, 1
        %v2682 = vsel %vm1580, %v2679, %v2681
        %v2683 = vrot.slane %v2565, 1
        %v2684 = vrot.slane %v2566, 1
        %v2685 = vsel %vm1580, %v2683, %v2684
        %v2686 = vrot.slane %v2567, 1
        %v2687 = vsel %vm1580, %v2684, %v2686
        %v2688 = vrot.slane %v2568, 1
        %v2689 = vrot.slane %v2569, 1
        %v2690 = vsel %vm1580, %v2688, %v2689
        %v2691 = vrot.slane %v2570, 1
        %v2692 = vsel %vm1580, %v2689, %v2691
        %v2693 = vrot.slane %v2571, 1
        %v2694 = vrot.slane %v2572, 1
        %v2695 = vsel %vm1580, %v2693, %v2694
        %v2696 = vrot.slane %v2573, 1
        %v2697 = vsel %vm1580, %v2694, %v2696
        %v2698 = vrot.slane %v2574, 1
        %v2699 = vrot.slane %v2575, 1
        %v2700 = vsel %vm1580, %v2698, %v2699
        %v2701 = vrot.slane %v2576, 1
        %v2702 = vsel %vm1580, %v2699, %v2701
        %v2703 = vrot.slane %v2577, 1
        %v2704 = vrot.slane %v2578, 1
        %v2705 = vsel %vm1580, %v2703, %v2704
        %v2706 = vrot.slane %v2579, 1
        %v2707 = vsel %vm1580, %v2704, %v2706
        %v2740 = vadd.f32 %v2496, %v2630
        %v2741 = vadd.f32 %v2497, %v2632
        %v2742 = vadd.f32 %v2498, %v2635
        %v2743 = vadd.f32 %v2499, %v2637
        %v2744 = vadd.f32 %v2500, %v2640
        %v2745 = vadd.f32 %v2501, %v2642
        %v2746 = vadd.f32 %v2502, %v2645
        %v2747 = vadd.f32 %v2503, %v2647
        %v2748 = vadd.f32 %v2504, %v2650
        %v2749 = vadd.f32 %v2505, %v2652
        %v2750 = vadd.f32 %v2506, %v2655
        %v2751 = vadd.f32 %v2507, %v2657
        %v2752 = vadd.f32 %v2508, %v2660
        %v2753 = vadd.f32 %v2509, %v2662
        %v2754 = vadd.f32 %v2510, %v2665
        %v2755 = vadd.f32 %v2511, %v2667
        %v2756 = vadd.f32 %v2512, %v2670
        %v2757 = vadd.f32 %v2513, %v2672
        %v2758 = vadd.f32 %v2514, %v2675
        %v2759 = vadd.f32 %v2515, %v2677
        %v2760 = vadd.f32 %v2516, %v2680
        %v2761 = vadd.f32 %v2517, %v2682
        %v2762 = vadd.f32 %v2518, %v2685
        %v2763 = vadd.f32 %v2519, %v2687
        %v2764 = vadd.f32 %v2520, %v2690
        %v2765 = vadd.f32 %v2521, %v2692
        %v2766 = vadd.f32 %v2522, %v2695
        %v2767 = vadd.f32 %v2523, %v2697
        %v2768 = vadd.f32 %v2524, %v2700
        %v2769 = vadd.f32 %v2525, %v2702
        %v2770 = vadd.f32 %v2526, %v2705
        %v2771 = vadd.f32 %v2527, %v2707
        %v2772 = vlaneseq
        %v2773 = vshrl.u32 %v2772, 7
        %v2774 = vsub.s32 7, %v2773
        %v2775 = vrot.slane %v1408, %v2774
        %v2776 = vmul.f32 %v1351, %v2775
        %v2777 = vmul.f32 %v1352, %v2775
        %v2778 = vmul.f32 %v1353, %v2775
        %v2779 = vmul.f32 %v1354, %v2775
        %v2780 = vmul.f32 %v1355, %v2775
        %v2781 = vmul.f32 %v1356, %v2775
        %v2782 = vmul.f32 %v1357, %v2775
        %v2783 = vmul.f32 %v1358, %v2775
        %v2784 = vmul.f32 %v1359, %v2775
        %v2785 = vmul.f32 %v1360, %v2775
        %v2786 = vmul.f32 %v1361, %v2775
        %v2787 = vmul.f32 %v1362, %v2775
        %v2788 = vmul.f32 %v1363, %v2775
        %v2789 = vmul.f32 %v1364, %v2775
        %v2790 = vmul.f32 %v1365, %v2775
        %v2791 = vmul.f32 %v1366, %v2775
        %v2792 = vmul.f32 %v1367, %v2775
        %v2793 = vmul.f32 %v1368, %v2775
        %v2794 = vmul.f32 %v1369, %v2775
        %v2795 = vmul.f32 %v1370, %v2775
        %v2796 = vmul.f32 %v1371, %v2775
        %v2797 = vmul.f32 %v1372, %v2775
        %v2798 = vmul.f32 %v1373, %v2775
        %v2799 = vmul.f32 %v1374, %v2775
        %v2800 = vmul.f32 %v1375, %v2775
        %v2801 = vmul.f32 %v1376, %v2775
        %v2802 = vmul.f32 %v1377, %v2775
        %v2803 = vmul.f32 %v1378, %v2775
        %v2804 = vmul.f32 %v1379, %v2775
        %v2805 = vmul.f32 %v1380, %v2775
        %v2806 = vmul.f32 %v1381, %v2775
        %v2807 = vmul.f32 %v1382, %v2775
        %v2808 = vmul.f32 %v1383, %v2775
        %v2809 = vmul.f32 %v1384, %v2775
        %v2810 = vmul.f32 %v1385, %v2775
        %v2811 = vmul.f32 %v1386, %v2775
        %v2812 = vmul.f32 %v1387, %v2775
        %v2813 = vmul.f32 %v1388, %v2775
        %v2814 = vmul.f32 %v1389, %v2775
        %v2815 = vmul.f32 %v1390, %v2775
        %v2816 = vmul.f32 %v1391, %v2775
        %v2817 = vmul.f32 %v1392, %v2775
        %v2818 = vmul.f32 %v1393, %v2775
        %v2819 = vmul.f32 %v1394, %v2775
        %v2820 = vmul.f32 %v1395, %v2775
        %v2821 = vmul.f32 %v1396, %v2775
        %v2822 = vmul.f32 %v1397, %v2775
        %v2823 = vmul.f32 %v1398, %v2775
        %v2872 = vrot.slane %v2776, 2
        %v2873 = vrot.slane %v2777, 2
        %v2874 = vsel %vm1825, %v2872, %v2873
        %v2875 = vrot.slane %v2778, 2
        %v2876 = vsel %vm1825, %v2873, %v2875
        %v2877 = vrot.slane %v2779, 2
        %v2878 = vrot.slane %v2780, 2
        %v2879 = vsel %vm1825, %v2877, %v2878
        %v2880 = vrot.slane %v2781, 2
        %v2881 = vsel %vm1825, %v2878, %v2880
        %v2882 = vrot.slane %v2782, 2
        %v2883 = vrot.slane %v2783, 2
        %v2884 = vsel %vm1825, %v2882, %v2883
        %v2885 = vrot.slane %v2784, 2
        %v2886 = vsel %vm1825, %v2883, %v2885
        %v2887 = vrot.slane %v2785, 2
        %v2888 = vrot.slane %v2786, 2
        %v2889 = vsel %vm1825, %v2887, %v2888
        %v2890 = vrot.slane %v2787, 2
        %v2891 = vsel %vm1825, %v2888, %v2890
        %v2892 = vrot.slane %v2788, 2
        %v2893 = vrot.slane %v2789, 2
        %v2894 = vsel %vm1825, %v2892, %v2893
        %v2895 = vrot.slane %v2790, 2
        %v2896 = vsel %vm1825, %v2893, %v2895
        %v2897 = vrot.slane %v2791, 2
        %v2898 = vrot.slane %v2792, 2
        %v2899 = vsel %vm1825, %v2897, %v2898
        %v2900 = vrot.slane %v2793, 2
        %v2901 = vsel %vm1825, %v2898, %v2900
        %v2902 = vrot.slane %v2794, 2
        %v2903 = vrot.slane %v2795, 2
        %v2904 = vsel %vm1825, %v2902, %v2903
        %v2905 = vrot.slane %v2796, 2
        %v2906 = vsel %vm1825, %v2903, %v2905
        %v2907 = vrot.slane %v2797, 2
        %v2908 = vrot.slane %v2798, 2
        %v2909 = vsel %vm1825, %v2907, %v2908
        %v2910 = vrot.slane %v2799, 2
        %v2911 = vsel %vm1825, %v2908, %v2910
        %v2912 = vrot.slane %v2800, 2
        %v2913 = vrot.slane %v2801, 2
        %v2914 = vsel %vm1825, %v2912, %v2913
        %v2915 = vrot.slane %v2802, 2
        %v2916 = vsel %vm1825, %v2913, %v2915
        %v2917 = vrot.slane %v2803, 2
        %v2918 = vrot.slane %v2804, 2
        %v2919 = vsel %vm1825, %v2917, %v2918
        %v2920 = vrot.slane %v2805, 2
        %v2921 = vsel %vm1825, %v2918, %v2920
        %v2922 = vrot.slane %v2806, 2
        %v2923 = vrot.slane %v2807, 2
        %v2924 = vsel %vm1825, %v2922, %v2923
        %v2925 = vrot.slane %v2808, 2
        %v2926 = vsel %vm1825, %v2923, %v2925
        %v2927 = vrot.slane %v2809, 2
        %v2928 = vrot.slane %v2810, 2
        %v2929 = vsel %vm1825, %v2927, %v2928
        %v2930 = vrot.slane %v2811, 2
        %v2931 = vsel %vm1825, %v2928, %v2930
        %v2932 = vrot.slane %v2812, 2
        %v2933 = vrot.slane %v2813, 2
        %v2934 = vsel %vm1825, %v2932, %v2933
        %v2935 = vrot.slane %v2814, 2
        %v2936 = vsel %vm1825, %v2933, %v2935
        %v2937 = vrot.slane %v2815, 2
        %v2938 = vrot.slane %v2816, 2
        %v2939 = vsel %vm1825, %v2937, %v2938
        %v2940 = vrot.slane %v2817, 2
        %v2941 = vsel %vm1825, %v2938, %v2940
        %v2942 = vrot.slane %v2818, 2
        %v2943 = vrot.slane %v2819, 2
        %v2944 = vsel %vm1825, %v2942, %v2943
        %v2945 = vrot.slane %v2820, 2
        %v2946 = vsel %vm1825, %v2943, %v2945
        %v2947 = vrot.slane %v2821, 2
        %v2948 = vrot.slane %v2822, 2
        %v2949 = vsel %vm1825, %v2947, %v2948
        %v2950 = vrot.slane %v2823, 2
        %v2951 = vsel %vm1825, %v2948, %v2950
        %v2984 = vadd.f32 %v2740, %v2874
        %v2985 = vadd.f32 %v2741, %v2876
        %v2986 = vadd.f32 %v2742, %v2879
        %v2987 = vadd.f32 %v2743, %v2881
        %v2988 = vadd.f32 %v2744, %v2884
        %v2989 = vadd.f32 %v2745, %v2886
        %v2990 = vadd.f32 %v2746, %v2889
        %v2991 = vadd.f32 %v2747, %v2891
        %v2992 = vadd.f32 %v2748, %v2894
        %v2993 = vadd.f32 %v2749, %v2896
        %v2994 = vadd.f32 %v2750, %v2899
        %v2995 = vadd.f32 %v2751, %v2901
        %v2996 = vadd.f32 %v2752, %v2904
        %v2997 = vadd.f32 %v2753, %v2906
        %v2998 = vadd.f32 %v2754, %v2909
        %v2999 = vadd.f32 %v2755, %v2911
        %v3000 = vadd.f32 %v2756, %v2914
        %v3001 = vadd.f32 %v2757, %v2916
        %v3002 = vadd.f32 %v2758, %v2919
        %v3003 = vadd.f32 %v2759, %v2921
        %v3004 = vadd.f32 %v2760, %v2924
        %v3005 = vadd.f32 %v2761, %v2926
        %v3006 = vadd.f32 %v2762, %v2929
        %v3007 = vadd.f32 %v2763, %v2931
        %v3008 = vadd.f32 %v2764, %v2934
        %v3009 = vadd.f32 %v2765, %v2936
        %v3010 = vadd.f32 %v2766, %v2939
        %v3011 = vadd.f32 %v2767, %v2941
        %v3012 = vadd.f32 %v2768, %v2944
        %v3013 = vadd.f32 %v2769, %v2946
        %v3014 = vadd.f32 %v2770, %v2949
        %v3015 = vadd.f32 %v2771, %v2951
        %v3016 = vlaneseq
        %v3017 = vshrl.u32 %v3016, 7
        %v3018 = vsub.s32 0, %v3017
        %v3019 = vrot.slane %v1409, %v3018
        %v3020 = vmul.f32 %v1351, %v3019
        %v3021 = vmul.f32 %v1352, %v3019
        %v3022 = vmul.f32 %v1353, %v3019
        %v3023 = vmul.f32 %v1354, %v3019
        %v3024 = vmul.f32 %v1355, %v3019
        %v3025 = vmul.f32 %v1356, %v3019
        %v3026 = vmul.f32 %v1357, %v3019
        %v3027 = vmul.f32 %v1358, %v3019
        %v3028 = vmul.f32 %v1359, %v3019
        %v3029 = vmul.f32 %v1360, %v3019
        %v3030 = vmul.f32 %v1361, %v3019
        %v3031 = vmul.f32 %v1362, %v3019
        %v3032 = vmul.f32 %v1363, %v3019
        %v3033 = vmul.f32 %v1364, %v3019
        %v3034 = vmul.f32 %v1365, %v3019
        %v3035 = vmul.f32 %v1366, %v3019
        %v3036 = vmul.f32 %v1367, %v3019
        %v3037 = vmul.f32 %v1368, %v3019
        %v3038 = vmul.f32 %v1369, %v3019
        %v3039 = vmul.f32 %v1370, %v3019
        %v3040 = vmul.f32 %v1371, %v3019
        %v3041 = vmul.f32 %v1372, %v3019
        %v3042 = vmul.f32 %v1373, %v3019
        %v3043 = vmul.f32 %v1374, %v3019
        %v3044 = vmul.f32 %v1375, %v3019
        %v3045 = vmul.f32 %v1376, %v3019
        %v3046 = vmul.f32 %v1377, %v3019
        %v3047 = vmul.f32 %v1378, %v3019
        %v3048 = vmul.f32 %v1379, %v3019
        %v3049 = vmul.f32 %v1380, %v3019
        %v3050 = vmul.f32 %v1381, %v3019
        %v3051 = vmul.f32 %v1382, %v3019
        %v3052 = vmul.f32 %v1383, %v3019
        %v3053 = vmul.f32 %v1384, %v3019
        %v3054 = vmul.f32 %v1385, %v3019
        %v3055 = vmul.f32 %v1386, %v3019
        %v3056 = vmul.f32 %v1387, %v3019
        %v3057 = vmul.f32 %v1388, %v3019
        %v3058 = vmul.f32 %v1389, %v3019
        %v3059 = vmul.f32 %v1390, %v3019
        %v3060 = vmul.f32 %v1391, %v3019
        %v3061 = vmul.f32 %v1392, %v3019
        %v3062 = vmul.f32 %v1393, %v3019
        %v3063 = vmul.f32 %v1394, %v3019
        %v3064 = vmul.f32 %v1395, %v3019
        %v3065 = vmul.f32 %v1396, %v3019
        %v3066 = vmul.f32 %v1397, %v3019
        %v3067 = vmul.f32 %v1398, %v3019
        %v3116 = vrot.slane %v3020, 3
        %v3117 = vrot.slane %v3021, 3
        %v3118 = vsel %vm2070, %v3116, %v3117
        %v3119 = vrot.slane %v3022, 3
        %v3120 = vsel %vm2070, %v3117, %v3119
        %v3121 = vrot.slane %v3023, 3
        %v3122 = vrot.slane %v3024, 3
        %v3123 = vsel %vm2070, %v3121, %v3122
        %v3124 = vrot.slane %v3025, 3
        %v3125 = vsel %vm2070, %v3122, %v3124
        %v3126 = vrot.slane %v3026, 3
        %v3127 = vrot.slane %v3027, 3
        %v3128 = vsel %vm2070, %v3126, %v3127
        %v3129 = vrot.slane %v3028, 3
        %v3130 = vsel %vm2070, %v3127, %v3129
        %v3131 = vrot.slane %v3029, 3
        %v3132 = vrot.slane %v3030, 3
        %v3133 = vsel %vm2070, %v3131, %v3132
        %v3134 = vrot.slane %v3031, 3
        %v3135 = vsel %vm2070, %v3132, %v3134
        %v3136 = vrot.slane %v3032, 3
        %v3137 = vrot.slane %v3033, 3
        %v3138 = vsel %vm2070, %v3136, %v3137
        %v3139 = vrot.slane %v3034, 3
        %v3140 = vsel %vm2070, %v3137, %v3139
        %v3141 = vrot.slane %v3035, 3
        %v3142 = vrot.slane %v3036, 3
        %v3143 = vsel %vm2070, %v3141, %v3142
        %v3144 = vrot.slane %v3037, 3
        %v3145 = vsel %vm2070, %v3142, %v3144
        %v3146 = vrot.slane %v3038, 3
        %v3147 = vrot.slane %v3039, 3
        %v3148 = vsel %vm2070, %v3146, %v3147
        %v3149 = vrot.slane %v3040, 3
        %v3150 = vsel %vm2070, %v3147, %v3149
        %v3151 = vrot.slane %v3041, 3
        %v3152 = vrot.slane %v3042, 3
        %v3153 = vsel %vm2070, %v3151, %v3152
        %v3154 = vrot.slane %v3043, 3
        %v3155 = vsel %vm2070, %v3152, %v3154
        %v3156 = vrot.slane %v3044, 3
        %v3157 = vrot.slane %v3045, 3
        %v3158 = vsel %vm2070, %v3156, %v3157
        %v3159 = vrot.slane %v3046, 3
        %v3160 = vsel %vm2070, %v3157, %v3159
        %v3161 = vrot.slane %v3047, 3
        %v3162 = vrot.slane %v3048, 3
        %v3163 = vsel %vm2070, %v3161, %v3162
        %v3164 = vrot.slane %v3049, 3
        %v3165 = vsel %vm2070, %v3162, %v3164
        %v3166 = vrot.slane %v3050, 3
        %v3167 = vrot.slane %v3051, 3
        %v3168 = vsel %vm2070, %v3166, %v3167
        %v3169 = vrot.slane %v3052, 3
        %v3170 = vsel %vm2070, %v3167, %v3169
        %v3171 = vrot.slane %v3053, 3
        %v3172 = vrot.slane %v3054, 3
        %v3173 = vsel %vm2070, %v3171, %v3172
        %v3174 = vrot.slane %v3055, 3
        %v3175 = vsel %vm2070, %v3172, %v3174
        %v3176 = vrot.slane %v3056, 3
        %v3177 = vrot.slane %v3057, 3
        %v3178 = vsel %vm2070, %v3176, %v3177
        %v3179 = vrot.slane %v3058, 3
        %v3180 = vsel %vm2070, %v3177, %v3179
        %v3181 = vrot.slane %v3059, 3
        %v3182 = vrot.slane %v3060, 3
        %v3183 = vsel %vm2070, %v3181, %v3182
        %v3184 = vrot.slane %v3061, 3
        %v3185 = vsel %vm2070, %v3182, %v3184
        %v3186 = vrot.slane %v3062, 3
        %v3187 = vrot.slane %v3063, 3
        %v3188 = vsel %vm2070, %v3186, %v3187
        %v3189 = vrot.slane %v3064, 3
        %v3190 = vsel %vm2070, %v3187, %v3189
        %v3191 = vrot.slane %v3065, 3
        %v3192 = vrot.slane %v3066, 3
        %v3193 = vsel %vm2070, %v3191, %v3192
        %v3194 = vrot.slane %v3067, 3
        %v3195 = vsel %vm2070, %v3192, %v3194
        %v3228 = vadd.f32 %v2984, %v3118
        %v3229 = vadd.f32 %v2985, %v3120
        %v3230 = vadd.f32 %v2986, %v3123
        %v3231 = vadd.f32 %v2987, %v3125
        %v3232 = vadd.f32 %v2988, %v3128
        %v3233 = vadd.f32 %v2989, %v3130
        %v3234 = vadd.f32 %v2990, %v3133
        %v3235 = vadd.f32 %v2991, %v3135
        %v3236 = vadd.f32 %v2992, %v3138
        %v3237 = vadd.f32 %v2993, %v3140
        %v3238 = vadd.f32 %v2994, %v3143
        %v3239 = vadd.f32 %v2995, %v3145
        %v3240 = vadd.f32 %v2996, %v3148
        %v3241 = vadd.f32 %v2997, %v3150
        %v3242 = vadd.f32 %v2998, %v3153
        %v3243 = vadd.f32 %v2999, %v3155
        %v3244 = vadd.f32 %v3000, %v3158
        %v3245 = vadd.f32 %v3001, %v3160
        %v3246 = vadd.f32 %v3002, %v3163
        %v3247 = vadd.f32 %v3003, %v3165
        %v3248 = vadd.f32 %v3004, %v3168
        %v3249 = vadd.f32 %v3005, %v3170
        %v3250 = vadd.f32 %v3006, %v3173
        %v3251 = vadd.f32 %v3007, %v3175
        %v3252 = vadd.f32 %v3008, %v3178
        %v3253 = vadd.f32 %v3009, %v3180
        %v3254 = vadd.f32 %v3010, %v3183
        %v3255 = vadd.f32 %v3011, %v3185
        %v3256 = vadd.f32 %v3012, %v3188
        %v3257 = vadd.f32 %v3013, %v3190
        %v3258 = vadd.f32 %v3014, %v3193
        %v3259 = vadd.f32 %v3015, %v3195
        %v3260 = vlaneseq
        %v3261 = vshrl.u32 %v3260, 7
        %v3262 = vsub.s32 1, %v3261
        %v3263 = vrot.slane %v1409, %v3262
        %v3264 = vmul.f32 %v1351, %v3263
        %v3265 = vmul.f32 %v1352, %v3263
        %v3266 = vmul.f32 %v1353, %v3263
        %v3267 = vmul.f32 %v1354, %v3263
        %v3268 = vmul.f32 %v1355, %v3263
        %v3269 = vmul.f32 %v1356, %v3263
        %v3270 = vmul.f32 %v1357, %v3263
        %v3271 = vmul.f32 %v1358, %v3263
        %v3272 = vmul.f32 %v1359, %v3263
        %v3273 = vmul.f32 %v1360, %v3263
        %v3274 = vmul.f32 %v1361, %v3263
        %v3275 = vmul.f32 %v1362, %v3263
        %v3276 = vmul.f32 %v1363, %v3263
        %v3277 = vmul.f32 %v1364, %v3263
        %v3278 = vmul.f32 %v1365, %v3263
        %v3279 = vmul.f32 %v1366, %v3263
        %v3280 = vmul.f32 %v1367, %v3263
        %v3281 = vmul.f32 %v1368, %v3263
        %v3282 = vmul.f32 %v1369, %v3263
        %v3283 = vmul.f32 %v1370, %v3263
        %v3284 = vmul.f32 %v1371, %v3263
        %v3285 = vmul.f32 %v1372, %v3263
        %v3286 = vmul.f32 %v1373, %v3263
        %v3287 = vmul.f32 %v1374, %v3263
        %v3288 = vmul.f32 %v1375, %v3263
        %v3289 = vmul.f32 %v1376, %v3263
        %v3290 = vmul.f32 %v1377, %v3263
        %v3291 = vmul.f32 %v1378, %v3263
        %v3292 = vmul.f32 %v1379, %v3263
        %v3293 = vmul.f32 %v1380, %v3263
        %v3294 = vmul.f32 %v1381, %v3263
        %v3295 = vmul.f32 %v1382, %v3263
        %v3296 = vmul.f32 %v1383, %v3263
        %v3297 = vmul.f32 %v1384, %v3263
        %v3298 = vmul.f32 %v1385, %v3263
        %v3299 = vmul.f32 %v1386, %v3263
        %v3300 = vmul.f32 %v1387, %v3263
        %v3301 = vmul.f32 %v1388, %v3263
        %v3302 = vmul.f32 %v1389, %v3263
        %v3303 = vmul.f32 %v1390, %v3263
        %v3304 = vmul.f32 %v1391, %v3263
        %v3305 = vmul.f32 %v1392, %v3263
        %v3306 = vmul.f32 %v1393, %v3263
        %v3307 = vmul.f32 %v1394, %v3263
        %v3308 = vmul.f32 %v1395, %v3263
        %v3309 = vmul.f32 %v1396, %v3263
        %v3310 = vmul.f32 %v1397, %v3263
        %v3311 = vmul.f32 %v1398, %v3263
        %v3360 = vrot.slane %v3264, 4
        %v3361 = vrot.slane %v3265, 4
        %v3362 = vsel %vm2315, %v3360, %v3361
        %v3363 = vrot.slane %v3266, 4
        %v3364 = vsel %vm2315, %v3361, %v3363
        %v3365 = vrot.slane %v3267, 4
        %v3366 = vrot.slane %v3268, 4
        %v3367 = vsel %vm2315, %v3365, %v3366
        %v3368 = vrot.slane %v3269, 4
        %v3369 = vsel %vm2315, %v3366, %v3368
        %v3370 = vrot.slane %v3270, 4
        %v3371 = vrot.slane %v3271, 4
        %v3372 = vsel %vm2315, %v3370, %v3371
        %v3373 = vrot.slane %v3272, 4
        %v3374 = vsel %vm2315, %v3371, %v3373
        %v3375 = vrot.slane %v3273, 4
        %v3376 = vrot.slane %v3274, 4
        %v3377 = vsel %vm2315, %v3375, %v3376
        %v3378 = vrot.slane %v3275, 4
        %v3379 = vsel %vm2315, %v3376, %v3378
        %v3380 = vrot.slane %v3276, 4
        %v3381 = vrot.slane %v3277, 4
        %v3382 = vsel %vm2315, %v3380, %v3381
        %v3383 = vrot.slane %v3278, 4
        %v3384 = vsel %vm2315, %v3381, %v3383
        %v3385 = vrot.slane %v3279, 4
        %v3386 = vrot.slane %v3280, 4
        %v3387 = vsel %vm2315, %v3385, %v3386
        %v3388 = vrot.slane %v3281, 4
        %v3389 = vsel %vm2315, %v3386, %v3388
        %v3390 = vrot.slane %v3282, 4
        %v3391 = vrot.slane %v3283, 4
        %v3392 = vsel %vm2315, %v3390, %v3391
        %v3393 = vrot.slane %v3284, 4
        %v3394 = vsel %vm2315, %v3391, %v3393
        %v3395 = vrot.slane %v3285, 4
        %v3396 = vrot.slane %v3286, 4
        %v3397 = vsel %vm2315, %v3395, %v3396
        %v3398 = vrot.slane %v3287, 4
        %v3399 = vsel %vm2315, %v3396, %v3398
        %v3400 = vrot.slane %v3288, 4
        %v3401 = vrot.slane %v3289, 4
        %v3402 = vsel %vm2315, %v3400, %v3401
        %v3403 = vrot.slane %v3290, 4
        %v3404 = vsel %vm2315, %v3401, %v3403
        %v3405 = vrot.slane %v3291, 4
        %v3406 = vrot.slane %v3292, 4
        %v3407 = vsel %vm2315, %v3405, %v3406
        %v3408 = vrot.slane %v3293, 4
        %v3409 = vsel %vm2315, %v3406, %v3408
        %v3410 = vrot.slane %v3294, 4
        %v3411 = vrot.slane %v3295, 4
        %v3412 = vsel %vm2315, %v3410, %v3411
        %v3413 = vrot.slane %v3296, 4
        %v3414 = vsel %vm2315, %v3411, %v3413
        %v3415 = vrot.slane %v3297, 4
        %v3416 = vrot.slane %v3298, 4
        %v3417 = vsel %vm2315, %v3415, %v3416
        %v3418 = vrot.slane %v3299, 4
        %v3419 = vsel %vm2315, %v3416, %v3418
        %v3420 = vrot.slane %v3300, 4
        %v3421 = vrot.slane %v3301, 4
        %v3422 = vsel %vm2315, %v3420, %v3421
        %v3423 = vrot.slane %v3302, 4
        %v3424 = vsel %vm2315, %v3421, %v3423
        %v3425 = vrot.slane %v3303, 4
        %v3426 = vrot.slane %v3304, 4
        %v3427 = vsel %vm2315, %v3425, %v3426
        %v3428 = vrot.slane %v3305, 4
        %v3429 = vsel %vm2315, %v3426, %v3428
        %v3430 = vrot.slane %v3306, 4
        %v3431 = vrot.slane %v3307, 4
        %v3432 = vsel %vm2315, %v3430, %v3431
        %v3433 = vrot.slane %v3308, 4
        %v3434 = vsel %vm2315, %v3431, %v3433
        %v3435 = vrot.slane %v3309, 4
        %v3436 = vrot.slane %v3310, 4
        %v3437 = vsel %vm2315, %v3435, %v3436
        %v3438 = vrot.slane %v3311, 4
        %v3439 = vsel %vm2315, %v3436, %v3438
        %v3472 = vadd.f32 %v3228, %v3362
        %v3473 = vadd.f32 %v3229, %v3364
        %v3474 = vadd.f32 %v3230, %v3367
        %v3475 = vadd.f32 %v3231, %v3369
        %v3476 = vadd.f32 %v3232, %v3372
        %v3477 = vadd.f32 %v3233, %v3374
        %v3478 = vadd.f32 %v3234, %v3377
        %v3479 = vadd.f32 %v3235, %v3379
        %v3480 = vadd.f32 %v3236, %v3382
        %v3481 = vadd.f32 %v3237, %v3384
        %v3482 = vadd.f32 %v3238, %v3387
        %v3483 = vadd.f32 %v3239, %v3389
        %v3484 = vadd.f32 %v3240, %v3392
        %v3485 = vadd.f32 %v3241, %v3394
        %v3486 = vadd.f32 %v3242, %v3397
        %v3487 = vadd.f32 %v3243, %v3399
        %v3488 = vadd.f32 %v3244, %v3402
        %v3489 = vadd.f32 %v3245, %v3404
        %v3490 = vadd.f32 %v3246, %v3407
        %v3491 = vadd.f32 %v3247, %v3409
        %v3492 = vadd.f32 %v3248, %v3412
        %v3493 = vadd.f32 %v3249, %v3414
        %v3494 = vadd.f32 %v3250, %v3417
        %v3495 = vadd.f32 %v3251, %v3419
        %v3496 = vadd.f32 %v3252, %v3422
        %v3497 = vadd.f32 %v3253, %v3424
        %v3498 = vadd.f32 %v3254, %v3427
        %v3499 = vadd.f32 %v3255, %v3429
        %v3500 = vadd.f32 %v3256, %v3432
        %v3501 = vadd.f32 %v3257, %v3434
        %v3502 = vadd.f32 %v3258, %v3437
        %v3503 = vadd.f32 %v3259, %v3439
        %v3504 = vlaneseq
        %v3505 = vshrl.u32 %v3504, 7
        %v3506 = vsub.s32 2, %v3505
        %v3507 = vrot.slane %v1409, %v3506
        %v3508 = vmul.f32 %v1354, %v3507
        %v3509 = vmul.f32 %v1355, %v3507
        %v3510 = vmul.f32 %v1357, %v3507
        %v3511 = vmul.f32 %v1358, %v3507
        %v3512 = vmul.f32 %v1360, %v3507
        %v3513 = vmul.f32 %v1361, %v3507
        %v3514 = vmul.f32 %v1363, %v3507
        %v3515 = vmul.f32 %v1364, %v3507
        %v3516 = vmul.f32 %v1366, %v3507
        %v3517 = vmul.f32 %v1367, %v3507
        %v3518 = vmul.f32 %v1369, %v3507
        %v3519 = vmul.f32 %v1370, %v3507
        %v3520 = vmul.f32 %v1372, %v3507
        %v3521 = vmul.f32 %v1373, %v3507
        %v3522 = vmul.f32 %v1375, %v3507
        %v3523 = vmul.f32 %v1376, %v3507
        %v3524 = vmul.f32 %v1378, %v3507
        %v3525 = vmul.f32 %v1379, %v3507
        %v3526 = vmul.f32 %v1381, %v3507
        %v3527 = vmul.f32 %v1382, %v3507
        %v3528 = vmul.f32 %v1384, %v3507
        %v3529 = vmul.f32 %v1385, %v3507
        %v3530 = vmul.f32 %v1387, %v3507
        %v3531 = vmul.f32 %v1388, %v3507
        %v3532 = vmul.f32 %v1390, %v3507
        %v3533 = vmul.f32 %v1391, %v3507
        %v3534 = vmul.f32 %v1393, %v3507
        %v3535 = vmul.f32 %v1394, %v3507
        %v3536 = vmul.f32 %v1396, %v3507
        %v3537 = vmul.f32 %v1397, %v3507
        %v3538 = vmul.f32 %v1399, %v3507
        %v3539 = vmul.f32 %v1400, %v3507
        %v3540 = vadd.f32 %v3472, %v3508
        %v3541 = vadd.f32 %v3473, %v3509
        %v3542 = vadd.f32 %v3474, %v3510
        %v3543 = vadd.f32 %v3475, %v3511
        %v3544 = vadd.f32 %v3476, %v3512
        %v3545 = vadd.f32 %v3477, %v3513
        %v3546 = vadd.f32 %v3478, %v3514
        %v3547 = vadd.f32 %v3479, %v3515
        %v3548 = vadd.f32 %v3480, %v3516
        %v3549 = vadd.f32 %v3481, %v3517
        %v3550 = vadd.f32 %v3482, %v3518
        %v3551 = vadd.f32 %v3483, %v3519
        %v3552 = vadd.f32 %v3484, %v3520
        %v3553 = vadd.f32 %v3485, %v3521
        %v3554 = vadd.f32 %v3486, %v3522
        %v3555 = vadd.f32 %v3487, %v3523
        %v3556 = vadd.f32 %v3488, %v3524
        %v3557 = vadd.f32 %v3489, %v3525
        %v3558 = vadd.f32 %v3490, %v3526
        %v3559 = vadd.f32 %v3491, %v3527
        %v3560 = vadd.f32 %v3492, %v3528
        %v3561 = vadd.f32 %v3493, %v3529
        %v3562 = vadd.f32 %v3494, %v3530
        %v3563 = vadd.f32 %v3495, %v3531
        %v3564 = vadd.f32 %v3496, %v3532
        %v3565 = vadd.f32 %v3497, %v3533
        %v3566 = vadd.f32 %v3498, %v3534
        %v3567 = vadd.f32 %v3499, %v3535
        %v3568 = vadd.f32 %v3500, %v3536
        %v3569 = vadd.f32 %v3501, %v3537
        %v3570 = vadd.f32 %v3502, %v3538
        %v3571 = vadd.f32 %v3503, %v3539
        %v3572 = vlaneseq
        %v3573 = vshrl.u32 %v3572, 7
        %v3574 = vsub.s32 3, %v3573
        %v3575 = vrot.slane %v1409, %v3574
        %v3576 = vmul.f32 %v1354, %v3575
        %v3577 = vmul.f32 %v1355, %v3575
        %v3578 = vmul.f32 %v1356, %v3575
        %v3579 = vmul.f32 %v1357, %v3575
        %v3580 = vmul.f32 %v1358, %v3575
        %v3581 = vmul.f32 %v1359, %v3575
        %v3582 = vmul.f32 %v1360, %v3575
        %v3583 = vmul.f32 %v1361, %v3575
        %v3584 = vmul.f32 %v1362, %v3575
        %v3585 = vmul.f32 %v1363, %v3575
        %v3586 = vmul.f32 %v1364, %v3575
        %v3587 = vmul.f32 %v1365, %v3575
        %v3588 = vmul.f32 %v1366, %v3575
        %v3589 = vmul.f32 %v1367, %v3575
        %v3590 = vmul.f32 %v1368, %v3575
        %v3591 = vmul.f32 %v1369, %v3575
        %v3592 = vmul.f32 %v1370, %v3575
        %v3593 = vmul.f32 %v1371, %v3575
        %v3594 = vmul.f32 %v1372, %v3575
        %v3595 = vmul.f32 %v1373, %v3575
        %v3596 = vmul.f32 %v1374, %v3575
        %v3597 = vmul.f32 %v1375, %v3575
        %v3598 = vmul.f32 %v1376, %v3575
        %v3599 = vmul.f32 %v1377, %v3575
        %v3600 = vmul.f32 %v1378, %v3575
        %v3601 = vmul.f32 %v1379, %v3575
        %v3602 = vmul.f32 %v1380, %v3575
        %v3603 = vmul.f32 %v1381, %v3575
        %v3604 = vmul.f32 %v1382, %v3575
        %v3605 = vmul.f32 %v1383, %v3575
        %v3606 = vmul.f32 %v1384, %v3575
        %v3607 = vmul.f32 %v1385, %v3575
        %v3608 = vmul.f32 %v1386, %v3575
        %v3609 = vmul.f32 %v1387, %v3575
        %v3610 = vmul.f32 %v1388, %v3575
        %v3611 = vmul.f32 %v1389, %v3575
        %v3612 = vmul.f32 %v1390, %v3575
        %v3613 = vmul.f32 %v1391, %v3575
        %v3614 = vmul.f32 %v1392, %v3575
        %v3615 = vmul.f32 %v1393, %v3575
        %v3616 = vmul.f32 %v1394, %v3575
        %v3617 = vmul.f32 %v1395, %v3575
        %v3618 = vmul.f32 %v1396, %v3575
        %v3619 = vmul.f32 %v1397, %v3575
        %v3620 = vmul.f32 %v1398, %v3575
        %v3621 = vmul.f32 %v1399, %v3575
        %v3622 = vmul.f32 %v1400, %v3575
        %v3623 = vmul.f32 %v1401, %v3575
        %v3672 = vrot.slane %v3576, 1
        %v3673 = vrot.slane %v3577, 1
        %v3674 = vsel %vm1580, %v3672, %v3673
        %v3675 = vrot.slane %v3578, 1
        %v3676 = vsel %vm1580, %v3673, %v3675
        %v3677 = vrot.slane %v3579, 1
        %v3678 = vrot.slane %v3580, 1
        %v3679 = vsel %vm1580, %v3677, %v3678
        %v3680 = vrot.slane %v3581, 1
        %v3681 = vsel %vm1580, %v3678, %v3680
        %v3682 = vrot.slane %v3582, 1
        %v3683 = vrot.slane %v3583, 1
        %v3684 = vsel %vm1580, %v3682, %v3683
        %v3685 = vrot.slane %v3584, 1
        %v3686 = vsel %vm1580, %v3683, %v3685
        %v3687 = vrot.slane %v3585, 1
        %v3688 = vrot.slane %v3586, 1
        %v3689 = vsel %vm1580, %v3687, %v3688
        %v3690 = vrot.slane %v3587, 1
        %v3691 = vsel %vm1580, %v3688, %v3690
        %v3692 = vrot.slane %v3588, 1
        %v3693 = vrot.slane %v3589, 1
        %v3694 = vsel %vm1580, %v3692, %v3693
        %v3695 = vrot.slane %v3590, 1
        %v3696 = vsel %vm1580, %v3693, %v3695
        %v3697 = vrot.slane %v3591, 1
        %v3698 = vrot.slane %v3592, 1
        %v3699 = vsel %vm1580, %v3697, %v3698
        %v3700 = vrot.slane %v3593, 1
        %v3701 = vsel %vm1580, %v3698, %v3700
        %v3702 = vrot.slane %v3594, 1
        %v3703 = vrot.slane %v3595, 1
        %v3704 = vsel %vm1580, %v3702, %v3703
        %v3705 = vrot.slane %v3596, 1
        %v3706 = vsel %vm1580, %v3703, %v3705
        %v3707 = vrot.slane %v3597, 1
        %v3708 = vrot.slane %v3598, 1
        %v3709 = vsel %vm1580, %v3707, %v3708
        %v3710 = vrot.slane %v3599, 1
        %v3711 = vsel %vm1580, %v3708, %v3710
        %v3712 = vrot.slane %v3600, 1
        %v3713 = vrot.slane %v3601, 1
        %v3714 = vsel %vm1580, %v3712, %v3713
        %v3715 = vrot.slane %v3602, 1
        %v3716 = vsel %vm1580, %v3713, %v3715
        %v3717 = vrot.slane %v3603, 1
        %v3718 = vrot.slane %v3604, 1
        %v3719 = vsel %vm1580, %v3717, %v3718
        %v3720 = vrot.slane %v3605, 1
        %v3721 = vsel %vm1580, %v3718, %v3720
        %v3722 = vrot.slane %v3606, 1
        %v3723 = vrot.slane %v3607, 1
        %v3724 = vsel %vm1580, %v3722, %v3723
        %v3725 = vrot.slane %v3608, 1
        %v3726 = vsel %vm1580, %v3723, %v3725
        %v3727 = vrot.slane %v3609, 1
        %v3728 = vrot.slane %v3610, 1
        %v3729 = vsel %vm1580, %v3727, %v3728
        %v3730 = vrot.slane %v3611, 1
        %v3731 = vsel %vm1580, %v3728, %v3730
        %v3732 = vrot.slane %v3612, 1
        %v3733 = vrot.slane %v3613, 1
        %v3734 = vsel %vm1580, %v3732, %v3733
        %v3735 = vrot.slane %v3614, 1
        %v3736 = vsel %vm1580, %v3733, %v3735
        %v3737 = vrot.slane %v3615, 1
        %v3738 = vrot.slane %v3616, 1
        %v3739 = vsel %vm1580, %v3737, %v3738
        %v3740 = vrot.slane %v3617, 1
        %v3741 = vsel %vm1580, %v3738, %v3740
        %v3742 = vrot.slane %v3618, 1
        %v3743 = vrot.slane %v3619, 1
        %v3744 = vsel %vm1580, %v3742, %v3743
        %v3745 = vrot.slane %v3620, 1
        %v3746 = vsel %vm1580, %v3743, %v3745
        %v3747 = vrot.slane %v3621, 1
        %v3748 = vrot.slane %v3622, 1
        %v3749 = vsel %vm1580, %v3747, %v3748
        %v3750 = vrot.slane %v3623, 1
        %v3751 = vsel %vm1580, %v3748, %v3750
        %v3784 = vadd.f32 %v3540, %v3674
        %v3785 = vadd.f32 %v3541, %v3676
        %v3786 = vadd.f32 %v3542, %v3679
        %v3787 = vadd.f32 %v3543, %v3681
        %v3788 = vadd.f32 %v3544, %v3684
        %v3789 = vadd.f32 %v3545, %v3686
        %v3790 = vadd.f32 %v3546, %v3689
        %v3791 = vadd.f32 %v3547, %v3691
        %v3792 = vadd.f32 %v3548, %v3694
        %v3793 = vadd.f32 %v3549, %v3696
        %v3794 = vadd.f32 %v3550, %v3699
        %v3795 = vadd.f32 %v3551, %v3701
        %v3796 = vadd.f32 %v3552, %v3704
        %v3797 = vadd.f32 %v3553, %v3706
        %v3798 = vadd.f32 %v3554, %v3709
        %v3799 = vadd.f32 %v3555, %v3711
        %v3800 = vadd.f32 %v3556, %v3714
        %v3801 = vadd.f32 %v3557, %v3716
        %v3802 = vadd.f32 %v3558, %v3719
        %v3803 = vadd.f32 %v3559, %v3721
        %v3804 = vadd.f32 %v3560, %v3724
        %v3805 = vadd.f32 %v3561, %v3726
        %v3806 = vadd.f32 %v3562, %v3729
        %v3807 = vadd.f32 %v3563, %v3731
        %v3808 = vadd.f32 %v3564, %v3734
        %v3809 = vadd.f32 %v3565, %v3736
        %v3810 = vadd.f32 %v3566, %v3739
        %v3811 = vadd.f32 %v3567, %v3741
        %v3812 = vadd.f32 %v3568, %v3744
        %v3813 = vadd.f32 %v3569, %v3746
        %v3814 = vadd.f32 %v3570, %v3749
        %v3815 = vadd.f32 %v3571, %v3751
        %v3816 = vlaneseq
        %v3817 = vshrl.u32 %v3816, 7
        %v3818 = vsub.s32 4, %v3817
        %v3819 = vrot.slane %v1409, %v3818
        %v3820 = vmul.f32 %v1354, %v3819
        %v3821 = vmul.f32 %v1355, %v3819
        %v3822 = vmul.f32 %v1356, %v3819
        %v3823 = vmul.f32 %v1357, %v3819
        %v3824 = vmul.f32 %v1358, %v3819
        %v3825 = vmul.f32 %v1359, %v3819
        %v3826 = vmul.f32 %v1360, %v3819
        %v3827 = vmul.f32 %v1361, %v3819
        %v3828 = vmul.f32 %v1362, %v3819
        %v3829 = vmul.f32 %v1363, %v3819
        %v3830 = vmul.f32 %v1364, %v3819
        %v3831 = vmul.f32 %v1365, %v3819
        %v3832 = vmul.f32 %v1366, %v3819
        %v3833 = vmul.f32 %v1367, %v3819
        %v3834 = vmul.f32 %v1368, %v3819
        %v3835 = vmul.f32 %v1369, %v3819
        %v3836 = vmul.f32 %v1370, %v3819
        %v3837 = vmul.f32 %v1371, %v3819
        %v3838 = vmul.f32 %v1372, %v3819
        %v3839 = vmul.f32 %v1373, %v3819
        %v3840 = vmul.f32 %v1374, %v3819
        %v3841 = vmul.f32 %v1375, %v3819
        %v3842 = vmul.f32 %v1376, %v3819
        %v3843 = vmul.f32 %v1377, %v3819
        %v3844 = vmul.f32 %v1378, %v3819
        %v3845 = vmul.f32 %v1379, %v3819
        %v3846 = vmul.f32 %v1380, %v3819
        %v3847 = vmul.f32 %v1381, %v3819
        %v3848 = vmul.f32 %v1382, %v3819
        %v3849 = vmul.f32 %v1383, %v3819
        %v3850 = vmul.f32 %v1384, %v3819
        %v3851 = vmul.f32 %v1385, %v3819
        %v3852 = vmul.f32 %v1386, %v3819
        %v3853 = vmul.f32 %v1387, %v3819
        %v3854 = vmul.f32 %v1388, %v3819
        %v3855 = vmul.f32 %v1389, %v3819
        %v3856 = vmul.f32 %v1390, %v3819
        %v3857 = vmul.f32 %v1391, %v3819
        %v3858 = vmul.f32 %v1392, %v3819
        %v3859 = vmul.f32 %v1393, %v3819
        %v3860 = vmul.f32 %v1394, %v3819
        %v3861 = vmul.f32 %v1395, %v3819
        %v3862 = vmul.f32 %v1396, %v3819
        %v3863 = vmul.f32 %v1397, %v3819
        %v3864 = vmul.f32 %v1398, %v3819
        %v3865 = vmul.f32 %v1399, %v3819
        %v3866 = vmul.f32 %v1400, %v3819
        %v3867 = vmul.f32 %v1401, %v3819
        %v3916 = vrot.slane %v3820, 2
        %v3917 = vrot.slane %v3821, 2
        %v3918 = vsel %vm1825, %v3916, %v3917
        %v3919 = vrot.slane %v3822, 2
        %v3920 = vsel %vm1825, %v3917, %v3919
        %v3921 = vrot.slane %v3823, 2
        %v3922 = vrot.slane %v3824, 2
        %v3923 = vsel %vm1825, %v3921, %v3922
        %v3924 = vrot.slane %v3825, 2
        %v3925 = vsel %vm1825, %v3922, %v3924
        %v3926 = vrot.slane %v3826, 2
        %v3927 = vrot.slane %v3827, 2
        %v3928 = vsel %vm1825, %v3926, %v3927
        %v3929 = vrot.slane %v3828, 2
        %v3930 = vsel %vm1825, %v3927, %v3929
        %v3931 = vrot.slane %v3829, 2
        %v3932 = vrot.slane %v3830, 2
        %v3933 = vsel %vm1825, %v3931, %v3932
        %v3934 = vrot.slane %v3831, 2
        %v3935 = vsel %vm1825, %v3932, %v3934
        %v3936 = vrot.slane %v3832, 2
        %v3937 = vrot.slane %v3833, 2
        %v3938 = vsel %vm1825, %v3936, %v3937
        %v3939 = vrot.slane %v3834, 2
        %v3940 = vsel %vm1825, %v3937, %v3939
        %v3941 = vrot.slane %v3835, 2
        %v3942 = vrot.slane %v3836, 2
        %v3943 = vsel %vm1825, %v3941, %v3942
        %v3944 = vrot.slane %v3837, 2
        %v3945 = vsel %vm1825, %v3942, %v3944
        %v3946 = vrot.slane %v3838, 2
        %v3947 = vrot.slane %v3839, 2
        %v3948 = vsel %vm1825, %v3946, %v3947
        %v3949 = vrot.slane %v3840, 2
        %v3950 = vsel %vm1825, %v3947, %v3949
        %v3951 = vrot.slane %v3841, 2
        %v3952 = vrot.slane %v3842, 2
        %v3953 = vsel %vm1825, %v3951, %v3952
        %v3954 = vrot.slane %v3843, 2
        %v3955 = vsel %vm1825, %v3952, %v3954
        %v3956 = vrot.slane %v3844, 2
        %v3957 = vrot.slane %v3845, 2
        %v3958 = vsel %vm1825, %v3956, %v3957
        %v3959 = vrot.slane %v3846, 2
        %v3960 = vsel %vm1825, %v3957, %v3959
        %v3961 = vrot.slane %v3847, 2
        %v3962 = vrot.slane %v3848, 2
        %v3963 = vsel %vm1825, %v3961, %v3962
        %v3964 = vrot.slane %v3849, 2
        %v3965 = vsel %vm1825, %v3962, %v3964
        %v3966 = vrot.slane %v3850, 2
        %v3967 = vrot.slane %v3851, 2
        %v3968 = vsel %vm1825, %v3966, %v3967
        %v3969 = vrot.slane %v3852, 2
        %v3970 = vsel %vm1825, %v3967, %v3969
        %v3971 = vrot.slane %v3853, 2
        %v3972 = vrot.slane %v3854, 2
        %v3973 = vsel %vm1825, %v3971, %v3972
        %v3974 = vrot.slane %v3855, 2
        %v3975 = vsel %vm1825, %v3972, %v3974
        %v3976 = vrot.slane %v3856, 2
        %v3977 = vrot.slane %v3857, 2
        %v3978 = vsel %vm1825, %v3976, %v3977
        %v3979 = vrot.slane %v3858, 2
        %v3980 = vsel %vm1825, %v3977, %v3979
        %v3981 = vrot.slane %v3859, 2
        %v3982 = vrot.slane %v3860, 2
        %v3983 = vsel %vm1825, %v3981, %v3982
        %v3984 = vrot.slane %v3861, 2
        %v3985 = vsel %vm1825, %v3982, %v3984
        %v3986 = vrot.slane %v3862, 2
        %v3987 = vrot.slane %v3863, 2
        %v3988 = vsel %vm1825, %v3986, %v3987
        %v3989 = vrot.slane %v3864, 2
        %v3990 = vsel %vm1825, %v3987, %v3989
        %v3991 = vrot.slane %v3865, 2
        %v3992 = vrot.slane %v3866, 2
        %v3993 = vsel %vm1825, %v3991, %v3992
        %v3994 = vrot.slane %v3867, 2
        %v3995 = vsel %vm1825, %v3992, %v3994
        %v4028 = vadd.f32 %v3784, %v3918
        %v4029 = vadd.f32 %v3785, %v3920
        %v4030 = vadd.f32 %v3786, %v3923
        %v4031 = vadd.f32 %v3787, %v3925
        %v4032 = vadd.f32 %v3788, %v3928
        %v4033 = vadd.f32 %v3789, %v3930
        %v4034 = vadd.f32 %v3790, %v3933
        %v4035 = vadd.f32 %v3791, %v3935
        %v4036 = vadd.f32 %v3792, %v3938
        %v4037 = vadd.f32 %v3793, %v3940
        %v4038 = vadd.f32 %v3794, %v3943
        %v4039 = vadd.f32 %v3795, %v3945
        %v4040 = vadd.f32 %v3796, %v3948
        %v4041 = vadd.f32 %v3797, %v3950
        %v4042 = vadd.f32 %v3798, %v3953
        %v4043 = vadd.f32 %v3799, %v3955
        %v4044 = vadd.f32 %v3800, %v3958
        %v4045 = vadd.f32 %v3801, %v3960
        %v4046 = vadd.f32 %v3802, %v3963
        %v4047 = vadd.f32 %v3803, %v3965
        %v4048 = vadd.f32 %v3804, %v3968
        %v4049 = vadd.f32 %v3805, %v3970
        %v4050 = vadd.f32 %v3806, %v3973
        %v4051 = vadd.f32 %v3807, %v3975
        %v4052 = vadd.f32 %v3808, %v3978
        %v4053 = vadd.f32 %v3809, %v3980
        %v4054 = vadd.f32 %v3810, %v3983
        %v4055 = vadd.f32 %v3811, %v3985
        %v4056 = vadd.f32 %v3812, %v3988
        %v4057 = vadd.f32 %v3813, %v3990
        %v4058 = vadd.f32 %v3814, %v3993
        %v4059 = vadd.f32 %v3815, %v3995
        %v4060 = vlaneseq
        %v4061 = vshrl.u32 %v4060, 7
        %v4062 = vsub.s32 5, %v4061
        %v4063 = vrot.slane %v1409, %v4062
        %v4064 = vmul.f32 %v1354, %v4063
        %v4065 = vmul.f32 %v1355, %v4063
        %v4066 = vmul.f32 %v1356, %v4063
        %v4067 = vmul.f32 %v1357, %v4063
        %v4068 = vmul.f32 %v1358, %v4063
        %v4069 = vmul.f32 %v1359, %v4063
        %v4070 = vmul.f32 %v1360, %v4063
        %v4071 = vmul.f32 %v1361, %v4063
        %v4072 = vmul.f32 %v1362, %v4063
        %v4073 = vmul.f32 %v1363, %v4063
        %v4074 = vmul.f32 %v1364, %v4063
        %v4075 = vmul.f32 %v1365, %v4063
        %v4076 = vmul.f32 %v1366, %v4063
        %v4077 = vmul.f32 %v1367, %v4063
        %v4078 = vmul.f32 %v1368, %v4063
        %v4079 = vmul.f32 %v1369, %v4063
        %v4080 = vmul.f32 %v1370, %v4063
        %v4081 = vmul.f32 %v1371, %v4063
        %v4082 = vmul.f32 %v1372, %v4063
        %v4083 = vmul.f32 %v1373, %v4063
        %v4084 = vmul.f32 %v1374, %v4063
        %v4085 = vmul.f32 %v1375, %v4063
        %v4086 = vmul.f32 %v1376, %v4063
        %v4087 = vmul.f32 %v1377, %v4063
        %v4088 = vmul.f32 %v1378, %v4063
        %v4089 = vmul.f32 %v1379, %v4063
        %v4090 = vmul.f32 %v1380, %v4063
        %v4091 = vmul.f32 %v1381, %v4063
        %v4092 = vmul.f32 %v1382, %v4063
        %v4093 = vmul.f32 %v1383, %v4063
        %v4094 = vmul.f32 %v1384, %v4063
        %v4095 = vmul.f32 %v1385, %v4063
        %v4096 = vmul.f32 %v1386, %v4063
        %v4097 = vmul.f32 %v1387, %v4063
        %v4098 = vmul.f32 %v1388, %v4063
        %v4099 = vmul.f32 %v1389, %v4063
        %v4100 = vmul.f32 %v1390, %v4063
        %v4101 = vmul.f32 %v1391, %v4063
        %v4102 = vmul.f32 %v1392, %v4063
        %v4103 = vmul.f32 %v1393, %v4063
        %v4104 = vmul.f32 %v1394, %v4063
        %v4105 = vmul.f32 %v1395, %v4063
        %v4106 = vmul.f32 %v1396, %v4063
        %v4107 = vmul.f32 %v1397, %v4063
        %v4108 = vmul.f32 %v1398, %v4063
        %v4109 = vmul.f32 %v1399, %v4063
        %v4110 = vmul.f32 %v1400, %v4063
        %v4111 = vmul.f32 %v1401, %v4063
        %v4160 = vrot.slane %v4064, 3
        %v4161 = vrot.slane %v4065, 3
        %v4162 = vsel %vm2070, %v4160, %v4161
        %v4163 = vrot.slane %v4066, 3
        %v4164 = vsel %vm2070, %v4161, %v4163
        %v4165 = vrot.slane %v4067, 3
        %v4166 = vrot.slane %v4068, 3
        %v4167 = vsel %vm2070, %v4165, %v4166
        %v4168 = vrot.slane %v4069, 3
        %v4169 = vsel %vm2070, %v4166, %v4168
        %v4170 = vrot.slane %v4070, 3
        %v4171 = vrot.slane %v4071, 3
        %v4172 = vsel %vm2070, %v4170, %v4171
        %v4173 = vrot.slane %v4072, 3
        %v4174 = vsel %vm2070, %v4171, %v4173
        %v4175 = vrot.slane %v4073, 3
        %v4176 = vrot.slane %v4074, 3
        %v4177 = vsel %vm2070, %v4175, %v4176
        %v4178 = vrot.slane %v4075, 3
        %v4179 = vsel %vm2070, %v4176, %v4178
        %v4180 = vrot.slane %v4076, 3
        %v4181 = vrot.slane %v4077, 3
        %v4182 = vsel %vm2070, %v4180, %v4181
        %v4183 = vrot.slane %v4078, 3
        %v4184 = vsel %vm2070, %v4181, %v4183
        %v4185 = vrot.slane %v4079, 3
        %v4186 = vrot.slane %v4080, 3
        %v4187 = vsel %vm2070, %v4185, %v4186
        %v4188 = vrot.slane %v4081, 3
        %v4189 = vsel %vm2070, %v4186, %v4188
        %v4190 = vrot.slane %v4082, 3
        %v4191 = vrot.slane %v4083, 3
        %v4192 = vsel %vm2070, %v4190, %v4191
        %v4193 = vrot.slane %v4084, 3
        %v4194 = vsel %vm2070, %v4191, %v4193
        %v4195 = vrot.slane %v4085, 3
        %v4196 = vrot.slane %v4086, 3
        %v4197 = vsel %vm2070, %v4195, %v4196
        %v4198 = vrot.slane %v4087, 3
        %v4199 = vsel %vm2070, %v4196, %v4198
        %v4200 = vrot.slane %v4088, 3
        %v4201 = vrot.slane %v4089, 3
        %v4202 = vsel %vm2070, %v4200, %v4201
        %v4203 = vrot.slane %v4090, 3
        %v4204 = vsel %vm2070, %v4201, %v4203
        %v4205 = vrot.slane %v4091, 3
        %v4206 = vrot.slane %v4092, 3
        %v4207 = vsel %vm2070, %v4205, %v4206
        %v4208 = vrot.slane %v4093, 3
        %v4209 = vsel %vm2070, %v4206, %v4208
        %v4210 = vrot.slane %v4094, 3
        %v4211 = vrot.slane %v4095, 3
        %v4212 = vsel %vm2070, %v4210, %v4211
        %v4213 = vrot.slane %v4096, 3
        %v4214 = vsel %vm2070, %v4211, %v4213
        %v4215 = vrot.slane %v4097, 3
        %v4216 = vrot.slane %v4098, 3
        %v4217 = vsel %vm2070, %v4215, %v4216
        %v4218 = vrot.slane %v4099, 3
        %v4219 = vsel %vm2070, %v4216, %v4218
        %v4220 = vrot.slane %v4100, 3
        %v4221 = vrot.slane %v4101, 3
        %v4222 = vsel %vm2070, %v4220, %v4221
        %v4223 = vrot.slane %v4102, 3
        %v4224 = vsel %vm2070, %v4221, %v4223
        %v4225 = vrot.slane %v4103, 3
        %v4226 = vrot.slane %v4104, 3
        %v4227 = vsel %vm2070, %v4225, %v4226
        %v4228 = vrot.slane %v4105, 3
        %v4229 = vsel %vm2070, %v4226, %v4228
        %v4230 = vrot.slane %v4106, 3
        %v4231 = vrot.slane %v4107, 3
        %v4232 = vsel %vm2070, %v4230, %v4231
        %v4233 = vrot.slane %v4108, 3
        %v4234 = vsel %vm2070, %v4231, %v4233
        %v4235 = vrot.slane %v4109, 3
        %v4236 = vrot.slane %v4110, 3
        %v4237 = vsel %vm2070, %v4235, %v4236
        %v4238 = vrot.slane %v4111, 3
        %v4239 = vsel %vm2070, %v4236, %v4238
        %v4272 = vadd.f32 %v4028, %v4162
        %v4273 = vadd.f32 %v4029, %v4164
        %v4274 = vadd.f32 %v4030, %v4167
        %v4275 = vadd.f32 %v4031, %v4169
        %v4276 = vadd.f32 %v4032, %v4172
        %v4277 = vadd.f32 %v4033, %v4174
        %v4278 = vadd.f32 %v4034, %v4177
        %v4279 = vadd.f32 %v4035, %v4179
        %v4280 = vadd.f32 %v4036, %v4182
        %v4281 = vadd.f32 %v4037, %v4184
        %v4282 = vadd.f32 %v4038, %v4187
        %v4283 = vadd.f32 %v4039, %v4189
        %v4284 = vadd.f32 %v4040, %v4192
        %v4285 = vadd.f32 %v4041, %v4194
        %v4286 = vadd.f32 %v4042, %v4197
        %v4287 = vadd.f32 %v4043, %v4199
        %v4288 = vadd.f32 %v4044, %v4202
        %v4289 = vadd.f32 %v4045, %v4204
        %v4290 = vadd.f32 %v4046, %v4207
        %v4291 = vadd.f32 %v4047, %v4209
        %v4292 = vadd.f32 %v4048, %v4212
        %v4293 = vadd.f32 %v4049, %v4214
        %v4294 = vadd.f32 %v4050, %v4217
        %v4295 = vadd.f32 %v4051, %v4219
        %v4296 = vadd.f32 %v4052, %v4222
        %v4297 = vadd.f32 %v4053, %v4224
        %v4298 = vadd.f32 %v4054, %v4227
        %v4299 = vadd.f32 %v4055, %v4229
        %v4300 = vadd.f32 %v4056, %v4232
        %v4301 = vadd.f32 %v4057, %v4234
        %v4302 = vadd.f32 %v4058, %v4237
        %v4303 = vadd.f32 %v4059, %v4239
        %v4304 = vlaneseq
        %v4305 = vshrl.u32 %v4304, 7
        %v4306 = vsub.s32 6, %v4305
        %v4307 = vrot.slane %v1409, %v4306
        %v4308 = vmul.f32 %v1354, %v4307
        %v4309 = vmul.f32 %v1355, %v4307
        %v4310 = vmul.f32 %v1356, %v4307
        %v4311 = vmul.f32 %v1357, %v4307
        %v4312 = vmul.f32 %v1358, %v4307
        %v4313 = vmul.f32 %v1359, %v4307
        %v4314 = vmul.f32 %v1360, %v4307
        %v4315 = vmul.f32 %v1361, %v4307
        %v4316 = vmul.f32 %v1362, %v4307
        %v4317 = vmul.f32 %v1363, %v4307
        %v4318 = vmul.f32 %v1364, %v4307
        %v4319 = vmul.f32 %v1365, %v4307
        %v4320 = vmul.f32 %v1366, %v4307
        %v4321 = vmul.f32 %v1367, %v4307
        %v4322 = vmul.f32 %v1368, %v4307
        %v4323 = vmul.f32 %v1369, %v4307
        %v4324 = vmul.f32 %v1370, %v4307
        %v4325 = vmul.f32 %v1371, %v4307
        %v4326 = vmul.f32 %v1372, %v4307
        %v4327 = vmul.f32 %v1373, %v4307
        %v4328 = vmul.f32 %v1374, %v4307
        %v4329 = vmul.f32 %v1375, %v4307
        %v4330 = vmul.f32 %v1376, %v4307
        %v4331 = vmul.f32 %v1377, %v4307
        %v4332 = vmul.f32 %v1378, %v4307
        %v4333 = vmul.f32 %v1379, %v4307
        %v4334 = vmul.f32 %v1380, %v4307
        %v4335 = vmul.f32 %v1381, %v4307
        %v4336 = vmul.f32 %v1382, %v4307
        %v4337 = vmul.f32 %v1383, %v4307
        %v4338 = vmul.f32 %v1384, %v4307
        %v4339 = vmul.f32 %v1385, %v4307
        %v4340 = vmul.f32 %v1386, %v4307
        %v4341 = vmul.f32 %v1387, %v4307
        %v4342 = vmul.f32 %v1388, %v4307
        %v4343 = vmul.f32 %v1389, %v4307
        %v4344 = vmul.f32 %v1390, %v4307
        %v4345 = vmul.f32 %v1391, %v4307
        %v4346 = vmul.f32 %v1392, %v4307
        %v4347 = vmul.f32 %v1393, %v4307
        %v4348 = vmul.f32 %v1394, %v4307
        %v4349 = vmul.f32 %v1395, %v4307
        %v4350 = vmul.f32 %v1396, %v4307
        %v4351 = vmul.f32 %v1397, %v4307
        %v4352 = vmul.f32 %v1398, %v4307
        %v4353 = vmul.f32 %v1399, %v4307
        %v4354 = vmul.f32 %v1400, %v4307
        %v4355 = vmul.f32 %v1401, %v4307
        %v4404 = vrot.slane %v4308, 4
        %v4405 = vrot.slane %v4309, 4
        %v4406 = vsel %vm2315, %v4404, %v4405
        %v4407 = vrot.slane %v4310, 4
        %v4408 = vsel %vm2315, %v4405, %v4407
        %v4409 = vrot.slane %v4311, 4
        %v4410 = vrot.slane %v4312, 4
        %v4411 = vsel %vm2315, %v4409, %v4410
        %v4412 = vrot.slane %v4313, 4
        %v4413 = vsel %vm2315, %v4410, %v4412
        %v4414 = vrot.slane %v4314, 4
        %v4415 = vrot.slane %v4315, 4
        %v4416 = vsel %vm2315, %v4414, %v4415
        %v4417 = vrot.slane %v4316, 4
        %v4418 = vsel %vm2315, %v4415, %v4417
        %v4419 = vrot.slane %v4317, 4
        %v4420 = vrot.slane %v4318, 4
        %v4421 = vsel %vm2315, %v4419, %v4420
        %v4422 = vrot.slane %v4319, 4
        %v4423 = vsel %vm2315, %v4420, %v4422
        %v4424 = vrot.slane %v4320, 4
        %v4425 = vrot.slane %v4321, 4
        %v4426 = vsel %vm2315, %v4424, %v4425
        %v4427 = vrot.slane %v4322, 4
        %v4428 = vsel %vm2315, %v4425, %v4427
        %v4429 = vrot.slane %v4323, 4
        %v4430 = vrot.slane %v4324, 4
        %v4431 = vsel %vm2315, %v4429, %v4430
        %v4432 = vrot.slane %v4325, 4
        %v4433 = vsel %vm2315, %v4430, %v4432
        %v4434 = vrot.slane %v4326, 4
        %v4435 = vrot.slane %v4327, 4
        %v4436 = vsel %vm2315, %v4434, %v4435
        %v4437 = vrot.slane %v4328, 4
        %v4438 = vsel %vm2315, %v4435, %v4437
        %v4439 = vrot.slane %v4329, 4
        %v4440 = vrot.slane %v4330, 4
        %v4441 = vsel %vm2315, %v4439, %v4440
        %v4442 = vrot.slane %v4331, 4
        %v4443 = vsel %vm2315, %v4440, %v4442
        %v4444 = vrot.slane %v4332, 4
        %v4445 = vrot.slane %v4333, 4
        %v4446 = vsel %vm2315, %v4444, %v4445
        %v4447 = vrot.slane %v4334, 4
        %v4448 = vsel %vm2315, %v4445, %v4447
        %v4449 = vrot.slane %v4335, 4
        %v4450 = vrot.slane %v4336, 4
        %v4451 = vsel %vm2315, %v4449, %v4450
        %v4452 = vrot.slane %v4337, 4
        %v4453 = vsel %vm2315, %v4450, %v4452
        %v4454 = vrot.slane %v4338, 4
        %v4455 = vrot.slane %v4339, 4
        %v4456 = vsel %vm2315, %v4454, %v4455
        %v4457 = vrot.slane %v4340, 4
        %v4458 = vsel %vm2315, %v4455, %v4457
        %v4459 = vrot.slane %v4341, 4
        %v4460 = vrot.slane %v4342, 4
        %v4461 = vsel %vm2315, %v4459, %v4460
        %v4462 = vrot.slane %v4343, 4
        %v4463 = vsel %vm2315, %v4460, %v4462
        %v4464 = vrot.slane %v4344, 4
        %v4465 = vrot.slane %v4345, 4
        %v4466 = vsel %vm2315, %v4464, %v4465
        %v4467 = vrot.slane %v4346, 4
        %v4468 = vsel %vm2315, %v4465, %v4467
        %v4469 = vrot.slane %v4347, 4
        %v4470 = vrot.slane %v4348, 4
        %v4471 = vsel %vm2315, %v4469, %v4470
        %v4472 = vrot.slane %v4349, 4
        %v4473 = vsel %vm2315, %v4470, %v4472
        %v4474 = vrot.slane %v4350, 4
        %v4475 = vrot.slane %v4351, 4
        %v4476 = vsel %vm2315, %v4474, %v4475
        %v4477 = vrot.slane %v4352, 4
        %v4478 = vsel %vm2315, %v4475, %v4477
        %v4479 = vrot.slane %v4353, 4
        %v4480 = vrot.slane %v4354, 4
        %v4481 = vsel %vm2315, %v4479, %v4480
        %v4482 = vrot.slane %v4355, 4
        %v4483 = vsel %vm2315, %v4480, %v4482
        %v4516 = vadd.f32 %v4272, %v4406
        %v4517 = vadd.f32 %v4273, %v4408
        %v4518 = vadd.f32 %v4274, %v4411
        %v4519 = vadd.f32 %v4275, %v4413
        %v4520 = vadd.f32 %v4276, %v4416
        %v4521 = vadd.f32 %v4277, %v4418
        %v4522 = vadd.f32 %v4278, %v4421
        %v4523 = vadd.f32 %v4279, %v4423
        %v4524 = vadd.f32 %v4280, %v4426
        %v4525 = vadd.f32 %v4281, %v4428
        %v4526 = vadd.f32 %v4282, %v4431
        %v4527 = vadd.f32 %v4283, %v4433
        %v4528 = vadd.f32 %v4284, %v4436
        %v4529 = vadd.f32 %v4285, %v4438
        %v4530 = vadd.f32 %v4286, %v4441
        %v4531 = vadd.f32 %v4287, %v4443
        %v4532 = vadd.f32 %v4288, %v4446
        %v4533 = vadd.f32 %v4289, %v4448
        %v4534 = vadd.f32 %v4290, %v4451
        %v4535 = vadd.f32 %v4291, %v4453
        %v4536 = vadd.f32 %v4292, %v4456
        %v4537 = vadd.f32 %v4293, %v4458
        %v4538 = vadd.f32 %v4294, %v4461
        %v4539 = vadd.f32 %v4295, %v4463
        %v4540 = vadd.f32 %v4296, %v4466
        %v4541 = vadd.f32 %v4297, %v4468
        %v4542 = vadd.f32 %v4298, %v4471
        %v4543 = vadd.f32 %v4299, %v4473
        %v4544 = vadd.f32 %v4300, %v4476
        %v4545 = vadd.f32 %v4301, %v4478
        %v4546 = vadd.f32 %v4302, %v4481
        %v4547 = vadd.f32 %v4303, %v4483
        %v4548 = vlaneseq
        %v4549 = vshrl.u32 %v4548, 7
        %v4550 = vsub.s32 7, %v4549
        %v4551 = vrot.slane %v1409, %v4550
        %v4552 = vmul.f32 %v1357, %v4551
        %v4553 = vmul.f32 %v1358, %v4551
        %v4554 = vmul.f32 %v1360, %v4551
        %v4555 = vmul.f32 %v1361, %v4551
        %v4556 = vmul.f32 %v1363, %v4551
        %v4557 = vmul.f32 %v1364, %v4551
        %v4558 = vmul.f32 %v1366, %v4551
        %v4559 = vmul.f32 %v1367, %v4551
        %v4560 = vmul.f32 %v1369, %v4551
        %v4561 = vmul.f32 %v1370, %v4551
        %v4562 = vmul.f32 %v1372, %v4551
        %v4563 = vmul.f32 %v1373, %v4551
        %v4564 = vmul.f32 %v1375, %v4551
        %v4565 = vmul.f32 %v1376, %v4551
        %v4566 = vmul.f32 %v1378, %v4551
        %v4567 = vmul.f32 %v1379, %v4551
        %v4568 = vmul.f32 %v1381, %v4551
        %v4569 = vmul.f32 %v1382, %v4551
        %v4570 = vmul.f32 %v1384, %v4551
        %v4571 = vmul.f32 %v1385, %v4551
        %v4572 = vmul.f32 %v1387, %v4551
        %v4573 = vmul.f32 %v1388, %v4551
        %v4574 = vmul.f32 %v1390, %v4551
        %v4575 = vmul.f32 %v1391, %v4551
        %v4576 = vmul.f32 %v1393, %v4551
        %v4577 = vmul.f32 %v1394, %v4551
        %v4578 = vmul.f32 %v1396, %v4551
        %v4579 = vmul.f32 %v1397, %v4551
        %v4580 = vmul.f32 %v1399, %v4551
        %v4581 = vmul.f32 %v1400, %v4551
        %v4582 = vmul.f32 %v1402, %v4551
        %v4583 = vmul.f32 %v1403, %v4551
        %v4584 = vadd.f32 %v4516, %v4552
        %v4585 = vadd.f32 %v4517, %v4553
        %v4586 = vadd.f32 %v4518, %v4554
        %v4587 = vadd.f32 %v4519, %v4555
        %v4588 = vadd.f32 %v4520, %v4556
        %v4589 = vadd.f32 %v4521, %v4557
        %v4590 = vadd.f32 %v4522, %v4558
        %v4591 = vadd.f32 %v4523, %v4559
        %v4592 = vadd.f32 %v4524, %v4560
        %v4593 = vadd.f32 %v4525, %v4561
        %v4594 = vadd.f32 %v4526, %v4562
        %v4595 = vadd.f32 %v4527, %v4563
        %v4596 = vadd.f32 %v4528, %v4564
        %v4597 = vadd.f32 %v4529, %v4565
        %v4598 = vadd.f32 %v4530, %v4566
        %v4599 = vadd.f32 %v4531, %v4567
        %v4600 = vadd.f32 %v4532, %v4568
        %v4601 = vadd.f32 %v4533, %v4569
        %v4602 = vadd.f32 %v4534, %v4570
        %v4603 = vadd.f32 %v4535, %v4571
        %v4604 = vadd.f32 %v4536, %v4572
        %v4605 = vadd.f32 %v4537, %v4573
        %v4606 = vadd.f32 %v4538, %v4574
        %v4607 = vadd.f32 %v4539, %v4575
        %v4608 = vadd.f32 %v4540, %v4576
        %v4609 = vadd.f32 %v4541, %v4577
        %v4610 = vadd.f32 %v4542, %v4578
        %v4611 = vadd.f32 %v4543, %v4579
        %v4612 = vadd.f32 %v4544, %v4580
        %v4613 = vadd.f32 %v4545, %v4581
        %v4614 = vadd.f32 %v4546, %v4582
        %v4615 = vadd.f32 %v4547, %v4583
        %v4616 = vlaneseq
        %v4617 = vshrl.u32 %v4616, 7
        %v4618 = vsub.s32 0, %v4617
        %v4619 = vrot.slane %v1410, %v4618
        %v4620 = vmul.f32 %v1357, %v4619
        %v4621 = vmul.f32 %v1358, %v4619
        %v4622 = vmul.f32 %v1359, %v4619
        %v4623 = vmul.f32 %v1360, %v4619
        %v4624 = vmul.f32 %v1361, %v4619
        %v4625 = vmul.f32 %v1362, %v4619
        %v4626 = vmul.f32 %v1363, %v4619
        %v4627 = vmul.f32 %v1364, %v4619
        %v4628 = vmul.f32 %v1365, %v4619
        %v4629 = vmul.f32 %v1366, %v4619
        %v4630 = vmul.f32 %v1367, %v4619
        %v4631 = vmul.f32 %v1368, %v4619
        %v4632 = vmul.f32 %v1369, %v4619
        %v4633 = vmul.f32 %v1370, %v4619
        %v4634 = vmul.f32 %v1371, %v4619
        %v4635 = vmul.f32 %v1372, %v4619
        %v4636 = vmul.f32 %v1373, %v4619
        %v4637 = vmul.f32 %v1374, %v4619
        %v4638 = vmul.f32 %v1375, %v4619
        %v4639 = vmul.f32 %v1376, %v4619
        %v4640 = vmul.f32 %v1377, %v4619
        %v4641 = vmul.f32 %v1378, %v4619
        %v4642 = vmul.f32 %v1379, %v4619
        %v4643 = vmul.f32 %v1380, %v4619
        %v4644 = vmul.f32 %v1381, %v4619
        %v4645 = vmul.f32 %v1382, %v4619
        %v4646 = vmul.f32 %v1383, %v4619
        %v4647 = vmul.f32 %v1384, %v4619
        %v4648 = vmul.f32 %v1385, %v4619
        %v4649 = vmul.f32 %v1386, %v4619
        %v4650 = vmul.f32 %v1387, %v4619
        %v4651 = vmul.f32 %v1388, %v4619
        %v4652 = vmul.f32 %v1389, %v4619
        %v4653 = vmul.f32 %v1390, %v4619
        %v4654 = vmul.f32 %v1391, %v4619
        %v4655 = vmul.f32 %v1392, %v4619
        %v4656 = vmul.f32 %v1393, %v4619
        %v4657 = vmul.f32 %v1394, %v4619
        %v4658 = vmul.f32 %v1395, %v4619
        %v4659 = vmul.f32 %v1396, %v4619
        %v4660 = vmul.f32 %v1397, %v4619
        %v4661 = vmul.f32 %v1398, %v4619
        %v4662 = vmul.f32 %v1399, %v4619
        %v4663 = vmul.f32 %v1400, %v4619
        %v4664 = vmul.f32 %v1401, %v4619
        %v4665 = vmul.f32 %v1402, %v4619
        %v4666 = vmul.f32 %v1403, %v4619
        %v4667 = vmul.f32 %v1404, %v4619
        %v4716 = vrot.slane %v4620, 1
        %v4717 = vrot.slane %v4621, 1
        %v4718 = vsel %vm1580, %v4716, %v4717
        %v4719 = vrot.slane %v4622, 1
        %v4720 = vsel %vm1580, %v4717, %v4719
        %v4721 = vrot.slane %v4623, 1
        %v4722 = vrot.slane %v4624, 1
        %v4723 = vsel %vm1580, %v4721, %v4722
        %v4724 = vrot.slane %v4625, 1
        %v4725 = vsel %vm1580, %v4722, %v4724
        %v4726 = vrot.slane %v4626, 1
        %v4727 = vrot.slane %v4627, 1
        %v4728 = vsel %vm1580, %v4726, %v4727
        %v4729 = vrot.slane %v4628, 1
        %v4730 = vsel %vm1580, %v4727, %v4729
        %v4731 = vrot.slane %v4629, 1
        %v4732 = vrot.slane %v4630, 1
        %v4733 = vsel %vm1580, %v4731, %v4732
        %v4734 = vrot.slane %v4631, 1
        %v4735 = vsel %vm1580, %v4732, %v4734
        %v4736 = vrot.slane %v4632, 1
        %v4737 = vrot.slane %v4633, 1
        %v4738 = vsel %vm1580, %v4736, %v4737
        %v4739 = vrot.slane %v4634, 1
        %v4740 = vsel %vm1580, %v4737, %v4739
        %v4741 = vrot.slane %v4635, 1
        %v4742 = vrot.slane %v4636, 1
        %v4743 = vsel %vm1580, %v4741, %v4742
        %v4744 = vrot.slane %v4637, 1
        %v4745 = vsel %vm1580, %v4742, %v4744
        %v4746 = vrot.slane %v4638, 1
        %v4747 = vrot.slane %v4639, 1
        %v4748 = vsel %vm1580, %v4746, %v4747
        %v4749 = vrot.slane %v4640, 1
        %v4750 = vsel %vm1580, %v4747, %v4749
        %v4751 = vrot.slane %v4641, 1
        %v4752 = vrot.slane %v4642, 1
        %v4753 = vsel %vm1580, %v4751, %v4752
        %v4754 = vrot.slane %v4643, 1
        %v4755 = vsel %vm1580, %v4752, %v4754
        %v4756 = vrot.slane %v4644, 1
        %v4757 = vrot.slane %v4645, 1
        %v4758 = vsel %vm1580, %v4756, %v4757
        %v4759 = vrot.slane %v4646, 1
        %v4760 = vsel %vm1580, %v4757, %v4759
        %v4761 = vrot.slane %v4647, 1
        %v4762 = vrot.slane %v4648, 1
        %v4763 = vsel %vm1580, %v4761, %v4762
        %v4764 = vrot.slane %v4649, 1
        %v4765 = vsel %vm1580, %v4762, %v4764
        %v4766 = vrot.slane %v4650, 1
        %v4767 = vrot.slane %v4651, 1
        %v4768 = vsel %vm1580, %v4766, %v4767
        %v4769 = vrot.slane %v4652, 1
        %v4770 = vsel %vm1580, %v4767, %v4769
        %v4771 = vrot.slane %v4653, 1
        %v4772 = vrot.slane %v4654, 1
        %v4773 = vsel %vm1580, %v4771, %v4772
        %v4774 = vrot.slane %v4655, 1
        %v4775 = vsel %vm1580, %v4772, %v4774
        %v4776 = vrot.slane %v4656, 1
        %v4777 = vrot.slane %v4657, 1
        %v4778 = vsel %vm1580, %v4776, %v4777
        %v4779 = vrot.slane %v4658, 1
        %v4780 = vsel %vm1580, %v4777, %v4779
        %v4781 = vrot.slane %v4659, 1
        %v4782 = vrot.slane %v4660, 1
        %v4783 = vsel %vm1580, %v4781, %v4782
        %v4784 = vrot.slane %v4661, 1
        %v4785 = vsel %vm1580, %v4782, %v4784
        %v4786 = vrot.slane %v4662, 1
        %v4787 = vrot.slane %v4663, 1
        %v4788 = vsel %vm1580, %v4786, %v4787
        %v4789 = vrot.slane %v4664, 1
        %v4790 = vsel %vm1580, %v4787, %v4789
        %v4791 = vrot.slane %v4665, 1
        %v4792 = vrot.slane %v4666, 1
        %v4793 = vsel %vm1580, %v4791, %v4792
        %v4794 = vrot.slane %v4667, 1
        %v4795 = vsel %vm1580, %v4792, %v4794
        %v4828 = vadd.f32 %v4584, %v4718
        %v4829 = vadd.f32 %v4585, %v4720
        %v4830 = vadd.f32 %v4586, %v4723
        %v4831 = vadd.f32 %v4587, %v4725
        %v4832 = vadd.f32 %v4588, %v4728
        %v4833 = vadd.f32 %v4589, %v4730
        %v4834 = vadd.f32 %v4590, %v4733
        %v4835 = vadd.f32 %v4591, %v4735
        %v4836 = vadd.f32 %v4592, %v4738
        %v4837 = vadd.f32 %v4593, %v4740
        %v4838 = vadd.f32 %v4594, %v4743
        %v4839 = vadd.f32 %v4595, %v4745
        %v4840 = vadd.f32 %v4596, %v4748
        %v4841 = vadd.f32 %v4597, %v4750
        %v4842 = vadd.f32 %v4598, %v4753
        %v4843 = vadd.f32 %v4599, %v4755
        %v4844 = vadd.f32 %v4600, %v4758
        %v4845 = vadd.f32 %v4601, %v4760
        %v4846 = vadd.f32 %v4602, %v4763
        %v4847 = vadd.f32 %v4603, %v4765
        %v4848 = vadd.f32 %v4604, %v4768
        %v4849 = vadd.f32 %v4605, %v4770
        %v4850 = vadd.f32 %v4606, %v4773
        %v4851 = vadd.f32 %v4607, %v4775
        %v4852 = vadd.f32 %v4608, %v4778
        %v4853 = vadd.f32 %v4609, %v4780
        %v4854 = vadd.f32 %v4610, %v4783
        %v4855 = vadd.f32 %v4611, %v4785
        %v4856 = vadd.f32 %v4612, %v4788
        %v4857 = vadd.f32 %v4613, %v4790
        %v4858 = vadd.f32 %v4614, %v4793
        %v4859 = vadd.f32 %v4615, %v4795
        %v4860 = vlaneseq
        %v4861 = vshrl.u32 %v4860, 7
        %v4862 = vsub.s32 1, %v4861
        %v4863 = vrot.slane %v1410, %v4862
        %v4864 = vmul.f32 %v1357, %v4863
        %v4865 = vmul.f32 %v1358, %v4863
        %v4866 = vmul.f32 %v1359, %v4863
        %v4867 = vmul.f32 %v1360, %v4863
        %v4868 = vmul.f32 %v1361, %v4863
        %v4869 = vmul.f32 %v1362, %v4863
        %v4870 = vmul.f32 %v1363, %v4863
        %v4871 = vmul.f32 %v1364, %v4863
        %v4872 = vmul.f32 %v1365, %v4863
        %v4873 = vmul.f32 %v1366, %v4863
        %v4874 = vmul.f32 %v1367, %v4863
        %v4875 = vmul.f32 %v1368, %v4863
        %v4876 = vmul.f32 %v1369, %v4863
        %v4877 = vmul.f32 %v1370, %v4863
        %v4878 = vmul.f32 %v1371, %v4863
        %v4879 = vmul.f32 %v1372, %v4863
        %v4880 = vmul.f32 %v1373, %v4863
        %v4881 = vmul.f32 %v1374, %v4863
        %v4882 = vmul.f32 %v1375, %v4863
        %v4883 = vmul.f32 %v1376, %v4863
        %v4884 = vmul.f32 %v1377, %v4863
        %v4885 = vmul.f32 %v1378, %v4863
        %v4886 = vmul.f32 %v1379, %v4863
        %v4887 = vmul.f32 %v1380, %v4863
        %v4888 = vmul.f32 %v1381, %v4863
        %v4889 = vmul.f32 %v1382, %v4863
        %v4890 = vmul.f32 %v1383, %v4863
        %v4891 = vmul.f32 %v1384, %v4863
        %v4892 = vmul.f32 %v1385, %v4863
        %v4893 = vmul.f32 %v1386, %v4863
        %v4894 = vmul.f32 %v1387, %v4863
        %v4895 = vmul.f32 %v1388, %v4863
        %v4896 = vmul.f32 %v1389, %v4863
        %v4897 = vmul.f32 %v1390, %v4863
        %v4898 = vmul.f32 %v1391, %v4863
        %v4899 = vmul.f32 %v1392, %v4863
        %v4900 = vmul.f32 %v1393, %v4863
        %v4901 = vmul.f32 %v1394, %v4863
        %v4902 = vmul.f32 %v1395, %v4863
        %v4903 = vmul.f32 %v1396, %v4863
        %v4904 = vmul.f32 %v1397, %v4863
        %v4905 = vmul.f32 %v1398, %v4863
        %v4906 = vmul.f32 %v1399, %v4863
        %v4907 = vmul.f32 %v1400, %v4863
        %v4908 = vmul.f32 %v1401, %v4863
        %v4909 = vmul.f32 %v1402, %v4863
        %v4910 = vmul.f32 %v1403, %v4863
        %v4911 = vmul.f32 %v1404, %v4863
        %v4960 = vrot.slane %v4864, 2
        %v4961 = vrot.slane %v4865, 2
        %v4962 = vsel %vm1825, %v4960, %v4961
        %v4963 = vrot.slane %v4866, 2
        %v4964 = vsel %vm1825, %v4961, %v4963
        %v4965 = vrot.slane %v4867, 2
        %v4966 = vrot.slane %v4868, 2
        %v4967 = vsel %vm1825, %v4965, %v4966
        %v4968 = vrot.slane %v4869, 2
        %v4969 = vsel %vm1825, %v4966, %v4968
        %v4970 = vrot.slane %v4870, 2
        %v4971 = vrot.slane %v4871, 2
        %v4972 = vsel %vm1825, %v4970, %v4971
        %v4973 = vrot.slane %v4872, 2
        %v4974 = vsel %vm1825, %v4971, %v4973
        %v4975 = vrot.slane %v4873, 2
        %v4976 = vrot.slane %v4874, 2
        %v4977 = vsel %vm1825, %v4975, %v4976
        %v4978 = vrot.slane %v4875, 2
        %v4979 = vsel %vm1825, %v4976, %v4978
        %v4980 = vrot.slane %v4876, 2
        %v4981 = vrot.slane %v4877, 2
        %v4982 = vsel %vm1825, %v4980, %v4981
        %v4983 = vrot.slane %v4878, 2
        %v4984 = vsel %vm1825, %v4981, %v4983
        %v4985 = vrot.slane %v4879, 2
        %v4986 = vrot.slane %v4880, 2
        %v4987 = vsel %vm1825, %v4985, %v4986
        %v4988 = vrot.slane %v4881, 2
        %v4989 = vsel %vm1825, %v4986, %v4988
        %v4990 = vrot.slane %v4882, 2
        %v4991 = vrot.slane %v4883, 2
        %v4992 = vsel %vm1825, %v4990, %v4991
        %v4993 = vrot.slane %v4884, 2
        %v4994 = vsel %vm1825, %v4991, %v4993
        %v4995 = vrot.slane %v4885, 2
        %v4996 = vrot.slane %v4886, 2
        %v4997 = vsel %vm1825, %v4995, %v4996
        %v4998 = vrot.slane %v4887, 2
        %v4999 = vsel %vm1825, %v4996, %v4998
        %v5000 = vrot.slane %v4888, 2
        %v5001 = vrot.slane %v4889, 2
        %v5002 = vsel %vm1825, %v5000, %v5001
        %v5003 = vrot.slane %v4890, 2
        %v5004 = vsel %vm1825, %v5001, %v5003
        %v5005 = vrot.slane %v4891, 2
        %v5006 = vrot.slane %v4892, 2
        %v5007 = vsel %vm1825, %v5005, %v5006
        %v5008 = vrot.slane %v4893, 2
        %v5009 = vsel %vm1825, %v5006, %v5008
        %v5010 = vrot.slane %v4894, 2
        %v5011 = vrot.slane %v4895, 2
        %v5012 = vsel %vm1825, %v5010, %v5011
        %v5013 = vrot.slane %v4896, 2
        %v5014 = vsel %vm1825, %v5011, %v5013
        %v5015 = vrot.slane %v4897, 2
        %v5016 = vrot.slane %v4898, 2
        %v5017 = vsel %vm1825, %v5015, %v5016
        %v5018 = vrot.slane %v4899, 2
        %v5019 = vsel %vm1825, %v5016, %v5018
        %v5020 = vrot.slane %v4900, 2
        %v5021 = vrot.slane %v4901, 2
        %v5022 = vsel %vm1825, %v5020, %v5021
        %v5023 = vrot.slane %v4902, 2
        %v5024 = vsel %vm1825, %v5021, %v5023
        %v5025 = vrot.slane %v4903, 2
        %v5026 = vrot.slane %v4904, 2
        %v5027 = vsel %vm1825, %v5025, %v5026
        %v5028 = vrot.slane %v4905, 2
        %v5029 = vsel %vm1825, %v5026, %v5028
        %v5030 = vrot.slane %v4906, 2
        %v5031 = vrot.slane %v4907, 2
        %v5032 = vsel %vm1825, %v5030, %v5031
        %v5033 = vrot.slane %v4908, 2
        %v5034 = vsel %vm1825, %v5031, %v5033
        %v5035 = vrot.slane %v4909, 2
        %v5036 = vrot.slane %v4910, 2
        %v5037 = vsel %vm1825, %v5035, %v5036
        %v5038 = vrot.slane %v4911, 2
        %v5039 = vsel %vm1825, %v5036, %v5038
        %v5072 = vadd.f32 %v4828, %v4962
        %v5073 = vadd.f32 %v4829, %v4964
        %v5074 = vadd.f32 %v4830, %v4967
        %v5075 = vadd.f32 %v4831, %v4969
        %v5076 = vadd.f32 %v4832, %v4972
        %v5077 = vadd.f32 %v4833, %v4974
        %v5078 = vadd.f32 %v4834, %v4977
        %v5079 = vadd.f32 %v4835, %v4979
        %v5080 = vadd.f32 %v4836, %v4982
        %v5081 = vadd.f32 %v4837, %v4984
        %v5082 = vadd.f32 %v4838, %v4987
        %v5083 = vadd.f32 %v4839, %v4989
        %v5084 = vadd.f32 %v4840, %v4992
        %v5085 = vadd.f32 %v4841, %v4994
        %v5086 = vadd.f32 %v4842, %v4997
        %v5087 = vadd.f32 %v4843, %v4999
        %v5088 = vadd.f32 %v4844, %v5002
        %v5089 = vadd.f32 %v4845, %v5004
        %v5090 = vadd.f32 %v4846, %v5007
        %v5091 = vadd.f32 %v4847, %v5009
        %v5092 = vadd.f32 %v4848, %v5012
        %v5093 = vadd.f32 %v4849, %v5014
        %v5094 = vadd.f32 %v4850, %v5017
        %v5095 = vadd.f32 %v4851, %v5019
        %v5096 = vadd.f32 %v4852, %v5022
        %v5097 = vadd.f32 %v4853, %v5024
        %v5098 = vadd.f32 %v4854, %v5027
        %v5099 = vadd.f32 %v4855, %v5029
        %v5100 = vadd.f32 %v4856, %v5032
        %v5101 = vadd.f32 %v4857, %v5034
        %v5102 = vadd.f32 %v4858, %v5037
        %v5103 = vadd.f32 %v4859, %v5039
        %v5104 = vlaneseq
        %v5105 = vshrl.u32 %v5104, 7
        %v5106 = vsub.s32 2, %v5105
        %v5107 = vrot.slane %v1410, %v5106
        %v5108 = vmul.f32 %v1357, %v5107
        %v5109 = vmul.f32 %v1358, %v5107
        %v5110 = vmul.f32 %v1359, %v5107
        %v5111 = vmul.f32 %v1360, %v5107
        %v5112 = vmul.f32 %v1361, %v5107
        %v5113 = vmul.f32 %v1362, %v5107
        %v5114 = vmul.f32 %v1363, %v5107
        %v5115 = vmul.f32 %v1364, %v5107
        %v5116 = vmul.f32 %v1365, %v5107
        %v5117 = vmul.f32 %v1366, %v5107
        %v5118 = vmul.f32 %v1367, %v5107
        %v5119 = vmul.f32 %v1368, %v5107
        %v5120 = vmul.f32 %v1369, %v5107
        %v5121 = vmul.f32 %v1370, %v5107
        %v5122 = vmul.f32 %v1371, %v5107
        %v5123 = vmul.f32 %v1372, %v5107
        %v5124 = vmul.f32 %v1373, %v5107
        %v5125 = vmul.f32 %v1374, %v5107
        %v5126 = vmul.f32 %v1375, %v5107
        %v5127 = vmul.f32 %v1376, %v5107
        %v5128 = vmul.f32 %v1377, %v5107
        %v5129 = vmul.f32 %v1378, %v5107
        %v5130 = vmul.f32 %v1379, %v5107
        %v5131 = vmul.f32 %v1380, %v5107
        %v5132 = vmul.f32 %v1381, %v5107
        %v5133 = vmul.f32 %v1382, %v5107
        %v5134 = vmul.f32 %v1383, %v5107
        %v5135 = vmul.f32 %v1384, %v5107
        %v5136 = vmul.f32 %v1385, %v5107
        %v5137 = vmul.f32 %v1386, %v5107
        %v5138 = vmul.f32 %v1387, %v5107
        %v5139 = vmul.f32 %v1388, %v5107
        %v5140 = vmul.f32 %v1389, %v5107
        %v5141 = vmul.f32 %v1390, %v5107
        %v5142 = vmul.f32 %v1391, %v5107
        %v5143 = vmul.f32 %v1392, %v5107
        %v5144 = vmul.f32 %v1393, %v5107
        %v5145 = vmul.f32 %v1394, %v5107
        %v5146 = vmul.f32 %v1395, %v5107
        %v5147 = vmul.f32 %v1396, %v5107
        %v5148 = vmul.f32 %v1397, %v5107
        %v5149 = vmul.f32 %v1398, %v5107
        %v5150 = vmul.f32 %v1399, %v5107
        %v5151 = vmul.f32 %v1400, %v5107
        %v5152 = vmul.f32 %v1401, %v5107
        %v5153 = vmul.f32 %v1402, %v5107
        %v5154 = vmul.f32 %v1403, %v5107
        %v5155 = vmul.f32 %v1404, %v5107
        %v5204 = vrot.slane %v5108, 3
        %v5205 = vrot.slane %v5109, 3
        %v5206 = vsel %vm2070, %v5204, %v5205
        %v5207 = vrot.slane %v5110, 3
        %v5208 = vsel %vm2070, %v5205, %v5207
        %v5209 = vrot.slane %v5111, 3
        %v5210 = vrot.slane %v5112, 3
        %v5211 = vsel %vm2070, %v5209, %v5210
        %v5212 = vrot.slane %v5113, 3
        %v5213 = vsel %vm2070, %v5210, %v5212
        %v5214 = vrot.slane %v5114, 3
        %v5215 = vrot.slane %v5115, 3
        %v5216 = vsel %vm2070, %v5214, %v5215
        %v5217 = vrot.slane %v5116, 3
        %v5218 = vsel %vm2070, %v5215, %v5217
        %v5219 = vrot.slane %v5117, 3
        %v5220 = vrot.slane %v5118, 3
        %v5221 = vsel %vm2070, %v5219, %v5220
        %v5222 = vrot.slane %v5119, 3
        %v5223 = vsel %vm2070, %v5220, %v5222
        %v5224 = vrot.slane %v5120, 3
        %v5225 = vrot.slane %v5121, 3
        %v5226 = vsel %vm2070, %v5224, %v5225
        %v5227 = vrot.slane %v5122, 3
        %v5228 = vsel %vm2070, %v5225, %v5227
        %v5229 = vrot.slane %v5123, 3
        %v5230 = vrot.slane %v5124, 3
        %v5231 = vsel %vm2070, %v5229, %v5230
        %v5232 = vrot.slane %v5125, 3
        %v5233 = vsel %vm2070, %v5230, %v5232
        %v5234 = vrot.slane %v5126, 3
        %v5235 = vrot.slane %v5127, 3
        %v5236 = vsel %vm2070, %v5234, %v5235
        %v5237 = vrot.slane %v5128, 3
        %v5238 = vsel %vm2070, %v5235, %v5237
        %v5239 = vrot.slane %v5129, 3
        %v5240 = vrot.slane %v5130, 3
        %v5241 = vsel %vm2070, %v5239, %v5240
        %v5242 = vrot.slane %v5131, 3
        %v5243 = vsel %vm2070, %v5240, %v5242
        %v5244 = vrot.slane %v5132, 3
        %v5245 = vrot.slane %v5133, 3
        %v5246 = vsel %vm2070, %v5244, %v5245
        %v5247 = vrot.slane %v5134, 3
        %v5248 = vsel %vm2070, %v5245, %v5247
        %v5249 = vrot.slane %v5135, 3
        %v5250 = vrot.slane %v5136, 3
        %v5251 = vsel %vm2070, %v5249, %v5250
        %v5252 = vrot.slane %v5137, 3
        %v5253 = vsel %vm2070, %v5250, %v5252
        %v5254 = vrot.slane %v5138, 3
        %v5255 = vrot.slane %v5139, 3
        %v5256 = vsel %vm2070, %v5254, %v5255
        %v5257 = vrot.slane %v5140, 3
        %v5258 = vsel %vm2070, %v5255, %v5257
        %v5259 = vrot.slane %v5141, 3
        %v5260 = vrot.slane %v5142, 3
        %v5261 = vsel %vm2070, %v5259, %v5260
        %v5262 = vrot.slane %v5143, 3
        %v5263 = vsel %vm2070, %v5260, %v5262
        %v5264 = vrot.slane %v5144, 3
        %v5265 = vrot.slane %v5145, 3
        %v5266 = vsel %vm2070, %v5264, %v5265
        %v5267 = vrot.slane %v5146, 3
        %v5268 = vsel %vm2070, %v5265, %v5267
        %v5269 = vrot.slane %v5147, 3
        %v5270 = vrot.slane %v5148, 3
        %v5271 = vsel %vm2070, %v5269, %v5270
        %v5272 = vrot.slane %v5149, 3
        %v5273 = vsel %vm2070, %v5270, %v5272
        %v5274 = vrot.slane %v5150, 3
        %v5275 = vrot.slane %v5151, 3
        %v5276 = vsel %vm2070, %v5274, %v5275
        %v5277 = vrot.slane %v5152, 3
        %v5278 = vsel %vm2070, %v5275, %v5277
        %v5279 = vrot.slane %v5153, 3
        %v5280 = vrot.slane %v5154, 3
        %v5281 = vsel %vm2070, %v5279, %v5280
        %v5282 = vrot.slane %v5155, 3
        %v5283 = vsel %vm2070, %v5280, %v5282
        %v5316 = vadd.f32 %v5072, %v5206
        %v5317 = vadd.f32 %v5073, %v5208
        %v5318 = vadd.f32 %v5074, %v5211
        %v5319 = vadd.f32 %v5075, %v5213
        %v5320 = vadd.f32 %v5076, %v5216
        %v5321 = vadd.f32 %v5077, %v5218
        %v5322 = vadd.f32 %v5078, %v5221
        %v5323 = vadd.f32 %v5079, %v5223
        %v5324 = vadd.f32 %v5080, %v5226
        %v5325 = vadd.f32 %v5081, %v5228
        %v5326 = vadd.f32 %v5082, %v5231
        %v5327 = vadd.f32 %v5083, %v5233
        %v5328 = vadd.f32 %v5084, %v5236
        %v5329 = vadd.f32 %v5085, %v5238
        %v5330 = vadd.f32 %v5086, %v5241
        %v5331 = vadd.f32 %v5087, %v5243
        %v5332 = vadd.f32 %v5088, %v5246
        %v5333 = vadd.f32 %v5089, %v5248
        %v5334 = vadd.f32 %v5090, %v5251
        %v5335 = vadd.f32 %v5091, %v5253
        %v5336 = vadd.f32 %v5092, %v5256
        %v5337 = vadd.f32 %v5093, %v5258
        %v5338 = vadd.f32 %v5094, %v5261
        %v5339 = vadd.f32 %v5095, %v5263
        %v5340 = vadd.f32 %v5096, %v5266
        %v5341 = vadd.f32 %v5097, %v5268
        %v5342 = vadd.f32 %v5098, %v5271
        %v5343 = vadd.f32 %v5099, %v5273
        %v5344 = vadd.f32 %v5100, %v5276
        %v5345 = vadd.f32 %v5101, %v5278
        %v5346 = vadd.f32 %v5102, %v5281
        %v5347 = vadd.f32 %v5103, %v5283
        %v5348 = vlaneseq
        %v5349 = vshrl.u32 %v5348, 7
        %v5350 = vsub.s32 3, %v5349
        %v5351 = vrot.slane %v1410, %v5350
        %v5352 = vmul.f32 %v1357, %v5351
        %v5353 = vmul.f32 %v1358, %v5351
        %v5354 = vmul.f32 %v1359, %v5351
        %v5355 = vmul.f32 %v1360, %v5351
        %v5356 = vmul.f32 %v1361, %v5351
        %v5357 = vmul.f32 %v1362, %v5351
        %v5358 = vmul.f32 %v1363, %v5351
        %v5359 = vmul.f32 %v1364, %v5351
        %v5360 = vmul.f32 %v1365, %v5351
        %v5361 = vmul.f32 %v1366, %v5351
        %v5362 = vmul.f32 %v1367, %v5351
        %v5363 = vmul.f32 %v1368, %v5351
        %v5364 = vmul.f32 %v1369, %v5351
        %v5365 = vmul.f32 %v1370, %v5351
        %v5366 = vmul.f32 %v1371, %v5351
        %v5367 = vmul.f32 %v1372, %v5351
        %v5368 = vmul.f32 %v1373, %v5351
        %v5369 = vmul.f32 %v1374, %v5351
        %v5370 = vmul.f32 %v1375, %v5351
        %v5371 = vmul.f32 %v1376, %v5351
        %v5372 = vmul.f32 %v1377, %v5351
        %v5373 = vmul.f32 %v1378, %v5351
        %v5374 = vmul.f32 %v1379, %v5351
        %v5375 = vmul.f32 %v1380, %v5351
        %v5376 = vmul.f32 %v1381, %v5351
        %v5377 = vmul.f32 %v1382, %v5351
        %v5378 = vmul.f32 %v1383, %v5351
        %v5379 = vmul.f32 %v1384, %v5351
        %v5380 = vmul.f32 %v1385, %v5351
        %v5381 = vmul.f32 %v1386, %v5351
        %v5382 = vmul.f32 %v1387, %v5351
        %v5383 = vmul.f32 %v1388, %v5351
        %v5384 = vmul.f32 %v1389, %v5351
        %v5385 = vmul.f32 %v1390, %v5351
        %v5386 = vmul.f32 %v1391, %v5351
        %v5387 = vmul.f32 %v1392, %v5351
        %v5388 = vmul.f32 %v1393, %v5351
        %v5389 = vmul.f32 %v1394, %v5351
        %v5390 = vmul.f32 %v1395, %v5351
        %v5391 = vmul.f32 %v1396, %v5351
        %v5392 = vmul.f32 %v1397, %v5351
        %v5393 = vmul.f32 %v1398, %v5351
        %v5394 = vmul.f32 %v1399, %v5351
        %v5395 = vmul.f32 %v1400, %v5351
        %v5396 = vmul.f32 %v1401, %v5351
        %v5397 = vmul.f32 %v1402, %v5351
        %v5398 = vmul.f32 %v1403, %v5351
        %v5399 = vmul.f32 %v1404, %v5351
        %v5448 = vrot.slane %v5352, 4
        %v5449 = vrot.slane %v5353, 4
        %v5450 = vsel %vm2315, %v5448, %v5449
        %v5451 = vrot.slane %v5354, 4
        %v5452 = vsel %vm2315, %v5449, %v5451
        %v5453 = vrot.slane %v5355, 4
        %v5454 = vrot.slane %v5356, 4
        %v5455 = vsel %vm2315, %v5453, %v5454
        %v5456 = vrot.slane %v5357, 4
        %v5457 = vsel %vm2315, %v5454, %v5456
        %v5458 = vrot.slane %v5358, 4
        %v5459 = vrot.slane %v5359, 4
        %v5460 = vsel %vm2315, %v5458, %v5459
        %v5461 = vrot.slane %v5360, 4
        %v5462 = vsel %vm2315, %v5459, %v5461
        %v5463 = vrot.slane %v5361, 4
        %v5464 = vrot.slane %v5362, 4
        %v5465 = vsel %vm2315, %v5463, %v5464
        %v5466 = vrot.slane %v5363, 4
        %v5467 = vsel %vm2315, %v5464, %v5466
        %v5468 = vrot.slane %v5364, 4
        %v5469 = vrot.slane %v5365, 4
        %v5470 = vsel %vm2315, %v5468, %v5469
        %v5471 = vrot.slane %v5366, 4
        %v5472 = vsel %vm2315, %v5469, %v5471
        %v5473 = vrot.slane %v5367, 4
        %v5474 = vrot.slane %v5368, 4
        %v5475 = vsel %vm2315, %v5473, %v5474
        %v5476 = vrot.slane %v5369, 4
        %v5477 = vsel %vm2315, %v5474, %v5476
        %v5478 = vrot.slane %v5370, 4
        %v5479 = vrot.slane %v5371, 4
        %v5480 = vsel %vm2315, %v5478, %v5479
        %v5481 = vrot.slane %v5372, 4
        %v5482 = vsel %vm2315, %v5479, %v5481
        %v5483 = vrot.slane %v5373, 4
        %v5484 = vrot.slane %v5374, 4
        %v5485 = vsel %vm2315, %v5483, %v5484
        %v5486 = vrot.slane %v5375, 4
        %v5487 = vsel %vm2315, %v5484, %v5486
        %v5488 = vrot.slane %v5376, 4
        %v5489 = vrot.slane %v5377, 4
        %v5490 = vsel %vm2315, %v5488, %v5489
        %v5491 = vrot.slane %v5378, 4
        %v5492 = vsel %vm2315, %v5489, %v5491
        %v5493 = vrot.slane %v5379, 4
        %v5494 = vrot.slane %v5380, 4
        %v5495 = vsel %vm2315, %v5493, %v5494
        %v5496 = vrot.slane %v5381, 4
        %v5497 = vsel %vm2315, %v5494, %v5496
        %v5498 = vrot.slane %v5382, 4
        %v5499 = vrot.slane %v5383, 4
        %v5500 = vsel %vm2315, %v5498, %v5499
        %v5501 = vrot.slane %v5384, 4
        %v5502 = vsel %vm2315, %v5499, %v5501
        %v5503 = vrot.slane %v5385, 4
        %v5504 = vrot.slane %v5386, 4
        %v5505 = vsel %vm2315, %v5503, %v5504
        %v5506 = vrot.slane %v5387, 4
        %v5507 = vsel %vm2315, %v5504, %v5506
        %v5508 = vrot.slane %v5388, 4
        %v5509 = vrot.slane %v5389, 4
        %v5510 = vsel %vm2315, %v5508, %v5509
        %v5511 = vrot.slane %v5390, 4
        %v5512 = vsel %vm2315, %v5509, %v5511
        %v5513 = vrot.slane %v5391, 4
        %v5514 = vrot.slane %v5392, 4
        %v5515 = vsel %vm2315, %v5513, %v5514
        %v5516 = vrot.slane %v5393, 4
        %v5517 = vsel %vm2315, %v5514, %v5516
        %v5518 = vrot.slane %v5394, 4
        %v5519 = vrot.slane %v5395, 4
        %v5520 = vsel %vm2315, %v5518, %v5519
        %v5521 = vrot.slane %v5396, 4
        %v5522 = vsel %vm2315, %v5519, %v5521
        %v5523 = vrot.slane %v5397, 4
        %v5524 = vrot.slane %v5398, 4
        %v5525 = vsel %vm2315, %v5523, %v5524
        %v5526 = vrot.slane %v5399, 4
        %v5527 = vsel %vm2315, %v5524, %v5526
        %v5560 = vadd.f32 %v5316, %v5450
        %v5561 = vadd.f32 %v5317, %v5452
        %v5562 = vadd.f32 %v5318, %v5455
        %v5563 = vadd.f32 %v5319, %v5457
        %v5564 = vadd.f32 %v5320, %v5460
        %v5565 = vadd.f32 %v5321, %v5462
        %v5566 = vadd.f32 %v5322, %v5465
        %v5567 = vadd.f32 %v5323, %v5467
        %v5568 = vadd.f32 %v5324, %v5470
        %v5569 = vadd.f32 %v5325, %v5472
        %v5570 = vadd.f32 %v5326, %v5475
        %v5571 = vadd.f32 %v5327, %v5477
        %v5572 = vadd.f32 %v5328, %v5480
        %v5573 = vadd.f32 %v5329, %v5482
        %v5574 = vadd.f32 %v5330, %v5485
        %v5575 = vadd.f32 %v5331, %v5487
        %v5576 = vadd.f32 %v5332, %v5490
        %v5577 = vadd.f32 %v5333, %v5492
        %v5578 = vadd.f32 %v5334, %v5495
        %v5579 = vadd.f32 %v5335, %v5497
        %v5580 = vadd.f32 %v5336, %v5500
        %v5581 = vadd.f32 %v5337, %v5502
        %v5582 = vadd.f32 %v5338, %v5505
        %v5583 = vadd.f32 %v5339, %v5507
        %v5584 = vadd.f32 %v5340, %v5510
        %v5585 = vadd.f32 %v5341, %v5512
        %v5586 = vadd.f32 %v5342, %v5515
        %v5587 = vadd.f32 %v5343, %v5517
        %v5588 = vadd.f32 %v5344, %v5520
        %v5589 = vadd.f32 %v5345, %v5522
        %v5590 = vadd.f32 %v5346, %v5525
        %v5591 = vadd.f32 %v5347, %v5527
        %v5592 = vlaneseq
        %v5593 = vshrl.u32 %v5592, 7
        %v5594 = vsub.s32 4, %v5593
        %v5595 = vrot.slane %v1410, %v5594
        %v5596 = vmul.f32 %v1360, %v5595
        %v5597 = vmul.f32 %v1361, %v5595
        %v5598 = vmul.f32 %v1363, %v5595
        %v5599 = vmul.f32 %v1364, %v5595
        %v5600 = vmul.f32 %v1366, %v5595
        %v5601 = vmul.f32 %v1367, %v5595
        %v5602 = vmul.f32 %v1369, %v5595
        %v5603 = vmul.f32 %v1370, %v5595
        %v5604 = vmul.f32 %v1372, %v5595
        %v5605 = vmul.f32 %v1373, %v5595
        %v5606 = vmul.f32 %v1375, %v5595
        %v5607 = vmul.f32 %v1376, %v5595
        %v5608 = vmul.f32 %v1378, %v5595
        %v5609 = vmul.f32 %v1379, %v5595
        %v5610 = vmul.f32 %v1381, %v5595
        %v5611 = vmul.f32 %v1382, %v5595
        %v5612 = vmul.f32 %v1384, %v5595
        %v5613 = vmul.f32 %v1385, %v5595
        %v5614 = vmul.f32 %v1387, %v5595
        %v5615 = vmul.f32 %v1388, %v5595
        %v5616 = vmul.f32 %v1390, %v5595
        %v5617 = vmul.f32 %v1391, %v5595
        %v5618 = vmul.f32 %v1393, %v5595
        %v5619 = vmul.f32 %v1394, %v5595
        %v5620 = vmul.f32 %v1396, %v5595
        %v5621 = vmul.f32 %v1397, %v5595
        %v5622 = vmul.f32 %v1399, %v5595
        %v5623 = vmul.f32 %v1400, %v5595
        %v5624 = vmul.f32 %v1402, %v5595
        %v5625 = vmul.f32 %v1403, %v5595
        %v5626 = vmul.f32 %v1405, %v5595
        %v5627 = vmul.f32 %v1406, %v5595
        %v5628 = vadd.f32 %v5560, %v5596
        %v5629 = vadd.f32 %v5561, %v5597
        %v5630 = vadd.f32 %v5562, %v5598
        %v5631 = vadd.f32 %v5563, %v5599
        %v5632 = vadd.f32 %v5564, %v5600
        %v5633 = vadd.f32 %v5565, %v5601
        %v5634 = vadd.f32 %v5566, %v5602
        %v5635 = vadd.f32 %v5567, %v5603
        %v5636 = vadd.f32 %v5568, %v5604
        %v5637 = vadd.f32 %v5569, %v5605
        %v5638 = vadd.f32 %v5570, %v5606
        %v5639 = vadd.f32 %v5571, %v5607
        %v5640 = vadd.f32 %v5572, %v5608
        %v5641 = vadd.f32 %v5573, %v5609
        %v5642 = vadd.f32 %v5574, %v5610
        %v5643 = vadd.f32 %v5575, %v5611
        %v5644 = vadd.f32 %v5576, %v5612
        %v5645 = vadd.f32 %v5577, %v5613
        %v5646 = vadd.f32 %v5578, %v5614
        %v5647 = vadd.f32 %v5579, %v5615
        %v5648 = vadd.f32 %v5580, %v5616
        %v5649 = vadd.f32 %v5581, %v5617
        %v5650 = vadd.f32 %v5582, %v5618
        %v5651 = vadd.f32 %v5583, %v5619
        %v5652 = vadd.f32 %v5584, %v5620
        %v5653 = vadd.f32 %v5585, %v5621
        %v5654 = vadd.f32 %v5586, %v5622
        %v5655 = vadd.f32 %v5587, %v5623
        %v5656 = vadd.f32 %v5588, %v5624
        %v5657 = vadd.f32 %v5589, %v5625
        %v5658 = vadd.f32 %v5590, %v5626
        %v5659 = vadd.f32 %v5591, %v5627
        %v5660 = vlaneseq
        %v5661 = vshrl.u32 %v5660, 7
        %v5662 = vsub.s32 5, %v5661
        %v5663 = vrot.slane %v1410, %v5662
        %v5664 = vmul.f32 %v1360, %v5663
        %v5665 = vmul.f32 %v1361, %v5663
        %v5666 = vmul.f32 %v1362, %v5663
        %v5667 = vmul.f32 %v1363, %v5663
        %v5668 = vmul.f32 %v1364, %v5663
        %v5669 = vmul.f32 %v1365, %v5663
        %v5670 = vmul.f32 %v1366, %v5663
        %v5671 = vmul.f32 %v1367, %v5663
        %v5672 = vmul.f32 %v1368, %v5663
        %v5673 = vmul.f32 %v1369, %v5663
        %v5674 = vmul.f32 %v1370, %v5663
        %v5675 = vmul.f32 %v1371, %v5663
        %v5676 = vmul.f32 %v1372, %v5663
        %v5677 = vmul.f32 %v1373, %v5663
        %v5678 = vmul.f32 %v1374, %v5663
        %v5679 = vmul.f32 %v1375, %v5663
        %v5680 = vmul.f32 %v1376, %v5663
        %v5681 = vmul.f32 %v1377, %v5663
        %v5682 = vmul.f32 %v1378, %v5663
        %v5683 = vmul.f32 %v1379, %v5663
        %v5684 = vmul.f32 %v1380, %v5663
        %v5685 = vmul.f32 %v1381, %v5663
        %v5686 = vmul.f32 %v1382, %v5663
        %v5687 = vmul.f32 %v1383, %v5663
        %v5688 = vmul.f32 %v1384, %v5663
        %v5689 = vmul.f32 %v1385, %v5663
        %v5690 = vmul.f32 %v1386, %v5663
        %v5691 = vmul.f32 %v1387, %v5663
        %v5692 = vmul.f32 %v1388, %v5663
        %v5693 = vmul.f32 %v1389, %v5663
        %v5694 = vmul.f32 %v1390, %v5663
        %v5695 = vmul.f32 %v1391, %v5663
        %v5696 = vmul.f32 %v1392, %v5663
        %v5697 = vmul.f32 %v1393, %v5663
        %v5698 = vmul.f32 %v1394, %v5663
        %v5699 = vmul.f32 %v1395, %v5663
        %v5700 = vmul.f32 %v1396, %v5663
        %v5701 = vmul.f32 %v1397, %v5663
        %v5702 = vmul.f32 %v1398, %v5663
        %v5703 = vmul.f32 %v1399, %v5663
        %v5704 = vmul.f32 %v1400, %v5663
        %v5705 = vmul.f32 %v1401, %v5663
        %v5706 = vmul.f32 %v1402, %v5663
        %v5707 = vmul.f32 %v1403, %v5663
        %v5708 = vmul.f32 %v1404, %v5663
        %v5709 = vmul.f32 %v1405, %v5663
        %v5710 = vmul.f32 %v1406, %v5663
        %v5711 = vmul.f32 %v1407, %v5663
        %v5760 = vrot.slane %v5664, 1
        %v5761 = vrot.slane %v5665, 1
        %v5762 = vsel %vm1580, %v5760, %v5761
        %v5763 = vrot.slane %v5666, 1
        %v5764 = vsel %vm1580, %v5761, %v5763
        %v5765 = vrot.slane %v5667, 1
        %v5766 = vrot.slane %v5668, 1
        %v5767 = vsel %vm1580, %v5765, %v5766
        %v5768 = vrot.slane %v5669, 1
        %v5769 = vsel %vm1580, %v5766, %v5768
        %v5770 = vrot.slane %v5670, 1
        %v5771 = vrot.slane %v5671, 1
        %v5772 = vsel %vm1580, %v5770, %v5771
        %v5773 = vrot.slane %v5672, 1
        %v5774 = vsel %vm1580, %v5771, %v5773
        %v5775 = vrot.slane %v5673, 1
        %v5776 = vrot.slane %v5674, 1
        %v5777 = vsel %vm1580, %v5775, %v5776
        %v5778 = vrot.slane %v5675, 1
        %v5779 = vsel %vm1580, %v5776, %v5778
        %v5780 = vrot.slane %v5676, 1
        %v5781 = vrot.slane %v5677, 1
        %v5782 = vsel %vm1580, %v5780, %v5781
        %v5783 = vrot.slane %v5678, 1
        %v5784 = vsel %vm1580, %v5781, %v5783
        %v5785 = vrot.slane %v5679, 1
        %v5786 = vrot.slane %v5680, 1
        %v5787 = vsel %vm1580, %v5785, %v5786
        %v5788 = vrot.slane %v5681, 1
        %v5789 = vsel %vm1580, %v5786, %v5788
        %v5790 = vrot.slane %v5682, 1
        %v5791 = vrot.slane %v5683, 1
        %v5792 = vsel %vm1580, %v5790, %v5791
        %v5793 = vrot.slane %v5684, 1
        %v5794 = vsel %vm1580, %v5791, %v5793
        %v5795 = vrot.slane %v5685, 1
        %v5796 = vrot.slane %v5686, 1
        %v5797 = vsel %vm1580, %v5795, %v5796
        %v5798 = vrot.slane %v5687, 1
        %v5799 = vsel %vm1580, %v5796, %v5798
        %v5800 = vrot.slane %v5688, 1
        %v5801 = vrot.slane %v5689, 1
        %v5802 = vsel %vm1580, %v5800, %v5801
        %v5803 = vrot.slane %v5690, 1
        %v5804 = vsel %vm1580, %v5801, %v5803
        %v5805 = vrot.slane %v5691, 1
        %v5806 = vrot.slane %v5692, 1
        %v5807 = vsel %vm1580, %v5805, %v5806
        %v5808 = vrot.slane %v5693, 1
        %v5809 = vsel %vm1580, %v5806, %v5808
        %v5810 = vrot.slane %v5694, 1
        %v5811 = vrot.slane %v5695, 1
        %v5812 = vsel %vm1580, %v5810, %v5811
        %v5813 = vrot.slane %v5696, 1
        %v5814 = vsel %vm1580, %v5811, %v5813
        %v5815 = vrot.slane %v5697, 1
        %v5816 = vrot.slane %v5698, 1
        %v5817 = vsel %vm1580, %v5815, %v5816
        %v5818 = vrot.slane %v5699, 1
        %v5819 = vsel %vm1580, %v5816, %v5818
        %v5820 = vrot.slane %v5700, 1
        %v5821 = vrot.slane %v5701, 1
        %v5822 = vsel %vm1580, %v5820, %v5821
        %v5823 = vrot.slane %v5702, 1
        %v5824 = vsel %vm1580, %v5821, %v5823
        %v5825 = vrot.slane %v5703, 1
        %v5826 = vrot.slane %v5704, 1
        %v5827 = vsel %vm1580, %v5825, %v5826
        %v5828 = vrot.slane %v5705, 1
        %v5829 = vsel %vm1580, %v5826, %v5828
        %v5830 = vrot.slane %v5706, 1
        %v5831 = vrot.slane %v5707, 1
        %v5832 = vsel %vm1580, %v5830, %v5831
        %v5833 = vrot.slane %v5708, 1
        %v5834 = vsel %vm1580, %v5831, %v5833
        %v5835 = vrot.slane %v5709, 1
        %v5836 = vrot.slane %v5710, 1
        %v5837 = vsel %vm1580, %v5835, %v5836
        %v5838 = vrot.slane %v5711, 1
        %v5839 = vsel %vm1580, %v5836, %v5838
        %v5872 = vadd.f32 %v5628, %v5762
        %v5873 = vadd.f32 %v5629, %v5764
        %v5874 = vadd.f32 %v5630, %v5767
        %v5875 = vadd.f32 %v5631, %v5769
        %v5876 = vadd.f32 %v5632, %v5772
        %v5877 = vadd.f32 %v5633, %v5774
        %v5878 = vadd.f32 %v5634, %v5777
        %v5879 = vadd.f32 %v5635, %v5779
        %v5880 = vadd.f32 %v5636, %v5782
        %v5881 = vadd.f32 %v5637, %v5784
        %v5882 = vadd.f32 %v5638, %v5787
        %v5883 = vadd.f32 %v5639, %v5789
        %v5884 = vadd.f32 %v5640, %v5792
        %v5885 = vadd.f32 %v5641, %v5794
        %v5886 = vadd.f32 %v5642, %v5797
        %v5887 = vadd.f32 %v5643, %v5799
        %v5888 = vadd.f32 %v5644, %v5802
        %v5889 = vadd.f32 %v5645, %v5804
        %v5890 = vadd.f32 %v5646, %v5807
        %v5891 = vadd.f32 %v5647, %v5809
        %v5892 = vadd.f32 %v5648, %v5812
        %v5893 = vadd.f32 %v5649, %v5814
        %v5894 = vadd.f32 %v5650, %v5817
        %v5895 = vadd.f32 %v5651, %v5819
        %v5896 = vadd.f32 %v5652, %v5822
        %v5897 = vadd.f32 %v5653, %v5824
        %v5898 = vadd.f32 %v5654, %v5827
        %v5899 = vadd.f32 %v5655, %v5829
        %v5900 = vadd.f32 %v5656, %v5832
        %v5901 = vadd.f32 %v5657, %v5834
        %v5902 = vadd.f32 %v5658, %v5837
        %v5903 = vadd.f32 %v5659, %v5839
        %v5904 = vlaneseq
        %v5905 = vshrl.u32 %v5904, 7
        %v5906 = vsub.s32 6, %v5905
        %v5907 = vrot.slane %v1410, %v5906
        %v5908 = vmul.f32 %v1360, %v5907
        %v5909 = vmul.f32 %v1361, %v5907
        %v5910 = vmul.f32 %v1362, %v5907
        %v5911 = vmul.f32 %v1363, %v5907
        %v5912 = vmul.f32 %v1364, %v5907
        %v5913 = vmul.f32 %v1365, %v5907
        %v5914 = vmul.f32 %v1366, %v5907
        %v5915 = vmul.f32 %v1367, %v5907
        %v5916 = vmul.f32 %v1368, %v5907
        %v5917 = vmul.f32 %v1369, %v5907
        %v5918 = vmul.f32 %v1370, %v5907
        %v5919 = vmul.f32 %v1371, %v5907
        %v5920 = vmul.f32 %v1372, %v5907
        %v5921 = vmul.f32 %v1373, %v5907
        %v5922 = vmul.f32 %v1374, %v5907
        %v5923 = vmul.f32 %v1375, %v5907
        %v5924 = vmul.f32 %v1376, %v5907
        %v5925 = vmul.f32 %v1377, %v5907
        %v5926 = vmul.f32 %v1378, %v5907
        %v5927 = vmul.f32 %v1379, %v5907
        %v5928 = vmul.f32 %v1380, %v5907
        %v5929 = vmul.f32 %v1381, %v5907
        %v5930 = vmul.f32 %v1382, %v5907
        %v5931 = vmul.f32 %v1383, %v5907
        %v5932 = vmul.f32 %v1384, %v5907
        %v5933 = vmul.f32 %v1385, %v5907
        %v5934 = vmul.f32 %v1386, %v5907
        %v5935 = vmul.f32 %v1387, %v5907
        %v5936 = vmul.f32 %v1388, %v5907
        %v5937 = vmul.f32 %v1389, %v5907
        %v5938 = vmul.f32 %v1390, %v5907
        %v5939 = vmul.f32 %v1391, %v5907
        %v5940 = vmul.f32 %v1392, %v5907
        %v5941 = vmul.f32 %v1393, %v5907
        %v5942 = vmul.f32 %v1394, %v5907
        %v5943 = vmul.f32 %v1395, %v5907
        %v5944 = vmul.f32 %v1396, %v5907
        %v5945 = vmul.f32 %v1397, %v5907
        %v5946 = vmul.f32 %v1398, %v5907
        %v5947 = vmul.f32 %v1399, %v5907
        %v5948 = vmul.f32 %v1400, %v5907
        %v5949 = vmul.f32 %v1401, %v5907
        %v5950 = vmul.f32 %v1402, %v5907
        %v5951 = vmul.f32 %v1403, %v5907
        %v5952 = vmul.f32 %v1404, %v5907
        %v5953 = vmul.f32 %v1405, %v5907
        %v5954 = vmul.f32 %v1406, %v5907
        %v5955 = vmul.f32 %v1407, %v5907
        %v6004 = vrot.slane %v5908, 2
        %v6005 = vrot.slane %v5909, 2
        %v6006 = vsel %vm1825, %v6004, %v6005
        %v6007 = vrot.slane %v5910, 2
        %v6008 = vsel %vm1825, %v6005, %v6007
        %v6009 = vrot.slane %v5911, 2
        %v6010 = vrot.slane %v5912, 2
        %v6011 = vsel %vm1825, %v6009, %v6010
        %v6012 = vrot.slane %v5913, 2
        %v6013 = vsel %vm1825, %v6010, %v6012
        %v6014 = vrot.slane %v5914, 2
        %v6015 = vrot.slane %v5915, 2
        %v6016 = vsel %vm1825, %v6014, %v6015
        %v6017 = vrot.slane %v5916, 2
        %v6018 = vsel %vm1825, %v6015, %v6017
        %v6019 = vrot.slane %v5917, 2
        %v6020 = vrot.slane %v5918, 2
        %v6021 = vsel %vm1825, %v6019, %v6020
        %v6022 = vrot.slane %v5919, 2
        %v6023 = vsel %vm1825, %v6020, %v6022
        %v6024 = vrot.slane %v5920, 2
        %v6025 = vrot.slane %v5921, 2
        %v6026 = vsel %vm1825, %v6024, %v6025
        %v6027 = vrot.slane %v5922, 2
        %v6028 = vsel %vm1825, %v6025, %v6027
        %v6029 = vrot.slane %v5923, 2
        %v6030 = vrot.slane %v5924, 2
        %v6031 = vsel %vm1825, %v6029, %v6030
        %v6032 = vrot.slane %v5925, 2
        %v6033 = vsel %vm1825, %v6030, %v6032
        %v6034 = vrot.slane %v5926, 2
        %v6035 = vrot.slane %v5927, 2
        %v6036 = vsel %vm1825, %v6034, %v6035
        %v6037 = vrot.slane %v5928, 2
        %v6038 = vsel %vm1825, %v6035, %v6037
        %v6039 = vrot.slane %v5929, 2
        %v6040 = vrot.slane %v5930, 2
        %v6041 = vsel %vm1825, %v6039, %v6040
        %v6042 = vrot.slane %v5931, 2
        %v6043 = vsel %vm1825, %v6040, %v6042
        %v6044 = vrot.slane %v5932, 2
        %v6045 = vrot.slane %v5933, 2
        %v6046 = vsel %vm1825, %v6044, %v6045
        %v6047 = vrot.slane %v5934, 2
        %v6048 = vsel %vm1825, %v6045, %v6047
        %v6049 = vrot.slane %v5935, 2
        %v6050 = vrot.slane %v5936, 2
        %v6051 = vsel %vm1825, %v6049, %v6050
        %v6052 = vrot.slane %v5937, 2
        %v6053 = vsel %vm1825, %v6050, %v6052
        %v6054 = vrot.slane %v5938, 2
        %v6055 = vrot.slane %v5939, 2
        %v6056 = vsel %vm1825, %v6054, %v6055
        %v6057 = vrot.slane %v5940, 2
        %v6058 = vsel %vm1825, %v6055, %v6057
        %v6059 = vrot.slane %v5941, 2
        %v6060 = vrot.slane %v5942, 2
        %v6061 = vsel %vm1825, %v6059, %v6060
        %v6062 = vrot.slane %v5943, 2
        %v6063 = vsel %vm1825, %v6060, %v6062
        %v6064 = vrot.slane %v5944, 2
        %v6065 = vrot.slane %v5945, 2
        %v6066 = vsel %vm1825, %v6064, %v6065
        %v6067 = vrot.slane %v5946, 2
        %v6068 = vsel %vm1825, %v6065, %v6067
        %v6069 = vrot.slane %v5947, 2
        %v6070 = vrot.slane %v5948, 2
        %v6071 = vsel %vm1825, %v6069, %v6070
        %v6072 = vrot.slane %v5949, 2
        %v6073 = vsel %vm1825, %v6070, %v6072
        %v6074 = vrot.slane %v5950, 2
        %v6075 = vrot.slane %v5951, 2
        %v6076 = vsel %vm1825, %v6074, %v6075
        %v6077 = vrot.slane %v5952, 2
        %v6078 = vsel %vm1825, %v6075, %v6077
        %v6079 = vrot.slane %v5953, 2
        %v6080 = vrot.slane %v5954, 2
        %v6081 = vsel %vm1825, %v6079, %v6080
        %v6082 = vrot.slane %v5955, 2
        %v6083 = vsel %vm1825, %v6080, %v6082
        %v6116 = vadd.f32 %v5872, %v6006
        %v6117 = vadd.f32 %v5873, %v6008
        %v6118 = vadd.f32 %v5874, %v6011
        %v6119 = vadd.f32 %v5875, %v6013
        %v6120 = vadd.f32 %v5876, %v6016
        %v6121 = vadd.f32 %v5877, %v6018
        %v6122 = vadd.f32 %v5878, %v6021
        %v6123 = vadd.f32 %v5879, %v6023
        %v6124 = vadd.f32 %v5880, %v6026
        %v6125 = vadd.f32 %v5881, %v6028
        %v6126 = vadd.f32 %v5882, %v6031
        %v6127 = vadd.f32 %v5883, %v6033
        %v6128 = vadd.f32 %v5884, %v6036
        %v6129 = vadd.f32 %v5885, %v6038
        %v6130 = vadd.f32 %v5886, %v6041
        %v6131 = vadd.f32 %v5887, %v6043
        %v6132 = vadd.f32 %v5888, %v6046
        %v6133 = vadd.f32 %v5889, %v6048
        %v6134 = vadd.f32 %v5890, %v6051
        %v6135 = vadd.f32 %v5891, %v6053
        %v6136 = vadd.f32 %v5892, %v6056
        %v6137 = vadd.f32 %v5893, %v6058
        %v6138 = vadd.f32 %v5894, %v6061
        %v6139 = vadd.f32 %v5895, %v6063
        %v6140 = vadd.f32 %v5896, %v6066
        %v6141 = vadd.f32 %v5897, %v6068
        %v6142 = vadd.f32 %v5898, %v6071
        %v6143 = vadd.f32 %v5899, %v6073
        %v6144 = vadd.f32 %v5900, %v6076
        %v6145 = vadd.f32 %v5901, %v6078
        %v6146 = vadd.f32 %v5902, %v6081
        %v6147 = vadd.f32 %v5903, %v6083
        %v6148 = vlaneseq
        %v6149 = vshrl.u32 %v6148, 7
        %v6150 = vsub.s32 7, %v6149
        %v6151 = vrot.slane %v1410, %v6150
        %v6152 = vmul.f32 %v1360, %v6151
        %v6153 = vmul.f32 %v1361, %v6151
        %v6154 = vmul.f32 %v1362, %v6151
        %v6155 = vmul.f32 %v1363, %v6151
        %v6156 = vmul.f32 %v1364, %v6151
        %v6157 = vmul.f32 %v1365, %v6151
        %v6158 = vmul.f32 %v1366, %v6151
        %v6159 = vmul.f32 %v1367, %v6151
        %v6160 = vmul.f32 %v1368, %v6151
        %v6161 = vmul.f32 %v1369, %v6151
        %v6162 = vmul.f32 %v1370, %v6151
        %v6163 = vmul.f32 %v1371, %v6151
        %v6164 = vmul.f32 %v1372, %v6151
        %v6165 = vmul.f32 %v1373, %v6151
        %v6166 = vmul.f32 %v1374, %v6151
        %v6167 = vmul.f32 %v1375, %v6151
        %v6168 = vmul.f32 %v1376, %v6151
        %v6169 = vmul.f32 %v1377, %v6151
        %v6170 = vmul.f32 %v1378, %v6151
        %v6171 = vmul.f32 %v1379, %v6151
        %v6172 = vmul.f32 %v1380, %v6151
        %v6173 = vmul.f32 %v1381, %v6151
        %v6174 = vmul.f32 %v1382, %v6151
        %v6175 = vmul.f32 %v1383, %v6151
        %v6176 = vmul.f32 %v1384, %v6151
        %v6177 = vmul.f32 %v1385, %v6151
        %v6178 = vmul.f32 %v1386, %v6151
        %v6179 = vmul.f32 %v1387, %v6151
        %v6180 = vmul.f32 %v1388, %v6151
        %v6181 = vmul.f32 %v1389, %v6151
        %v6182 = vmul.f32 %v1390, %v6151
        %v6183 = vmul.f32 %v1391, %v6151
        %v6184 = vmul.f32 %v1392, %v6151
        %v6185 = vmul.f32 %v1393, %v6151
        %v6186 = vmul.f32 %v1394, %v6151
        %v6187 = vmul.f32 %v1395, %v6151
        %v6188 = vmul.f32 %v1396, %v6151
        %v6189 = vmul.f32 %v1397, %v6151
        %v6190 = vmul.f32 %v1398, %v6151
        %v6191 = vmul.f32 %v1399, %v6151
        %v6192 = vmul.f32 %v1400, %v6151
        %v6193 = vmul.f32 %v1401, %v6151
        %v6194 = vmul.f32 %v1402, %v6151
        %v6195 = vmul.f32 %v1403, %v6151
        %v6196 = vmul.f32 %v1404, %v6151
        %v6197 = vmul.f32 %v1405, %v6151
        %v6198 = vmul.f32 %v1406, %v6151
        %v6199 = vmul.f32 %v1407, %v6151
        %v6248 = vrot.slane %v6152, 3
        %v6249 = vrot.slane %v6153, 3
        %v6250 = vsel %vm2070, %v6248, %v6249
        %v6251 = vrot.slane %v6154, 3
        %v6252 = vsel %vm2070, %v6249, %v6251
        %v6253 = vrot.slane %v6155, 3
        %v6254 = vrot.slane %v6156, 3
        %v6255 = vsel %vm2070, %v6253, %v6254
        %v6256 = vrot.slane %v6157, 3
        %v6257 = vsel %vm2070, %v6254, %v6256
        %v6258 = vrot.slane %v6158, 3
        %v6259 = vrot.slane %v6159, 3
        %v6260 = vsel %vm2070, %v6258, %v6259
        %v6261 = vrot.slane %v6160, 3
        %v6262 = vsel %vm2070, %v6259, %v6261
        %v6263 = vrot.slane %v6161, 3
        %v6264 = vrot.slane %v6162, 3
        %v6265 = vsel %vm2070, %v6263, %v6264
        %v6266 = vrot.slane %v6163, 3
        %v6267 = vsel %vm2070, %v6264, %v6266
        %v6268 = vrot.slane %v6164, 3
        %v6269 = vrot.slane %v6165, 3
        %v6270 = vsel %vm2070, %v6268, %v6269
        %v6271 = vrot.slane %v6166, 3
        %v6272 = vsel %vm2070, %v6269, %v6271
        %v6273 = vrot.slane %v6167, 3
        %v6274 = vrot.slane %v6168, 3
        %v6275 = vsel %vm2070, %v6273, %v6274
        %v6276 = vrot.slane %v6169, 3
        %v6277 = vsel %vm2070, %v6274, %v6276
        %v6278 = vrot.slane %v6170, 3
        %v6279 = vrot.slane %v6171, 3
        %v6280 = vsel %vm2070, %v6278, %v6279
        %v6281 = vrot.slane %v6172, 3
        %v6282 = vsel %vm2070, %v6279, %v6281
        %v6283 = vrot.slane %v6173, 3
        %v6284 = vrot.slane %v6174, 3
        %v6285 = vsel %vm2070, %v6283, %v6284
        %v6286 = vrot.slane %v6175, 3
        %v6287 = vsel %vm2070, %v6284, %v6286
        %v6288 = vrot.slane %v6176, 3
        %v6289 = vrot.slane %v6177, 3
        %v6290 = vsel %vm2070, %v6288, %v6289
        %v6291 = vrot.slane %v6178, 3
        %v6292 = vsel %vm2070, %v6289, %v6291
        %v6293 = vrot.slane %v6179, 3
        %v6294 = vrot.slane %v6180, 3
        %v6295 = vsel %vm2070, %v6293, %v6294
        %v6296 = vrot.slane %v6181, 3
        %v6297 = vsel %vm2070, %v6294, %v6296
        %v6298 = vrot.slane %v6182, 3
        %v6299 = vrot.slane %v6183, 3
        %v6300 = vsel %vm2070, %v6298, %v6299
        %v6301 = vrot.slane %v6184, 3
        %v6302 = vsel %vm2070, %v6299, %v6301
        %v6303 = vrot.slane %v6185, 3
        %v6304 = vrot.slane %v6186, 3
        %v6305 = vsel %vm2070, %v6303, %v6304
        %v6306 = vrot.slane %v6187, 3
        %v6307 = vsel %vm2070, %v6304, %v6306
        %v6308 = vrot.slane %v6188, 3
        %v6309 = vrot.slane %v6189, 3
        %v6310 = vsel %vm2070, %v6308, %v6309
        %v6311 = vrot.slane %v6190, 3
        %v6312 = vsel %vm2070, %v6309, %v6311
        %v6313 = vrot.slane %v6191, 3
        %v6314 = vrot.slane %v6192, 3
        %v6315 = vsel %vm2070, %v6313, %v6314
        %v6316 = vrot.slane %v6193, 3
        %v6317 = vsel %vm2070, %v6314, %v6316
        %v6318 = vrot.slane %v6194, 3
        %v6319 = vrot.slane %v6195, 3
        %v6320 = vsel %vm2070, %v6318, %v6319
        %v6321 = vrot.slane %v6196, 3
        %v6322 = vsel %vm2070, %v6319, %v6321
        %v6323 = vrot.slane %v6197, 3
        %v6324 = vrot.slane %v6198, 3
        %v6325 = vsel %vm2070, %v6323, %v6324
        %v6326 = vrot.slane %v6199, 3
        %v6327 = vsel %vm2070, %v6324, %v6326
        %v6360 = vadd.f32 %v6116, %v6250
        %v6361 = vadd.f32 %v6117, %v6252
        %v6362 = vadd.f32 %v6118, %v6255
        %v6363 = vadd.f32 %v6119, %v6257
        %v6364 = vadd.f32 %v6120, %v6260
        %v6365 = vadd.f32 %v6121, %v6262
        %v6366 = vadd.f32 %v6122, %v6265
        %v6367 = vadd.f32 %v6123, %v6267
        %v6368 = vadd.f32 %v6124, %v6270
        %v6369 = vadd.f32 %v6125, %v6272
        %v6370 = vadd.f32 %v6126, %v6275
        %v6371 = vadd.f32 %v6127, %v6277
        %v6372 = vadd.f32 %v6128, %v6280
        %v6373 = vadd.f32 %v6129, %v6282
        %v6374 = vadd.f32 %v6130, %v6285
        %v6375 = vadd.f32 %v6131, %v6287
        %v6376 = vadd.f32 %v6132, %v6290
        %v6377 = vadd.f32 %v6133, %v6292
        %v6378 = vadd.f32 %v6134, %v6295
        %v6379 = vadd.f32 %v6135, %v6297
        %v6380 = vadd.f32 %v6136, %v6300
        %v6381 = vadd.f32 %v6137, %v6302
        %v6382 = vadd.f32 %v6138, %v6305
        %v6383 = vadd.f32 %v6139, %v6307
        %v6384 = vadd.f32 %v6140, %v6310
        %v6385 = vadd.f32 %v6141, %v6312
        %v6386 = vadd.f32 %v6142, %v6315
        %v6387 = vadd.f32 %v6143, %v6317
        %v6388 = vadd.f32 %v6144, %v6320
        %v6389 = vadd.f32 %v6145, %v6322
        %v6390 = vadd.f32 %v6146, %v6325
        %v6391 = vadd.f32 %v6147, %v6327
        %v6392 = vlaneseq
        %v6393 = vshrl.u32 %v6392, 7
        %v6394 = vsub.s32 0, %v6393
        %v6395 = vrot.slane %v1411, %v6394
        %v6396 = vmul.f32 %v1360, %v6395
        %v6397 = vmul.f32 %v1361, %v6395
        %v6398 = vmul.f32 %v1362, %v6395
        %v6399 = vmul.f32 %v1363, %v6395
        %v6400 = vmul.f32 %v1364, %v6395
        %v6401 = vmul.f32 %v1365, %v6395
        %v6402 = vmul.f32 %v1366, %v6395
        %v6403 = vmul.f32 %v1367, %v6395
        %v6404 = vmul.f32 %v1368, %v6395
        %v6405 = vmul.f32 %v1369, %v6395
        %v6406 = vmul.f32 %v1370, %v6395
        %v6407 = vmul.f32 %v1371, %v6395
        %v6408 = vmul.f32 %v1372, %v6395
        %v6409 = vmul.f32 %v1373, %v6395
        %v6410 = vmul.f32 %v1374, %v6395
        %v6411 = vmul.f32 %v1375, %v6395
        %v6412 = vmul.f32 %v1376, %v6395
        %v6413 = vmul.f32 %v1377, %v6395
        %v6414 = vmul.f32 %v1378, %v6395
        %v6415 = vmul.f32 %v1379, %v6395
        %v6416 = vmul.f32 %v1380, %v6395
        %v6417 = vmul.f32 %v1381, %v6395
        %v6418 = vmul.f32 %v1382, %v6395
        %v6419 = vmul.f32 %v1383, %v6395
        %v6420 = vmul.f32 %v1384, %v6395
        %v6421 = vmul.f32 %v1385, %v6395
        %v6422 = vmul.f32 %v1386, %v6395
        %v6423 = vmul.f32 %v1387, %v6395
        %v6424 = vmul.f32 %v1388, %v6395
        %v6425 = vmul.f32 %v1389, %v6395
        %v6426 = vmul.f32 %v1390, %v6395
        %v6427 = vmul.f32 %v1391, %v6395
        %v6428 = vmul.f32 %v1392, %v6395
        %v6429 = vmul.f32 %v1393, %v6395
        %v6430 = vmul.f32 %v1394, %v6395
        %v6431 = vmul.f32 %v1395, %v6395
        %v6432 = vmul.f32 %v1396, %v6395
        %v6433 = vmul.f32 %v1397, %v6395
        %v6434 = vmul.f32 %v1398, %v6395
        %v6435 = vmul.f32 %v1399, %v6395
        %v6436 = vmul.f32 %v1400, %v6395
        %v6437 = vmul.f32 %v1401, %v6395
        %v6438 = vmul.f32 %v1402, %v6395
        %v6439 = vmul.f32 %v1403, %v6395
        %v6440 = vmul.f32 %v1404, %v6395
        %v6441 = vmul.f32 %v1405, %v6395
        %v6442 = vmul.f32 %v1406, %v6395
        %v6443 = vmul.f32 %v1407, %v6395
        %v6492 = vrot.slane %v6396, 4
        %v6493 = vrot.slane %v6397, 4
        %v6494 = vsel %vm2315, %v6492, %v6493
        %v6495 = vrot.slane %v6398, 4
        %v6496 = vsel %vm2315, %v6493, %v6495
        %v6497 = vrot.slane %v6399, 4
        %v6498 = vrot.slane %v6400, 4
        %v6499 = vsel %vm2315, %v6497, %v6498
        %v6500 = vrot.slane %v6401, 4
        %v6501 = vsel %vm2315, %v6498, %v6500
        %v6502 = vrot.slane %v6402, 4
        %v6503 = vrot.slane %v6403, 4
        %v6504 = vsel %vm2315, %v6502, %v6503
        %v6505 = vrot.slane %v6404, 4
        %v6506 = vsel %vm2315, %v6503, %v6505
        %v6507 = vrot.slane %v6405, 4
        %v6508 = vrot.slane %v6406, 4
        %v6509 = vsel %vm2315, %v6507, %v6508
        %v6510 = vrot.slane %v6407, 4
        %v6511 = vsel %vm2315, %v6508, %v6510
        %v6512 = vrot.slane %v6408, 4
        %v6513 = vrot.slane %v6409, 4
        %v6514 = vsel %vm2315, %v6512, %v6513
        %v6515 = vrot.slane %v6410, 4
        %v6516 = vsel %vm2315, %v6513, %v6515
        %v6517 = vrot.slane %v6411, 4
        %v6518 = vrot.slane %v6412, 4
        %v6519 = vsel %vm2315, %v6517, %v6518
        %v6520 = vrot.slane %v6413, 4
        %v6521 = vsel %vm2315, %v6518, %v6520
        %v6522 = vrot.slane %v6414, 4
        %v6523 = vrot.slane %v6415, 4
        %v6524 = vsel %vm2315, %v6522, %v6523
        %v6525 = vrot.slane %v6416, 4
        %v6526 = vsel %vm2315, %v6523, %v6525
        %v6527 = vrot.slane %v6417, 4
        %v6528 = vrot.slane %v6418, 4
        %v6529 = vsel %vm2315, %v6527, %v6528
        %v6530 = vrot.slane %v6419, 4
        %v6531 = vsel %vm2315, %v6528, %v6530
        %v6532 = vrot.slane %v6420, 4
        %v6533 = vrot.slane %v6421, 4
        %v6534 = vsel %vm2315, %v6532, %v6533
        %v6535 = vrot.slane %v6422, 4
        %v6536 = vsel %vm2315, %v6533, %v6535
        %v6537 = vrot.slane %v6423, 4
        %v6538 = vrot.slane %v6424, 4
        %v6539 = vsel %vm2315, %v6537, %v6538
        %v6540 = vrot.slane %v6425, 4
        %v6541 = vsel %vm2315, %v6538, %v6540
        %v6542 = vrot.slane %v6426, 4
        %v6543 = vrot.slane %v6427, 4
        %v6544 = vsel %vm2315, %v6542, %v6543
        %v6545 = vrot.slane %v6428, 4
        %v6546 = vsel %vm2315, %v6543, %v6545
        %v6547 = vrot.slane %v6429, 4
        %v6548 = vrot.slane %v6430, 4
        %v6549 = vsel %vm2315, %v6547, %v6548
        %v6550 = vrot.slane %v6431, 4
        %v6551 = vsel %vm2315, %v6548, %v6550
        %v6552 = vrot.slane %v6432, 4
        %v6553 = vrot.slane %v6433, 4
        %v6554 = vsel %vm2315, %v6552, %v6553
        %v6555 = vrot.slane %v6434, 4
        %v6556 = vsel %vm2315, %v6553, %v6555
        %v6557 = vrot.slane %v6435, 4
        %v6558 = vrot.slane %v6436, 4
        %v6559 = vsel %vm2315, %v6557, %v6558
        %v6560 = vrot.slane %v6437, 4
        %v6561 = vsel %vm2315, %v6558, %v6560
        %v6562 = vrot.slane %v6438, 4
        %v6563 = vrot.slane %v6439, 4
        %v6564 = vsel %vm2315, %v6562, %v6563
        %v6565 = vrot.slane %v6440, 4
        %v6566 = vsel %vm2315, %v6563, %v6565
        %v6567 = vrot.slane %v6441, 4
        %v6568 = vrot.slane %v6442, 4
        %v6569 = vsel %vm2315, %v6567, %v6568
        %v6570 = vrot.slane %v6443, 4
        %v6571 = vsel %vm2315, %v6568, %v6570
        %v6604 = vadd.f32 %v6360, %v6494
        %v6605 = vadd.f32 %v6361, %v6496
        %v6606 = vadd.f32 %v6362, %v6499
        %v6607 = vadd.f32 %v6363, %v6501
        %v6608 = vadd.f32 %v6364, %v6504
        %v6609 = vadd.f32 %v6365, %v6506
        %v6610 = vadd.f32 %v6366, %v6509
        %v6611 = vadd.f32 %v6367, %v6511
        %v6612 = vadd.f32 %v6368, %v6514
        %v6613 = vadd.f32 %v6369, %v6516
        %v6614 = vadd.f32 %v6370, %v6519
        %v6615 = vadd.f32 %v6371, %v6521
        %v6616 = vadd.f32 %v6372, %v6524
        %v6617 = vadd.f32 %v6373, %v6526
        %v6618 = vadd.f32 %v6374, %v6529
        %v6619 = vadd.f32 %v6375, %v6531
        %v6620 = vadd.f32 %v6376, %v6534
        %v6621 = vadd.f32 %v6377, %v6536
        %v6622 = vadd.f32 %v6378, %v6539
        %v6623 = vadd.f32 %v6379, %v6541
        %v6624 = vadd.f32 %v6380, %v6544
        %v6625 = vadd.f32 %v6381, %v6546
        %v6626 = vadd.f32 %v6382, %v6549
        %v6627 = vadd.f32 %v6383, %v6551
        %v6628 = vadd.f32 %v6384, %v6554
        %v6629 = vadd.f32 %v6385, %v6556
        %v6630 = vadd.f32 %v6386, %v6559
        %v6631 = vadd.f32 %v6387, %v6561
        %v6632 = vadd.f32 %v6388, %v6564
        %v6633 = vadd.f32 %v6389, %v6566
        %v6634 = vadd.f32 %v6390, %v6569
        %v6635 = vadd.f32 %v6391, %v6571
        %v6636 = vld [vmem:[%s4] sm:$0x1]
        %v6638 = vlaneseq
        %v6639 = vshrl.u32 %v6638, 7
        %v6640 = vsub.s32 0, %v6639
        %v6641 = vrot.slane %v6636, %v6640
        %v6643 = vadd.f32 %v6604, %v6641
        %v6644 = vadd.f32 %v6605, %v6641
        %v6645 = vadd.f32 %v6606, %v6641
        %v6646 = vadd.f32 %v6607, %v6641
        %v6647 = vadd.f32 %v6608, %v6641
        %v6648 = vadd.f32 %v6609, %v6641
        %v6649 = vadd.f32 %v6610, %v6641
        %v6650 = vadd.f32 %v6611, %v6641
        %v6651 = vadd.f32 %v6612, %v6641
        %v6652 = vadd.f32 %v6613, %v6641
        %v6653 = vadd.f32 %v6614, %v6641
        %v6654 = vadd.f32 %v6615, %v6641
        %v6655 = vadd.f32 %v6616, %v6641
        %v6656 = vadd.f32 %v6617, %v6641
        %v6657 = vadd.f32 %v6618, %v6641
        %v6658 = vadd.f32 %v6619, %v6641
        %v6659 = vadd.f32 %v6620, %v6641
        %v6660 = vadd.f32 %v6621, %v6641
        %v6661 = vadd.f32 %v6622, %v6641
        %v6662 = vadd.f32 %v6623, %v6641
        %v6663 = vadd.f32 %v6624, %v6641
        %v6664 = vadd.f32 %v6625, %v6641
        %v6665 = vadd.f32 %v6626, %v6641
        %v6666 = vadd.f32 %v6627, %v6641
        %v6667 = vadd.f32 %v6628, %v6641
        %v6668 = vadd.f32 %v6629, %v6641
        %v6669 = vadd.f32 %v6630, %v6641
        %v6670 = vadd.f32 %v6631, %v6641
        %v6671 = vadd.f32 %v6632, %v6641
        %v6672 = vadd.f32 %v6633, %v6641
        %v6673 = vadd.f32 %v6634, %v6641
        %v6674 = vadd.f32 %v6635, %v6641
        %v6675 = vxor.u32 %v6643, 2147483648
        %v6676 = vxor.u32 %v6644, 2147483648
        %v6677 = vxor.u32 %v6645, 2147483648
        %v6678 = vxor.u32 %v6646, 2147483648
        %v6679 = vxor.u32 %v6647, 2147483648
        %v6680 = vxor.u32 %v6648, 2147483648
        %v6681 = vxor.u32 %v6649, 2147483648
        %v6682 = vxor.u32 %v6650, 2147483648
        %v6683 = vxor.u32 %v6651, 2147483648
        %v6684 = vxor.u32 %v6652, 2147483648
        %v6685 = vxor.u32 %v6653, 2147483648
        %v6686 = vxor.u32 %v6654, 2147483648
        %v6687 = vxor.u32 %v6655, 2147483648
        %v6688 = vxor.u32 %v6656, 2147483648
        %v6689 = vxor.u32 %v6657, 2147483648
        %v6690 = vxor.u32 %v6658, 2147483648
        %v6691 = vxor.u32 %v6659, 2147483648
        %v6692 = vxor.u32 %v6660, 2147483648
        %v6693 = vxor.u32 %v6661, 2147483648
        %v6694 = vxor.u32 %v6662, 2147483648
        %v6695 = vxor.u32 %v6663, 2147483648
        %v6696 = vxor.u32 %v6664, 2147483648
        %v6697 = vxor.u32 %v6665, 2147483648
        %v6698 = vxor.u32 %v6666, 2147483648
        %v6699 = vxor.u32 %v6667, 2147483648
        %v6700 = vxor.u32 %v6668, 2147483648
        %v6701 = vxor.u32 %v6669, 2147483648
        %v6702 = vxor.u32 %v6670, 2147483648
        %v6703 = vxor.u32 %v6671, 2147483648
        %v6704 = vxor.u32 %v6672, 2147483648
        %v6705 = vxor.u32 %v6673, 2147483648
        %v6706 = vxor.u32 %v6674, 2147483648
        %v6707 = vmul.f32 %v6675, 1.442695
        %v6708 = vpow.pop %v6707
        %v6709 = vmul.f32 %v6676, 1.442695
        %v6710 = vpow.pop %v6709
        %v6711 = vmul.f32 %v6677, 1.442695
        %v6712 = vpow.pop %v6711
        %v6713 = vmul.f32 %v6678, 1.442695
        %v6714 = vpow.pop %v6713
        %v6715 = vmul.f32 %v6679, 1.442695
        %v6716 = vpow.pop %v6715
        %v6717 = vmul.f32 %v6680, 1.442695
        %v6718 = vpow.pop %v6717
        %v6719 = vmul.f32 %v6681, 1.442695
        %v6720 = vpow.pop %v6719
        %v6721 = vmul.f32 %v6682, 1.442695
        %v6722 = vpow.pop %v6721
        %v6723 = vmul.f32 %v6683, 1.442695
        %v6724 = vpow.pop %v6723
        %v6725 = vmul.f32 %v6684, 1.442695
        %v6726 = vpow.pop %v6725
        %v6727 = vmul.f32 %v6685, 1.442695
        %v6728 = vpow.pop %v6727
        %v6729 = vmul.f32 %v6686, 1.442695
        %v6730 = vpow.pop %v6729
        %v6731 = vmul.f32 %v6687, 1.442695
        %v6732 = vpow.pop %v6731
        %v6733 = vmul.f32 %v6688, 1.442695
        %v6734 = vpow.pop %v6733
        %v6735 = vmul.f32 %v6689, 1.442695
        %v6736 = vpow.pop %v6735
        %v6737 = vmul.f32 %v6690, 1.442695
        %v6738 = vpow.pop %v6737
        %v6739 = vmul.f32 %v6691, 1.442695
        %v6740 = vpow.pop %v6739
        %v6741 = vmul.f32 %v6692, 1.442695
        %v6742 = vpow.pop %v6741
        %v6743 = vmul.f32 %v6693, 1.442695
        %v6744 = vpow.pop %v6743
        %v6745 = vmul.f32 %v6694, 1.442695
        %v6746 = vpow.pop %v6745
        %v6747 = vmul.f32 %v6695, 1.442695
        %v6748 = vpow.pop %v6747
        %v6749 = vmul.f32 %v6696, 1.442695
        %v6750 = vpow.pop %v6749
        %v6751 = vmul.f32 %v6697, 1.442695
        %v6752 = vpow.pop %v6751
        %v6753 = vmul.f32 %v6698, 1.442695
        %v6754 = vpow.pop %v6753
        %v6755 = vmul.f32 %v6699, 1.442695
        %v6756 = vpow.pop %v6755
        %v6757 = vmul.f32 %v6700, 1.442695
        %v6758 = vpow.pop %v6757
        %v6759 = vmul.f32 %v6701, 1.442695
        %v6760 = vpow.pop %v6759
        %v6761 = vmul.f32 %v6702, 1.442695
        %v6762 = vpow.pop %v6761
        %v6763 = vmul.f32 %v6703, 1.442695
        %v6764 = vpow.pop %v6763
        %v6765 = vmul.f32 %v6704, 1.442695
        %v6766 = vpow.pop %v6765
        %v6767 = vmul.f32 %v6705, 1.442695
        %v6768 = vpow.pop %v6767
        %v6769 = vmul.f32 %v6706, 1.442695
        %v6770 = vpow.pop %v6769
        %v6771 = vadd.f32 %v6708, 1.0
        %v6772 = vadd.f32 %v6710, 1.0
        %v6773 = vadd.f32 %v6712, 1.0
        %v6774 = vadd.f32 %v6714, 1.0
        %v6775 = vadd.f32 %v6716, 1.0
        %v6776 = vadd.f32 %v6718, 1.0
        %v6777 = vadd.f32 %v6720, 1.0
        %v6778 = vadd.f32 %v6722, 1.0
        %v6779 = vadd.f32 %v6724, 1.0
        %v6780 = vadd.f32 %v6726, 1.0
        %v6781 = vadd.f32 %v6728, 1.0
        %v6782 = vadd.f32 %v6730, 1.0
        %v6783 = vadd.f32 %v6732, 1.0
        %v6784 = vadd.f32 %v6734, 1.0
        %v6785 = vadd.f32 %v6736, 1.0
        %v6786 = vadd.f32 %v6738, 1.0
        %v6787 = vadd.f32 %v6740, 1.0
        %v6788 = vadd.f32 %v6742, 1.0
        %v6789 = vadd.f32 %v6744, 1.0
        %v6790 = vadd.f32 %v6746, 1.0
        %v6791 = vadd.f32 %v6748, 1.0
        %v6792 = vadd.f32 %v6750, 1.0
        %v6793 = vadd.f32 %v6752, 1.0
        %v6794 = vadd.f32 %v6754, 1.0
        %v6795 = vadd.f32 %v6756, 1.0
        %v6796 = vadd.f32 %v6758, 1.0
        %v6797 = vadd.f32 %v6760, 1.0
        %v6798 = vadd.f32 %v6762, 1.0
        %v6799 = vadd.f32 %v6764, 1.0
        %v6800 = vadd.f32 %v6766, 1.0
        %v6801 = vadd.f32 %v6768, 1.0
        %v6802 = vadd.f32 %v6770, 1.0
        %v6803 = vrcp.pop %v6771
        %v6804 = vmul.f32 1.0, %v6803
        %v6805 = vrcp.pop %v6772
        %v6806 = vmul.f32 1.0, %v6805
        %v6807 = vrcp.pop %v6773
        %v6808 = vmul.f32 1.0, %v6807
        %v6809 = vrcp.pop %v6774
        %v6810 = vmul.f32 1.0, %v6809
        %v6811 = vrcp.pop %v6775
        %v6812 = vmul.f32 1.0, %v6811
        %v6813 = vrcp.pop %v6776
        %v6814 = vmul.f32 1.0, %v6813
        %v6815 = vrcp.pop %v6777
        %v6816 = vmul.f32 1.0, %v6815
        %v6817 = vrcp.pop %v6778
        %v6818 = vmul.f32 1.0, %v6817
        %v6819 = vrcp.pop %v6779
        %v6820 = vmul.f32 1.0, %v6819
        %v6821 = vrcp.pop %v6780
        %v6822 = vmul.f32 1.0, %v6821
        %v6823 = vrcp.pop %v6781
        %v6824 = vmul.f32 1.0, %v6823
        %v6825 = vrcp.pop %v6782
        %v6826 = vmul.f32 1.0, %v6825
        %v6827 = vrcp.pop %v6783
        %v6828 = vmul.f32 1.0, %v6827
        %v6829 = vrcp.pop %v6784
        %v6830 = vmul.f32 1.0, %v6829
        %v6831 = vrcp.pop %v6785
        %v6832 = vmul.f32 1.0, %v6831
        %v6833 = vrcp.pop %v6786
        %v6834 = vmul.f32 1.0, %v6833
        %v6835 = vrcp.pop %v6787
        %v6836 = vmul.f32 1.0, %v6835
        %v6837 = vrcp.pop %v6788
        %v6838 = vmul.f32 1.0, %v6837
        %v6839 = vrcp.pop %v6789
        %v6840 = vmul.f32 1.0, %v6839
        %v6841 = vrcp.pop %v6790
        %v6842 = vmul.f32 1.0, %v6841
        %v6843 = vrcp.pop %v6791
        %v6844 = vmul.f32 1.0, %v6843
        %v6845 = vrcp.pop %v6792
        %v6846 = vmul.f32 1.0, %v6845
        %v6847 = vrcp.pop %v6793
        %v6848 = vmul.f32 1.0, %v6847
        %v6849 = vrcp.pop %v6794
        %v6850 = vmul.f32 1.0, %v6849
        %v6851 = vrcp.pop %v6795
        %v6852 = vmul.f32 1.0, %v6851
        %v6853 = vrcp.pop %v6796
        %v6854 = vmul.f32 1.0, %v6853
        %v6855 = vrcp.pop %v6797
        %v6856 = vmul.f32 1.0, %v6855
        %v6857 = vrcp.pop %v6798
        %v6858 = vmul.f32 1.0, %v6857
        %v6859 = vrcp.pop %v6799
        %v6860 = vmul.f32 1.0, %v6859
        %v6861 = vrcp.pop %v6800
        %v6862 = vmul.f32 1.0, %v6861
        %v6863 = vrcp.pop %v6801
        %v6864 = vmul.f32 1.0, %v6863
        %v6865 = vrcp.pop %v6802
        %v6866 = vmul.f32 1.0, %v6865
        %v6867 = vmul.f32 %v6643, %v6804
        %v6868 = vmul.f32 %v6644, %v6806
        %v6869 = vmul.f32 %v6645, %v6808
        %v6870 = vmul.f32 %v6646, %v6810
        %v6871 = vmul.f32 %v6647, %v6812
        %v6872 = vmul.f32 %v6648, %v6814
        %v6873 = vmul.f32 %v6649, %v6816
        %v6874 = vmul.f32 %v6650, %v6818
        %v6875 = vmul.f32 %v6651, %v6820
        %v6876 = vmul.f32 %v6652, %v6822
        %v6877 = vmul.f32 %v6653, %v6824
        %v6878 = vmul.f32 %v6654, %v6826
        %v6879 = vmul.f32 %v6655, %v6828
        %v6880 = vmul.f32 %v6656, %v6830
        %v6881 = vmul.f32 %v6657, %v6832
        %v6882 = vmul.f32 %v6658, %v6834
        %v6883 = vmul.f32 %v6659, %v6836
        %v6884 = vmul.f32 %v6660, %v6838
        %v6885 = vmul.f32 %v6661, %v6840
        %v6886 = vmul.f32 %v6662, %v6842
        %v6887 = vmul.f32 %v6663, %v6844
        %v6888 = vmul.f32 %v6664, %v6846
        %v6889 = vmul.f32 %v6665, %v6848
        %v6890 = vmul.f32 %v6666, %v6850
        %v6891 = vmul.f32 %v6667, %v6852
        %v6892 = vmul.f32 %v6668, %v6854
        %v6893 = vmul.f32 %v6669, %v6856
        %v6894 = vmul.f32 %v6670, %v6858
        %v6895 = vmul.f32 %v6671, %v6860
        %v6896 = vmul.f32 %v6672, %v6862
        %v6897 = vmul.f32 %v6673, %v6864
        %v6898 = vmul.f32 %v6674, %v6866
        %v6947 = vrot.slane %v1354, 2
        %v6948 = vrot.slane %v1355, 2
        %v6949 = vsel %vm1825, %v6947, %v6948
        %v6950 = vrot.slane %v1356, 2
        %v6951 = vsel %vm1825, %v6948, %v6950
        %v6952 = vrot.slane %v1357, 2
        %v6953 = vrot.slane %v1358, 2
        %v6954 = vsel %vm1825, %v6952, %v6953
        %v6955 = vrot.slane %v1359, 2
        %v6956 = vsel %vm1825, %v6953, %v6955
        %v6957 = vrot.slane %v1360, 2
        %v6958 = vrot.slane %v1361, 2
        %v6959 = vsel %vm1825, %v6957, %v6958
        %v6960 = vrot.slane %v1362, 2
        %v6961 = vsel %vm1825, %v6958, %v6960
        %v6962 = vrot.slane %v1363, 2
        %v6963 = vrot.slane %v1364, 2
        %v6964 = vsel %vm1825, %v6962, %v6963
        %v6965 = vrot.slane %v1365, 2
        %v6966 = vsel %vm1825, %v6963, %v6965
        %v6967 = vrot.slane %v1366, 2
        %v6968 = vrot.slane %v1367, 2
        %v6969 = vsel %vm1825, %v6967, %v6968
        %v6970 = vrot.slane %v1368, 2
        %v6971 = vsel %vm1825, %v6968, %v6970
        %v6972 = vrot.slane %v1369, 2
        %v6973 = vrot.slane %v1370, 2
        %v6974 = vsel %vm1825, %v6972, %v6973
        %v6975 = vrot.slane %v1371, 2
        %v6976 = vsel %vm1825, %v6973, %v6975
        %v6977 = vrot.slane %v1372, 2
        %v6978 = vrot.slane %v1373, 2
        %v6979 = vsel %vm1825, %v6977, %v6978
        %v6980 = vrot.slane %v1374, 2
        %v6981 = vsel %vm1825, %v6978, %v6980
        %v6982 = vrot.slane %v1375, 2
        %v6983 = vrot.slane %v1376, 2
        %v6984 = vsel %vm1825, %v6982, %v6983
        %v6985 = vrot.slane %v1377, 2
        %v6986 = vsel %vm1825, %v6983, %v6985
        %v6987 = vrot.slane %v1378, 2
        %v6988 = vrot.slane %v1379, 2
        %v6989 = vsel %vm1825, %v6987, %v6988
        %v6990 = vrot.slane %v1380, 2
        %v6991 = vsel %vm1825, %v6988, %v6990
        %v6992 = vrot.slane %v1381, 2
        %v6993 = vrot.slane %v1382, 2
        %v6994 = vsel %vm1825, %v6992, %v6993
        %v6995 = vrot.slane %v1383, 2
        %v6996 = vsel %vm1825, %v6993, %v6995
        %v6997 = vrot.slane %v1384, 2
        %v6998 = vrot.slane %v1385, 2
        %v6999 = vsel %vm1825, %v6997, %v6998
        %v7000 = vrot.slane %v1386, 2
        %v7001 = vsel %vm1825, %v6998, %v7000
        %v7002 = vrot.slane %v1387, 2
        %v7003 = vrot.slane %v1388, 2
        %v7004 = vsel %vm1825, %v7002, %v7003
        %v7005 = vrot.slane %v1389, 2
        %v7006 = vsel %vm1825, %v7003, %v7005
        %v7007 = vrot.slane %v1390, 2
        %v7008 = vrot.slane %v1391, 2
        %v7009 = vsel %vm1825, %v7007, %v7008
        %v7010 = vrot.slane %v1392, 2
        %v7011 = vsel %vm1825, %v7008, %v7010
        %v7012 = vrot.slane %v1393, 2
        %v7013 = vrot.slane %v1394, 2
        %v7014 = vsel %vm1825, %v7012, %v7013
        %v7015 = vrot.slane %v1395, 2
        %v7016 = vsel %vm1825, %v7013, %v7015
        %v7017 = vrot.slane %v1396, 2
        %v7018 = vrot.slane %v1397, 2
        %v7019 = vsel %vm1825, %v7017, %v7018
        %v7020 = vrot.slane %v1398, 2
        %v7021 = vsel %vm1825, %v7018, %v7020
        %v7022 = vrot.slane %v1399, 2
        %v7023 = vrot.slane %v1400, 2
        %v7024 = vsel %vm1825, %v7022, %v7023
        %v7025 = vrot.slane %v1401, 2
        %v7026 = vsel %vm1825, %v7023, %v7025
        %v7059 = vpack.c.bf16 %v6951, %v6949
        %v7060 = vpack.c.bf16 %v6956, %v6954
        %v7061 = vpack.c.bf16 %v6961, %v6959
        %v7062 = vpack.c.bf16 %v6966, %v6964
        %v7063 = vpack.c.bf16 %v6971, %v6969
        %v7064 = vpack.c.bf16 %v6976, %v6974
        %v7065 = vpack.c.bf16 %v6981, %v6979
        %v7066 = vpack.c.bf16 %v6986, %v6984
        %v7067 = vpack.c.bf16 %v6991, %v6989
        %v7068 = vpack.c.bf16 %v6996, %v6994
        %v7069 = vpack.c.bf16 %v7001, %v6999
        %v7070 = vpack.c.bf16 %v7006, %v7004
        %v7071 = vpack.c.bf16 %v7011, %v7009
        %v7072 = vpack.c.bf16 %v7016, %v7014
        %v7073 = vpack.c.bf16 %v7021, %v7019
        %v7074 = vpack.c.bf16 %v7026, %v7024
        %v7075 = vld [vmem:[%s5] sm:$0xf]
        %v7076 = vld [vmem:[%s5 + $0x4] sm:$0xf]
        %v7077 = vld [vmem:[%s5 + $0x8] sm:$0xf]
        %v7078 = vld [vmem:[%s5 + $0xc] sm:$0xf]
        %v7079 = vld [vmem:[%s5 + $0x10] sm:$0xf]
        %v7080 = vld [vmem:[%s5 + $0x14] sm:$0xf]
        %v7081 = vld [vmem:[%s5 + $0x18] sm:$0xf]
        %v7082 = vld [vmem:[%s5 + $0x1c] sm:$0xf]
        %v7083 = vpack.c.bf16 %v6868, %v6867
        %v7084 = vpack.c.bf16 %v6870, %v6869
        %v7085 = vpack.c.bf16 %v6872, %v6871
        %v7086 = vpack.c.bf16 %v6874, %v6873
        %v7087 = vpack.c.bf16 %v6876, %v6875
        %v7088 = vpack.c.bf16 %v6878, %v6877
        %v7089 = vpack.c.bf16 %v6880, %v6879
        %v7090 = vpack.c.bf16 %v6882, %v6881
        %v7091 = vpack.c.bf16 %v6884, %v6883
        %v7092 = vpack.c.bf16 %v6886, %v6885
        %v7093 = vpack.c.bf16 %v6888, %v6887
        %v7094 = vpack.c.bf16 %v6890, %v6889
        %v7095 = vpack.c.bf16 %v6892, %v6891
        %v7096 = vpack.c.bf16 %v6894, %v6893
        %v7097 = vpack.c.bf16 %v6896, %v6895
        %v7098 = vpack.c.bf16 %v6898, %v6897
        %v7099 = vld [vmem:[%s6] sm:$0xf]
        %v7100 = vld [vmem:[%s6 + $0x4] sm:$0xf]
        %v7101 = vld [vmem:[%s6 + $0x8] sm:$0xf]
        %v7102 = vld [vmem:[%s6 + $0xc] sm:$0xf]
        %v7103 = vld [vmem:[%s6 + $0x10] sm:$0xf]
        %v7104 = vld [vmem:[%s6 + $0x14] sm:$0xf]
        %v7105 = vld [vmem:[%s6 + $0x18] sm:$0xf]
        %v7106 = vld [vmem:[%s6 + $0x1c] sm:$0xf]
        %v7115 = vunpack.c.l.b16 %v7099
        %v7116 = vunpack.c.l.b16 %v7100
        %v7117 = vunpack.c.l.b16 %v7101
        %v7118 = vunpack.c.l.b16 %v7102
        %v7119 = vunpack.c.l.b16 %v7103
        %v7120 = vunpack.c.l.b16 %v7104
        %v7121 = vunpack.c.l.b16 %v7105
        %v7122 = vunpack.c.l.b16 %v7106
        %v7123 = vpack.c.b16 %v7116, %v7115
        %v7124 = vpack.c.b16 %v7118, %v7117
        %v7125 = vpack.c.b16 %v7120, %v7119
        %v7126 = vpack.c.b16 %v7122, %v7121
        %v7132 = vsel %vm542, %v7083, 0
        %v7135 = vsel %vm542, %v7084, 0
        %v7138 = vsel %vm542, %v7085, 0
        %v7141 = vsel %vm542, %v7086, 0
        %v7144 = vsel %vm542, %v7087, 0
        %v7147 = vsel %vm542, %v7088, 0
        %v7150 = vsel %vm542, %v7089, 0
        %v7153 = vsel %vm542, %v7090, 0
        %v7156 = vsel %vm542, %v7091, 0
        %v7159 = vsel %vm542, %v7092, 0
        %v7162 = vsel %vm542, %v7093, 0
        %v7165 = vsel %vm542, %v7094, 0
        %v7168 = vsel %vm542, %v7095, 0
        %v7171 = vsel %vm542, %v7096, 0
        %v7174 = vsel %vm542, %v7097, 0
        %v7177 = vsel %vm542, %v7098, 0
        %7179 = vmatprep.subr.bf16.mxu0 0
        %7180 = vmatpush1.bf16.msra.mxu0 %v7123
        %7181 = vmatprep.subr.bf16.mxu0 0
        %7182 = vmatpush1.bf16.msra.mxu0 %v7124
        %7183 = vmatprep.subr.bf16.mxu0 0
        %7184 = vmatpush1.bf16.msra.mxu0 %v7125
        %7185 = vmatprep.subr.bf16.mxu0 0
        %7186 = vmatpush1.bf16.msra.mxu0 %v7126
        %7187 = vmatprep.subr.bf16.mxu0 0
        %7188 = vmatpush1.bf16.msra.mxu0 0
        %7189 = vmatprep.subr.bf16.mxu0 0
        %7190 = vmatpush1.bf16.msra.mxu0 0
        %7191 = vmatprep.subr.bf16.mxu0 0
        %7192 = vmatpush1.bf16.msra.mxu0 0
        %7193 = vmatprep.subr.bf16.mxu0 0
        %7194 = vmatpush1.bf16.msra.mxu0 0
        %7195 = vmatprep.subr.bf16.mxu0 0
        %7196 = vmatpush1.bf16.msra.mxu0 0
        %7197 = vmatprep.subr.bf16.mxu0 0
        %7198 = vmatpush1.bf16.msra.mxu0 0
        %7199 = vmatprep.subr.bf16.mxu0 0
        %7200 = vmatpush1.bf16.msra.mxu0 0
        %7201 = vmatprep.subr.bf16.mxu0 0
        %7202 = vmatpush1.bf16.msra.mxu0 0
        %7203 = vmatprep.subr.bf16.mxu0 0
        %7204 = vmatpush1.bf16.msra.mxu0 0
        %7205 = vmatprep.subr.bf16.mxu0 0
        %7206 = vmatpush1.bf16.msra.mxu0 0
        %7207 = vmatprep.subr.bf16.mxu0 0
        %7208 = vmatpush1.bf16.msra.mxu0 0
        %7209 = vmatprep.subr.bf16.mxu0 0
        %7210 = vmatpush1.bf16.msra.mxu0 0
        %7211 = vmatprep.mubr.bf16.mxu0 0
        %7212 = vmatmul.mubr.bf16.gmra.mrb[0].mxu0 %v7132
        %v7213 = vpop.f32.mrb[0].mxu0
        %v7214 = vadd.f32 0.0, %v7213
        %v7215 = vpop.f32.mrb[0].mxu0
        %v7216 = vpop.f32.mrb[0].mxu0
        %v7217 = vadd.f32 0.0, %v7216
        %v7218 = vpop.f32.mrb[0].mxu0
        %7219 = vmatprep.mubr.bf16.mxu0 0
        %7220 = vmatmul.mubr.bf16.gmra.mrb[0].mxu0 %v7135
        %v7221 = vpop.f32.mrb[0].mxu0
        %v7222 = vadd.f32 0.0, %v7221
        %v7223 = vpop.f32.mrb[0].mxu0
        %v7224 = vpop.f32.mrb[0].mxu0
        %v7225 = vadd.f32 0.0, %v7224
        %v7226 = vpop.f32.mrb[0].mxu0
        %7227 = vmatprep.mubr.bf16.mxu0 0
        %7228 = vmatmul.mubr.bf16.gmra.mrb[0].mxu0 %v7138
        %v7229 = vpop.f32.mrb[0].mxu0
        %v7230 = vadd.f32 0.0, %v7229
        %v7231 = vpop.f32.mrb[0].mxu0
        %v7232 = vpop.f32.mrb[0].mxu0
        %v7233 = vadd.f32 0.0, %v7232
        %v7234 = vpop.f32.mrb[0].mxu0
        %7235 = vmatprep.mubr.bf16.mxu0 0
        %7236 = vmatmul.mubr.bf16.gmra.mrb[0].mxu0 %v7141
        %v7237 = vpop.f32.mrb[0].mxu0
        %v7238 = vadd.f32 0.0, %v7237
        %v7239 = vpop.f32.mrb[0].mxu0
        %v7240 = vpop.f32.mrb[0].mxu0
        %v7241 = vadd.f32 0.0, %v7240
        %v7242 = vpop.f32.mrb[0].mxu0
        %7243 = vmatprep.mubr.bf16.mxu0 0
        %7244 = vmatmul.mubr.bf16.gmra.mrb[0].mxu0 %v7144
        %v7245 = vpop.f32.mrb[0].mxu0
        %v7246 = vadd.f32 0.0, %v7245
        %v7247 = vpop.f32.mrb[0].mxu0
        %v7248 = vpop.f32.mrb[0].mxu0
        %v7249 = vadd.f32 0.0, %v7248
        %v7250 = vpop.f32.mrb[0].mxu0
        %7251 = vmatprep.mubr.bf16.mxu0 0
        %7252 = vmatmul.mubr.bf16.gmra.mrb[0].mxu0 %v7147
        %v7253 = vpop.f32.mrb[0].mxu0
        %v7254 = vadd.f32 0.0, %v7253
        %v7255 = vpop.f32.mrb[0].mxu0
        %v7256 = vpop.f32.mrb[0].mxu0
        %v7257 = vadd.f32 0.0, %v7256
        %v7258 = vpop.f32.mrb[0].mxu0
        %7259 = vmatprep.mubr.bf16.mxu0 0
        %7260 = vmatmul.mubr.bf16.gmra.mrb[0].mxu0 %v7150
        %v7261 = vpop.f32.mrb[0].mxu0
        %v7262 = vadd.f32 0.0, %v7261
        %v7263 = vpop.f32.mrb[0].mxu0
        %v7264 = vpop.f32.mrb[0].mxu0
        %v7265 = vadd.f32 0.0, %v7264
        %v7266 = vpop.f32.mrb[0].mxu0
        %7267 = vmatprep.mubr.bf16.mxu0 0
        %7268 = vmatmul.mubr.bf16.gmra.mrb[0].mxu0 %v7153
        %v7269 = vpop.f32.mrb[0].mxu0
        %v7270 = vadd.f32 0.0, %v7269
        %v7271 = vpop.f32.mrb[0].mxu0
        %v7272 = vpop.f32.mrb[0].mxu0
        %v7273 = vadd.f32 0.0, %v7272
        %v7274 = vpop.f32.mrb[0].mxu0
        %7275 = vmatprep.mubr.bf16.mxu0 0
        %7276 = vmatmul.mubr.bf16.gmra.mrb[0].mxu0 %v7156
        %v7277 = vpop.f32.mrb[0].mxu0
        %v7278 = vadd.f32 0.0, %v7277
        %v7279 = vpop.f32.mrb[0].mxu0
        %v7280 = vpop.f32.mrb[0].mxu0
        %v7281 = vadd.f32 0.0, %v7280
        %v7282 = vpop.f32.mrb[0].mxu0
        %7283 = vmatprep.mubr.bf16.mxu0 0
        %7284 = vmatmul.mubr.bf16.gmra.mrb[0].mxu0 %v7159
        %v7285 = vpop.f32.mrb[0].mxu0
        %v7286 = vadd.f32 0.0, %v7285
        %v7287 = vpop.f32.mrb[0].mxu0
        %v7288 = vpop.f32.mrb[0].mxu0
        %v7289 = vadd.f32 0.0, %v7288
        %v7290 = vpop.f32.mrb[0].mxu0
        %7291 = vmatprep.mubr.bf16.mxu0 0
        %7292 = vmatmul.mubr.bf16.gmra.mrb[0].mxu0 %v7162
        %v7293 = vpop.f32.mrb[0].mxu0
        %v7294 = vadd.f32 0.0, %v7293
        %v7295 = vpop.f32.mrb[0].mxu0
        %v7296 = vpop.f32.mrb[0].mxu0
        %v7297 = vadd.f32 0.0, %v7296
        %v7298 = vpop.f32.mrb[0].mxu0
        %7299 = vmatprep.mubr.bf16.mxu0 0
        %7300 = vmatmul.mubr.bf16.gmra.mrb[0].mxu0 %v7165
        %v7301 = vpop.f32.mrb[0].mxu0
        %v7302 = vadd.f32 0.0, %v7301
        %v7303 = vpop.f32.mrb[0].mxu0
        %v7304 = vpop.f32.mrb[0].mxu0
        %v7305 = vadd.f32 0.0, %v7304
        %v7306 = vpop.f32.mrb[0].mxu0
        %7307 = vmatprep.mubr.bf16.mxu0 0
        %7308 = vmatmul.mubr.bf16.gmra.mrb[0].mxu0 %v7168
        %v7309 = vpop.f32.mrb[0].mxu0
        %v7310 = vadd.f32 0.0, %v7309
        %v7311 = vpop.f32.mrb[0].mxu0
        %v7312 = vpop.f32.mrb[0].mxu0
        %v7313 = vadd.f32 0.0, %v7312
        %v7314 = vpop.f32.mrb[0].mxu0
        %7315 = vmatprep.mubr.bf16.mxu0 0
        %7316 = vmatmul.mubr.bf16.gmra.mrb[0].mxu0 %v7171
        %v7317 = vpop.f32.mrb[0].mxu0
        %v7318 = vadd.f32 0.0, %v7317
        %v7319 = vpop.f32.mrb[0].mxu0
        %v7320 = vpop.f32.mrb[0].mxu0
        %v7321 = vadd.f32 0.0, %v7320
        %v7322 = vpop.f32.mrb[0].mxu0
        %7323 = vmatprep.mubr.bf16.mxu0 0
        %7324 = vmatmul.mubr.bf16.gmra.mrb[0].mxu0 %v7174
        %v7325 = vpop.f32.mrb[0].mxu0
        %v7326 = vadd.f32 0.0, %v7325
        %v7327 = vpop.f32.mrb[0].mxu0
        %v7328 = vpop.f32.mrb[0].mxu0
        %v7329 = vadd.f32 0.0, %v7328
        %v7330 = vpop.f32.mrb[0].mxu0
        %7331 = vmatprep.mubr.bf16.mxu0 0
        %7332 = vmatmul.mubr.bf16.gmra.mrb[0].mxu0 %v7177
        %v7333 = vpop.f32.mrb[0].mxu0
        %v7334 = vadd.f32 0.0, %v7333
        %v7335 = vpop.f32.mrb[0].mxu0
        %v7336 = vpop.f32.mrb[0].mxu0
        %v7337 = vadd.f32 0.0, %v7336
        %v7338 = vpop.f32.mrb[0].mxu0
        %7339 = vdwg.mxu0
        %v7348 = vunpack.c.l.b16 %v7075
        %v7349 = vunpack.c.l.b16 %v7076
        %v7350 = vunpack.c.l.b16 %v7077
        %v7351 = vunpack.c.l.b16 %v7078
        %v7352 = vunpack.c.l.b16 %v7079
        %v7353 = vunpack.c.l.b16 %v7080
        %v7354 = vunpack.c.l.b16 %v7081
        %v7355 = vunpack.c.l.b16 %v7082
        %v7356 = vpack.c.b16 %v7349, %v7348
        %v7357 = vpack.c.b16 %v7351, %v7350
        %v7358 = vpack.c.b16 %v7353, %v7352
        %v7359 = vpack.c.b16 %v7355, %v7354
        %v7365 = vsel %vm542, %v7059, 0
        %v7368 = vsel %vm542, %v7060, 0
        %v7371 = vsel %vm542, %v7061, 0
        %v7374 = vsel %vm542, %v7062, 0
        %v7377 = vsel %vm542, %v7063, 0
        %v7380 = vsel %vm542, %v7064, 0
        %v7383 = vsel %vm542, %v7065, 0
        %v7386 = vsel %vm542, %v7066, 0
        %v7389 = vsel %vm542, %v7067, 0
        %v7392 = vsel %vm542, %v7068, 0
        %v7395 = vsel %vm542, %v7069, 0
        %v7398 = vsel %vm542, %v7070, 0
        %v7401 = vsel %vm542, %v7071, 0
        %v7404 = vsel %vm542, %v7072, 0
        %v7407 = vsel %vm542, %v7073, 0
        %v7410 = vsel %vm542, %v7074, 0
        %7412 = vmatprep.subr.bf16.mxu0 0
        %7413 = vmatpush1.bf16.msra.mxu0 %v7356
        %7414 = vmatprep.subr.bf16.mxu0 0
        %7415 = vmatpush1.bf16.msra.mxu0 %v7357
        %7416 = vmatprep.subr.bf16.mxu0 0
        %7417 = vmatpush1.bf16.msra.mxu0 %v7358
        %7418 = vmatprep.subr.bf16.mxu0 0
        %7419 = vmatpush1.bf16.msra.mxu0 %v7359
        %7420 = vmatprep.subr.bf16.mxu0 0
        %7421 = vmatpush1.bf16.msra.mxu0 0
        %7422 = vmatprep.subr.bf16.mxu0 0
        %7423 = vmatpush1.bf16.msra.mxu0 0
        %7424 = vmatprep.subr.bf16.mxu0 0
        %7425 = vmatpush1.bf16.msra.mxu0 0
        %7426 = vmatprep.subr.bf16.mxu0 0
        %7427 = vmatpush1.bf16.msra.mxu0 0
        %7428 = vmatprep.subr.bf16.mxu0 0
        %7429 = vmatpush1.bf16.msra.mxu0 0
        %7430 = vmatprep.subr.bf16.mxu0 0
        %7431 = vmatpush1.bf16.msra.mxu0 0
        %7432 = vmatprep.subr.bf16.mxu0 0
        %7433 = vmatpush1.bf16.msra.mxu0 0
        %7434 = vmatprep.subr.bf16.mxu0 0
        %7435 = vmatpush1.bf16.msra.mxu0 0
        %7436 = vmatprep.subr.bf16.mxu0 0
        %7437 = vmatpush1.bf16.msra.mxu0 0
        %7438 = vmatprep.subr.bf16.mxu0 0
        %7439 = vmatpush1.bf16.msra.mxu0 0
        %7440 = vmatprep.subr.bf16.mxu0 0
        %7441 = vmatpush1.bf16.msra.mxu0 0
        %7442 = vmatprep.subr.bf16.mxu0 0
        %7443 = vmatpush1.bf16.msra.mxu0 0
        %7444 = vmatprep.mubr.bf16.mxu0 0
        %7445 = vmatmul.mubr.bf16.gmra.mrb[0].mxu0 %v7365
        %v7446 = vpop.f32.mrb[0].mxu0
        %v7447 = vadd.f32 %v7214, %v7446
        %v7448 = vpop.f32.mrb[0].mxu0
        %v7449 = vpop.f32.mrb[0].mxu0
        %v7450 = vadd.f32 %v7217, %v7449
        %v7451 = vpop.f32.mrb[0].mxu0
        %7452 = vmatprep.mubr.bf16.mxu0 0
        %7453 = vmatmul.mubr.bf16.gmra.mrb[0].mxu0 %v7368
        %v7454 = vpop.f32.mrb[0].mxu0
        %v7455 = vadd.f32 %v7222, %v7454
        %v7456 = vpop.f32.mrb[0].mxu0
        %v7457 = vpop.f32.mrb[0].mxu0
        %v7458 = vadd.f32 %v7225, %v7457
        %v7459 = vpop.f32.mrb[0].mxu0
        %7460 = vmatprep.mubr.bf16.mxu0 0
        %7461 = vmatmul.mubr.bf16.gmra.mrb[0].mxu0 %v7371
        %v7462 = vpop.f32.mrb[0].mxu0
        %v7463 = vadd.f32 %v7230, %v7462
        %v7464 = vpop.f32.mrb[0].mxu0
        %v7465 = vpop.f32.mrb[0].mxu0
        %v7466 = vadd.f32 %v7233, %v7465
        %v7467 = vpop.f32.mrb[0].mxu0
        %7468 = vmatprep.mubr.bf16.mxu0 0
        %7469 = vmatmul.mubr.bf16.gmra.mrb[0].mxu0 %v7374
        %v7470 = vpop.f32.mrb[0].mxu0
        %v7471 = vadd.f32 %v7238, %v7470
        %v7472 = vpop.f32.mrb[0].mxu0
        %v7473 = vpop.f32.mrb[0].mxu0
        %v7474 = vadd.f32 %v7241, %v7473
        %v7475 = vpop.f32.mrb[0].mxu0
        %7476 = vmatprep.mubr.bf16.mxu0 0
        %7477 = vmatmul.mubr.bf16.gmra.mrb[0].mxu0 %v7377
        %v7478 = vpop.f32.mrb[0].mxu0
        %v7479 = vadd.f32 %v7246, %v7478
        %v7480 = vpop.f32.mrb[0].mxu0
        %v7481 = vpop.f32.mrb[0].mxu0
        %v7482 = vadd.f32 %v7249, %v7481
        %v7483 = vpop.f32.mrb[0].mxu0
        %7484 = vmatprep.mubr.bf16.mxu0 0
        %7485 = vmatmul.mubr.bf16.gmra.mrb[0].mxu0 %v7380
        %v7486 = vpop.f32.mrb[0].mxu0
        %v7487 = vadd.f32 %v7254, %v7486
        %v7488 = vpop.f32.mrb[0].mxu0
        %v7489 = vpop.f32.mrb[0].mxu0
        %v7490 = vadd.f32 %v7257, %v7489
        %v7491 = vpop.f32.mrb[0].mxu0
        %7492 = vmatprep.mubr.bf16.mxu0 0
        %7493 = vmatmul.mubr.bf16.gmra.mrb[0].mxu0 %v7383
        %v7494 = vpop.f32.mrb[0].mxu0
        %v7495 = vadd.f32 %v7262, %v7494
        %v7496 = vpop.f32.mrb[0].mxu0
        %v7497 = vpop.f32.mrb[0].mxu0
        %v7498 = vadd.f32 %v7265, %v7497
        %v7499 = vpop.f32.mrb[0].mxu0
        %7500 = vmatprep.mubr.bf16.mxu0 0
        %7501 = vmatmul.mubr.bf16.gmra.mrb[0].mxu0 %v7386
        %v7502 = vpop.f32.mrb[0].mxu0
        %v7503 = vadd.f32 %v7270, %v7502
        %v7504 = vpop.f32.mrb[0].mxu0
        %v7505 = vpop.f32.mrb[0].mxu0
        %v7506 = vadd.f32 %v7273, %v7505
        %v7507 = vpop.f32.mrb[0].mxu0
        %7508 = vmatprep.mubr.bf16.mxu0 0
        %7509 = vmatmul.mubr.bf16.gmra.mrb[0].mxu0 %v7389
        %v7510 = vpop.f32.mrb[0].mxu0
        %v7511 = vadd.f32 %v7278, %v7510
        %v7512 = vpop.f32.mrb[0].mxu0
        %v7513 = vpop.f32.mrb[0].mxu0
        %v7514 = vadd.f32 %v7281, %v7513
        %v7515 = vpop.f32.mrb[0].mxu0
        %7516 = vmatprep.mubr.bf16.mxu0 0
        %7517 = vmatmul.mubr.bf16.gmra.mrb[0].mxu0 %v7392
        %v7518 = vpop.f32.mrb[0].mxu0
        %v7519 = vadd.f32 %v7286, %v7518
        %v7520 = vpop.f32.mrb[0].mxu0
        %v7521 = vpop.f32.mrb[0].mxu0
        %v7522 = vadd.f32 %v7289, %v7521
        %v7523 = vpop.f32.mrb[0].mxu0
        %7524 = vmatprep.mubr.bf16.mxu0 0
        %7525 = vmatmul.mubr.bf16.gmra.mrb[0].mxu0 %v7395
        %v7526 = vpop.f32.mrb[0].mxu0
        %v7527 = vadd.f32 %v7294, %v7526
        %v7528 = vpop.f32.mrb[0].mxu0
        %v7529 = vpop.f32.mrb[0].mxu0
        %v7530 = vadd.f32 %v7297, %v7529
        %v7531 = vpop.f32.mrb[0].mxu0
        %7532 = vmatprep.mubr.bf16.mxu0 0
        %7533 = vmatmul.mubr.bf16.gmra.mrb[0].mxu0 %v7398
        %v7534 = vpop.f32.mrb[0].mxu0
        %v7535 = vadd.f32 %v7302, %v7534
        %v7536 = vpop.f32.mrb[0].mxu0
        %v7537 = vpop.f32.mrb[0].mxu0
        %v7538 = vadd.f32 %v7305, %v7537
        %v7539 = vpop.f32.mrb[0].mxu0
        %7540 = vmatprep.mubr.bf16.mxu0 0
        %7541 = vmatmul.mubr.bf16.gmra.mrb[0].mxu0 %v7401
        %v7542 = vpop.f32.mrb[0].mxu0
        %v7543 = vadd.f32 %v7310, %v7542
        %v7544 = vpop.f32.mrb[0].mxu0
        %v7545 = vpop.f32.mrb[0].mxu0
        %v7546 = vadd.f32 %v7313, %v7545
        %v7547 = vpop.f32.mrb[0].mxu0
        %7548 = vmatprep.mubr.bf16.mxu0 0
        %7549 = vmatmul.mubr.bf16.gmra.mrb[0].mxu0 %v7404
        %v7550 = vpop.f32.mrb[0].mxu0
        %v7551 = vadd.f32 %v7318, %v7550
        %v7552 = vpop.f32.mrb[0].mxu0
        %v7553 = vpop.f32.mrb[0].mxu0
        %v7554 = vadd.f32 %v7321, %v7553
        %v7555 = vpop.f32.mrb[0].mxu0
        %7556 = vmatprep.mubr.bf16.mxu0 0
        %7557 = vmatmul.mubr.bf16.gmra.mrb[0].mxu0 %v7407
        %v7558 = vpop.f32.mrb[0].mxu0
        %v7559 = vadd.f32 %v7326, %v7558
        %v7560 = vpop.f32.mrb[0].mxu0
        %v7561 = vpop.f32.mrb[0].mxu0
        %v7562 = vadd.f32 %v7329, %v7561
        %v7563 = vpop.f32.mrb[0].mxu0
        %7564 = vmatprep.mubr.bf16.mxu0 0
        %7565 = vmatmul.mubr.bf16.gmra.mrb[0].mxu0 %v7410
        %v7566 = vpop.f32.mrb[0].mxu0
        %v7567 = vadd.f32 %v7334, %v7566
        %v7568 = vpop.f32.mrb[0].mxu0
        %v7569 = vpop.f32.mrb[0].mxu0
        %v7570 = vadd.f32 %v7337, %v7569
        %v7571 = vpop.f32.mrb[0].mxu0
        %7572 = vdwg.mxu0
        %v7573 = vld [vmem:[%s7] sm:$0x1]
        %v7575 = vlaneseq
        %v7576 = vshrl.u32 %v7575, 7
        %v7577 = vsub.s32 0, %v7576
        %v7578 = vrot.slane %v7573, %v7577
        %v7580 = vadd.f32 %v7447, %v7578
        %v7581 = vadd.f32 %v7450, %v7578
        %v7582 = vadd.f32 %v7455, %v7578
        %v7583 = vadd.f32 %v7458, %v7578
        %v7584 = vadd.f32 %v7463, %v7578
        %v7585 = vadd.f32 %v7466, %v7578
        %v7586 = vadd.f32 %v7471, %v7578
        %v7587 = vadd.f32 %v7474, %v7578
        %v7588 = vadd.f32 %v7479, %v7578
        %v7589 = vadd.f32 %v7482, %v7578
        %v7590 = vadd.f32 %v7487, %v7578
        %v7591 = vadd.f32 %v7490, %v7578
        %v7592 = vadd.f32 %v7495, %v7578
        %v7593 = vadd.f32 %v7498, %v7578
        %v7594 = vadd.f32 %v7503, %v7578
        %v7595 = vadd.f32 %v7506, %v7578
        %v7596 = vadd.f32 %v7511, %v7578
        %v7597 = vadd.f32 %v7514, %v7578
        %v7598 = vadd.f32 %v7519, %v7578
        %v7599 = vadd.f32 %v7522, %v7578
        %v7600 = vadd.f32 %v7527, %v7578
        %v7601 = vadd.f32 %v7530, %v7578
        %v7602 = vadd.f32 %v7535, %v7578
        %v7603 = vadd.f32 %v7538, %v7578
        %v7604 = vadd.f32 %v7543, %v7578
        %v7605 = vadd.f32 %v7546, %v7578
        %v7606 = vadd.f32 %v7551, %v7578
        %v7607 = vadd.f32 %v7554, %v7578
        %v7608 = vadd.f32 %v7559, %v7578
        %v7609 = vadd.f32 %v7562, %v7578
        %v7610 = vadd.f32 %v7567, %v7578
        %v7611 = vadd.f32 %v7570, %v7578
        %v7612 = vxor.u32 %v7580, 2147483648
        %v7613 = vxor.u32 %v7581, 2147483648
        %v7614 = vxor.u32 %v7582, 2147483648
        %v7615 = vxor.u32 %v7583, 2147483648
        %v7616 = vxor.u32 %v7584, 2147483648
        %v7617 = vxor.u32 %v7585, 2147483648
        %v7618 = vxor.u32 %v7586, 2147483648
        %v7619 = vxor.u32 %v7587, 2147483648
        %v7620 = vxor.u32 %v7588, 2147483648
        %v7621 = vxor.u32 %v7589, 2147483648
        %v7622 = vxor.u32 %v7590, 2147483648
        %v7623 = vxor.u32 %v7591, 2147483648
        %v7624 = vxor.u32 %v7592, 2147483648
        %v7625 = vxor.u32 %v7593, 2147483648
        %v7626 = vxor.u32 %v7594, 2147483648
        %v7627 = vxor.u32 %v7595, 2147483648
        %v7628 = vxor.u32 %v7596, 2147483648
        %v7629 = vxor.u32 %v7597, 2147483648
        %v7630 = vxor.u32 %v7598, 2147483648
        %v7631 = vxor.u32 %v7599, 2147483648
        %v7632 = vxor.u32 %v7600, 2147483648
        %v7633 = vxor.u32 %v7601, 2147483648
        %v7634 = vxor.u32 %v7602, 2147483648
        %v7635 = vxor.u32 %v7603, 2147483648
        %v7636 = vxor.u32 %v7604, 2147483648
        %v7637 = vxor.u32 %v7605, 2147483648
        %v7638 = vxor.u32 %v7606, 2147483648
        %v7639 = vxor.u32 %v7607, 2147483648
        %v7640 = vxor.u32 %v7608, 2147483648
        %v7641 = vxor.u32 %v7609, 2147483648
        %v7642 = vxor.u32 %v7610, 2147483648
        %v7643 = vxor.u32 %v7611, 2147483648
        %v7644 = vmul.f32 %v7612, 1.442695
        %v7645 = vpow.pop %v7644
        %v7646 = vmul.f32 %v7613, 1.442695
        %v7647 = vpow.pop %v7646
        %v7648 = vmul.f32 %v7614, 1.442695
        %v7649 = vpow.pop %v7648
        %v7650 = vmul.f32 %v7615, 1.442695
        %v7651 = vpow.pop %v7650
        %v7652 = vmul.f32 %v7616, 1.442695
        %v7653 = vpow.pop %v7652
        %v7654 = vmul.f32 %v7617, 1.442695
        %v7655 = vpow.pop %v7654
        %v7656 = vmul.f32 %v7618, 1.442695
        %v7657 = vpow.pop %v7656
        %v7658 = vmul.f32 %v7619, 1.442695
        %v7659 = vpow.pop %v7658
        %v7660 = vmul.f32 %v7620, 1.442695
        %v7661 = vpow.pop %v7660
        %v7662 = vmul.f32 %v7621, 1.442695
        %v7663 = vpow.pop %v7662
        %v7664 = vmul.f32 %v7622, 1.442695
        %v7665 = vpow.pop %v7664
        %v7666 = vmul.f32 %v7623, 1.442695
        %v7667 = vpow.pop %v7666
        %v7668 = vmul.f32 %v7624, 1.442695
        %v7669 = vpow.pop %v7668
        %v7670 = vmul.f32 %v7625, 1.442695
        %v7671 = vpow.pop %v7670
        %v7672 = vmul.f32 %v7626, 1.442695
        %v7673 = vpow.pop %v7672
        %v7674 = vmul.f32 %v7627, 1.442695
        %v7675 = vpow.pop %v7674
        %v7676 = vmul.f32 %v7628, 1.442695
        %v7677 = vpow.pop %v7676
        %v7678 = vmul.f32 %v7629, 1.442695
        %v7679 = vpow.pop %v7678
        %v7680 = vmul.f32 %v7630, 1.442695
        %v7681 = vpow.pop %v7680
        %v7682 = vmul.f32 %v7631, 1.442695
        %v7683 = vpow.pop %v7682
        %v7684 = vmul.f32 %v7632, 1.442695
        %v7685 = vpow.pop %v7684
        %v7686 = vmul.f32 %v7633, 1.442695
        %v7687 = vpow.pop %v7686
        %v7688 = vmul.f32 %v7634, 1.442695
        %v7689 = vpow.pop %v7688
        %v7690 = vmul.f32 %v7635, 1.442695
        %v7691 = vpow.pop %v7690
        %v7692 = vmul.f32 %v7636, 1.442695
        %v7693 = vpow.pop %v7692
        %v7694 = vmul.f32 %v7637, 1.442695
        %v7695 = vpow.pop %v7694
        %v7696 = vmul.f32 %v7638, 1.442695
        %v7697 = vpow.pop %v7696
        %v7698 = vmul.f32 %v7639, 1.442695
        %v7699 = vpow.pop %v7698
        %v7700 = vmul.f32 %v7640, 1.442695
        %v7701 = vpow.pop %v7700
        %v7702 = vmul.f32 %v7641, 1.442695
        %v7703 = vpow.pop %v7702
        %v7704 = vmul.f32 %v7642, 1.442695
        %v7705 = vpow.pop %v7704
        %v7706 = vmul.f32 %v7643, 1.442695
        %v7707 = vpow.pop %v7706
        %v7708 = vadd.f32 %v7645, 1.0
        %v7709 = vadd.f32 %v7647, 1.0
        %v7710 = vadd.f32 %v7649, 1.0
        %v7711 = vadd.f32 %v7651, 1.0
        %v7712 = vadd.f32 %v7653, 1.0
        %v7713 = vadd.f32 %v7655, 1.0
        %v7714 = vadd.f32 %v7657, 1.0
        %v7715 = vadd.f32 %v7659, 1.0
        %v7716 = vadd.f32 %v7661, 1.0
        %v7717 = vadd.f32 %v7663, 1.0
        %v7718 = vadd.f32 %v7665, 1.0
        %v7719 = vadd.f32 %v7667, 1.0
        %v7720 = vadd.f32 %v7669, 1.0
        %v7721 = vadd.f32 %v7671, 1.0
        %v7722 = vadd.f32 %v7673, 1.0
        %v7723 = vadd.f32 %v7675, 1.0
        %v7724 = vadd.f32 %v7677, 1.0
        %v7725 = vadd.f32 %v7679, 1.0
        %v7726 = vadd.f32 %v7681, 1.0
        %v7727 = vadd.f32 %v7683, 1.0
        %v7728 = vadd.f32 %v7685, 1.0
        %v7729 = vadd.f32 %v7687, 1.0
        %v7730 = vadd.f32 %v7689, 1.0
        %v7731 = vadd.f32 %v7691, 1.0
        %v7732 = vadd.f32 %v7693, 1.0
        %v7733 = vadd.f32 %v7695, 1.0
        %v7734 = vadd.f32 %v7697, 1.0
        %v7735 = vadd.f32 %v7699, 1.0
        %v7736 = vadd.f32 %v7701, 1.0
        %v7737 = vadd.f32 %v7703, 1.0
        %v7738 = vadd.f32 %v7705, 1.0
        %v7739 = vadd.f32 %v7707, 1.0
        %v7740 = vrcp.pop %v7708
        %v7741 = vmul.f32 1.0, %v7740
        %v7742 = vrcp.pop %v7709
        %v7743 = vmul.f32 1.0, %v7742
        %v7744 = vrcp.pop %v7710
        %v7745 = vmul.f32 1.0, %v7744
        %v7746 = vrcp.pop %v7711
        %v7747 = vmul.f32 1.0, %v7746
        %v7748 = vrcp.pop %v7712
        %v7749 = vmul.f32 1.0, %v7748
        %v7750 = vrcp.pop %v7713
        %v7751 = vmul.f32 1.0, %v7750
        %v7752 = vrcp.pop %v7714
        %v7753 = vmul.f32 1.0, %v7752
        %v7754 = vrcp.pop %v7715
        %v7755 = vmul.f32 1.0, %v7754
        %v7756 = vrcp.pop %v7716
        %v7757 = vmul.f32 1.0, %v7756
        %v7758 = vrcp.pop %v7717
        %v7759 = vmul.f32 1.0, %v7758
        %v7760 = vrcp.pop %v7718
        %v7761 = vmul.f32 1.0, %v7760
        %v7762 = vrcp.pop %v7719
        %v7763 = vmul.f32 1.0, %v7762
        %v7764 = vrcp.pop %v7720
        %v7765 = vmul.f32 1.0, %v7764
        %v7766 = vrcp.pop %v7721
        %v7767 = vmul.f32 1.0, %v7766
        %v7768 = vrcp.pop %v7722
        %v7769 = vmul.f32 1.0, %v7768
        %v7770 = vrcp.pop %v7723
        %v7771 = vmul.f32 1.0, %v7770
        %v7772 = vrcp.pop %v7724
        %v7773 = vmul.f32 1.0, %v7772
        %v7774 = vrcp.pop %v7725
        %v7775 = vmul.f32 1.0, %v7774
        %v7776 = vrcp.pop %v7726
        %v7777 = vmul.f32 1.0, %v7776
        %v7778 = vrcp.pop %v7727
        %v7779 = vmul.f32 1.0, %v7778
        %v7780 = vrcp.pop %v7728
        %v7781 = vmul.f32 1.0, %v7780
        %v7782 = vrcp.pop %v7729
        %v7783 = vmul.f32 1.0, %v7782
        %v7784 = vrcp.pop %v7730
        %v7785 = vmul.f32 1.0, %v7784
        %v7786 = vrcp.pop %v7731
        %v7787 = vmul.f32 1.0, %v7786
        %v7788 = vrcp.pop %v7732
        %v7789 = vmul.f32 1.0, %v7788
        %v7790 = vrcp.pop %v7733
        %v7791 = vmul.f32 1.0, %v7790
        %v7792 = vrcp.pop %v7734
        %v7793 = vmul.f32 1.0, %v7792
        %v7794 = vrcp.pop %v7735
        %v7795 = vmul.f32 1.0, %v7794
        %v7796 = vrcp.pop %v7736
        %v7797 = vmul.f32 1.0, %v7796
        %v7798 = vrcp.pop %v7737
        %v7799 = vmul.f32 1.0, %v7798
        %v7800 = vrcp.pop %v7738
        %v7801 = vmul.f32 1.0, %v7800
        %v7802 = vrcp.pop %v7739
        %v7803 = vmul.f32 1.0, %v7802
        %v7804 = vmul.f32 %v7580, %v7741
        %v7805 = vmul.f32 %v7581, %v7743
        %v7806 = vmul.f32 %v7582, %v7745
        %v7807 = vmul.f32 %v7583, %v7747
        %v7808 = vmul.f32 %v7584, %v7749
        %v7809 = vmul.f32 %v7585, %v7751
        %v7810 = vmul.f32 %v7586, %v7753
        %v7811 = vmul.f32 %v7587, %v7755
        %v7812 = vmul.f32 %v7588, %v7757
        %v7813 = vmul.f32 %v7589, %v7759
        %v7814 = vmul.f32 %v7590, %v7761
        %v7815 = vmul.f32 %v7591, %v7763
        %v7816 = vmul.f32 %v7592, %v7765
        %v7817 = vmul.f32 %v7593, %v7767
        %v7818 = vmul.f32 %v7594, %v7769
        %v7819 = vmul.f32 %v7595, %v7771
        %v7820 = vmul.f32 %v7596, %v7773
        %v7821 = vmul.f32 %v7597, %v7775
        %v7822 = vmul.f32 %v7598, %v7777
        %v7823 = vmul.f32 %v7599, %v7779
        %v7824 = vmul.f32 %v7600, %v7781
        %v7825 = vmul.f32 %v7601, %v7783
        %v7826 = vmul.f32 %v7602, %v7785
        %v7827 = vmul.f32 %v7603, %v7787
        %v7828 = vmul.f32 %v7604, %v7789
        %v7829 = vmul.f32 %v7605, %v7791
        %v7830 = vmul.f32 %v7606, %v7793
        %v7831 = vmul.f32 %v7607, %v7795
        %v7832 = vmul.f32 %v7608, %v7797
        %v7833 = vmul.f32 %v7609, %v7799
        %v7834 = vmul.f32 %v7610, %v7801
        %v7835 = vmul.f32 %v7611, %v7803
        %v7836 = vld [vmem:[%s8] sm:$0xff]
        %v7837 = vld [vmem:[%s8 + $0x8] sm:$0x1]
        %v7838 = vlaneseq
        %v7839 = vshrl.u32 %v7838, 7
        %v7840 = vsub.s32 0, %v7839
        %v7841 = vrot.slane %v7836, %v7840
        %v7842 = vmul.f32 %v416, %v7841
        %v7843 = vmul.f32 %v417, %v7841
        %v7844 = vmul.f32 %v418, %v7841
        %v7845 = vmul.f32 %v419, %v7841
        %v7846 = vmul.f32 %v420, %v7841
        %v7847 = vmul.f32 %v421, %v7841
        %v7848 = vmul.f32 %v422, %v7841
        %v7849 = vmul.f32 %v423, %v7841
        %v7850 = vmul.f32 %v424, %v7841
        %v7851 = vmul.f32 %v425, %v7841
        %v7852 = vmul.f32 %v426, %v7841
        %v7853 = vmul.f32 %v427, %v7841
        %v7854 = vmul.f32 %v428, %v7841
        %v7855 = vmul.f32 %v429, %v7841
        %v7856 = vmul.f32 %v430, %v7841
        %v7857 = vmul.f32 %v431, %v7841
        %v7858 = vmul.f32 %v432, %v7841
        %v7859 = vmul.f32 %v433, %v7841
        %v7860 = vmul.f32 %v434, %v7841
        %v7861 = vmul.f32 %v435, %v7841
        %v7862 = vmul.f32 %v436, %v7841
        %v7863 = vmul.f32 %v437, %v7841
        %v7864 = vmul.f32 %v438, %v7841
        %v7865 = vmul.f32 %v439, %v7841
        %v7866 = vmul.f32 %v440, %v7841
        %v7867 = vmul.f32 %v441, %v7841
        %v7868 = vmul.f32 %v442, %v7841
        %v7869 = vmul.f32 %v443, %v7841
        %v7870 = vmul.f32 %v444, %v7841
        %v7871 = vmul.f32 %v445, %v7841
        %v7872 = vmul.f32 %v446, %v7841
        %v7873 = vmul.f32 %v447, %v7841
        %v7874 = vmul.f32 %v448, %v7841
        %v7875 = vmul.f32 %v449, %v7841
        %v7876 = vmul.f32 %v450, %v7841
        %v7877 = vmul.f32 %v451, %v7841
        %v7878 = vmul.f32 %v452, %v7841
        %v7879 = vmul.f32 %v453, %v7841
        %v7880 = vmul.f32 %v454, %v7841
        %v7881 = vmul.f32 %v455, %v7841
        %v7882 = vmul.f32 %v456, %v7841
        %v7883 = vmul.f32 %v457, %v7841
        %v7884 = vmul.f32 %v458, %v7841
        %v7885 = vmul.f32 %v459, %v7841
        %v7886 = vmul.f32 %v460, %v7841
        %v7887 = vmul.f32 %v461, %v7841
        %v7888 = vmul.f32 %v462, %v7841
        %v7889 = vmul.f32 %v463, %v7841
        %v7890 = vadd.f32 %v7842, 0.0
        %v7891 = vadd.f32 %v7843, 0.0
        %v7892 = vadd.f32 %v7844, 0.0
        %v7893 = vadd.f32 %v7845, 0.0
        %v7894 = vadd.f32 %v7846, 0.0
        %v7895 = vadd.f32 %v7847, 0.0
        %v7896 = vadd.f32 %v7848, 0.0
        %v7897 = vadd.f32 %v7849, 0.0
        %v7898 = vadd.f32 %v7850, 0.0
        %v7899 = vadd.f32 %v7851, 0.0
        %v7900 = vadd.f32 %v7852, 0.0
        %v7901 = vadd.f32 %v7853, 0.0
        %v7902 = vadd.f32 %v7854, 0.0
        %v7903 = vadd.f32 %v7855, 0.0
        %v7904 = vadd.f32 %v7856, 0.0
        %v7905 = vadd.f32 %v7857, 0.0
        %v7906 = vadd.f32 %v7858, 0.0
        %v7907 = vadd.f32 %v7859, 0.0
        %v7908 = vadd.f32 %v7860, 0.0
        %v7909 = vadd.f32 %v7861, 0.0
        %v7910 = vadd.f32 %v7862, 0.0
        %v7911 = vadd.f32 %v7863, 0.0
        %v7912 = vadd.f32 %v7864, 0.0
        %v7913 = vadd.f32 %v7865, 0.0
        %v7914 = vadd.f32 %v7866, 0.0
        %v7915 = vadd.f32 %v7867, 0.0
        %v7916 = vadd.f32 %v7868, 0.0
        %v7917 = vadd.f32 %v7869, 0.0
        %v7918 = vadd.f32 %v7870, 0.0
        %v7919 = vadd.f32 %v7871, 0.0
        %v7920 = vadd.f32 %v7872, 0.0
        %v7921 = vadd.f32 %v7873, 0.0
        %v7922 = vadd.f32 %v7874, 0.0
        %v7923 = vadd.f32 %v7875, 0.0
        %v7924 = vadd.f32 %v7876, 0.0
        %v7925 = vadd.f32 %v7877, 0.0
        %v7926 = vadd.f32 %v7878, 0.0
        %v7927 = vadd.f32 %v7879, 0.0
        %v7928 = vadd.f32 %v7880, 0.0
        %v7929 = vadd.f32 %v7881, 0.0
        %v7930 = vadd.f32 %v7882, 0.0
        %v7931 = vadd.f32 %v7883, 0.0
        %v7932 = vadd.f32 %v7884, 0.0
        %v7933 = vadd.f32 %v7885, 0.0
        %v7934 = vadd.f32 %v7886, 0.0
        %v7935 = vadd.f32 %v7887, 0.0
        %v7936 = vadd.f32 %v7888, 0.0
        %v7937 = vadd.f32 %v7889, 0.0
        %v7938 = vlaneseq
        %v7939 = vshrl.u32 %v7938, 7
        %v7940 = vsub.s32 1, %v7939
        %v7941 = vrot.slane %v7836, %v7940
        %v7942 = vmul.f32 %v416, %v7941
        %v7943 = vmul.f32 %v417, %v7941
        %v7944 = vmul.f32 %v418, %v7941
        %v7945 = vmul.f32 %v419, %v7941
        %v7946 = vmul.f32 %v420, %v7941
        %v7947 = vmul.f32 %v421, %v7941
        %v7948 = vmul.f32 %v422, %v7941
        %v7949 = vmul.f32 %v423, %v7941
        %v7950 = vmul.f32 %v424, %v7941
        %v7951 = vmul.f32 %v425, %v7941
        %v7952 = vmul.f32 %v426, %v7941
        %v7953 = vmul.f32 %v427, %v7941
        %v7954 = vmul.f32 %v428, %v7941
        %v7955 = vmul.f32 %v429, %v7941
        %v7956 = vmul.f32 %v430, %v7941
        %v7957 = vmul.f32 %v431, %v7941
        %v7958 = vmul.f32 %v432, %v7941
        %v7959 = vmul.f32 %v433, %v7941
        %v7960 = vmul.f32 %v434, %v7941
        %v7961 = vmul.f32 %v435, %v7941
        %v7962 = vmul.f32 %v436, %v7941
        %v7963 = vmul.f32 %v437, %v7941
        %v7964 = vmul.f32 %v438, %v7941
        %v7965 = vmul.f32 %v439, %v7941
        %v7966 = vmul.f32 %v440, %v7941
        %v7967 = vmul.f32 %v441, %v7941
        %v7968 = vmul.f32 %v442, %v7941
        %v7969 = vmul.f32 %v443, %v7941
        %v7970 = vmul.f32 %v444, %v7941
        %v7971 = vmul.f32 %v445, %v7941
        %v7972 = vmul.f32 %v446, %v7941
        %v7973 = vmul.f32 %v447, %v7941
        %v7974 = vmul.f32 %v448, %v7941
        %v7975 = vmul.f32 %v449, %v7941
        %v7976 = vmul.f32 %v450, %v7941
        %v7977 = vmul.f32 %v451, %v7941
        %v7978 = vmul.f32 %v452, %v7941
        %v7979 = vmul.f32 %v453, %v7941
        %v7980 = vmul.f32 %v454, %v7941
        %v7981 = vmul.f32 %v455, %v7941
        %v7982 = vmul.f32 %v456, %v7941
        %v7983 = vmul.f32 %v457, %v7941
        %v7984 = vmul.f32 %v458, %v7941
        %v7985 = vmul.f32 %v459, %v7941
        %v7986 = vmul.f32 %v460, %v7941
        %v7987 = vmul.f32 %v461, %v7941
        %v7988 = vmul.f32 %v462, %v7941
        %v7989 = vmul.f32 %v463, %v7941
        %v8038 = vrot.slane %v7942, 1
        %v8039 = vrot.slane %v7943, 1
        %v8040 = vsel %vm1580, %v8038, %v8039
        %v8041 = vrot.slane %v7944, 1
        %v8042 = vsel %vm1580, %v8039, %v8041
        %v8043 = vrot.slane %v7945, 1
        %v8044 = vrot.slane %v7946, 1
        %v8045 = vsel %vm1580, %v8043, %v8044
        %v8046 = vrot.slane %v7947, 1
        %v8047 = vsel %vm1580, %v8044, %v8046
        %v8048 = vrot.slane %v7948, 1
        %v8049 = vrot.slane %v7949, 1
        %v8050 = vsel %vm1580, %v8048, %v8049
        %v8051 = vrot.slane %v7950, 1
        %v8052 = vsel %vm1580, %v8049, %v8051
        %v8053 = vrot.slane %v7951, 1
        %v8054 = vrot.slane %v7952, 1
        %v8055 = vsel %vm1580, %v8053, %v8054
        %v8056 = vrot.slane %v7953, 1
        %v8057 = vsel %vm1580, %v8054, %v8056
        %v8058 = vrot.slane %v7954, 1
        %v8059 = vrot.slane %v7955, 1
        %v8060 = vsel %vm1580, %v8058, %v8059
        %v8061 = vrot.slane %v7956, 1
        %v8062 = vsel %vm1580, %v8059, %v8061
        %v8063 = vrot.slane %v7957, 1
        %v8064 = vrot.slane %v7958, 1
        %v8065 = vsel %vm1580, %v8063, %v8064
        %v8066 = vrot.slane %v7959, 1
        %v8067 = vsel %vm1580, %v8064, %v8066
        %v8068 = vrot.slane %v7960, 1
        %v8069 = vrot.slane %v7961, 1
        %v8070 = vsel %vm1580, %v8068, %v8069
        %v8071 = vrot.slane %v7962, 1
        %v8072 = vsel %vm1580, %v8069, %v8071
        %v8073 = vrot.slane %v7963, 1
        %v8074 = vrot.slane %v7964, 1
        %v8075 = vsel %vm1580, %v8073, %v8074
        %v8076 = vrot.slane %v7965, 1
        %v8077 = vsel %vm1580, %v8074, %v8076
        %v8078 = vrot.slane %v7966, 1
        %v8079 = vrot.slane %v7967, 1
        %v8080 = vsel %vm1580, %v8078, %v8079
        %v8081 = vrot.slane %v7968, 1
        %v8082 = vsel %vm1580, %v8079, %v8081
        %v8083 = vrot.slane %v7969, 1
        %v8084 = vrot.slane %v7970, 1
        %v8085 = vsel %vm1580, %v8083, %v8084
        %v8086 = vrot.slane %v7971, 1
        %v8087 = vsel %vm1580, %v8084, %v8086
        %v8088 = vrot.slane %v7972, 1
        %v8089 = vrot.slane %v7973, 1
        %v8090 = vsel %vm1580, %v8088, %v8089
        %v8091 = vrot.slane %v7974, 1
        %v8092 = vsel %vm1580, %v8089, %v8091
        %v8093 = vrot.slane %v7975, 1
        %v8094 = vrot.slane %v7976, 1
        %v8095 = vsel %vm1580, %v8093, %v8094
        %v8096 = vrot.slane %v7977, 1
        %v8097 = vsel %vm1580, %v8094, %v8096
        %v8098 = vrot.slane %v7978, 1
        %v8099 = vrot.slane %v7979, 1
        %v8100 = vsel %vm1580, %v8098, %v8099
        %v8101 = vrot.slane %v7980, 1
        %v8102 = vsel %vm1580, %v8099, %v8101
        %v8103 = vrot.slane %v7981, 1
        %v8104 = vrot.slane %v7982, 1
        %v8105 = vsel %vm1580, %v8103, %v8104
        %v8106 = vrot.slane %v7983, 1
        %v8107 = vsel %vm1580, %v8104, %v8106
        %v8108 = vrot.slane %v7984, 1
        %v8109 = vrot.slane %v7985, 1
        %v8110 = vsel %vm1580, %v8108, %v8109
        %v8111 = vrot.slane %v7986, 1
        %v8112 = vsel %vm1580, %v8109, %v8111
        %v8113 = vrot.slane %v7987, 1
        %v8114 = vrot.slane %v7988, 1
        %v8115 = vsel %vm1580, %v8113, %v8114
        %v8116 = vrot.slane %v7989, 1
        %v8117 = vsel %vm1580, %v8114, %v8116
        %v8166 = vadd.f32 %v7890, %v8040
        %v8167 = vadd.f32 %v7891, %v8042
        %v8168 = vadd.f32 %v7892, %v8041
        %v8169 = vadd.f32 %v7893, %v8045
        %v8170 = vadd.f32 %v7894, %v8047
        %v8171 = vadd.f32 %v7895, %v8046
        %v8172 = vadd.f32 %v7896, %v8050
        %v8173 = vadd.f32 %v7897, %v8052
        %v8174 = vadd.f32 %v7898, %v8051
        %v8175 = vadd.f32 %v7899, %v8055
        %v8176 = vadd.f32 %v7900, %v8057
        %v8177 = vadd.f32 %v7901, %v8056
        %v8178 = vadd.f32 %v7902, %v8060
        %v8179 = vadd.f32 %v7903, %v8062
        %v8180 = vadd.f32 %v7904, %v8061
        %v8181 = vadd.f32 %v7905, %v8065
        %v8182 = vadd.f32 %v7906, %v8067
        %v8183 = vadd.f32 %v7907, %v8066
        %v8184 = vadd.f32 %v7908, %v8070
        %v8185 = vadd.f32 %v7909, %v8072
        %v8186 = vadd.f32 %v7910, %v8071
        %v8187 = vadd.f32 %v7911, %v8075
        %v8188 = vadd.f32 %v7912, %v8077
        %v8189 = vadd.f32 %v7913, %v8076
        %v8190 = vadd.f32 %v7914, %v8080
        %v8191 = vadd.f32 %v7915, %v8082
        %v8192 = vadd.f32 %v7916, %v8081
        %v8193 = vadd.f32 %v7917, %v8085
        %v8194 = vadd.f32 %v7918, %v8087
        %v8195 = vadd.f32 %v7919, %v8086
        %v8196 = vadd.f32 %v7920, %v8090
        %v8197 = vadd.f32 %v7921, %v8092
        %v8198 = vadd.f32 %v7922, %v8091
        %v8199 = vadd.f32 %v7923, %v8095
        %v8200 = vadd.f32 %v7924, %v8097
        %v8201 = vadd.f32 %v7925, %v8096
        %v8202 = vadd.f32 %v7926, %v8100
        %v8203 = vadd.f32 %v7927, %v8102
        %v8204 = vadd.f32 %v7928, %v8101
        %v8205 = vadd.f32 %v7929, %v8105
        %v8206 = vadd.f32 %v7930, %v8107
        %v8207 = vadd.f32 %v7931, %v8106
        %v8208 = vadd.f32 %v7932, %v8110
        %v8209 = vadd.f32 %v7933, %v8112
        %v8210 = vadd.f32 %v7934, %v8111
        %v8211 = vadd.f32 %v7935, %v8115
        %v8212 = vadd.f32 %v7936, %v8117
        %v8213 = vadd.f32 %v7937, %v8116
        %v8214 = vlaneseq
        %v8215 = vshrl.u32 %v8214, 7
        %v8216 = vsub.s32 2, %v8215
        %v8217 = vrot.slane %v7836, %v8216
        %v8218 = vmul.f32 %v416, %v8217
        %v8219 = vmul.f32 %v417, %v8217
        %v8220 = vmul.f32 %v418, %v8217
        %v8221 = vmul.f32 %v419, %v8217
        %v8222 = vmul.f32 %v420, %v8217
        %v8223 = vmul.f32 %v421, %v8217
        %v8224 = vmul.f32 %v422, %v8217
        %v8225 = vmul.f32 %v423, %v8217
        %v8226 = vmul.f32 %v424, %v8217
        %v8227 = vmul.f32 %v425, %v8217
        %v8228 = vmul.f32 %v426, %v8217
        %v8229 = vmul.f32 %v427, %v8217
        %v8230 = vmul.f32 %v428, %v8217
        %v8231 = vmul.f32 %v429, %v8217
        %v8232 = vmul.f32 %v430, %v8217
        %v8233 = vmul.f32 %v431, %v8217
        %v8234 = vmul.f32 %v432, %v8217
        %v8235 = vmul.f32 %v433, %v8217
        %v8236 = vmul.f32 %v434, %v8217
        %v8237 = vmul.f32 %v435, %v8217
        %v8238 = vmul.f32 %v436, %v8217
        %v8239 = vmul.f32 %v437, %v8217
        %v8240 = vmul.f32 %v438, %v8217
        %v8241 = vmul.f32 %v439, %v8217
        %v8242 = vmul.f32 %v440, %v8217
        %v8243 = vmul.f32 %v441, %v8217
        %v8244 = vmul.f32 %v442, %v8217
        %v8245 = vmul.f32 %v443, %v8217
        %v8246 = vmul.f32 %v444, %v8217
        %v8247 = vmul.f32 %v445, %v8217
        %v8248 = vmul.f32 %v446, %v8217
        %v8249 = vmul.f32 %v447, %v8217
        %v8250 = vmul.f32 %v448, %v8217
        %v8251 = vmul.f32 %v449, %v8217
        %v8252 = vmul.f32 %v450, %v8217
        %v8253 = vmul.f32 %v451, %v8217
        %v8254 = vmul.f32 %v452, %v8217
        %v8255 = vmul.f32 %v453, %v8217
        %v8256 = vmul.f32 %v454, %v8217
        %v8257 = vmul.f32 %v455, %v8217
        %v8258 = vmul.f32 %v456, %v8217
        %v8259 = vmul.f32 %v457, %v8217
        %v8260 = vmul.f32 %v458, %v8217
        %v8261 = vmul.f32 %v459, %v8217
        %v8262 = vmul.f32 %v460, %v8217
        %v8263 = vmul.f32 %v461, %v8217
        %v8264 = vmul.f32 %v462, %v8217
        %v8265 = vmul.f32 %v463, %v8217
        %v8314 = vrot.slane %v8218, 2
        %v8315 = vrot.slane %v8219, 2
        %v8316 = vsel %vm1825, %v8314, %v8315
        %v8317 = vrot.slane %v8220, 2
        %v8318 = vsel %vm1825, %v8315, %v8317
        %v8319 = vrot.slane %v8221, 2
        %v8320 = vrot.slane %v8222, 2
        %v8321 = vsel %vm1825, %v8319, %v8320
        %v8322 = vrot.slane %v8223, 2
        %v8323 = vsel %vm1825, %v8320, %v8322
        %v8324 = vrot.slane %v8224, 2
        %v8325 = vrot.slane %v8225, 2
        %v8326 = vsel %vm1825, %v8324, %v8325
        %v8327 = vrot.slane %v8226, 2
        %v8328 = vsel %vm1825, %v8325, %v8327
        %v8329 = vrot.slane %v8227, 2
        %v8330 = vrot.slane %v8228, 2
        %v8331 = vsel %vm1825, %v8329, %v8330
        %v8332 = vrot.slane %v8229, 2
        %v8333 = vsel %vm1825, %v8330, %v8332
        %v8334 = vrot.slane %v8230, 2
        %v8335 = vrot.slane %v8231, 2
        %v8336 = vsel %vm1825, %v8334, %v8335
        %v8337 = vrot.slane %v8232, 2
        %v8338 = vsel %vm1825, %v8335, %v8337
        %v8339 = vrot.slane %v8233, 2
        %v8340 = vrot.slane %v8234, 2
        %v8341 = vsel %vm1825, %v8339, %v8340
        %v8342 = vrot.slane %v8235, 2
        %v8343 = vsel %vm1825, %v8340, %v8342
        %v8344 = vrot.slane %v8236, 2
        %v8345 = vrot.slane %v8237, 2
        %v8346 = vsel %vm1825, %v8344, %v8345
        %v8347 = vrot.slane %v8238, 2
        %v8348 = vsel %vm1825, %v8345, %v8347
        %v8349 = vrot.slane %v8239, 2
        %v8350 = vrot.slane %v8240, 2
        %v8351 = vsel %vm1825, %v8349, %v8350
        %v8352 = vrot.slane %v8241, 2
        %v8353 = vsel %vm1825, %v8350, %v8352
        %v8354 = vrot.slane %v8242, 2
        %v8355 = vrot.slane %v8243, 2
        %v8356 = vsel %vm1825, %v8354, %v8355
        %v8357 = vrot.slane %v8244, 2
        %v8358 = vsel %vm1825, %v8355, %v8357
        %v8359 = vrot.slane %v8245, 2
        %v8360 = vrot.slane %v8246, 2
        %v8361 = vsel %vm1825, %v8359, %v8360
        %v8362 = vrot.slane %v8247, 2
        %v8363 = vsel %vm1825, %v8360, %v8362
        %v8364 = vrot.slane %v8248, 2
        %v8365 = vrot.slane %v8249, 2
        %v8366 = vsel %vm1825, %v8364, %v8365
        %v8367 = vrot.slane %v8250, 2
        %v8368 = vsel %vm1825, %v8365, %v8367
        %v8369 = vrot.slane %v8251, 2
        %v8370 = vrot.slane %v8252, 2
        %v8371 = vsel %vm1825, %v8369, %v8370
        %v8372 = vrot.slane %v8253, 2
        %v8373 = vsel %vm1825, %v8370, %v8372
        %v8374 = vrot.slane %v8254, 2
        %v8375 = vrot.slane %v8255, 2
        %v8376 = vsel %vm1825, %v8374, %v8375
        %v8377 = vrot.slane %v8256, 2
        %v8378 = vsel %vm1825, %v8375, %v8377
        %v8379 = vrot.slane %v8257, 2
        %v8380 = vrot.slane %v8258, 2
        %v8381 = vsel %vm1825, %v8379, %v8380
        %v8382 = vrot.slane %v8259, 2
        %v8383 = vsel %vm1825, %v8380, %v8382
        %v8384 = vrot.slane %v8260, 2
        %v8385 = vrot.slane %v8261, 2
        %v8386 = vsel %vm1825, %v8384, %v8385
        %v8387 = vrot.slane %v8262, 2
        %v8388 = vsel %vm1825, %v8385, %v8387
        %v8389 = vrot.slane %v8263, 2
        %v8390 = vrot.slane %v8264, 2
        %v8391 = vsel %vm1825, %v8389, %v8390
        %v8392 = vrot.slane %v8265, 2
        %v8393 = vsel %vm1825, %v8390, %v8392
        %v8442 = vadd.f32 %v8166, %v8316
        %v8443 = vadd.f32 %v8167, %v8318
        %v8444 = vadd.f32 %v8168, %v8317
        %v8445 = vadd.f32 %v8169, %v8321
        %v8446 = vadd.f32 %v8170, %v8323
        %v8447 = vadd.f32 %v8171, %v8322
        %v8448 = vadd.f32 %v8172, %v8326
        %v8449 = vadd.f32 %v8173, %v8328
        %v8450 = vadd.f32 %v8174, %v8327
        %v8451 = vadd.f32 %v8175, %v8331
        %v8452 = vadd.f32 %v8176, %v8333
        %v8453 = vadd.f32 %v8177, %v8332
        %v8454 = vadd.f32 %v8178, %v8336
        %v8455 = vadd.f32 %v8179, %v8338
        %v8456 = vadd.f32 %v8180, %v8337
        %v8457 = vadd.f32 %v8181, %v8341
        %v8458 = vadd.f32 %v8182, %v8343
        %v8459 = vadd.f32 %v8183, %v8342
        %v8460 = vadd.f32 %v8184, %v8346
        %v8461 = vadd.f32 %v8185, %v8348
        %v8462 = vadd.f32 %v8186, %v8347
        %v8463 = vadd.f32 %v8187, %v8351
        %v8464 = vadd.f32 %v8188, %v8353
        %v8465 = vadd.f32 %v8189, %v8352
        %v8466 = vadd.f32 %v8190, %v8356
        %v8467 = vadd.f32 %v8191, %v8358
        %v8468 = vadd.f32 %v8192, %v8357
        %v8469 = vadd.f32 %v8193, %v8361
        %v8470 = vadd.f32 %v8194, %v8363
        %v8471 = vadd.f32 %v8195, %v8362
        %v8472 = vadd.f32 %v8196, %v8366
        %v8473 = vadd.f32 %v8197, %v8368
        %v8474 = vadd.f32 %v8198, %v8367
        %v8475 = vadd.f32 %v8199, %v8371
        %v8476 = vadd.f32 %v8200, %v8373
        %v8477 = vadd.f32 %v8201, %v8372
        %v8478 = vadd.f32 %v8202, %v8376
        %v8479 = vadd.f32 %v8203, %v8378
        %v8480 = vadd.f32 %v8204, %v8377
        %v8481 = vadd.f32 %v8205, %v8381
        %v8482 = vadd.f32 %v8206, %v8383
        %v8483 = vadd.f32 %v8207, %v8382
        %v8484 = vadd.f32 %v8208, %v8386
        %v8485 = vadd.f32 %v8209, %v8388
        %v8486 = vadd.f32 %v8210, %v8387
        %v8487 = vadd.f32 %v8211, %v8391
        %v8488 = vadd.f32 %v8212, %v8393
        %v8489 = vadd.f32 %v8213, %v8392
        %v8490 = vlaneseq
        %v8491 = vshrl.u32 %v8490, 7
        %v8492 = vsub.s32 3, %v8491
        %v8493 = vrot.slane %v7836, %v8492
        %v8494 = vmul.f32 %v419, %v8493
        %v8495 = vmul.f32 %v420, %v8493
        %v8496 = vmul.f32 %v421, %v8493
        %v8497 = vmul.f32 %v422, %v8493
        %v8498 = vmul.f32 %v423, %v8493
        %v8499 = vmul.f32 %v424, %v8493
        %v8500 = vmul.f32 %v425, %v8493
        %v8501 = vmul.f32 %v426, %v8493
        %v8502 = vmul.f32 %v427, %v8493
        %v8503 = vmul.f32 %v428, %v8493
        %v8504 = vmul.f32 %v429, %v8493
        %v8505 = vmul.f32 %v430, %v8493
        %v8506 = vmul.f32 %v431, %v8493
        %v8507 = vmul.f32 %v432, %v8493
        %v8508 = vmul.f32 %v433, %v8493
        %v8509 = vmul.f32 %v434, %v8493
        %v8510 = vmul.f32 %v435, %v8493
        %v8511 = vmul.f32 %v436, %v8493
        %v8512 = vmul.f32 %v437, %v8493
        %v8513 = vmul.f32 %v438, %v8493
        %v8514 = vmul.f32 %v439, %v8493
        %v8515 = vmul.f32 %v440, %v8493
        %v8516 = vmul.f32 %v441, %v8493
        %v8517 = vmul.f32 %v442, %v8493
        %v8518 = vmul.f32 %v443, %v8493
        %v8519 = vmul.f32 %v444, %v8493
        %v8520 = vmul.f32 %v445, %v8493
        %v8521 = vmul.f32 %v446, %v8493
        %v8522 = vmul.f32 %v447, %v8493
        %v8523 = vmul.f32 %v448, %v8493
        %v8524 = vmul.f32 %v449, %v8493
        %v8525 = vmul.f32 %v450, %v8493
        %v8526 = vmul.f32 %v451, %v8493
        %v8527 = vmul.f32 %v452, %v8493
        %v8528 = vmul.f32 %v453, %v8493
        %v8529 = vmul.f32 %v454, %v8493
        %v8530 = vmul.f32 %v455, %v8493
        %v8531 = vmul.f32 %v456, %v8493
        %v8532 = vmul.f32 %v457, %v8493
        %v8533 = vmul.f32 %v458, %v8493
        %v8534 = vmul.f32 %v459, %v8493
        %v8535 = vmul.f32 %v460, %v8493
        %v8536 = vmul.f32 %v461, %v8493
        %v8537 = vmul.f32 %v462, %v8493
        %v8538 = vmul.f32 %v463, %v8493
        %v8539 = vmul.f32 %v464, %v8493
        %v8540 = vmul.f32 %v465, %v8493
        %v8541 = vmul.f32 %v466, %v8493
        %v8542 = vadd.f32 %v8442, %v8494
        %v8543 = vadd.f32 %v8443, %v8495
        %v8544 = vadd.f32 %v8444, %v8496
        %v8545 = vadd.f32 %v8445, %v8497
        %v8546 = vadd.f32 %v8446, %v8498
        %v8547 = vadd.f32 %v8447, %v8499
        %v8548 = vadd.f32 %v8448, %v8500
        %v8549 = vadd.f32 %v8449, %v8501
        %v8550 = vadd.f32 %v8450, %v8502
        %v8551 = vadd.f32 %v8451, %v8503
        %v8552 = vadd.f32 %v8452, %v8504
        %v8553 = vadd.f32 %v8453, %v8505
        %v8554 = vadd.f32 %v8454, %v8506
        %v8555 = vadd.f32 %v8455, %v8507
        %v8556 = vadd.f32 %v8456, %v8508
        %v8557 = vadd.f32 %v8457, %v8509
        %v8558 = vadd.f32 %v8458, %v8510
        %v8559 = vadd.f32 %v8459, %v8511
        %v8560 = vadd.f32 %v8460, %v8512
        %v8561 = vadd.f32 %v8461, %v8513
        %v8562 = vadd.f32 %v8462, %v8514
        %v8563 = vadd.f32 %v8463, %v8515
        %v8564 = vadd.f32 %v8464, %v8516
        %v8565 = vadd.f32 %v8465, %v8517
        %v8566 = vadd.f32 %v8466, %v8518
        %v8567 = vadd.f32 %v8467, %v8519
        %v8568 = vadd.f32 %v8468, %v8520
        %v8569 = vadd.f32 %v8469, %v8521
        %v8570 = vadd.f32 %v8470, %v8522
        %v8571 = vadd.f32 %v8471, %v8523
        %v8572 = vadd.f32 %v8472, %v8524
        %v8573 = vadd.f32 %v8473, %v8525
        %v8574 = vadd.f32 %v8474, %v8526
        %v8575 = vadd.f32 %v8475, %v8527
        %v8576 = vadd.f32 %v8476, %v8528
        %v8577 = vadd.f32 %v8477, %v8529
        %v8578 = vadd.f32 %v8478, %v8530
        %v8579 = vadd.f32 %v8479, %v8531
        %v8580 = vadd.f32 %v8480, %v8532
        %v8581 = vadd.f32 %v8481, %v8533
        %v8582 = vadd.f32 %v8482, %v8534
        %v8583 = vadd.f32 %v8483, %v8535
        %v8584 = vadd.f32 %v8484, %v8536
        %v8585 = vadd.f32 %v8485, %v8537
        %v8586 = vadd.f32 %v8486, %v8538
        %v8587 = vadd.f32 %v8487, %v8539
        %v8588 = vadd.f32 %v8488, %v8540
        %v8589 = vadd.f32 %v8489, %v8541
        %v8590 = vlaneseq
        %v8591 = vshrl.u32 %v8590, 7
        %v8592 = vsub.s32 4, %v8591
        %v8593 = vrot.slane %v7836, %v8592
        %v8594 = vmul.f32 %v419, %v8593
        %v8595 = vmul.f32 %v420, %v8593
        %v8596 = vmul.f32 %v421, %v8593
        %v8597 = vmul.f32 %v422, %v8593
        %v8598 = vmul.f32 %v423, %v8593
        %v8599 = vmul.f32 %v424, %v8593
        %v8600 = vmul.f32 %v425, %v8593
        %v8601 = vmul.f32 %v426, %v8593
        %v8602 = vmul.f32 %v427, %v8593
        %v8603 = vmul.f32 %v428, %v8593
        %v8604 = vmul.f32 %v429, %v8593
        %v8605 = vmul.f32 %v430, %v8593
        %v8606 = vmul.f32 %v431, %v8593
        %v8607 = vmul.f32 %v432, %v8593
        %v8608 = vmul.f32 %v433, %v8593
        %v8609 = vmul.f32 %v434, %v8593
        %v8610 = vmul.f32 %v435, %v8593
        %v8611 = vmul.f32 %v436, %v8593
        %v8612 = vmul.f32 %v437, %v8593
        %v8613 = vmul.f32 %v438, %v8593
        %v8614 = vmul.f32 %v439, %v8593
        %v8615 = vmul.f32 %v440, %v8593
        %v8616 = vmul.f32 %v441, %v8593
        %v8617 = vmul.f32 %v442, %v8593
        %v8618 = vmul.f32 %v443, %v8593
        %v8619 = vmul.f32 %v444, %v8593
        %v8620 = vmul.f32 %v445, %v8593
        %v8621 = vmul.f32 %v446, %v8593
        %v8622 = vmul.f32 %v447, %v8593
        %v8623 = vmul.f32 %v448, %v8593
        %v8624 = vmul.f32 %v449, %v8593
        %v8625 = vmul.f32 %v450, %v8593
        %v8626 = vmul.f32 %v451, %v8593
        %v8627 = vmul.f32 %v452, %v8593
        %v8628 = vmul.f32 %v453, %v8593
        %v8629 = vmul.f32 %v454, %v8593
        %v8630 = vmul.f32 %v455, %v8593
        %v8631 = vmul.f32 %v456, %v8593
        %v8632 = vmul.f32 %v457, %v8593
        %v8633 = vmul.f32 %v458, %v8593
        %v8634 = vmul.f32 %v459, %v8593
        %v8635 = vmul.f32 %v460, %v8593
        %v8636 = vmul.f32 %v461, %v8593
        %v8637 = vmul.f32 %v462, %v8593
        %v8638 = vmul.f32 %v463, %v8593
        %v8639 = vmul.f32 %v464, %v8593
        %v8640 = vmul.f32 %v465, %v8593
        %v8641 = vmul.f32 %v466, %v8593
        %v8690 = vrot.slane %v8594, 1
        %v8691 = vrot.slane %v8595, 1
        %v8692 = vsel %vm1580, %v8690, %v8691
        %v8693 = vrot.slane %v8596, 1
        %v8694 = vsel %vm1580, %v8691, %v8693
        %v8695 = vrot.slane %v8597, 1
        %v8696 = vrot.slane %v8598, 1
        %v8697 = vsel %vm1580, %v8695, %v8696
        %v8698 = vrot.slane %v8599, 1
        %v8699 = vsel %vm1580, %v8696, %v8698
        %v8700 = vrot.slane %v8600, 1
        %v8701 = vrot.slane %v8601, 1
        %v8702 = vsel %vm1580, %v8700, %v8701
        %v8703 = vrot.slane %v8602, 1
        %v8704 = vsel %vm1580, %v8701, %v8703
        %v8705 = vrot.slane %v8603, 1
        %v8706 = vrot.slane %v8604, 1
        %v8707 = vsel %vm1580, %v8705, %v8706
        %v8708 = vrot.slane %v8605, 1
        %v8709 = vsel %vm1580, %v8706, %v8708
        %v8710 = vrot.slane %v8606, 1
        %v8711 = vrot.slane %v8607, 1
        %v8712 = vsel %vm1580, %v8710, %v8711
        %v8713 = vrot.slane %v8608, 1
        %v8714 = vsel %vm1580, %v8711, %v8713
        %v8715 = vrot.slane %v8609, 1
        %v8716 = vrot.slane %v8610, 1
        %v8717 = vsel %vm1580, %v8715, %v8716
        %v8718 = vrot.slane %v8611, 1
        %v8719 = vsel %vm1580, %v8716, %v8718
        %v8720 = vrot.slane %v8612, 1
        %v8721 = vrot.slane %v8613, 1
        %v8722 = vsel %vm1580, %v8720, %v8721
        %v8723 = vrot.slane %v8614, 1
        %v8724 = vsel %vm1580, %v8721, %v8723
        %v8725 = vrot.slane %v8615, 1
        %v8726 = vrot.slane %v8616, 1
        %v8727 = vsel %vm1580, %v8725, %v8726
        %v8728 = vrot.slane %v8617, 1
        %v8729 = vsel %vm1580, %v8726, %v8728
        %v8730 = vrot.slane %v8618, 1
        %v8731 = vrot.slane %v8619, 1
        %v8732 = vsel %vm1580, %v8730, %v8731
        %v8733 = vrot.slane %v8620, 1
        %v8734 = vsel %vm1580, %v8731, %v8733
        %v8735 = vrot.slane %v8621, 1
        %v8736 = vrot.slane %v8622, 1
        %v8737 = vsel %vm1580, %v8735, %v8736
        %v8738 = vrot.slane %v8623, 1
        %v8739 = vsel %vm1580, %v8736, %v8738
        %v8740 = vrot.slane %v8624, 1
        %v8741 = vrot.slane %v8625, 1
        %v8742 = vsel %vm1580, %v8740, %v8741
        %v8743 = vrot.slane %v8626, 1
        %v8744 = vsel %vm1580, %v8741, %v8743
        %v8745 = vrot.slane %v8627, 1
        %v8746 = vrot.slane %v8628, 1
        %v8747 = vsel %vm1580, %v8745, %v8746
        %v8748 = vrot.slane %v8629, 1
        %v8749 = vsel %vm1580, %v8746, %v8748
        %v8750 = vrot.slane %v8630, 1
        %v8751 = vrot.slane %v8631, 1
        %v8752 = vsel %vm1580, %v8750, %v8751
        %v8753 = vrot.slane %v8632, 1
        %v8754 = vsel %vm1580, %v8751, %v8753
        %v8755 = vrot.slane %v8633, 1
        %v8756 = vrot.slane %v8634, 1
        %v8757 = vsel %vm1580, %v8755, %v8756
        %v8758 = vrot.slane %v8635, 1
        %v8759 = vsel %vm1580, %v8756, %v8758
        %v8760 = vrot.slane %v8636, 1
        %v8761 = vrot.slane %v8637, 1
        %v8762 = vsel %vm1580, %v8760, %v8761
        %v8763 = vrot.slane %v8638, 1
        %v8764 = vsel %vm1580, %v8761, %v8763
        %v8765 = vrot.slane %v8639, 1
        %v8766 = vrot.slane %v8640, 1
        %v8767 = vsel %vm1580, %v8765, %v8766
        %v8768 = vrot.slane %v8641, 1
        %v8769 = vsel %vm1580, %v8766, %v8768
        %v8818 = vadd.f32 %v8542, %v8692
        %v8819 = vadd.f32 %v8543, %v8694
        %v8820 = vadd.f32 %v8544, %v8693
        %v8821 = vadd.f32 %v8545, %v8697
        %v8822 = vadd.f32 %v8546, %v8699
        %v8823 = vadd.f32 %v8547, %v8698
        %v8824 = vadd.f32 %v8548, %v8702
        %v8825 = vadd.f32 %v8549, %v8704
        %v8826 = vadd.f32 %v8550, %v8703
        %v8827 = vadd.f32 %v8551, %v8707
        %v8828 = vadd.f32 %v8552, %v8709
        %v8829 = vadd.f32 %v8553, %v8708
        %v8830 = vadd.f32 %v8554, %v8712
        %v8831 = vadd.f32 %v8555, %v8714
        %v8832 = vadd.f32 %v8556, %v8713
        %v8833 = vadd.f32 %v8557, %v8717
        %v8834 = vadd.f32 %v8558, %v8719
        %v8835 = vadd.f32 %v8559, %v8718
        %v8836 = vadd.f32 %v8560, %v8722
        %v8837 = vadd.f32 %v8561, %v8724
        %v8838 = vadd.f32 %v8562, %v8723
        %v8839 = vadd.f32 %v8563, %v8727
        %v8840 = vadd.f32 %v8564, %v8729
        %v8841 = vadd.f32 %v8565, %v8728
        %v8842 = vadd.f32 %v8566, %v8732
        %v8843 = vadd.f32 %v8567, %v8734
        %v8844 = vadd.f32 %v8568, %v8733
        %v8845 = vadd.f32 %v8569, %v8737
        %v8846 = vadd.f32 %v8570, %v8739
        %v8847 = vadd.f32 %v8571, %v8738
        %v8848 = vadd.f32 %v8572, %v8742
        %v8849 = vadd.f32 %v8573, %v8744
        %v8850 = vadd.f32 %v8574, %v8743
        %v8851 = vadd.f32 %v8575, %v8747
        %v8852 = vadd.f32 %v8576, %v8749
        %v8853 = vadd.f32 %v8577, %v8748
        %v8854 = vadd.f32 %v8578, %v8752
        %v8855 = vadd.f32 %v8579, %v8754
        %v8856 = vadd.f32 %v8580, %v8753
        %v8857 = vadd.f32 %v8581, %v8757
        %v8858 = vadd.f32 %v8582, %v8759
        %v8859 = vadd.f32 %v8583, %v8758
        %v8860 = vadd.f32 %v8584, %v8762
        %v8861 = vadd.f32 %v8585, %v8764
        %v8862 = vadd.f32 %v8586, %v8763
        %v8863 = vadd.f32 %v8587, %v8767
        %v8864 = vadd.f32 %v8588, %v8769
        %v8865 = vadd.f32 %v8589, %v8768
        %v8866 = vlaneseq
        %v8867 = vshrl.u32 %v8866, 7
        %v8868 = vsub.s32 5, %v8867
        %v8869 = vrot.slane %v7836, %v8868
        %v8870 = vmul.f32 %v419, %v8869
        %v8871 = vmul.f32 %v420, %v8869
        %v8872 = vmul.f32 %v421, %v8869
        %v8873 = vmul.f32 %v422, %v8869
        %v8874 = vmul.f32 %v423, %v8869
        %v8875 = vmul.f32 %v424, %v8869
        %v8876 = vmul.f32 %v425, %v8869
        %v8877 = vmul.f32 %v426, %v8869
        %v8878 = vmul.f32 %v427, %v8869
        %v8879 = vmul.f32 %v428, %v8869
        %v8880 = vmul.f32 %v429, %v8869
        %v8881 = vmul.f32 %v430, %v8869
        %v8882 = vmul.f32 %v431, %v8869
        %v8883 = vmul.f32 %v432, %v8869
        %v8884 = vmul.f32 %v433, %v8869
        %v8885 = vmul.f32 %v434, %v8869
        %v8886 = vmul.f32 %v435, %v8869
        %v8887 = vmul.f32 %v436, %v8869
        %v8888 = vmul.f32 %v437, %v8869
        %v8889 = vmul.f32 %v438, %v8869
        %v8890 = vmul.f32 %v439, %v8869
        %v8891 = vmul.f32 %v440, %v8869
        %v8892 = vmul.f32 %v441, %v8869
        %v8893 = vmul.f32 %v442, %v8869
        %v8894 = vmul.f32 %v443, %v8869
        %v8895 = vmul.f32 %v444, %v8869
        %v8896 = vmul.f32 %v445, %v8869
        %v8897 = vmul.f32 %v446, %v8869
        %v8898 = vmul.f32 %v447, %v8869
        %v8899 = vmul.f32 %v448, %v8869
        %v8900 = vmul.f32 %v449, %v8869
        %v8901 = vmul.f32 %v450, %v8869
        %v8902 = vmul.f32 %v451, %v8869
        %v8903 = vmul.f32 %v452, %v8869
        %v8904 = vmul.f32 %v453, %v8869
        %v8905 = vmul.f32 %v454, %v8869
        %v8906 = vmul.f32 %v455, %v8869
        %v8907 = vmul.f32 %v456, %v8869
        %v8908 = vmul.f32 %v457, %v8869
        %v8909 = vmul.f32 %v458, %v8869
        %v8910 = vmul.f32 %v459, %v8869
        %v8911 = vmul.f32 %v460, %v8869
        %v8912 = vmul.f32 %v461, %v8869
        %v8913 = vmul.f32 %v462, %v8869
        %v8914 = vmul.f32 %v463, %v8869
        %v8915 = vmul.f32 %v464, %v8869
        %v8916 = vmul.f32 %v465, %v8869
        %v8917 = vmul.f32 %v466, %v8869
        %v8966 = vrot.slane %v8870, 2
        %v8967 = vrot.slane %v8871, 2
        %v8968 = vsel %vm1825, %v8966, %v8967
        %v8969 = vrot.slane %v8872, 2
        %v8970 = vsel %vm1825, %v8967, %v8969
        %v8971 = vrot.slane %v8873, 2
        %v8972 = vrot.slane %v8874, 2
        %v8973 = vsel %vm1825, %v8971, %v8972
        %v8974 = vrot.slane %v8875, 2
        %v8975 = vsel %vm1825, %v8972, %v8974
        %v8976 = vrot.slane %v8876, 2
        %v8977 = vrot.slane %v8877, 2
        %v8978 = vsel %vm1825, %v8976, %v8977
        %v8979 = vrot.slane %v8878, 2
        %v8980 = vsel %vm1825, %v8977, %v8979
        %v8981 = vrot.slane %v8879, 2
        %v8982 = vrot.slane %v8880, 2
        %v8983 = vsel %vm1825, %v8981, %v8982
        %v8984 = vrot.slane %v8881, 2
        %v8985 = vsel %vm1825, %v8982, %v8984
        %v8986 = vrot.slane %v8882, 2
        %v8987 = vrot.slane %v8883, 2
        %v8988 = vsel %vm1825, %v8986, %v8987
        %v8989 = vrot.slane %v8884, 2
        %v8990 = vsel %vm1825, %v8987, %v8989
        %v8991 = vrot.slane %v8885, 2
        %v8992 = vrot.slane %v8886, 2
        %v8993 = vsel %vm1825, %v8991, %v8992
        %v8994 = vrot.slane %v8887, 2
        %v8995 = vsel %vm1825, %v8992, %v8994
        %v8996 = vrot.slane %v8888, 2
        %v8997 = vrot.slane %v8889, 2
        %v8998 = vsel %vm1825, %v8996, %v8997
        %v8999 = vrot.slane %v8890, 2
        %v9000 = vsel %vm1825, %v8997, %v8999
        %v9001 = vrot.slane %v8891, 2
        %v9002 = vrot.slane %v8892, 2
        %v9003 = vsel %vm1825, %v9001, %v9002
        %v9004 = vrot.slane %v8893, 2
        %v9005 = vsel %vm1825, %v9002, %v9004
        %v9006 = vrot.slane %v8894, 2
        %v9007 = vrot.slane %v8895, 2
        %v9008 = vsel %vm1825, %v9006, %v9007
        %v9009 = vrot.slane %v8896, 2
        %v9010 = vsel %vm1825, %v9007, %v9009
        %v9011 = vrot.slane %v8897, 2
        %v9012 = vrot.slane %v8898, 2
        %v9013 = vsel %vm1825, %v9011, %v9012
        %v9014 = vrot.slane %v8899, 2
        %v9015 = vsel %vm1825, %v9012, %v9014
        %v9016 = vrot.slane %v8900, 2
        %v9017 = vrot.slane %v8901, 2
        %v9018 = vsel %vm1825, %v9016, %v9017
        %v9019 = vrot.slane %v8902, 2
        %v9020 = vsel %vm1825, %v9017, %v9019
        %v9021 = vrot.slane %v8903, 2
        %v9022 = vrot.slane %v8904, 2
        %v9023 = vsel %vm1825, %v9021, %v9022
        %v9024 = vrot.slane %v8905, 2
        %v9025 = vsel %vm1825, %v9022, %v9024
        %v9026 = vrot.slane %v8906, 2
        %v9027 = vrot.slane %v8907, 2
        %v9028 = vsel %vm1825, %v9026, %v9027
        %v9029 = vrot.slane %v8908, 2
        %v9030 = vsel %vm1825, %v9027, %v9029
        %v9031 = vrot.slane %v8909, 2
        %v9032 = vrot.slane %v8910, 2
        %v9033 = vsel %vm1825, %v9031, %v9032
        %v9034 = vrot.slane %v8911, 2
        %v9035 = vsel %vm1825, %v9032, %v9034
        %v9036 = vrot.slane %v8912, 2
        %v9037 = vrot.slane %v8913, 2
        %v9038 = vsel %vm1825, %v9036, %v9037
        %v9039 = vrot.slane %v8914, 2
        %v9040 = vsel %vm1825, %v9037, %v9039
        %v9041 = vrot.slane %v8915, 2
        %v9042 = vrot.slane %v8916, 2
        %v9043 = vsel %vm1825, %v9041, %v9042
        %v9044 = vrot.slane %v8917, 2
        %v9045 = vsel %vm1825, %v9042, %v9044
        %v9094 = vadd.f32 %v8818, %v8968
        %v9095 = vadd.f32 %v8819, %v8970
        %v9096 = vadd.f32 %v8820, %v8969
        %v9097 = vadd.f32 %v8821, %v8973
        %v9098 = vadd.f32 %v8822, %v8975
        %v9099 = vadd.f32 %v8823, %v8974
        %v9100 = vadd.f32 %v8824, %v8978
        %v9101 = vadd.f32 %v8825, %v8980
        %v9102 = vadd.f32 %v8826, %v8979
        %v9103 = vadd.f32 %v8827, %v8983
        %v9104 = vadd.f32 %v8828, %v8985
        %v9105 = vadd.f32 %v8829, %v8984
        %v9106 = vadd.f32 %v8830, %v8988
        %v9107 = vadd.f32 %v8831, %v8990
        %v9108 = vadd.f32 %v8832, %v8989
        %v9109 = vadd.f32 %v8833, %v8993
        %v9110 = vadd.f32 %v8834, %v8995
        %v9111 = vadd.f32 %v8835, %v8994
        %v9112 = vadd.f32 %v8836, %v8998
        %v9113 = vadd.f32 %v8837, %v9000
        %v9114 = vadd.f32 %v8838, %v8999
        %v9115 = vadd.f32 %v8839, %v9003
        %v9116 = vadd.f32 %v8840, %v9005
        %v9117 = vadd.f32 %v8841, %v9004
        %v9118 = vadd.f32 %v8842, %v9008
        %v9119 = vadd.f32 %v8843, %v9010
        %v9120 = vadd.f32 %v8844, %v9009
        %v9121 = vadd.f32 %v8845, %v9013
        %v9122 = vadd.f32 %v8846, %v9015
        %v9123 = vadd.f32 %v8847, %v9014
        %v9124 = vadd.f32 %v8848, %v9018
        %v9125 = vadd.f32 %v8849, %v9020
        %v9126 = vadd.f32 %v8850, %v9019
        %v9127 = vadd.f32 %v8851, %v9023
        %v9128 = vadd.f32 %v8852, %v9025
        %v9129 = vadd.f32 %v8853, %v9024
        %v9130 = vadd.f32 %v8854, %v9028
        %v9131 = vadd.f32 %v8855, %v9030
        %v9132 = vadd.f32 %v8856, %v9029
        %v9133 = vadd.f32 %v8857, %v9033
        %v9134 = vadd.f32 %v8858, %v9035
        %v9135 = vadd.f32 %v8859, %v9034
        %v9136 = vadd.f32 %v8860, %v9038
        %v9137 = vadd.f32 %v8861, %v9040
        %v9138 = vadd.f32 %v8862, %v9039
        %v9139 = vadd.f32 %v8863, %v9043
        %v9140 = vadd.f32 %v8864, %v9045
        %v9141 = vadd.f32 %v8865, %v9044
        %v9142 = vlaneseq
        %v9143 = vshrl.u32 %v9142, 7
        %v9144 = vsub.s32 6, %v9143
        %v9145 = vrot.slane %v7836, %v9144
        %v9146 = vmul.f32 %v422, %v9145
        %v9147 = vmul.f32 %v423, %v9145
        %v9148 = vmul.f32 %v424, %v9145
        %v9149 = vmul.f32 %v425, %v9145
        %v9150 = vmul.f32 %v426, %v9145
        %v9151 = vmul.f32 %v427, %v9145
        %v9152 = vmul.f32 %v428, %v9145
        %v9153 = vmul.f32 %v429, %v9145
        %v9154 = vmul.f32 %v430, %v9145
        %v9155 = vmul.f32 %v431, %v9145
        %v9156 = vmul.f32 %v432, %v9145
        %v9157 = vmul.f32 %v433, %v9145
        %v9158 = vmul.f32 %v434, %v9145
        %v9159 = vmul.f32 %v435, %v9145
        %v9160 = vmul.f32 %v436, %v9145
        %v9161 = vmul.f32 %v437, %v9145
        %v9162 = vmul.f32 %v438, %v9145
        %v9163 = vmul.f32 %v439, %v9145
        %v9164 = vmul.f32 %v440, %v9145
        %v9165 = vmul.f32 %v441, %v9145
        %v9166 = vmul.f32 %v442, %v9145
        %v9167 = vmul.f32 %v443, %v9145
        %v9168 = vmul.f32 %v444, %v9145
        %v9169 = vmul.f32 %v445, %v9145
        %v9170 = vmul.f32 %v446, %v9145
        %v9171 = vmul.f32 %v447, %v9145
        %v9172 = vmul.f32 %v448, %v9145
        %v9173 = vmul.f32 %v449, %v9145
        %v9174 = vmul.f32 %v450, %v9145
        %v9175 = vmul.f32 %v451, %v9145
        %v9176 = vmul.f32 %v452, %v9145
        %v9177 = vmul.f32 %v453, %v9145
        %v9178 = vmul.f32 %v454, %v9145
        %v9179 = vmul.f32 %v455, %v9145
        %v9180 = vmul.f32 %v456, %v9145
        %v9181 = vmul.f32 %v457, %v9145
        %v9182 = vmul.f32 %v458, %v9145
        %v9183 = vmul.f32 %v459, %v9145
        %v9184 = vmul.f32 %v460, %v9145
        %v9185 = vmul.f32 %v461, %v9145
        %v9186 = vmul.f32 %v462, %v9145
        %v9187 = vmul.f32 %v463, %v9145
        %v9188 = vmul.f32 %v464, %v9145
        %v9189 = vmul.f32 %v465, %v9145
        %v9190 = vmul.f32 %v466, %v9145
        %v9191 = vmul.f32 %v467, %v9145
        %v9192 = vmul.f32 %v468, %v9145
        %v9193 = vmul.f32 %v469, %v9145
        %v9194 = vadd.f32 %v9094, %v9146
        %v9195 = vadd.f32 %v9095, %v9147
        %v9196 = vadd.f32 %v9096, %v9148
        %v9197 = vadd.f32 %v9097, %v9149
        %v9198 = vadd.f32 %v9098, %v9150
        %v9199 = vadd.f32 %v9099, %v9151
        %v9200 = vadd.f32 %v9100, %v9152
        %v9201 = vadd.f32 %v9101, %v9153
        %v9202 = vadd.f32 %v9102, %v9154
        %v9203 = vadd.f32 %v9103, %v9155
        %v9204 = vadd.f32 %v9104, %v9156
        %v9205 = vadd.f32 %v9105, %v9157
        %v9206 = vadd.f32 %v9106, %v9158
        %v9207 = vadd.f32 %v9107, %v9159
        %v9208 = vadd.f32 %v9108, %v9160
        %v9209 = vadd.f32 %v9109, %v9161
        %v9210 = vadd.f32 %v9110, %v9162
        %v9211 = vadd.f32 %v9111, %v9163
        %v9212 = vadd.f32 %v9112, %v9164
        %v9213 = vadd.f32 %v9113, %v9165
        %v9214 = vadd.f32 %v9114, %v9166
        %v9215 = vadd.f32 %v9115, %v9167
        %v9216 = vadd.f32 %v9116, %v9168
        %v9217 = vadd.f32 %v9117, %v9169
        %v9218 = vadd.f32 %v9118, %v9170
        %v9219 = vadd.f32 %v9119, %v9171
        %v9220 = vadd.f32 %v9120, %v9172
        %v9221 = vadd.f32 %v9121, %v9173
        %v9222 = vadd.f32 %v9122, %v9174
        %v9223 = vadd.f32 %v9123, %v9175
        %v9224 = vadd.f32 %v9124, %v9176
        %v9225 = vadd.f32 %v9125, %v9177
        %v9226 = vadd.f32 %v9126, %v9178
        %v9227 = vadd.f32 %v9127, %v9179
        %v9228 = vadd.f32 %v9128, %v9180
        %v9229 = vadd.f32 %v9129, %v9181
        %v9230 = vadd.f32 %v9130, %v9182
        %v9231 = vadd.f32 %v9131, %v9183
        %v9232 = vadd.f32 %v9132, %v9184
        %v9233 = vadd.f32 %v9133, %v9185
        %v9234 = vadd.f32 %v9134, %v9186
        %v9235 = vadd.f32 %v9135, %v9187
        %v9236 = vadd.f32 %v9136, %v9188
        %v9237 = vadd.f32 %v9137, %v9189
        %v9238 = vadd.f32 %v9138, %v9190
        %v9239 = vadd.f32 %v9139, %v9191
        %v9240 = vadd.f32 %v9140, %v9192
        %v9241 = vadd.f32 %v9141, %v9193
        %v9242 = vlaneseq
        %v9243 = vshrl.u32 %v9242, 7
        %v9244 = vsub.s32 7, %v9243
        %v9245 = vrot.slane %v7836, %v9244
        %v9246 = vmul.f32 %v422, %v9245
        %v9247 = vmul.f32 %v423, %v9245
        %v9248 = vmul.f32 %v424, %v9245
        %v9249 = vmul.f32 %v425, %v9245
        %v9250 = vmul.f32 %v426, %v9245
        %v9251 = vmul.f32 %v427, %v9245
        %v9252 = vmul.f32 %v428, %v9245
        %v9253 = vmul.f32 %v429, %v9245
        %v9254 = vmul.f32 %v430, %v9245
        %v9255 = vmul.f32 %v431, %v9245
        %v9256 = vmul.f32 %v432, %v9245
        %v9257 = vmul.f32 %v433, %v9245
        %v9258 = vmul.f32 %v434, %v9245
        %v9259 = vmul.f32 %v435, %v9245
        %v9260 = vmul.f32 %v436, %v9245
        %v9261 = vmul.f32 %v437, %v9245
        %v9262 = vmul.f32 %v438, %v9245
        %v9263 = vmul.f32 %v439, %v9245
        %v9264 = vmul.f32 %v440, %v9245
        %v9265 = vmul.f32 %v441, %v9245
        %v9266 = vmul.f32 %v442, %v9245
        %v9267 = vmul.f32 %v443, %v9245
        %v9268 = vmul.f32 %v444, %v9245
        %v9269 = vmul.f32 %v445, %v9245
        %v9270 = vmul.f32 %v446, %v9245
        %v9271 = vmul.f32 %v447, %v9245
        %v9272 = vmul.f32 %v448, %v9245
        %v9273 = vmul.f32 %v449, %v9245
        %v9274 = vmul.f32 %v450, %v9245
        %v9275 = vmul.f32 %v451, %v9245
        %v9276 = vmul.f32 %v452, %v9245
        %v9277 = vmul.f32 %v453, %v9245
        %v9278 = vmul.f32 %v454, %v9245
        %v9279 = vmul.f32 %v455, %v9245
        %v9280 = vmul.f32 %v456, %v9245
        %v9281 = vmul.f32 %v457, %v9245
        %v9282 = vmul.f32 %v458, %v9245
        %v9283 = vmul.f32 %v459, %v9245
        %v9284 = vmul.f32 %v460, %v9245
        %v9285 = vmul.f32 %v461, %v9245
        %v9286 = vmul.f32 %v462, %v9245
        %v9287 = vmul.f32 %v463, %v9245
        %v9288 = vmul.f32 %v464, %v9245
        %v9289 = vmul.f32 %v465, %v9245
        %v9290 = vmul.f32 %v466, %v9245
        %v9291 = vmul.f32 %v467, %v9245
        %v9292 = vmul.f32 %v468, %v9245
        %v9293 = vmul.f32 %v469, %v9245
        %v9342 = vrot.slane %v9246, 1
        %v9343 = vrot.slane %v9247, 1
        %v9344 = vsel %vm1580, %v9342, %v9343
        %v9345 = vrot.slane %v9248, 1
        %v9346 = vsel %vm1580, %v9343, %v9345
        %v9347 = vrot.slane %v9249, 1
        %v9348 = vrot.slane %v9250, 1
        %v9349 = vsel %vm1580, %v9347, %v9348
        %v9350 = vrot.slane %v9251, 1
        %v9351 = vsel %vm1580, %v9348, %v9350
        %v9352 = vrot.slane %v9252, 1
        %v9353 = vrot.slane %v9253, 1
        %v9354 = vsel %vm1580, %v9352, %v9353
        %v9355 = vrot.slane %v9254, 1
        %v9356 = vsel %vm1580, %v9353, %v9355
        %v9357 = vrot.slane %v9255, 1
        %v9358 = vrot.slane %v9256, 1
        %v9359 = vsel %vm1580, %v9357, %v9358
        %v9360 = vrot.slane %v9257, 1
        %v9361 = vsel %vm1580, %v9358, %v9360
        %v9362 = vrot.slane %v9258, 1
        %v9363 = vrot.slane %v9259, 1
        %v9364 = vsel %vm1580, %v9362, %v9363
        %v9365 = vrot.slane %v9260, 1
        %v9366 = vsel %vm1580, %v9363, %v9365
        %v9367 = vrot.slane %v9261, 1
        %v9368 = vrot.slane %v9262, 1
        %v9369 = vsel %vm1580, %v9367, %v9368
        %v9370 = vrot.slane %v9263, 1
        %v9371 = vsel %vm1580, %v9368, %v9370
        %v9372 = vrot.slane %v9264, 1
        %v9373 = vrot.slane %v9265, 1
        %v9374 = vsel %vm1580, %v9372, %v9373
        %v9375 = vrot.slane %v9266, 1
        %v9376 = vsel %vm1580, %v9373, %v9375
        %v9377 = vrot.slane %v9267, 1
        %v9378 = vrot.slane %v9268, 1
        %v9379 = vsel %vm1580, %v9377, %v9378
        %v9380 = vrot.slane %v9269, 1
        %v9381 = vsel %vm1580, %v9378, %v9380
        %v9382 = vrot.slane %v9270, 1
        %v9383 = vrot.slane %v9271, 1
        %v9384 = vsel %vm1580, %v9382, %v9383
        %v9385 = vrot.slane %v9272, 1
        %v9386 = vsel %vm1580, %v9383, %v9385
        %v9387 = vrot.slane %v9273, 1
        %v9388 = vrot.slane %v9274, 1
        %v9389 = vsel %vm1580, %v9387, %v9388
        %v9390 = vrot.slane %v9275, 1
        %v9391 = vsel %vm1580, %v9388, %v9390
        %v9392 = vrot.slane %v9276, 1
        %v9393 = vrot.slane %v9277, 1
        %v9394 = vsel %vm1580, %v9392, %v9393
        %v9395 = vrot.slane %v9278, 1
        %v9396 = vsel %vm1580, %v9393, %v9395
        %v9397 = vrot.slane %v9279, 1
        %v9398 = vrot.slane %v9280, 1
        %v9399 = vsel %vm1580, %v9397, %v9398
        %v9400 = vrot.slane %v9281, 1
        %v9401 = vsel %vm1580, %v9398, %v9400
        %v9402 = vrot.slane %v9282, 1
        %v9403 = vrot.slane %v9283, 1
        %v9404 = vsel %vm1580, %v9402, %v9403
        %v9405 = vrot.slane %v9284, 1
        %v9406 = vsel %vm1580, %v9403, %v9405
        %v9407 = vrot.slane %v9285, 1
        %v9408 = vrot.slane %v9286, 1
        %v9409 = vsel %vm1580, %v9407, %v9408
        %v9410 = vrot.slane %v9287, 1
        %v9411 = vsel %vm1580, %v9408, %v9410
        %v9412 = vrot.slane %v9288, 1
        %v9413 = vrot.slane %v9289, 1
        %v9414 = vsel %vm1580, %v9412, %v9413
        %v9415 = vrot.slane %v9290, 1
        %v9416 = vsel %vm1580, %v9413, %v9415
        %v9417 = vrot.slane %v9291, 1
        %v9418 = vrot.slane %v9292, 1
        %v9419 = vsel %vm1580, %v9417, %v9418
        %v9420 = vrot.slane %v9293, 1
        %v9421 = vsel %vm1580, %v9418, %v9420
        %v9470 = vadd.f32 %v9194, %v9344
        %v9471 = vadd.f32 %v9195, %v9346
        %v9472 = vadd.f32 %v9196, %v9345
        %v9473 = vadd.f32 %v9197, %v9349
        %v9474 = vadd.f32 %v9198, %v9351
        %v9475 = vadd.f32 %v9199, %v9350
        %v9476 = vadd.f32 %v9200, %v9354
        %v9477 = vadd.f32 %v9201, %v9356
        %v9478 = vadd.f32 %v9202, %v9355
        %v9479 = vadd.f32 %v9203, %v9359
        %v9480 = vadd.f32 %v9204, %v9361
        %v9481 = vadd.f32 %v9205, %v9360
        %v9482 = vadd.f32 %v9206, %v9364
        %v9483 = vadd.f32 %v9207, %v9366
        %v9484 = vadd.f32 %v9208, %v9365
        %v9485 = vadd.f32 %v9209, %v9369
        %v9486 = vadd.f32 %v9210, %v9371
        %v9487 = vadd.f32 %v9211, %v9370
        %v9488 = vadd.f32 %v9212, %v9374
        %v9489 = vadd.f32 %v9213, %v9376
        %v9490 = vadd.f32 %v9214, %v9375
        %v9491 = vadd.f32 %v9215, %v9379
        %v9492 = vadd.f32 %v9216, %v9381
        %v9493 = vadd.f32 %v9217, %v9380
        %v9494 = vadd.f32 %v9218, %v9384
        %v9495 = vadd.f32 %v9219, %v9386
        %v9496 = vadd.f32 %v9220, %v9385
        %v9497 = vadd.f32 %v9221, %v9389
        %v9498 = vadd.f32 %v9222, %v9391
        %v9499 = vadd.f32 %v9223, %v9390
        %v9500 = vadd.f32 %v9224, %v9394
        %v9501 = vadd.f32 %v9225, %v9396
        %v9502 = vadd.f32 %v9226, %v9395
        %v9503 = vadd.f32 %v9227, %v9399
        %v9504 = vadd.f32 %v9228, %v9401
        %v9505 = vadd.f32 %v9229, %v9400
        %v9506 = vadd.f32 %v9230, %v9404
        %v9507 = vadd.f32 %v9231, %v9406
        %v9508 = vadd.f32 %v9232, %v9405
        %v9509 = vadd.f32 %v9233, %v9409
        %v9510 = vadd.f32 %v9234, %v9411
        %v9511 = vadd.f32 %v9235, %v9410
        %v9512 = vadd.f32 %v9236, %v9414
        %v9513 = vadd.f32 %v9237, %v9416
        %v9514 = vadd.f32 %v9238, %v9415
        %v9515 = vadd.f32 %v9239, %v9419
        %v9516 = vadd.f32 %v9240, %v9421
        %v9517 = vadd.f32 %v9241, %v9420
        %v9518 = vlaneseq
        %v9519 = vshrl.u32 %v9518, 7
        %v9520 = vsub.s32 0, %v9519
        %v9521 = vrot.slane %v7837, %v9520
        %v9522 = vmul.f32 %v422, %v9521
        %v9523 = vmul.f32 %v423, %v9521
        %v9524 = vmul.f32 %v424, %v9521
        %v9525 = vmul.f32 %v425, %v9521
        %v9526 = vmul.f32 %v426, %v9521
        %v9527 = vmul.f32 %v427, %v9521
        %v9528 = vmul.f32 %v428, %v9521
        %v9529 = vmul.f32 %v429, %v9521
        %v9530 = vmul.f32 %v430, %v9521
        %v9531 = vmul.f32 %v431, %v9521
        %v9532 = vmul.f32 %v432, %v9521
        %v9533 = vmul.f32 %v433, %v9521
        %v9534 = vmul.f32 %v434, %v9521
        %v9535 = vmul.f32 %v435, %v9521
        %v9536 = vmul.f32 %v436, %v9521
        %v9537 = vmul.f32 %v437, %v9521
        %v9538 = vmul.f32 %v438, %v9521
        %v9539 = vmul.f32 %v439, %v9521
        %v9540 = vmul.f32 %v440, %v9521
        %v9541 = vmul.f32 %v441, %v9521
        %v9542 = vmul.f32 %v442, %v9521
        %v9543 = vmul.f32 %v443, %v9521
        %v9544 = vmul.f32 %v444, %v9521
        %v9545 = vmul.f32 %v445, %v9521
        %v9546 = vmul.f32 %v446, %v9521
        %v9547 = vmul.f32 %v447, %v9521
        %v9548 = vmul.f32 %v448, %v9521
        %v9549 = vmul.f32 %v449, %v9521
        %v9550 = vmul.f32 %v450, %v9521
        %v9551 = vmul.f32 %v451, %v9521
        %v9552 = vmul.f32 %v452, %v9521
        %v9553 = vmul.f32 %v453, %v9521
        %v9554 = vmul.f32 %v454, %v9521
        %v9555 = vmul.f32 %v455, %v9521
        %v9556 = vmul.f32 %v456, %v9521
        %v9557 = vmul.f32 %v457, %v9521
        %v9558 = vmul.f32 %v458, %v9521
        %v9559 = vmul.f32 %v459, %v9521
        %v9560 = vmul.f32 %v460, %v9521
        %v9561 = vmul.f32 %v461, %v9521
        %v9562 = vmul.f32 %v462, %v9521
        %v9563 = vmul.f32 %v463, %v9521
        %v9564 = vmul.f32 %v464, %v9521
        %v9565 = vmul.f32 %v465, %v9521
        %v9566 = vmul.f32 %v466, %v9521
        %v9567 = vmul.f32 %v467, %v9521
        %v9568 = vmul.f32 %v468, %v9521
        %v9569 = vmul.f32 %v469, %v9521
        %v9618 = vrot.slane %v9522, 2
        %v9619 = vrot.slane %v9523, 2
        %v9620 = vsel %vm1825, %v9618, %v9619
        %v9621 = vrot.slane %v9524, 2
        %v9622 = vsel %vm1825, %v9619, %v9621
        %v9623 = vrot.slane %v9525, 2
        %v9624 = vrot.slane %v9526, 2
        %v9625 = vsel %vm1825, %v9623, %v9624
        %v9626 = vrot.slane %v9527, 2
        %v9627 = vsel %vm1825, %v9624, %v9626
        %v9628 = vrot.slane %v9528, 2
        %v9629 = vrot.slane %v9529, 2
        %v9630 = vsel %vm1825, %v9628, %v9629
        %v9631 = vrot.slane %v9530, 2
        %v9632 = vsel %vm1825, %v9629, %v9631
        %v9633 = vrot.slane %v9531, 2
        %v9634 = vrot.slane %v9532, 2
        %v9635 = vsel %vm1825, %v9633, %v9634
        %v9636 = vrot.slane %v9533, 2
        %v9637 = vsel %vm1825, %v9634, %v9636
        %v9638 = vrot.slane %v9534, 2
        %v9639 = vrot.slane %v9535, 2
        %v9640 = vsel %vm1825, %v9638, %v9639
        %v9641 = vrot.slane %v9536, 2
        %v9642 = vsel %vm1825, %v9639, %v9641
        %v9643 = vrot.slane %v9537, 2
        %v9644 = vrot.slane %v9538, 2
        %v9645 = vsel %vm1825, %v9643, %v9644
        %v9646 = vrot.slane %v9539, 2
        %v9647 = vsel %vm1825, %v9644, %v9646
        %v9648 = vrot.slane %v9540, 2
        %v9649 = vrot.slane %v9541, 2
        %v9650 = vsel %vm1825, %v9648, %v9649
        %v9651 = vrot.slane %v9542, 2
        %v9652 = vsel %vm1825, %v9649, %v9651
        %v9653 = vrot.slane %v9543, 2
        %v9654 = vrot.slane %v9544, 2
        %v9655 = vsel %vm1825, %v9653, %v9654
        %v9656 = vrot.slane %v9545, 2
        %v9657 = vsel %vm1825, %v9654, %v9656
        %v9658 = vrot.slane %v9546, 2
        %v9659 = vrot.slane %v9547, 2
        %v9660 = vsel %vm1825, %v9658, %v9659
        %v9661 = vrot.slane %v9548, 2
        %v9662 = vsel %vm1825, %v9659, %v9661
        %v9663 = vrot.slane %v9549, 2
        %v9664 = vrot.slane %v9550, 2
        %v9665 = vsel %vm1825, %v9663, %v9664
        %v9666 = vrot.slane %v9551, 2
        %v9667 = vsel %vm1825, %v9664, %v9666
        %v9668 = vrot.slane %v9552, 2
        %v9669 = vrot.slane %v9553, 2
        %v9670 = vsel %vm1825, %v9668, %v9669
        %v9671 = vrot.slane %v9554, 2
        %v9672 = vsel %vm1825, %v9669, %v9671
        %v9673 = vrot.slane %v9555, 2
        %v9674 = vrot.slane %v9556, 2
        %v9675 = vsel %vm1825, %v9673, %v9674
        %v9676 = vrot.slane %v9557, 2
        %v9677 = vsel %vm1825, %v9674, %v9676
        %v9678 = vrot.slane %v9558, 2
        %v9679 = vrot.slane %v9559, 2
        %v9680 = vsel %vm1825, %v9678, %v9679
        %v9681 = vrot.slane %v9560, 2
        %v9682 = vsel %vm1825, %v9679, %v9681
        %v9683 = vrot.slane %v9561, 2
        %v9684 = vrot.slane %v9562, 2
        %v9685 = vsel %vm1825, %v9683, %v9684
        %v9686 = vrot.slane %v9563, 2
        %v9687 = vsel %vm1825, %v9684, %v9686
        %v9688 = vrot.slane %v9564, 2
        %v9689 = vrot.slane %v9565, 2
        %v9690 = vsel %vm1825, %v9688, %v9689
        %v9691 = vrot.slane %v9566, 2
        %v9692 = vsel %vm1825, %v9689, %v9691
        %v9693 = vrot.slane %v9567, 2
        %v9694 = vrot.slane %v9568, 2
        %v9695 = vsel %vm1825, %v9693, %v9694
        %v9696 = vrot.slane %v9569, 2
        %v9697 = vsel %vm1825, %v9694, %v9696
        %v9746 = vadd.f32 %v9470, %v9620
        %v9747 = vadd.f32 %v9471, %v9622
        %v9748 = vadd.f32 %v9472, %v9621
        %v9749 = vadd.f32 %v9473, %v9625
        %v9750 = vadd.f32 %v9474, %v9627
        %v9751 = vadd.f32 %v9475, %v9626
        %v9752 = vadd.f32 %v9476, %v9630
        %v9753 = vadd.f32 %v9477, %v9632
        %v9754 = vadd.f32 %v9478, %v9631
        %v9755 = vadd.f32 %v9479, %v9635
        %v9756 = vadd.f32 %v9480, %v9637
        %v9757 = vadd.f32 %v9481, %v9636
        %v9758 = vadd.f32 %v9482, %v9640
        %v9759 = vadd.f32 %v9483, %v9642
        %v9760 = vadd.f32 %v9484, %v9641
        %v9761 = vadd.f32 %v9485, %v9645
        %v9762 = vadd.f32 %v9486, %v9647
        %v9763 = vadd.f32 %v9487, %v9646
        %v9764 = vadd.f32 %v9488, %v9650
        %v9765 = vadd.f32 %v9489, %v9652
        %v9766 = vadd.f32 %v9490, %v9651
        %v9767 = vadd.f32 %v9491, %v9655
        %v9768 = vadd.f32 %v9492, %v9657
        %v9769 = vadd.f32 %v9493, %v9656
        %v9770 = vadd.f32 %v9494, %v9660
        %v9771 = vadd.f32 %v9495, %v9662
        %v9772 = vadd.f32 %v9496, %v9661
        %v9773 = vadd.f32 %v9497, %v9665
        %v9774 = vadd.f32 %v9498, %v9667
        %v9775 = vadd.f32 %v9499, %v9666
        %v9776 = vadd.f32 %v9500, %v9670
        %v9777 = vadd.f32 %v9501, %v9672
        %v9778 = vadd.f32 %v9502, %v9671
        %v9779 = vadd.f32 %v9503, %v9675
        %v9780 = vadd.f32 %v9504, %v9677
        %v9781 = vadd.f32 %v9505, %v9676
        %v9782 = vadd.f32 %v9506, %v9680
        %v9783 = vadd.f32 %v9507, %v9682
        %v9784 = vadd.f32 %v9508, %v9681
        %v9785 = vadd.f32 %v9509, %v9685
        %v9786 = vadd.f32 %v9510, %v9687
        %v9787 = vadd.f32 %v9511, %v9686
        %v9788 = vadd.f32 %v9512, %v9690
        %v9789 = vadd.f32 %v9513, %v9692
        %v9790 = vadd.f32 %v9514, %v9691
        %v9791 = vadd.f32 %v9515, %v9695
        %v9792 = vadd.f32 %v9516, %v9697
        %v9793 = vadd.f32 %v9517, %v9696
        %v9794 = vld [vmem:[%s9] sm:$0x1]
        %v9796 = vlaneseq
        %v9797 = vshrl.u32 %v9796, 7
        %v9798 = vsub.s32 0, %v9797
        %v9799 = vrot.slane %v9794, %v9798
        %v9801 = vadd.f32 %v9746, %v9799
        %v9802 = vadd.f32 %v9747, %v9799
        %v9803 = vadd.f32 %v9748, %v9799
        %v9804 = vadd.f32 %v9749, %v9799
        %v9805 = vadd.f32 %v9750, %v9799
        %v9806 = vadd.f32 %v9751, %v9799
        %v9807 = vadd.f32 %v9752, %v9799
        %v9808 = vadd.f32 %v9753, %v9799
        %v9809 = vadd.f32 %v9754, %v9799
        %v9810 = vadd.f32 %v9755, %v9799
        %v9811 = vadd.f32 %v9756, %v9799
        %v9812 = vadd.f32 %v9757, %v9799
        %v9813 = vadd.f32 %v9758, %v9799
        %v9814 = vadd.f32 %v9759, %v9799
        %v9815 = vadd.f32 %v9760, %v9799
        %v9816 = vadd.f32 %v9761, %v9799
        %v9817 = vadd.f32 %v9762, %v9799
        %v9818 = vadd.f32 %v9763, %v9799
        %v9819 = vadd.f32 %v9764, %v9799
        %v9820 = vadd.f32 %v9765, %v9799
        %v9821 = vadd.f32 %v9766, %v9799
        %v9822 = vadd.f32 %v9767, %v9799
        %v9823 = vadd.f32 %v9768, %v9799
        %v9824 = vadd.f32 %v9769, %v9799
        %v9825 = vadd.f32 %v9770, %v9799
        %v9826 = vadd.f32 %v9771, %v9799
        %v9827 = vadd.f32 %v9772, %v9799
        %v9828 = vadd.f32 %v9773, %v9799
        %v9829 = vadd.f32 %v9774, %v9799
        %v9830 = vadd.f32 %v9775, %v9799
        %v9831 = vadd.f32 %v9776, %v9799
        %v9832 = vadd.f32 %v9777, %v9799
        %v9833 = vadd.f32 %v9778, %v9799
        %v9834 = vadd.f32 %v9779, %v9799
        %v9835 = vadd.f32 %v9780, %v9799
        %v9836 = vadd.f32 %v9781, %v9799
        %v9837 = vadd.f32 %v9782, %v9799
        %v9838 = vadd.f32 %v9783, %v9799
        %v9839 = vadd.f32 %v9784, %v9799
        %v9840 = vadd.f32 %v9785, %v9799
        %v9841 = vadd.f32 %v9786, %v9799
        %v9842 = vadd.f32 %v9787, %v9799
        %v9843 = vadd.f32 %v9788, %v9799
        %v9844 = vadd.f32 %v9789, %v9799
        %v9845 = vadd.f32 %v9790, %v9799
        %v9846 = vadd.f32 %v9791, %v9799
        %v9847 = vadd.f32 %v9792, %v9799
        %v9848 = vadd.f32 %v9793, %v9799
        %v9897 = vrot.slane %v9801, 1
        %v9898 = vrot.slane %v9802, 1
        %v9899 = vsel %vm1580, %v9897, %v9898
        %v9900 = vrot.slane %v9803, 1
        %v9901 = vsel %vm1580, %v9898, %v9900
        %v9902 = vrot.slane %v9804, 1
        %v9903 = vrot.slane %v9805, 1
        %v9904 = vsel %vm1580, %v9902, %v9903
        %v9905 = vrot.slane %v9806, 1
        %v9906 = vsel %vm1580, %v9903, %v9905
        %v9907 = vrot.slane %v9807, 1
        %v9908 = vrot.slane %v9808, 1
        %v9909 = vsel %vm1580, %v9907, %v9908
        %v9910 = vrot.slane %v9809, 1
        %v9911 = vsel %vm1580, %v9908, %v9910
        %v9912 = vrot.slane %v9810, 1
        %v9913 = vrot.slane %v9811, 1
        %v9914 = vsel %vm1580, %v9912, %v9913
        %v9915 = vrot.slane %v9812, 1
        %v9916 = vsel %vm1580, %v9913, %v9915
        %v9917 = vrot.slane %v9813, 1
        %v9918 = vrot.slane %v9814, 1
        %v9919 = vsel %vm1580, %v9917, %v9918
        %v9920 = vrot.slane %v9815, 1
        %v9921 = vsel %vm1580, %v9918, %v9920
        %v9922 = vrot.slane %v9816, 1
        %v9923 = vrot.slane %v9817, 1
        %v9924 = vsel %vm1580, %v9922, %v9923
        %v9925 = vrot.slane %v9818, 1
        %v9926 = vsel %vm1580, %v9923, %v9925
        %v9927 = vrot.slane %v9819, 1
        %v9928 = vrot.slane %v9820, 1
        %v9929 = vsel %vm1580, %v9927, %v9928
        %v9930 = vrot.slane %v9821, 1
        %v9931 = vsel %vm1580, %v9928, %v9930
        %v9932 = vrot.slane %v9822, 1
        %v9933 = vrot.slane %v9823, 1
        %v9934 = vsel %vm1580, %v9932, %v9933
        %v9935 = vrot.slane %v9824, 1
        %v9936 = vsel %vm1580, %v9933, %v9935
        %v9937 = vrot.slane %v9825, 1
        %v9938 = vrot.slane %v9826, 1
        %v9939 = vsel %vm1580, %v9937, %v9938
        %v9940 = vrot.slane %v9827, 1
        %v9941 = vsel %vm1580, %v9938, %v9940
        %v9942 = vrot.slane %v9828, 1
        %v9943 = vrot.slane %v9829, 1
        %v9944 = vsel %vm1580, %v9942, %v9943
        %v9945 = vrot.slane %v9830, 1
        %v9946 = vsel %vm1580, %v9943, %v9945
        %v9947 = vrot.slane %v9831, 1
        %v9948 = vrot.slane %v9832, 1
        %v9949 = vsel %vm1580, %v9947, %v9948
        %v9950 = vrot.slane %v9833, 1
        %v9951 = vsel %vm1580, %v9948, %v9950
        %v9952 = vrot.slane %v9834, 1
        %v9953 = vrot.slane %v9835, 1
        %v9954 = vsel %vm1580, %v9952, %v9953
        %v9955 = vrot.slane %v9836, 1
        %v9956 = vsel %vm1580, %v9953, %v9955
        %v9957 = vrot.slane %v9837, 1
        %v9958 = vrot.slane %v9838, 1
        %v9959 = vsel %vm1580, %v9957, %v9958
        %v9960 = vrot.slane %v9839, 1
        %v9961 = vsel %vm1580, %v9958, %v9960
        %v9962 = vrot.slane %v9840, 1
        %v9963 = vrot.slane %v9841, 1
        %v9964 = vsel %vm1580, %v9962, %v9963
        %v9965 = vrot.slane %v9842, 1
        %v9966 = vsel %vm1580, %v9963, %v9965
        %v9967 = vrot.slane %v9843, 1
        %v9968 = vrot.slane %v9844, 1
        %v9969 = vsel %vm1580, %v9967, %v9968
        %v9970 = vrot.slane %v9845, 1
        %v9971 = vsel %vm1580, %v9968, %v9970
        %v9972 = vrot.slane %v9846, 1
        %v9973 = vrot.slane %v9847, 1
        %v9974 = vsel %vm1580, %v9972, %v9973
        %v9975 = vrot.slane %v9848, 1
        %v9976 = vsel %vm1580, %v9973, %v9975
        %v10009 = vpack.c.bf16 %v9901, %v9899
        %v10010 = vpack.c.bf16 %v9906, %v9904
        %v10011 = vpack.c.bf16 %v9911, %v9909
        %v10012 = vpack.c.bf16 %v9916, %v9914
        %v10013 = vpack.c.bf16 %v9921, %v9919
        %v10014 = vpack.c.bf16 %v9926, %v9924
        %v10015 = vpack.c.bf16 %v9931, %v9929
        %v10016 = vpack.c.bf16 %v9936, %v9934
        %v10017 = vpack.c.bf16 %v9941, %v9939
        %v10018 = vpack.c.bf16 %v9946, %v9944
        %v10019 = vpack.c.bf16 %v9951, %v9949
        %v10020 = vpack.c.bf16 %v9956, %v9954
        %v10021 = vpack.c.bf16 %v9961, %v9959
        %v10022 = vpack.c.bf16 %v9966, %v9964
        %v10023 = vpack.c.bf16 %v9971, %v9969
        %v10024 = vpack.c.bf16 %v9976, %v9974
        %v10025 = vld [vmem:[%s10] sm:$0xf]
        %v10026 = vld [vmem:[%s10 + $0x4] sm:$0xf]
        %v10027 = vld [vmem:[%s10 + $0x8] sm:$0xf]
        %v10028 = vld [vmem:[%s10 + $0xc] sm:$0xf]
        %v10029 = vld [vmem:[%s10 + $0x10] sm:$0xf]
        %v10030 = vld [vmem:[%s10 + $0x14] sm:$0xf]
        %v10031 = vld [vmem:[%s10 + $0x18] sm:$0xf]
        %v10032 = vld [vmem:[%s10 + $0x1c] sm:$0xf]
        %v10033 = vld [vmem:[%s11] sm:$0x1]
        %v10035 = vlaneseq
        %v10036 = vshrl.u32 %v10035, 7
        %v10037 = vsub.s32 0, %v10036
        %v10038 = vrot.slane %v10033, %v10037
        %v10048 = vunpack.c.l.b16 %v10025
        %v10049 = vunpack.c.l.b16 %v10026
        %v10050 = vunpack.c.l.b16 %v10027
        %v10051 = vunpack.c.l.b16 %v10028
        %v10052 = vunpack.c.l.b16 %v10029
        %v10053 = vunpack.c.l.b16 %v10030
        %v10054 = vunpack.c.l.b16 %v10031
        %v10055 = vunpack.c.l.b16 %v10032
        %v10056 = vpack.c.b16 %v10049, %v10048
        %v10057 = vpack.c.b16 %v10051, %v10050
        %v10058 = vpack.c.b16 %v10053, %v10052
        %v10059 = vpack.c.b16 %v10055, %v10054
        %v10065 = vsel %vm542, %v10009, 0
        %v10068 = vsel %vm542, %v10010, 0
        %v10071 = vsel %vm542, %v10011, 0
        %v10074 = vsel %vm542, %v10012, 0
        %v10077 = vsel %vm542, %v10013, 0
        %v10080 = vsel %vm542, %v10014, 0
        %v10083 = vsel %vm542, %v10015, 0
        %v10086 = vsel %vm542, %v10016, 0
        %v10089 = vsel %vm542, %v10017, 0
        %v10092 = vsel %vm542, %v10018, 0
        %v10095 = vsel %vm542, %v10019, 0
        %v10098 = vsel %vm542, %v10020, 0
        %v10101 = vsel %vm542, %v10021, 0
        %v10104 = vsel %vm542, %v10022, 0
        %v10107 = vsel %vm542, %v10023, 0
        %v10110 = vsel %vm542, %v10024, 0
        %10112 = vmatprep.subr.bf16.mxu0 0
        %10113 = vmatpush1.bf16.msra.mxu0 %v10056
        %10114 = vmatprep.subr.bf16.mxu0 0
        %10115 = vmatpush1.bf16.msra.mxu0 %v10057
        %10116 = vmatprep.subr.bf16.mxu0 0
        %10117 = vmatpush1.bf16.msra.mxu0 %v10058
        %10118 = vmatprep.subr.bf16.mxu0 0
        %10119 = vmatpush1.bf16.msra.mxu0 %v10059
        %10120 = vmatprep.subr.bf16.mxu0 0
        %10121 = vmatpush1.bf16.msra.mxu0 0
        %10122 = vmatprep.subr.bf16.mxu0 0
        %10123 = vmatpush1.bf16.msra.mxu0 0
        %10124 = vmatprep.subr.bf16.mxu0 0
        %10125 = vmatpush1.bf16.msra.mxu0 0
        %10126 = vmatprep.subr.bf16.mxu0 0
        %10127 = vmatpush1.bf16.msra.mxu0 0
        %10128 = vmatprep.subr.bf16.mxu0 0
        %10129 = vmatpush1.bf16.msra.mxu0 0
        %10130 = vmatprep.subr.bf16.mxu0 0
        %10131 = vmatpush1.bf16.msra.mxu0 0
        %10132 = vmatprep.subr.bf16.mxu0 0
        %10133 = vmatpush1.bf16.msra.mxu0 0
        %10134 = vmatprep.subr.bf16.mxu0 0
        %10135 = vmatpush1.bf16.msra.mxu0 0
        %10136 = vmatprep.subr.bf16.mxu0 0
        %10137 = vmatpush1.bf16.msra.mxu0 0
        %10138 = vmatprep.subr.bf16.mxu0 0
        %10139 = vmatpush1.bf16.msra.mxu0 0
        %10140 = vmatprep.subr.bf16.mxu0 0
        %10141 = vmatpush1.bf16.msra.mxu0 0
        %10142 = vmatprep.subr.bf16.mxu0 0
        %10143 = vmatpush1.bf16.msra.mxu0 0
        %10144 = vmatprep.mubr.bf16.mxu0 0
        %10145 = vmatmul.mubr.bf16.gmra.mrb[0].mxu0 %v10065
        %v10146 = vpop.f32.mrb[0].mxu0
        %v10147 = vadd.f32 %v10038, %v10146
        %v10148 = vpop.f32.mrb[0].mxu0
        %v10149 = vpop.f32.mrb[0].mxu0
        %v10150 = vadd.f32 %v10038, %v10149
        %v10151 = vpop.f32.mrb[0].mxu0
        %10152 = vmatprep.mubr.bf16.mxu0 0
        %10153 = vmatmul.mubr.bf16.gmra.mrb[0].mxu0 %v10068
        %v10154 = vpop.f32.mrb[0].mxu0
        %v10155 = vadd.f32 %v10038, %v10154
        %v10156 = vpop.f32.mrb[0].mxu0
        %v10157 = vpop.f32.mrb[0].mxu0
        %v10158 = vadd.f32 %v10038, %v10157
        %v10159 = vpop.f32.mrb[0].mxu0
        %10160 = vmatprep.mubr.bf16.mxu0 0
        %10161 = vmatmul.mubr.bf16.gmra.mrb[0].mxu0 %v10071
        %v10162 = vpop.f32.mrb[0].mxu0
        %v10163 = vadd.f32 %v10038, %v10162
        %v10164 = vpop.f32.mrb[0].mxu0
        %v10165 = vpop.f32.mrb[0].mxu0
        %v10166 = vadd.f32 %v10038, %v10165
        %v10167 = vpop.f32.mrb[0].mxu0
        %10168 = vmatprep.mubr.bf16.mxu0 0
        %10169 = vmatmul.mubr.bf16.gmra.mrb[0].mxu0 %v10074
        %v10170 = vpop.f32.mrb[0].mxu0
        %v10171 = vadd.f32 %v10038, %v10170
        %v10172 = vpop.f32.mrb[0].mxu0
        %v10173 = vpop.f32.mrb[0].mxu0
        %v10174 = vadd.f32 %v10038, %v10173
        %v10175 = vpop.f32.mrb[0].mxu0
        %10176 = vmatprep.mubr.bf16.mxu0 0
        %10177 = vmatmul.mubr.bf16.gmra.mrb[0].mxu0 %v10077
        %v10178 = vpop.f32.mrb[0].mxu0
        %v10179 = vadd.f32 %v10038, %v10178
        %v10180 = vpop.f32.mrb[0].mxu0
        %v10181 = vpop.f32.mrb[0].mxu0
        %v10182 = vadd.f32 %v10038, %v10181
        %v10183 = vpop.f32.mrb[0].mxu0
        %10184 = vmatprep.mubr.bf16.mxu0 0
        %10185 = vmatmul.mubr.bf16.gmra.mrb[0].mxu0 %v10080
        %v10186 = vpop.f32.mrb[0].mxu0
        %v10187 = vadd.f32 %v10038, %v10186
        %v10188 = vpop.f32.mrb[0].mxu0
        %v10189 = vpop.f32.mrb[0].mxu0
        %v10190 = vadd.f32 %v10038, %v10189
        %v10191 = vpop.f32.mrb[0].mxu0
        %10192 = vmatprep.mubr.bf16.mxu0 0
        %10193 = vmatmul.mubr.bf16.gmra.mrb[0].mxu0 %v10083
        %v10194 = vpop.f32.mrb[0].mxu0
        %v10195 = vadd.f32 %v10038, %v10194
        %v10196 = vpop.f32.mrb[0].mxu0
        %v10197 = vpop.f32.mrb[0].mxu0
        %v10198 = vadd.f32 %v10038, %v10197
        %v10199 = vpop.f32.mrb[0].mxu0
        %10200 = vmatprep.mubr.bf16.mxu0 0
        %10201 = vmatmul.mubr.bf16.gmra.mrb[0].mxu0 %v10086
        %v10202 = vpop.f32.mrb[0].mxu0
        %v10203 = vadd.f32 %v10038, %v10202
        %v10204 = vpop.f32.mrb[0].mxu0
        %v10205 = vpop.f32.mrb[0].mxu0
        %v10206 = vadd.f32 %v10038, %v10205
        %v10207 = vpop.f32.mrb[0].mxu0
        %10208 = vmatprep.mubr.bf16.mxu0 0
        %10209 = vmatmul.mubr.bf16.gmra.mrb[0].mxu0 %v10089
        %v10210 = vpop.f32.mrb[0].mxu0
        %v10211 = vadd.f32 %v10038, %v10210
        %v10212 = vpop.f32.mrb[0].mxu0
        %v10213 = vpop.f32.mrb[0].mxu0
        %v10214 = vadd.f32 %v10038, %v10213
        %v10215 = vpop.f32.mrb[0].mxu0
        %10216 = vmatprep.mubr.bf16.mxu0 0
        %10217 = vmatmul.mubr.bf16.gmra.mrb[0].mxu0 %v10092
        %v10218 = vpop.f32.mrb[0].mxu0
        %v10219 = vadd.f32 %v10038, %v10218
        %v10220 = vpop.f32.mrb[0].mxu0
        %v10221 = vpop.f32.mrb[0].mxu0
        %v10222 = vadd.f32 %v10038, %v10221
        %v10223 = vpop.f32.mrb[0].mxu0
        %10224 = vmatprep.mubr.bf16.mxu0 0
        %10225 = vmatmul.mubr.bf16.gmra.mrb[0].mxu0 %v10095
        %v10226 = vpop.f32.mrb[0].mxu0
        %v10227 = vadd.f32 %v10038, %v10226
        %v10228 = vpop.f32.mrb[0].mxu0
        %v10229 = vpop.f32.mrb[0].mxu0
        %v10230 = vadd.f32 %v10038, %v10229
        %v10231 = vpop.f32.mrb[0].mxu0
        %10232 = vmatprep.mubr.bf16.mxu0 0
        %10233 = vmatmul.mubr.bf16.gmra.mrb[0].mxu0 %v10098
        %v10234 = vpop.f32.mrb[0].mxu0
        %v10235 = vadd.f32 %v10038, %v10234
        %v10236 = vpop.f32.mrb[0].mxu0
        %v10237 = vpop.f32.mrb[0].mxu0
        %v10238 = vadd.f32 %v10038, %v10237
        %v10239 = vpop.f32.mrb[0].mxu0
        %10240 = vmatprep.mubr.bf16.mxu0 0
        %10241 = vmatmul.mubr.bf16.gmra.mrb[0].mxu0 %v10101
        %v10242 = vpop.f32.mrb[0].mxu0
        %v10243 = vadd.f32 %v10038, %v10242
        %v10244 = vpop.f32.mrb[0].mxu0
        %v10245 = vpop.f32.mrb[0].mxu0
        %v10246 = vadd.f32 %v10038, %v10245
        %v10247 = vpop.f32.mrb[0].mxu0
        %10248 = vmatprep.mubr.bf16.mxu0 0
        %10249 = vmatmul.mubr.bf16.gmra.mrb[0].mxu0 %v10104
        %v10250 = vpop.f32.mrb[0].mxu0
        %v10251 = vadd.f32 %v10038, %v10250
        %v10252 = vpop.f32.mrb[0].mxu0
        %v10253 = vpop.f32.mrb[0].mxu0
        %v10254 = vadd.f32 %v10038, %v10253
        %v10255 = vpop.f32.mrb[0].mxu0
        %10256 = vmatprep.mubr.bf16.mxu0 0
        %10257 = vmatmul.mubr.bf16.gmra.mrb[0].mxu0 %v10107
        %v10258 = vpop.f32.mrb[0].mxu0
        %v10259 = vadd.f32 %v10038, %v10258
        %v10260 = vpop.f32.mrb[0].mxu0
        %v10261 = vpop.f32.mrb[0].mxu0
        %v10262 = vadd.f32 %v10038, %v10261
        %v10263 = vpop.f32.mrb[0].mxu0
        %10264 = vmatprep.mubr.bf16.mxu0 0
        %10265 = vmatmul.mubr.bf16.gmra.mrb[0].mxu0 %v10110
        %v10266 = vpop.f32.mrb[0].mxu0
        %v10267 = vadd.f32 %v10038, %v10266
        %v10268 = vpop.f32.mrb[0].mxu0
        %v10269 = vpop.f32.mrb[0].mxu0
        %v10270 = vadd.f32 %v10038, %v10269
        %v10271 = vpop.f32.mrb[0].mxu0
        %10272 = vdwg.mxu0
        %v10273 = vadd.f32 %v7804, %v10147
        %v10274 = vadd.f32 %v7805, %v10150
        %v10275 = vadd.f32 %v7806, %v10155
        %v10276 = vadd.f32 %v7807, %v10158
        %v10277 = vadd.f32 %v7808, %v10163
        %v10278 = vadd.f32 %v7809, %v10166
        %v10279 = vadd.f32 %v7810, %v10171
        %v10280 = vadd.f32 %v7811, %v10174
        %v10281 = vadd.f32 %v7812, %v10179
        %v10282 = vadd.f32 %v7813, %v10182
        %v10283 = vadd.f32 %v7814, %v10187
        %v10284 = vadd.f32 %v7815, %v10190
        %v10285 = vadd.f32 %v7816, %v10195
        %v10286 = vadd.f32 %v7817, %v10198
        %v10287 = vadd.f32 %v7818, %v10203
        %v10288 = vadd.f32 %v7819, %v10206
        %v10289 = vadd.f32 %v7820, %v10211
        %v10290 = vadd.f32 %v7821, %v10214
        %v10291 = vadd.f32 %v7822, %v10219
        %v10292 = vadd.f32 %v7823, %v10222
        %v10293 = vadd.f32 %v7824, %v10227
        %v10294 = vadd.f32 %v7825, %v10230
        %v10295 = vadd.f32 %v7826, %v10235
        %v10296 = vadd.f32 %v7827, %v10238
        %v10297 = vadd.f32 %v7828, %v10243
        %v10298 = vadd.f32 %v7829, %v10246
        %v10299 = vadd.f32 %v7830, %v10251
        %v10300 = vadd.f32 %v7831, %v10254
        %v10301 = vadd.f32 %v7832, %v10259
        %v10302 = vadd.f32 %v7833, %v10262
        %v10303 = vadd.f32 %v7834, %v10267
        %v10304 = vadd.f32 %v7835, %v10270
        %10305 = vst [vmem:[%s406] sm:$0xff] %v10273
        %10306 = vst [vmem:[%s406 + $0x8] sm:$0xff] %v10274
        %10307 = vst [vmem:[%s406 + $0x10] sm:$0xff] %v10275
        %10308 = vst [vmem:[%s406 + $0x18] sm:$0xff] %v10276
        %10309 = vst [vmem:[%s406 + $0x20] sm:$0xff] %v10277
        %10310 = vst [vmem:[%s406 + $0x28] sm:$0xff] %v10278
        %10311 = vst [vmem:[%s406 + $0x30] sm:$0xff] %v10279
        %10312 = vst [vmem:[%s406 + $0x38] sm:$0xff] %v10280
        %10313 = vst [vmem:[%s406 + $0x40] sm:$0xff] %v10281
        %10314 = vst [vmem:[%s406 + $0x48] sm:$0xff] %v10282
        %10315 = vst [vmem:[%s406 + $0x50] sm:$0xff] %v10283
        %10316 = vst [vmem:[%s406 + $0x58] sm:$0xff] %v10284
        %10317 = vst [vmem:[%s406 + $0x60] sm:$0xff] %v10285
        %10318 = vst [vmem:[%s406 + $0x68] sm:$0xff] %v10286
        %10319 = vst [vmem:[%s406 + $0x70] sm:$0xff] %v10287
        %10320 = vst [vmem:[%s406 + $0x78] sm:$0xff] %v10288
        %10321 = vst [vmem:[%s406 + $0x80] sm:$0xff] %v10289
        %10322 = vst [vmem:[%s406 + $0x88] sm:$0xff] %v10290
        %10323 = vst [vmem:[%s406 + $0x90] sm:$0xff] %v10291
        %10324 = vst [vmem:[%s406 + $0x98] sm:$0xff] %v10292
        %10325 = vst [vmem:[%s406 + $0xa0] sm:$0xff] %v10293
        %10326 = vst [vmem:[%s406 + $0xa8] sm:$0xff] %v10294
        %10327 = vst [vmem:[%s406 + $0xb0] sm:$0xff] %v10295
        %10328 = vst [vmem:[%s406 + $0xb8] sm:$0xff] %v10296
        %10329 = vst [vmem:[%s406 + $0xc0] sm:$0xff] %v10297
        %10330 = vst [vmem:[%s406 + $0xc8] sm:$0xff] %v10298
        %10331 = vst [vmem:[%s406 + $0xd0] sm:$0xff] %v10299
        %10332 = vst [vmem:[%s406 + $0xd8] sm:$0xff] %v10300
        %10333 = vst [vmem:[%s406 + $0xe0] sm:$0xff] %v10301
        %10334 = vst [vmem:[%s406 + $0xe8] sm:$0xff] %v10302
        %10335 = vst [vmem:[%s406 + $0xf0] sm:$0xff] %v10303
        %10336 = vst [vmem:[%s406 + $0xf8] sm:$0xff] %v10304
        %s10337 = sand.u32 %s291, 1
        %s10338 = scalar_lea.sflag [#allocation3], %s10337
        %s10339 = sand.u32 %s291, 1
        %s10340 = smul.addr %s10339, 256
        %s10341 = scalar_lea.vmem [#allocation2], %s10340
        // Predicated region
        $region69: #{_lambda_.1} parent=67 // pred_check
          %p10342 = pneg %p301
        $region70: #{_lambda_.1} parent=67 // pred_check_branch
          %10344 = sbr.rel (%p10342) target = $region72
        $region71: #{_lambda_.1} parent=67 // pred_region
          %s10346 = ssub.s32 4096, 4096
          %10347 = vsyncadd %s10338, %s10346
          %s10348 = smul.addr %s26, 32
          %s10349 = smul.addr %s10348, 128
          %s10350 = scalar_lea.hbm %s12, %s10349
          %s10351 = sshll.u32 %s10341, 4
          %s10352 = int_to_ptr.vmem [resolvable:$true] %s10351
          %10357 = dma.vmem_to_hbm [thread:$0]  %s10352, 4096, %s10350, %s10338, 128, 128, 8
        $region72: #{_lambda_.1} parent=67 // pred_fallthru
          _
      $region68: #{_lambda_.1} parent=5 // pred_fallthru
        _
      %p10358 = scmp.le.s32.totalorder 2, %s21
      // Predicated region
      $region73: #{_lambda_.1} parent=5 // pred_check
        %p10359 = pneg %p10358
      $region74: #{_lambda_.1} parent=5 // pred_check_branch
        %10361 = sbr.rel (%p10359) target = $region76
      $region75: #{_lambda_.1} parent=5 // pred_region
        %s10362 = ssub.s32 %s21, 2
        // Predicated region
        $region77: #{_lambda_.1} parent=75 // pred_check
          %p10363 = pneg %p307
        $region78: #{_lambda_.1} parent=75 // pred_check_branch
          %10365 = sbr.rel (%p10363) target = $region80
        $region79: #{_lambda_.1} parent=75 // pred_region
          %s10366 = sand.u32 %s292, 1
          %s10367 = scalar_lea.sflag [#allocation3], %s10366
          %s10368 = sand.u32 %s292, 1
          %s10369 = smul.addr %s10368, 256
          %s10370 = scalar_lea.vmem [#allocation2], %s10369
          %10371 = dma.done %s10367, 4096
        $region80: #{_lambda_.1} parent=75 // pred_fallthru
          _
      $region76: #{_lambda_.1} parent=5 // pred_fallthru
        _
    $region6: #{_lambda_.1} parent=1 // loop_footer
      %s25 = sadd.s32 1, %s21
    $region7: #{_lambda_.1} parent=1 // loop_footer_branch
      %20 = sbr.rel target = $region3
    $region8: #{_lambda_.1} parent=1 // loop_exit
      _
    %10372 = vsyncpa [#allocation3], 1
    %s10373 = scalar_lea.sflag [#allocation3], 1
    %10374 = vsyncpa %s10373, 1

</llo_original>
